<compile_context>
chip_gen: v7x
topology: tpu7x:2x2x1
jax: 0.10.0
libtpu: 0.0.40
codegen_flags: <defaults>
</compile_context>

<pallas_src>
import functools

import jax
import jax.numpy as jnp
from jax.experimental import pallas as pl
from jax.experimental.pallas import tpu as pltpu


def _softmax_lastdim(x):
    m = jnp.max(x, axis=-1, keepdims=True)
    e = jnp.exp(x - m)
    return e * pl.reciprocal(jnp.sum(e, axis=-1, keepdims=True), approx=True)


def da_kernel(e_ref, w_ref, wfg1_ref, b_ref, wfin_ref, bfin_ref, out_ref,
              *, S1, S2, bt):
    """One batch block. e_ref is (bt*(S1+S2), E): sent1 rows then sent2 rows
    per example, examples stacked along the row axis."""
    St = S1 + S2
    M, E = e_ref.shape
    H = w_ref.shape[1]
    cdt = e_ref.dtype                         # MXU input dtype (bfloat16)

    # --- static views into the packed weight / bias stacks (cheap) ---
    win = w_ref[0:E, :]
    wf2 = w_ref[E:E + H, :]
    wg1b = w_ref[E + H:E + 2 * H, :]          # Wg1 rows acting on the attended half
    wg2 = w_ref[E + 2 * H:E + 3 * H, :]
    wh1 = w_ref[E + 3 * H:E + 5 * H, :]       # full (2H, H) -> single K=2H matmul
    wh2 = w_ref[E + 5 * H:E + 6 * H, :]

    bf1 = b_ref[0:1, :]
    bf2 = b_ref[1:2, :]
    bg1 = b_ref[2:3, :]
    bg2 = b_ref[3:4, :]
    bh1 = b_ref[4:5, :]
    bh2 = b_ref[5:6, :]

    # --- shared input_linear on the fused (sent1 ++ sent2) rows ---
    s_all = jnp.dot(e_ref[...], win, preferred_element_type=jnp.float32)   # (M, H) f32
    s_bf = s_all.astype(cdt)                  # single downcast, reused everywhere

    # --- N-fused [Wf1 | Wg1_embed]: one MXU pass, two results ---
    fg = jnp.dot(s_bf, wfg1_ref[...], preferred_element_type=jnp.float32)  # (M, 2H)
    h = jnp.maximum(fg[:, :H] + bf1, 0.0)                                  # mlp_f hidden
    sg1a = fg[:, H:]                          # s_all @ Wg1_embed (bias added later)

    f_all = jnp.maximum(
        jnp.dot(h.astype(cdt), wf2, preferred_element_type=jnp.float32) + bf2,
        0.0)                                                               # (M, H) f32

    # --- attention: one fused (St x St) score per example, masked softmax ---
    f3 = f_all.astype(cdt).reshape(bt, St, H)
    s3 = s_bf.reshape(bt, St, H)

    dn_ss = (((2,), (2,)), ((0,), (0,)))      # contract H, batch over examples
    score = jax.lax.dot_general(f3, f3, dn_ss,
                                preferred_element_type=jnp.float32)        # (bt,St,St)
    # Mask same-sentence blocks: row i<S1 attends only to cols >=S1 (== prob1),
    # row i>=S1 attends only to cols <S1 (== prob2). One softmax covers both.
    ri = jax.lax.broadcasted_iota(jnp.int32, (St, St), 0)
    ci = jax.lax.broadcasted_iota(jnp.int32, (St, St), 1)
    same_sent = (ri < S1) == (ci < S1)
    score = score + jnp.where(same_sent, -1e30, 0.0)
    prob = _softmax_lastdim(score)                                         # (bt,St,St)

    dn_av = (((2,), (1,)), ((0,), (0,)))
    att3 = jax.lax.dot_general(prob.astype(cdt), s3, dn_av,
                               preferred_element_type=jnp.float32)         # (bt,St,H)
    att_all = att3.reshape(M, H)              # rows already interleaved per example

    # --- mlp_g (split-weight concat -> two matmuls accumulated in f32) ---
    gp = sg1a + jnp.dot(att_all.astype(cdt), wg1b,
                        preferred_element_type=jnp.float32) + bg1
    gh = jnp.maximum(gp, 0.0)
    g_all = jnp.maximum(
        jnp.dot(gh.astype(cdt), wg2, preferred_element_type=jnp.float32) + bg2,
        0.0)                                                               # (M, H)
    g3 = g_all.reshape(bt, St, H)

    # --- aggregate over tokens, mlp_h as one K=2H matmul, padded head ---
    o1 = jnp.sum(g3[:, :S1, :], axis=1)                                    # (bt, H)
    o2 = jnp.sum(g3[:, S1:, :], axis=1)                                    # (bt, H)
    o = jnp.concatenate([o1, o2], axis=-1).astype(cdt)                     # (bt, 2H)
    hh = jnp.maximum(
        jnp.dot(o, wh1, preferred_element_type=jnp.float32) + bh1, 0.0)
    hid = jnp.maximum(
        jnp.dot(hh.astype(cdt), wh2, preferred_element_type=jnp.float32) + bh2,
        0.0)                                                               # (bt, H)
    final = jnp.dot(hid.astype(cdt), wfin_ref[...],
                    preferred_element_type=jnp.float32) + bfin_ref[...]    # (bt, Lp)
    out_ref[...] = final


@functools.partial(jax.jit, static_argnames=("b_tile", "compute_dtype"))
def decomposable_attention_forward(context_tokens, end_tokens, params,
                                   *, b_tile=64, compute_dtype=jnp.bfloat16):
    """context_tokens: (S1, B) int32, end_tokens: (S2, B) int32 (PyTorch layout).

    Only the batch_size == end_batch_size path of the PyTorch forward is
    implemented; dropout is identity (inference).
    """
    # TODO(synk): decode_mode / multi_decode_mode (batch-size-mismatch) branches
    # and training-time stochastic dropout are not reproduced.
    embed = params['embed']                        # (vocab, E)
    S1, B = context_tokens.shape
    S2, B2 = end_tokens.shape
    assert B == B2, "only the batch == end_batch path is implemented"
    E = embed.shape[1]
    H = params['Win'].shape[1]
    L = params['Wfin'].shape[1]
    St = S1 + S2
    Lp = 128 * pl.cdiv(L, 128)                     # lane-dense classifier head

    # Single fused gather of both sentences' token ids.
    # TODO(synk): at large E/vocab an in-kernel DMA gather via scalar-prefetched
    # token ids would remove this HBM round trip entirely.
    tokens_all = jnp.concatenate([context_tokens.T, end_tokens.T], axis=1)  # (B, St)
    e_all = embed[tokens_all].astype(compute_dtype)                         # (B, St, E)

    # Batch tile: large (32-128) for MXU/step-overhead amortization, but keep
    # >=2 grid steps when B allows so v7x's two TensorCores both get work.
    bt = max(8, min(int(b_tile), 8 * ((B + 15) // 16)))
    B_pad = ((B + bt - 1) // bt) * bt
    if B_pad != B:
        e_all = jnp.pad(e_all, ((0, B_pad - B), (0, 0), (0, 0)))
    e2d = e_all.reshape(B_pad * St, E)             # contiguous slab per grid step

    cdt = compute_dtype
    # Packed weights: [Wf1 | Wg1_embed] side by side (N-fusion, same LHS);
    # everything with N == H stacked along K into one block; padded head.
    w_fg1 = jnp.concatenate([params['Wf1'], params['Wg1'][:H]], axis=1).astype(cdt)   # (H, 2H)
    w_stack = jnp.concatenate(
        [params['Win'], params['Wf2'], params['Wg1'][H:], params['Wg2'],
         params['Wh1'], params['Wh2']], axis=0).astype(cdt)                           # (E+6H, H)
    b_all = jnp.concatenate(
        [params['bf1'], params['bf2'], params['bg1'], params['bg2'],
         params['bh1'], params['bh2']], axis=0).astype(jnp.float32)                   # (6, H)
    w_fin = jnp.pad(params['Wfin'].astype(cdt), ((0, 0), (0, Lp - L)))                # (H, Lp)
    b_fin = jnp.pad(params['bfin'].astype(jnp.float32), ((0, 0), (0, Lp - L)))        # (1, Lp)

    grid = (B_pad // bt,)
    out = pl.pallas_call(
        functools.partial(da_kernel, S1=S1, S2=S2, bt=bt),
        out_shape=jax.ShapeDtypeStruct((B_pad, Lp), jnp.float32),
        grid_spec=pltpu.PrefetchScalarGridSpec(
            num_scalar_prefetch=0,
            grid=grid,
            in_specs=[
                pl.BlockSpec((bt * St, E), lambda i: (i, 0)),
                pl.BlockSpec(w_stack.shape, lambda i: (0, 0)),
                pl.BlockSpec(w_fg1.shape, lambda i: (0, 0)),
                pl.BlockSpec(b_all.shape, lambda i: (0, 0)),
                pl.BlockSpec(w_fin.shape, lambda i: (0, 0)),
                pl.BlockSpec(b_fin.shape, lambda i: (0, 0)),
            ],
            out_specs=pl.BlockSpec((bt, Lp), lambda i: (i, 0)),
        ),
        compiler_params=pltpu.CompilerParams(
            dimension_semantics=("parallel",),
            # At bt=128, St=16, H=E=32 the live f32 intermediates are ~2-3 MiB
            # plus a ~128 KiB double-buffered input block: well under 32 MiB on
            # every generation (v7x physical VMEM is 64 MiB).
            vmem_limit_bytes=32 * 1024 * 1024,
        ),
    )(e2d, w_stack, w_fg1, b_all, w_fin, b_fin)
    return out[:B, :L]


def reference_forward(context_tokens, end_tokens, params):
    """Pure-JAX f32 reference mirroring the PyTorch forward (batch == end_batch)."""
    embed = params['embed']
    s1 = embed[context_tokens.T] @ params['Win']          # (B, S1, H)
    s2 = embed[end_tokens.T] @ params['Win']              # (B, S2, H)

    def mlp(x, w1, b1, w2, b2):
        h = jnp.maximum(x @ w1 + b1, 0.0)
        return jnp.maximum(h @ w2 + b2, 0.0)

    f1 = mlp(s1, params['Wf1'], params['bf1'], params['Wf2'], params['bf2'])
    f2 = mlp(s2, params['Wf1'], params['bf1'], params['Wf2'], params['bf2'])
    score1 = jnp.einsum('bqh,bkh->bqk', f1, f2)           # (B, S1, S2)
    prob1 = jax.nn.softmax(score1, axis=-1)
    prob2 = jax.nn.softmax(jnp.swapaxes(score1, 1, 2), axis=-1)
    att1 = jnp.einsum('bqk,bkh->bqh', prob1, s2)
    att2 = jnp.einsum('bkq,bqh->bkh', prob2, s1)
    c1 = jnp.concatenate([s1, att1], axis=2)
    c2 = jnp.concatenate([s2, att2], axis=2)
    g1 = mlp(c1, params['Wg1'], params['bg1'], params['Wg2'], params['bg2'])
    g2 = mlp(c2, params['Wg1'], params['bg1'], params['Wg2'], params['bg2'])
    o1 = jnp.sum(g1, axis=1)
    o2 = jnp.sum(g2, axis=1)
    hid = mlp(jnp.concatenate([o1, o2], axis=1),
              params['Wh1'], params['bh1'], params['Wh2'], params['bh2'])
    return hid @ params['Wfin'] + params['bfin']


def make_params(key, vocab_size, embedding_dim, hidden_dim, label_size,
                init_normal_var=0.01):
    ks = jax.random.split(key, 16)
    std = init_normal_var
    H, E, L = hidden_dim, embedding_dim, label_size
    # Weights stored as (in, out); biases as (1, out).
    return {
        'embed': jax.random.normal(ks[0], (vocab_size, E), jnp.float32),
        'Win':  std * jax.random.normal(ks[1], (E, H), jnp.float32),
        'Wf1':  std * jax.random.normal(ks[2], (H, H), jnp.float32),
        'bf1':  std * jax.random.normal(ks[3], (1, H), jnp.float32),
        'Wf2':  std * jax.random.normal(ks[4], (H, H), jnp.float32),
        'bf2':  std * jax.random.normal(ks[5], (1, H), jnp.float32),
        'Wg1':  std * jax.random.normal(ks[6], (2 * H, H), jnp.float32),
        'bg1':  std * jax.random.normal(ks[7], (1, H), jnp.float32),
        'Wg2':  std * jax.random.normal(ks[8], (H, H), jnp.float32),
        'bg2':  std * jax.random.normal(ks[9], (1, H), jnp.float32),
        'Wh1':  std * jax.random.normal(ks[10], (2 * H, H), jnp.float32),
        'bh1':  std * jax.random.normal(ks[11], (1, H), jnp.float32),
        'Wh2':  std * jax.random.normal(ks[12], (H, H), jnp.float32),
        'bh2':  std * jax.random.normal(ks[13], (1, H), jnp.float32),
        'Wfin': std * jax.random.normal(ks[14], (H, L), jnp.float32),
        'bfin': std * jax.random.normal(ks[15], (1, L), jnp.float32),
    }


if __name__ == "__main__":
    vocab_size = 100
    label_size = 3
    embedding_dim = 32
    hidden_dim = 32
    batch = 64          # -> bt=32, 2 parallel grid steps (exercises the pipeline)
    seq_len1 = 8
    seq_len2 = 8

    key = jax.random.PRNGKey(0)
    kparam, kctx, kend = jax.random.split(key, 3)
    params = make_params(kparam, vocab_size, embedding_dim, hidden_dim, label_size)

    # Token ids in PyTorch layout (seq_len, batch).
    context = jax.random.randint(kctx, (seq_len1, batch), 0, vocab_size, dtype=jnp.int32)
    endings = jax.random.randint(kend, (seq_len2, batch), 0, vocab_size, dtype=jnp.int32)

    out = decomposable_attention_forward(context, endings, params)
    out = jax.block_until_ready(out)

    ref = reference_forward(context, endings, params)
    assert out.shape == (batch, label_size)
    # bf16 MXU inputs with f32 accumulation -> slightly looser tolerance vs f32 ref.
    assert jnp.allclose(out, ref, atol=2e-3, rtol=2e-2), (out, ref)
    print("KERNEL_OK")
</pallas_src>

<mosaic_0001>
module attributes {stable_mosaic.version = 11 : i64} {
  func.func @da_kernel(%arg0: i32, %arg1: memref<512x32xbf16, #tpu.memory_space<vmem>>, %arg2: memref<224x32xbf16, #tpu.memory_space<vmem>>, %arg3: memref<32x64xbf16, #tpu.memory_space<vmem>>, %arg4: memref<6x32xf32, #tpu.memory_space<vmem>>, %arg5: memref<32x128xbf16, #tpu.memory_space<vmem>>, %arg6: memref<1x128xf32, #tpu.memory_space<vmem>>, %arg7: memref<32x128xf32, #tpu.memory_space<vmem>>) attributes {dimension_semantics = [#tpu.dimension_semantics<parallel>], iteration_bounds = array<i64: 2>, scalar_prefetch = 0 : i64, scratch_operands = 0 : i64, tpu.core_type = #tpu.core_type<tc>, window_params = [{transform_indices = @transform_0, window_bounds = array<i64: 512, 32>}, {pipeline_mode = #tpu.pipeline_mode<synchronous>, transform_indices = @transform_1, window_bounds = array<i64: 224, 32>}, {pipeline_mode = #tpu.pipeline_mode<synchronous>, transform_indices = @transform_2, window_bounds = array<i64: 32, 64>}, {pipeline_mode = #tpu.pipeline_mode<synchronous>, transform_indices = @transform_3, window_bounds = array<i64: 6, 32>}, {pipeline_mode = #tpu.pipeline_mode<synchronous>, transform_indices = @transform_4, window_bounds = array<i64: 32, 128>}, {pipeline_mode = #tpu.pipeline_mode<synchronous>, transform_indices = @transform_5, window_bounds = array<i64: 1, 128>}, {transform_indices = @transform_6, window_bounds = array<i64: 32, 128>}]} {
    %c0 = arith.constant 0 : index
    %c0_0 = arith.constant 0 : index
    %0 = vector.load %arg2[%c0, %c0_0] : memref<224x32xbf16, #tpu.memory_space<vmem>>, vector<32x32xbf16>
    %c32 = arith.constant 32 : index
    %c0_1 = arith.constant 0 : index
    %1 = vector.load %arg2[%c32, %c0_1] : memref<224x32xbf16, #tpu.memory_space<vmem>>, vector<32x32xbf16>
    %c64 = arith.constant 64 : index
    %c0_2 = arith.constant 0 : index
    %2 = vector.load %arg2[%c64, %c0_2] : memref<224x32xbf16, #tpu.memory_space<vmem>>, vector<32x32xbf16>
    %c96 = arith.constant 96 : index
    %c0_3 = arith.constant 0 : index
    %3 = vector.load %arg2[%c96, %c0_3] : memref<224x32xbf16, #tpu.memory_space<vmem>>, vector<32x32xbf16>
    %c128 = arith.constant 128 : index
    %c0_4 = arith.constant 0 : index
    %4 = vector.load %arg2[%c128, %c0_4] : memref<224x32xbf16, #tpu.memory_space<vmem>>, vector<64x32xbf16>
    %c192 = arith.constant 192 : index
    %c0_5 = arith.constant 0 : index
    %5 = vector.load %arg2[%c192, %c0_5] : memref<224x32xbf16, #tpu.memory_space<vmem>>, vector<32x32xbf16>
    %c0_6 = arith.constant 0 : index
    %c0_7 = arith.constant 0 : index
    %6 = vector.load %arg4[%c0_6, %c0_7] : memref<6x32xf32, #tpu.memory_space<vmem>>, vector<1x32xf32>
    %c1 = arith.constant 1 : index
    %c0_8 = arith.constant 0 : index
    %7 = vector.load %arg4[%c1, %c0_8] : memref<6x32xf32, #tpu.memory_space<vmem>>, vector<1x32xf32>
    %c2 = arith.constant 2 : index
    %c0_9 = arith.constant 0 : index
    %8 = vector.load %arg4[%c2, %c0_9] : memref<6x32xf32, #tpu.memory_space<vmem>>, vector<1x32xf32>
    %c3 = arith.constant 3 : index
    %c0_10 = arith.constant 0 : index
    %9 = vector.load %arg4[%c3, %c0_10] : memref<6x32xf32, #tpu.memory_space<vmem>>, vector<1x32xf32>
    %c4 = arith.constant 4 : index
    %c0_11 = arith.constant 0 : index
    %10 = vector.load %arg4[%c4, %c0_11] : memref<6x32xf32, #tpu.memory_space<vmem>>, vector<1x32xf32>
    %c5 = arith.constant 5 : index
    %c0_12 = arith.constant 0 : index
    %11 = vector.load %arg4[%c5, %c0_12] : memref<6x32xf32, #tpu.memory_space<vmem>>, vector<1x32xf32>
    %c0_13 = arith.constant 0 : index
    %c0_14 = arith.constant 0 : index
    %12 = vector.load %arg1[%c0_13, %c0_14] : memref<512x32xbf16, #tpu.memory_space<vmem>>, vector<512x32xbf16>
    %cst = arith.constant dense<0.000000e+00> : vector<512x32xf32>
    %13 = tpu.matmul %12, %0, %cst {dimension_numbers = #tpu.dot_dimension_numbers<[1], [0], [0], [1], [0, 0, 1, 1], [], []>} : vector<512x32xbf16>, vector<32x32xbf16>, vector<512x32xf32> -> vector<512x32xf32>
    %14 = arith.truncf %13 : vector<512x32xf32> to vector<512x32xbf16>
    %c0_15 = arith.constant 0 : index
    %c0_16 = arith.constant 0 : index
    %15 = vector.load %arg3[%c0_15, %c0_16] : memref<32x64xbf16, #tpu.memory_space<vmem>>, vector<32x64xbf16>
    %cst_17 = arith.constant dense<0.000000e+00> : vector<512x64xf32>
    %16 = tpu.matmul %14, %15, %cst_17 {dimension_numbers = #tpu.dot_dimension_numbers<[1], [0], [0], [1], [0, 0, 1, 1], [], []>} : vector<512x32xbf16>, vector<32x64xbf16>, vector<512x64xf32> -> vector<512x64xf32>
    %17 = vector.extract_strided_slice %16 {offsets = [0, 0], sizes = [512, 32], strides = [1, 1]} : vector<512x64xf32> to vector<512x32xf32>
    %18 = vector.broadcast %6 : vector<1x32xf32> to vector<512x32xf32>
    %19 = arith.addf %17, %18 : vector<512x32xf32>
    %cst_18 = arith.constant 0.000000e+00 : f32
    %20 = vector.broadcast %cst_18 : f32 to vector<512x32xf32>
    %21 = arith.maximumf %19, %20 : vector<512x32xf32>
    %22 = vector.extract_strided_slice %16 {offsets = [0, 32], sizes = [512, 32], strides = [1, 1]} : vector<512x64xf32> to vector<512x32xf32>
    %23 = arith.truncf %21 : vector<512x32xf32> to vector<512x32xbf16>
    %cst_19 = arith.constant dense<0.000000e+00> : vector<512x32xf32>
    %24 = tpu.matmul %23, %1, %cst_19 {dimension_numbers = #tpu.dot_dimension_numbers<[1], [0], [0], [1], [0, 0, 1, 1], [], []>} : vector<512x32xbf16>, vector<32x32xbf16>, vector<512x32xf32> -> vector<512x32xf32>
    %25 = vector.broadcast %7 : vector<1x32xf32> to vector<512x32xf32>
    %26 = arith.addf %24, %25 : vector<512x32xf32>
    %cst_20 = arith.constant 0.000000e+00 : f32
    %27 = vector.broadcast %cst_20 : f32 to vector<512x32xf32>
    %28 = arith.maximumf %26, %27 : vector<512x32xf32>
    %29 = arith.truncf %28 : vector<512x32xf32> to vector<512x32xbf16>
    %30 = vector.shape_cast %29 : vector<512x32xbf16> to vector<32x16x32xbf16>
    %31 = vector.shape_cast %14 : vector<512x32xbf16> to vector<32x16x32xbf16>
    %cst_21 = arith.constant dense<0.000000e+00> : vector<32x16x16xf32>
    %32 = tpu.matmul %30, %30, %cst_21 {dimension_numbers = #tpu.dot_dimension_numbers<[2], [2], [1], [1], [0, 0, 0, 1, 1, 1], [0], [0]>} : vector<32x16x32xbf16>, vector<32x16x32xbf16>, vector<32x16x16xf32> -> vector<32x16x16xf32>
    %33 = tpu.iota {dimensions = array<i32: 0>} : vector<16x16xi32>
    %34 = tpu.iota {dimensions = array<i32: 1>} : vector<16x16xi32>
    %c8_i32 = arith.constant 8 : i32
    %35 = vector.broadcast %c8_i32 : i32 to vector<16x16xi32>
    %36 = arith.cmpi slt, %33, %35 : vector<16x16xi32>
    %c8_i32_22 = arith.constant 8 : i32
    %37 = vector.broadcast %c8_i32_22 : i32 to vector<16x16xi32>
    %38 = arith.cmpi slt, %34, %37 : vector<16x16xi32>
    %39 = arith.xori %36, %38 : vector<16x16xi1>
    %cst_23 = arith.constant dense<true> : vector<16x16xi1>
    %40 = arith.xori %39, %cst_23 : vector<16x16xi1>
    %cst_24 = arith.constant -1.000000e+30 : f32
    %cst_25 = arith.constant 0.000000e+00 : f32
    %41 = vector.broadcast %cst_24 : f32 to vector<16x16xf32>
    %42 = vector.broadcast %cst_25 : f32 to vector<16x16xf32>
    %43 = arith.select %40, %41, %42 : vector<16x16xi1>, vector<16x16xf32>
    %44 = vector.shape_cast %43 : vector<16x16xf32> to vector<1x16x16xf32>
    %45 = vector.broadcast %44 : vector<1x16x16xf32> to vector<32x16x16xf32>
    %46 = arith.addf %32, %45 : vector<32x16x16xf32>
    %cst_26 = arith.constant dense<0xFF800000> : vector<32x16xf32>
    %47 = vector.multi_reduction <maximumf>, %46, %cst_26 [2] : vector<32x16x16xf32> to vector<32x16xf32>
    %48 = vector.shape_cast %47 : vector<32x16xf32> to vector<32x16x1xf32>
    %49 = vector.broadcast %48 : vector<32x16x1xf32> to vector<32x16x16xf32>
    %50 = arith.subf %46, %49 : vector<32x16x16xf32>
    %51 = math.exp %50 : vector<32x16x16xf32>
    %cst_27 = arith.constant dense<0.000000e+00> : vector<32x16xf32>
    %52 = vector.multi_reduction <add>, %51, %cst_27 [2] : vector<32x16x16xf32> to vector<32x16xf32>
    %53 = vector.shape_cast %52 : vector<32x16xf32> to vector<32x16x1xf32>
    %54 = tpu.reciprocal %53 {approx = true} : vector<32x16x1xf32> -> vector<32x16x1xf32>
    %55 = vector.broadcast %54 : vector<32x16x1xf32> to vector<32x16x16xf32>
    %56 = arith.mulf %51, %55 : vector<32x16x16xf32>
    %57 = arith.truncf %56 : vector<32x16x16xf32> to vector<32x16x16xbf16>
    %cst_28 = arith.constant dense<0.000000e+00> : vector<32x16x32xf32>
    %58 = tpu.matmul %57, %31, %cst_28 {dimension_numbers = #tpu.dot_dimension_numbers<[2], [1], [1], [2], [0, 0, 0, 1, 1, 2], [0], [0]>} : vector<32x16x16xbf16>, vector<32x16x32xbf16>, vector<32x16x32xf32> -> vector<32x16x32xf32>
    %59 = vector.shape_cast %58 : vector<32x16x32xf32> to vector<512x32xf32>
    %60 = arith.truncf %59 : vector<512x32xf32> to vector<512x32xbf16>
    %cst_29 = arith.constant dense<0.000000e+00> : vector<512x32xf32>
    %61 = tpu.matmul %60, %2, %cst_29 {dimension_numbers = #tpu.dot_dimension_numbers<[1], [0], [0], [1], [0, 0, 1, 1], [], []>} : vector<512x32xbf16>, vector<32x32xbf16>, vector<512x32xf32> -> vector<512x32xf32>
    %62 = arith.addf %22, %61 : vector<512x32xf32>
    %63 = vector.broadcast %8 : vector<1x32xf32> to vector<512x32xf32>
    %64 = arith.addf %62, %63 : vector<512x32xf32>
    %cst_30 = arith.constant 0.000000e+00 : f32
    %65 = vector.broadcast %cst_30 : f32 to vector<512x32xf32>
    %66 = arith.maximumf %64, %65 : vector<512x32xf32>
    %67 = arith.truncf %66 : vector<512x32xf32> to vector<512x32xbf16>
    %cst_31 = arith.constant dense<0.000000e+00> : vector<512x32xf32>
    %68 = tpu.matmul %67, %3, %cst_31 {dimension_numbers = #tpu.dot_dimension_numbers<[1], [0], [0], [1], [0, 0, 1, 1], [], []>} : vector<512x32xbf16>, vector<32x32xbf16>, vector<512x32xf32> -> vector<512x32xf32>
    %69 = vector.broadcast %9 : vector<1x32xf32> to vector<512x32xf32>
    %70 = arith.addf %68, %69 : vector<512x32xf32>
    %cst_32 = arith.constant 0.000000e+00 : f32
    %71 = vector.broadcast %cst_32 : f32 to vector<512x32xf32>
    %72 = arith.maximumf %70, %71 : vector<512x32xf32>
    %73 = vector.shape_cast %72 : vector<512x32xf32> to vector<32x16x32xf32>
    %74 = vector.extract_strided_slice %73 {offsets = [0, 0, 0], sizes = [32, 8, 32], strides = [1, 1, 1]} : vector<32x16x32xf32> to vector<32x8x32xf32>
    %cst_33 = arith.constant dense<0.000000e+00> : vector<32x32xf32>
    %75 = vector.multi_reduction <add>, %74, %cst_33 [1] : vector<32x8x32xf32> to vector<32x32xf32>
    %76 = vector.extract_strided_slice %73 {offsets = [0, 8, 0], sizes = [32, 8, 32], strides = [1, 1, 1]} : vector<32x16x32xf32> to vector<32x8x32xf32>
    %cst_34 = arith.constant dense<0.000000e+00> : vector<32x32xf32>
    %77 = vector.multi_reduction <add>, %76, %cst_34 [1] : vector<32x8x32xf32> to vector<32x32xf32>
    %78 = tpu.concatenate %75, %77 in 1 : vector<32x32xf32>, vector<32x32xf32> -> vector<32x64xf32>
    %79 = arith.truncf %78 : vector<32x64xf32> to vector<32x64xbf16>
    %cst_35 = arith.constant dense<0.000000e+00> : vector<32x32xf32>
    %80 = tpu.matmul %79, %4, %cst_35 {dimension_numbers = #tpu.dot_dimension_numbers<[1], [0], [0], [1], [0, 0, 1, 1], [], []>} : vector<32x64xbf16>, vector<64x32xbf16>, vector<32x32xf32> -> vector<32x32xf32>
    %81 = vector.broadcast %10 : vector<1x32xf32> to vector<32x32xf32>
    %82 = arith.addf %80, %81 : vector<32x32xf32>
    %cst_36 = arith.constant 0.000000e+00 : f32
    %83 = vector.broadcast %cst_36 : f32 to vector<32x32xf32>
    %84 = arith.maximumf %82, %83 : vector<32x32xf32>
    %85 = arith.truncf %84 : vector<32x32xf32> to vector<32x32xbf16>
    %cst_37 = arith.constant dense<0.000000e+00> : vector<32x32xf32>
    %86 = tpu.matmul %85, %5, %cst_37 {dimension_numbers = #tpu.dot_dimension_numbers<[1], [0], [0], [1], [0, 0, 1, 1], [], []>} : vector<32x32xbf16>, vector<32x32xbf16>, vector<32x32xf32> -> vector<32x32xf32>
    %87 = vector.broadcast %11 : vector<1x32xf32> to vector<32x32xf32>
    %88 = arith.addf %86, %87 : vector<32x32xf32>
    %cst_38 = arith.constant 0.000000e+00 : f32
    %89 = vector.broadcast %cst_38 : f32 to vector<32x32xf32>
    %90 = arith.maximumf %88, %89 : vector<32x32xf32>
    %91 = arith.truncf %90 : vector<32x32xf32> to vector<32x32xbf16>
    %c0_39 = arith.constant 0 : index
    %c0_40 = arith.constant 0 : index
    %92 = vector.load %arg5[%c0_39, %c0_40] : memref<32x128xbf16, #tpu.memory_space<vmem>>, vector<32x128xbf16>
    %cst_41 = arith.constant dense<0.000000e+00> : vector<32x128xf32>
    %93 = tpu.matmul %91, %92, %cst_41 {dimension_numbers = #tpu.dot_dimension_numbers<[1], [0], [0], [1], [0, 0, 1, 1], [], []>} : vector<32x32xbf16>, vector<32x128xbf16>, vector<32x128xf32> -> vector<32x128xf32>
    %c0_42 = arith.constant 0 : index
    %c0_43 = arith.constant 0 : index
    %94 = vector.load %arg6[%c0_42, %c0_43] : memref<1x128xf32, #tpu.memory_space<vmem>>, vector<1x128xf32>
    %95 = vector.broadcast %94 : vector<1x128xf32> to vector<32x128xf32>
    %96 = arith.addf %93, %95 : vector<32x128xf32>
    %c0_44 = arith.constant 0 : index
    %c0_45 = arith.constant 0 : index
    %97 = vector.load %arg7[%c0_44, %c0_45] : memref<32x128xf32, #tpu.memory_space<vmem>>, vector<32x128xf32>
    tpu.vector_store %arg7[%c0_44, %c0_45], %96 {strides = array<i32>} : memref<32x128xf32, #tpu.memory_space<vmem>>, vector<32x128xf32>,
    return
  }
  func.func @transform_0(%arg0: i32) -> (i32, i32) {
    %c0_i32 = arith.constant 0 : i32
    %c0_i32_0 = arith.constant 0 : i32
    return %arg0, %c0_i32 : i32, i32
  }
  func.func @transform_1(%arg0: i32) -> (i32, i32) {
    %c0_i32 = arith.constant 0 : i32
    %c0_i32_0 = arith.constant 0 : i32
    %c0_i32_1 = arith.constant 0 : i32
    return %c0_i32, %c0_i32_0 : i32, i32
  }
  func.func @transform_2(%arg0: i32) -> (i32, i32) {
    %c0_i32 = arith.constant 0 : i32
    %c0_i32_0 = arith.constant 0 : i32
    %c0_i32_1 = arith.constant 0 : i32
    return %c0_i32, %c0_i32_0 : i32, i32
  }
  func.func @transform_3(%arg0: i32) -> (i32, i32) {
    %c0_i32 = arith.constant 0 : i32
    %c0_i32_0 = arith.constant 0 : i32
    %c0_i32_1 = arith.constant 0 : i32
    return %c0_i32, %c0_i32_0 : i32, i32
  }
  func.func @transform_4(%arg0: i32) -> (i32, i32) {
    %c0_i32 = arith.constant 0 : i32
    %c0_i32_0 = arith.constant 0 : i32
    %c0_i32_1 = arith.constant 0 : i32
    return %c0_i32, %c0_i32_0 : i32, i32
  }
  func.func @transform_5(%arg0: i32) -> (i32, i32) {
    %c0_i32 = arith.constant 0 : i32
    %c0_i32_0 = arith.constant 0 : i32
    %c0_i32_1 = arith.constant 0 : i32
    return %c0_i32, %c0_i32_0 : i32, i32
  }
  func.func @transform_6(%arg0: i32) -> (i32, i32) {
    %c0_i32 = arith.constant 0 : i32
    %c0_i32_0 = arith.constant 0 : i32
    return %arg0, %c0_i32 : i32, i32
  }
}

</mosaic_0001>

<llo_original>
// kernel: decomposable_attention_forward.1
$region0: #{decomposable_attention_forward.1}
  #allocation0 [shape = 'u32[]', space=smem, size = 0x4, offset = 0x4, fixed_abs, tag = 'smem constant byte address 0x4 - core index']
  #allocation1 [shape = 'u32[144,128]{1,0:T(1,128)}', space=vmem, size = 0x12000, scoped, tag = 'internal scratch']
  %s0 = inlined_call_operand.vmem [shape: bf16[1024,32], index: 0, kind: input, shape index: {}]
  %s1 = inlined_call_operand.vmem [shape: bf16[224,32], index: 1, kind: input, shape index: {}]
  %s2 = inlined_call_operand.vmem [shape: bf16[32,64], index: 2, kind: input, shape index: {}]
  %s3 = inlined_call_operand.vmem [shape: f32[6,32], index: 3, kind: input, shape index: {}]
  %s4 = inlined_call_operand.vmem [shape: bf16[32,128], index: 4, kind: input, shape index: {}]
  %s5 = inlined_call_operand.vmem [shape: f32[1,128], index: 5, kind: input, shape index: {}]
  %s6 = inlined_call_operand.vmem [shape: f32[64,128], index: 6, kind: output, shape index: {}]
  %s7 = sld [smem:[#allocation0]]
  $region57: #{decomposable_attention_forward.1} parent=0
    _
  %s9 = ssub.s32 1, %s7
  %s10 = scalar_select 0, %s9, %s7
  loop: start=0, step=1, limit=4
  $region2: #{decomposable_attention_forward.1} parent=0 // loop_pre_header
    _
  $region3: #{decomposable_attention_forward.1} parent=0 // loop_header
    %s12 = sphi 0, %s16
    %p13 = scmp.ge.s32.totalorder %s12, 4
    %s22 = sphi 0, %s24
    %s25 = sphi 0, %s22
    %s26 = sphi 0, %s25
    %s42 = sphi 0, %s26
    %s46 = sphi 0, %s46
    %s48 = sphi 0, %s46
    %s49 = sphi 0, %s48
    %s63 = sphi 0, %s49
    %s67 = sphi 0, %s67
    %s69 = sphi 0, %s67
    %s70 = sphi 0, %s69
    %s84 = sphi 0, %s70
    %s88 = sphi 0, %s88
    %s90 = sphi 0, %s88
    %s91 = sphi 0, %s90
    %s105 = sphi 0, %s91
    %s109 = sphi 0, %s109
    %s111 = sphi 0, %s109
    %s112 = sphi 0, %s111
    %s126 = sphi 0, %s112
    %s130 = sphi 0, %s130
    %s132 = sphi 0, %s130
    %s133 = sphi 0, %s132
    %s147 = sphi 0, %s133
    %s153 = sphi 0, %s155
    %s156 = sphi 0, %s153
    %s157 = sphi 0, %s156
    %s173 = sphi 0, %s157
  $region4: #{decomposable_attention_forward.1} parent=0 // loop_header_branch
    %15 = sbr.rel (%p13) target = $region8
  $region5: #{decomposable_attention_forward.1} parent=0 // loop_body
    %s17 = ssub.s32 %s12, 1
    %s18 = ssub.s32 %s12, 2
    %s19 = sadd.s32 %s12, 1
    %s20 = ssub.s32 %s12, %s19
    %p21 = scmp.eq.s32.totalorder %s20, 0
    %s23 = sadd.s32 %s22, 1
    %s24 = scalar_select %p21, %s22, %s23
    %p27 = pneg %p21
    %p28 = scmp.eq.s32.totalorder %s12, 1
    %p29 = por %p27, %p28
    %p30 = scmp.ne.s32.totalorder %s22, %s25
    %p31 = scmp.eq.s32.totalorder %s12, 0
    %p32 = por %p30, %p31
    %p33 = scmp.ne.s32.totalorder %s22, %s25
    %p34 = scmp.eq.s32.totalorder %s17, 1
    %p35 = por %p33, %p34
    %p36 = scmp.ne.s32.totalorder %s25, %s26
    %p37 = scmp.eq.s32.totalorder %s17, 0
    %p38 = por %p36, %p37
    %p39 = scmp.ne.s32.totalorder %s25, %s26
    %p40 = scmp.eq.s32.totalorder %s18, 1
    %p41 = por %p39, %p40
    %p43 = scmp.ne.s32.totalorder %s26, %s42
    %p44 = scmp.eq.s32.totalorder %s18, 0
    %p45 = por %p43, %p44
    %s47 = sadd.s32 %s46, 1
    %p50 = scmp.eq.s32.totalorder %s12, 1
    %p51 = scmp.ne.s32.totalorder %s46, %s48
    %p52 = scmp.eq.s32.totalorder %s12, 0
    %p53 = por %p51, %p52
    %p54 = scmp.ne.s32.totalorder %s46, %s48
    %p55 = scmp.eq.s32.totalorder %s17, 1
    %p56 = por %p54, %p55
    %p57 = scmp.ne.s32.totalorder %s48, %s49
    %p58 = scmp.eq.s32.totalorder %s17, 0
    %p59 = por %p57, %p58
    %p60 = scmp.ne.s32.totalorder %s48, %s49
    %p61 = scmp.eq.s32.totalorder %s18, 1
    %p62 = por %p60, %p61
    %p64 = scmp.ne.s32.totalorder %s49, %s63
    %p65 = scmp.eq.s32.totalorder %s18, 0
    %p66 = por %p64, %p65
    %s68 = sadd.s32 %s67, 1
    %p71 = scmp.eq.s32.totalorder %s12, 1
    %p72 = scmp.ne.s32.totalorder %s67, %s69
    %p73 = scmp.eq.s32.totalorder %s12, 0
    %p74 = por %p72, %p73
    %p75 = scmp.ne.s32.totalorder %s67, %s69
    %p76 = scmp.eq.s32.totalorder %s17, 1
    %p77 = por %p75, %p76
    %p78 = scmp.ne.s32.totalorder %s69, %s70
    %p79 = scmp.eq.s32.totalorder %s17, 0
    %p80 = por %p78, %p79
    %p81 = scmp.ne.s32.totalorder %s69, %s70
    %p82 = scmp.eq.s32.totalorder %s18, 1
    %p83 = por %p81, %p82
    %p85 = scmp.ne.s32.totalorder %s70, %s84
    %p86 = scmp.eq.s32.totalorder %s18, 0
    %p87 = por %p85, %p86
    %s89 = sadd.s32 %s88, 1
    %p92 = scmp.eq.s32.totalorder %s12, 1
    %p93 = scmp.ne.s32.totalorder %s88, %s90
    %p94 = scmp.eq.s32.totalorder %s12, 0
    %p95 = por %p93, %p94
    %p96 = scmp.ne.s32.totalorder %s88, %s90
    %p97 = scmp.eq.s32.totalorder %s17, 1
    %p98 = por %p96, %p97
    %p99 = scmp.ne.s32.totalorder %s90, %s91
    %p100 = scmp.eq.s32.totalorder %s17, 0
    %p101 = por %p99, %p100
    %p102 = scmp.ne.s32.totalorder %s90, %s91
    %p103 = scmp.eq.s32.totalorder %s18, 1
    %p104 = por %p102, %p103
    %p106 = scmp.ne.s32.totalorder %s91, %s105
    %p107 = scmp.eq.s32.totalorder %s18, 0
    %p108 = por %p106, %p107
    %s110 = sadd.s32 %s109, 1
    %p113 = scmp.eq.s32.totalorder %s12, 1
    %p114 = scmp.ne.s32.totalorder %s109, %s111
    %p115 = scmp.eq.s32.totalorder %s12, 0
    %p116 = por %p114, %p115
    %p117 = scmp.ne.s32.totalorder %s109, %s111
    %p118 = scmp.eq.s32.totalorder %s17, 1
    %p119 = por %p117, %p118
    %p120 = scmp.ne.s32.totalorder %s111, %s112
    %p121 = scmp.eq.s32.totalorder %s17, 0
    %p122 = por %p120, %p121
    %p123 = scmp.ne.s32.totalorder %s111, %s112
    %p124 = scmp.eq.s32.totalorder %s18, 1
    %p125 = por %p123, %p124
    %p127 = scmp.ne.s32.totalorder %s112, %s126
    %p128 = scmp.eq.s32.totalorder %s18, 0
    %p129 = por %p127, %p128
    %s131 = sadd.s32 %s130, 1
    %p134 = scmp.eq.s32.totalorder %s12, 1
    %p135 = scmp.ne.s32.totalorder %s130, %s132
    %p136 = scmp.eq.s32.totalorder %s12, 0
    %p137 = por %p135, %p136
    %p138 = scmp.ne.s32.totalorder %s130, %s132
    %p139 = scmp.eq.s32.totalorder %s17, 1
    %p140 = por %p138, %p139
    %p141 = scmp.ne.s32.totalorder %s132, %s133
    %p142 = scmp.eq.s32.totalorder %s17, 0
    %p143 = por %p141, %p142
    %p144 = scmp.ne.s32.totalorder %s132, %s133
    %p145 = scmp.eq.s32.totalorder %s18, 1
    %p146 = por %p144, %p145
    %p148 = scmp.ne.s32.totalorder %s133, %s147
    %p149 = scmp.eq.s32.totalorder %s18, 0
    %p150 = por %p148, %p149
    %s151 = ssub.s32 %s12, %s19
    %p152 = scmp.eq.s32.totalorder %s151, 0
    %s154 = sadd.s32 %s153, 1
    %s155 = scalar_select %p152, %s153, %s154
    %p158 = pneg %p152
    %p159 = scmp.eq.s32.totalorder %s12, 1
    %p160 = por %p158, %p159
    %p161 = scmp.ne.s32.totalorder %s153, %s156
    %p162 = scmp.eq.s32.totalorder %s12, 0
    %p163 = por %p161, %p162
    %p164 = scmp.ne.s32.totalorder %s153, %s156
    %p165 = scmp.eq.s32.totalorder %s17, 1
    %p166 = por %p164, %p165
    %p167 = scmp.ne.s32.totalorder %s156, %s157
    %p168 = scmp.eq.s32.totalorder %s17, 0
    %p169 = por %p167, %p168
    %p170 = scmp.ne.s32.totalorder %s156, %s157
    %p171 = scmp.eq.s32.totalorder %s18, 1
    %p172 = por %p170, %p171
    %p174 = scmp.ne.s32.totalorder %s157, %s173
    %p175 = scmp.eq.s32.totalorder %s18, 0
    %p176 = por %p174, %p175
    %p177 = scmp.le.s32.totalorder 1, %s12
    %p178 = scmp.lt.s32.totalorder %s12, 3
    %p179 = pnand %p177, %p178
    %p180 = pneg %p179
    // Predicated region
    $region9: #{decomposable_attention_forward.1} parent=5 // pred_check
      _
    $region10: #{decomposable_attention_forward.1} parent=5 // pred_check_branch
      %182 = sbr.rel (%p179) target = $region12
    $region11: #{decomposable_attention_forward.1} parent=5 // pred_region
      %s183 = ssub.s32 %s12, 1
      // Predicated region
      $region13: #{decomposable_attention_forward.1} parent=11 // pred_check
        %p184 = pneg %p59
      $region14: #{decomposable_attention_forward.1} parent=11 // pred_check_branch
        %186 = sbr.rel (%p184) target = $region16
      $region15: #{decomposable_attention_forward.1} parent=11 // pred_region
        _
      $region16: #{decomposable_attention_forward.1} parent=11 // pred_fallthru
        _
      // Predicated region
      $region17: #{decomposable_attention_forward.1} parent=11 // pred_check
        %p187 = pneg %p80
      $region18: #{decomposable_attention_forward.1} parent=11 // pred_check_branch
        %189 = sbr.rel (%p187) target = $region20
      $region19: #{decomposable_attention_forward.1} parent=11 // pred_region
        _
      $region20: #{decomposable_attention_forward.1} parent=11 // pred_fallthru
        _
      // Predicated region
      $region21: #{decomposable_attention_forward.1} parent=11 // pred_check
        %p190 = pneg %p101
      $region22: #{decomposable_attention_forward.1} parent=11 // pred_check_branch
        %192 = sbr.rel (%p190) target = $region24
      $region23: #{decomposable_attention_forward.1} parent=11 // pred_region
        _
      $region24: #{decomposable_attention_forward.1} parent=11 // pred_fallthru
        _
      // Predicated region
      $region25: #{decomposable_attention_forward.1} parent=11 // pred_check
        %p193 = pneg %p122
      $region26: #{decomposable_attention_forward.1} parent=11 // pred_check_branch
        %195 = sbr.rel (%p193) target = $region28
      $region27: #{decomposable_attention_forward.1} parent=11 // pred_region
        _
      $region28: #{decomposable_attention_forward.1} parent=11 // pred_fallthru
        _
      // Predicated region
      $region29: #{decomposable_attention_forward.1} parent=11 // pred_check
        %p196 = pneg %p143
      $region30: #{decomposable_attention_forward.1} parent=11 // pred_check_branch
        %198 = sbr.rel (%p196) target = $region32
      $region31: #{decomposable_attention_forward.1} parent=11 // pred_region
        _
      $region32: #{decomposable_attention_forward.1} parent=11 // pred_fallthru
        _
    $region12: #{decomposable_attention_forward.1} parent=5 // pred_fallthru
      _
    %p199 = scmp.lt.s32.totalorder %s12, 2
    // Predicated region
    $region33: #{decomposable_attention_forward.1} parent=5 // pred_check
      %p200 = pneg %p199
    $region34: #{decomposable_attention_forward.1} parent=5 // pred_check_branch
      %202 = sbr.rel (%p200) target = $region36
    $region35: #{decomposable_attention_forward.1} parent=5 // pred_region
      // Predicated region
      $region37: #{decomposable_attention_forward.1} parent=35 // pred_check
        %p203 = pneg %p32
      $region38: #{decomposable_attention_forward.1} parent=35 // pred_check_branch
        %205 = sbr.rel (%p203) target = $region40
      $region39: #{decomposable_attention_forward.1} parent=35 // pred_region
        %s206 = smul.u32 64, %s12
        %p207 = scmp.lt.s32.totalorder %s206, 127
        %s208 = scalar_select %p207, %s206, 127
        %s209 = smul.addr %s208, 4
        %s210 = scalar_lea.vmem %s0, %s209
        %s211 = smul.u32 64, %s12
      $region40: #{decomposable_attention_forward.1} parent=35 // pred_fallthru
        _
    $region36: #{decomposable_attention_forward.1} parent=5 // pred_fallthru
      _
    %p212 = scmp.le.s32.totalorder 1, %s12
    %p213 = scmp.lt.s32.totalorder %s12, 3
    %p214 = pnand %p212, %p213
    %p215 = pneg %p214
    // Predicated region
    $region41: #{decomposable_attention_forward.1} parent=5 // pred_check
      _
    $region42: #{decomposable_attention_forward.1} parent=5 // pred_check_branch
      %217 = sbr.rel (%p214) target = $region44
    $region43: #{decomposable_attention_forward.1} parent=5 // pred_region
      %s218 = ssub.s32 %s12, 1
      %s219 = smul.u32 64, %s17
      %p220 = scmp.lt.s32.totalorder %s219, 127
      %s221 = scalar_select %p220, %s219, 127
      %s222 = smul.addr %s221, 4
      %s223 = scalar_lea.vmem %s0, %s222
      %p224 = pneg %p38
      %p225 = pneg %p35
      %p226 = pneg %p59
      %p227 = pneg %p56
      %p228 = pneg %p80
      %p229 = pneg %p77
      %p230 = pneg %p101
      %p231 = pneg %p98
      %p232 = pneg %p122
      %p233 = pneg %p119
      %p234 = pneg %p143
      %p235 = pneg %p140
      %p236 = pneg %p169
      %p237 = pneg %p166
      %s238 = smul.u32 4, %s17
      %p239 = scmp.lt.s32.totalorder %s238, 7
      %s240 = scalar_select %p239, %s238, 7
      %s241 = smul.addr %s240, 8
      %s242 = scalar_lea.vmem %s6, %s241
      %s243 = smul.u32 64, %s17
      %p244 = scmp.lt.s32.totalorder %s243, 127
      %s245 = scalar_select %p244, %s243, 127
      %s246 = smul.addr %s245, 4
      %s247 = scalar_lea.vmem %s0, %s246
      %s248 = smul.u32 64, %s17
      %s249 = smul.u32 4, %s17
      %p250 = scmp.lt.s32.totalorder %s249, 7
      %s251 = scalar_select %p250, %s249, 7
      %s252 = smul.addr %s251, 8
      %s253 = scalar_lea.vmem %s6, %s252
      %s254 = smul.u32 4, %s17
      %v256 = vld [vmem:[%s1] sm:$0xf]
      %v257 = vld [vmem:[%s1 + $0x4] sm:$0xf]
      %v258 = vld [vmem:[%s1 + $0x8] sm:$0xf]
      %v259 = vld [vmem:[%s1 + $0xc] sm:$0xf]
      %v260 = vld [vmem:[%s1 + $0x10] sm:$0xf]
      %v261 = vld [vmem:[%s1 + $0x14] sm:$0xf]
      %v262 = vld [vmem:[%s1 + $0x18] sm:$0xf]
      %v263 = vld [vmem:[%s1 + $0x1c] sm:$0xf]
      %v264 = vld [vmem:[%s1 + $0x20] sm:$0xf]
      %v265 = vld [vmem:[%s1 + $0x24] sm:$0xf]
      %v266 = vld [vmem:[%s1 + $0x28] sm:$0xf]
      %v267 = vld [vmem:[%s1 + $0x2c] sm:$0xf]
      %v268 = vld [vmem:[%s1 + $0x30] sm:$0xf]
      %v269 = vld [vmem:[%s1 + $0x34] sm:$0xf]
      %v270 = vld [vmem:[%s1 + $0x38] sm:$0xf]
      %v271 = vld [vmem:[%s1 + $0x3c] sm:$0xf]
      %v272 = vld [vmem:[%s1 + $0x40] sm:$0xf]
      %v273 = vld [vmem:[%s1 + $0x44] sm:$0xf]
      %v274 = vld [vmem:[%s1 + $0x48] sm:$0xf]
      %v275 = vld [vmem:[%s1 + $0x4c] sm:$0xf]
      %v276 = vld [vmem:[%s1 + $0x50] sm:$0xf]
      %v277 = vld [vmem:[%s1 + $0x54] sm:$0xf]
      %v278 = vld [vmem:[%s1 + $0x58] sm:$0xf]
      %v279 = vld [vmem:[%s1 + $0x5c] sm:$0xf]
      %v280 = vld [vmem:[%s1 + $0x60] sm:$0xf]
      %v281 = vld [vmem:[%s1 + $0x64] sm:$0xf]
      %v282 = vld [vmem:[%s1 + $0x68] sm:$0xf]
      %v283 = vld [vmem:[%s1 + $0x6c] sm:$0xf]
      %v284 = vld [vmem:[%s3] sm:$0x1]
      %v285 = vld [vmem:[%s3 + $0x1] sm:$0x1]
      %v286 = vld [vmem:[%s3 + $0x2] sm:$0x1]
      %v287 = vld [vmem:[%s3 + $0x3] sm:$0x1]
      %v288 = vld [vmem:[%s3 + $0x4] sm:$0x1]
      %v289 = vld [vmem:[%s3 + $0x5] sm:$0x1]
      %v290 = vld [vmem:[%s247] sm:$0xf]
      %v291 = vld [vmem:[%s247 + $0x4] sm:$0xf]
      %v292 = vld [vmem:[%s247 + $0x8] sm:$0xf]
      %v293 = vld [vmem:[%s247 + $0xc] sm:$0xf]
      %v294 = vld [vmem:[%s247 + $0x10] sm:$0xf]
      %v295 = vld [vmem:[%s247 + $0x14] sm:$0xf]
      %v296 = vld [vmem:[%s247 + $0x18] sm:$0xf]
      %v297 = vld [vmem:[%s247 + $0x1c] sm:$0xf]
      %v298 = vld [vmem:[%s247 + $0x20] sm:$0xf]
      %v299 = vld [vmem:[%s247 + $0x24] sm:$0xf]
      %v300 = vld [vmem:[%s247 + $0x28] sm:$0xf]
      %v301 = vld [vmem:[%s247 + $0x2c] sm:$0xf]
      %v302 = vld [vmem:[%s247 + $0x30] sm:$0xf]
      %v303 = vld [vmem:[%s247 + $0x34] sm:$0xf]
      %v304 = vld [vmem:[%s247 + $0x38] sm:$0xf]
      %v305 = vld [vmem:[%s247 + $0x3c] sm:$0xf]
      %v306 = vld [vmem:[%s247 + $0x40] sm:$0xf]
      %v307 = vld [vmem:[%s247 + $0x44] sm:$0xf]
      %v308 = vld [vmem:[%s247 + $0x48] sm:$0xf]
      %v309 = vld [vmem:[%s247 + $0x4c] sm:$0xf]
      %v310 = vld [vmem:[%s247 + $0x50] sm:$0xf]
      %v311 = vld [vmem:[%s247 + $0x54] sm:$0xf]
      %v312 = vld [vmem:[%s247 + $0x58] sm:$0xf]
      %v313 = vld [vmem:[%s247 + $0x5c] sm:$0xf]
      %v314 = vld [vmem:[%s247 + $0x60] sm:$0xf]
      %v315 = vld [vmem:[%s247 + $0x64] sm:$0xf]
      %v316 = vld [vmem:[%s247 + $0x68] sm:$0xf]
      %v317 = vld [vmem:[%s247 + $0x6c] sm:$0xf]
      %v318 = vld [vmem:[%s247 + $0x70] sm:$0xf]
      %v319 = vld [vmem:[%s247 + $0x74] sm:$0xf]
      %v320 = vld [vmem:[%s247 + $0x78] sm:$0xf]
      %v321 = vld [vmem:[%s247 + $0x7c] sm:$0xf]
      %v322 = vld [vmem:[%s247 + $0x80] sm:$0xf]
      %v323 = vld [vmem:[%s247 + $0x84] sm:$0xf]
      %v324 = vld [vmem:[%s247 + $0x88] sm:$0xf]
      %v325 = vld [vmem:[%s247 + $0x8c] sm:$0xf]
      %v326 = vld [vmem:[%s247 + $0x90] sm:$0xf]
      %v327 = vld [vmem:[%s247 + $0x94] sm:$0xf]
      %v328 = vld [vmem:[%s247 + $0x98] sm:$0xf]
      %v329 = vld [vmem:[%s247 + $0x9c] sm:$0xf]
      %v330 = vld [vmem:[%s247 + $0xa0] sm:$0xf]
      %v331 = vld [vmem:[%s247 + $0xa4] sm:$0xf]
      %v332 = vld [vmem:[%s247 + $0xa8] sm:$0xf]
      %v333 = vld [vmem:[%s247 + $0xac] sm:$0xf]
      %v334 = vld [vmem:[%s247 + $0xb0] sm:$0xf]
      %v335 = vld [vmem:[%s247 + $0xb4] sm:$0xf]
      %v336 = vld [vmem:[%s247 + $0xb8] sm:$0xf]
      %v337 = vld [vmem:[%s247 + $0xbc] sm:$0xf]
      %v338 = vld [vmem:[%s247 + $0xc0] sm:$0xf]
      %v339 = vld [vmem:[%s247 + $0xc4] sm:$0xf]
      %v340 = vld [vmem:[%s247 + $0xc8] sm:$0xf]
      %v341 = vld [vmem:[%s247 + $0xcc] sm:$0xf]
      %v342 = vld [vmem:[%s247 + $0xd0] sm:$0xf]
      %v343 = vld [vmem:[%s247 + $0xd4] sm:$0xf]
      %v344 = vld [vmem:[%s247 + $0xd8] sm:$0xf]
      %v345 = vld [vmem:[%s247 + $0xdc] sm:$0xf]
      %v346 = vld [vmem:[%s247 + $0xe0] sm:$0xf]
      %v347 = vld [vmem:[%s247 + $0xe4] sm:$0xf]
      %v348 = vld [vmem:[%s247 + $0xe8] sm:$0xf]
      %v349 = vld [vmem:[%s247 + $0xec] sm:$0xf]
      %v350 = vld [vmem:[%s247 + $0xf0] sm:$0xf]
      %v351 = vld [vmem:[%s247 + $0xf4] sm:$0xf]
      %v352 = vld [vmem:[%s247 + $0xf8] sm:$0xf]
      %v353 = vld [vmem:[%s247 + $0xfc] sm:$0xf]
      %v418 = vunpack.c.l.b16 %v290
      %v419 = vunpack.c.l.b16 %v291
      %v420 = vunpack.c.l.b16 %v292
      %v421 = vunpack.c.l.b16 %v293
      %v422 = vunpack.c.l.b16 %v294
      %v423 = vunpack.c.l.b16 %v295
      %v424 = vunpack.c.l.b16 %v296
      %v425 = vunpack.c.l.b16 %v297
      %v426 = vunpack.c.l.b16 %v298
      %v427 = vunpack.c.l.b16 %v299
      %v428 = vunpack.c.l.b16 %v300
      %v429 = vunpack.c.l.b16 %v301
      %v430 = vunpack.c.l.b16 %v302
      %v431 = vunpack.c.l.b16 %v303
      %v432 = vunpack.c.l.b16 %v304
      %v433 = vunpack.c.l.b16 %v305
      %v434 = vunpack.c.l.b16 %v306
      %v435 = vunpack.c.l.b16 %v307
      %v436 = vunpack.c.l.b16 %v308
      %v437 = vunpack.c.l.b16 %v309
      %v438 = vunpack.c.l.b16 %v310
      %v439 = vunpack.c.l.b16 %v311
      %v440 = vunpack.c.l.b16 %v312
      %v441 = vunpack.c.l.b16 %v313
      %v442 = vunpack.c.l.b16 %v314
      %v443 = vunpack.c.l.b16 %v315
      %v444 = vunpack.c.l.b16 %v316
      %v445 = vunpack.c.l.b16 %v317
      %v446 = vunpack.c.l.b16 %v318
      %v447 = vunpack.c.l.b16 %v319
      %v448 = vunpack.c.l.b16 %v320
      %v449 = vunpack.c.l.b16 %v321
      %v450 = vunpack.c.l.b16 %v322
      %v451 = vunpack.c.l.b16 %v323
      %v452 = vunpack.c.l.b16 %v324
      %v453 = vunpack.c.l.b16 %v325
      %v454 = vunpack.c.l.b16 %v326
      %v455 = vunpack.c.l.b16 %v327
      %v456 = vunpack.c.l.b16 %v328
      %v457 = vunpack.c.l.b16 %v329
      %v458 = vunpack.c.l.b16 %v330
      %v459 = vunpack.c.l.b16 %v331
      %v460 = vunpack.c.l.b16 %v332
      %v461 = vunpack.c.l.b16 %v333
      %v462 = vunpack.c.l.b16 %v334
      %v463 = vunpack.c.l.b16 %v335
      %v464 = vunpack.c.l.b16 %v336
      %v465 = vunpack.c.l.b16 %v337
      %v466 = vunpack.c.l.b16 %v338
      %v467 = vunpack.c.l.b16 %v339
      %v468 = vunpack.c.l.b16 %v340
      %v469 = vunpack.c.l.b16 %v341
      %v470 = vunpack.c.l.b16 %v342
      %v471 = vunpack.c.l.b16 %v343
      %v472 = vunpack.c.l.b16 %v344
      %v473 = vunpack.c.l.b16 %v345
      %v474 = vunpack.c.l.b16 %v346
      %v475 = vunpack.c.l.b16 %v347
      %v476 = vunpack.c.l.b16 %v348
      %v477 = vunpack.c.l.b16 %v349
      %v478 = vunpack.c.l.b16 %v350
      %v479 = vunpack.c.l.b16 %v351
      %v480 = vunpack.c.l.b16 %v352
      %v481 = vunpack.c.l.b16 %v353
      %v482 = vpack.c.b16 %v419, %v418
      %v483 = vpack.c.b16 %v421, %v420
      %v484 = vpack.c.b16 %v423, %v422
      %v485 = vpack.c.b16 %v425, %v424
      %v486 = vpack.c.b16 %v427, %v426
      %v487 = vpack.c.b16 %v429, %v428
      %v488 = vpack.c.b16 %v431, %v430
      %v489 = vpack.c.b16 %v433, %v432
      %v490 = vpack.c.b16 %v435, %v434
      %v491 = vpack.c.b16 %v437, %v436
      %v492 = vpack.c.b16 %v439, %v438
      %v493 = vpack.c.b16 %v441, %v440
      %v494 = vpack.c.b16 %v443, %v442
      %v495 = vpack.c.b16 %v445, %v444
      %v496 = vpack.c.b16 %v447, %v446
      %v497 = vpack.c.b16 %v449, %v448
      %v498 = vpack.c.b16 %v451, %v450
      %v499 = vpack.c.b16 %v453, %v452
      %v500 = vpack.c.b16 %v455, %v454
      %v501 = vpack.c.b16 %v457, %v456
      %v502 = vpack.c.b16 %v459, %v458
      %v503 = vpack.c.b16 %v461, %v460
      %v504 = vpack.c.b16 %v463, %v462
      %v505 = vpack.c.b16 %v465, %v464
      %v506 = vpack.c.b16 %v467, %v466
      %v507 = vpack.c.b16 %v469, %v468
      %v508 = vpack.c.b16 %v471, %v470
      %v509 = vpack.c.b16 %v473, %v472
      %v510 = vpack.c.b16 %v475, %v474
      %v511 = vpack.c.b16 %v477, %v476
      %v512 = vpack.c.b16 %v479, %v478
      %v513 = vpack.c.b16 %v481, %v480
      %v518 = vunpack.c.l.b16 %v256
      %v519 = vunpack.c.l.b16 %v257
      %v520 = vunpack.c.l.b16 %v258
      %v521 = vunpack.c.l.b16 %v259
      %v522 = vpack.c.b16 %v519, %v518
      %v523 = vpack.c.b16 %v521, %v520
      %vm526 = vcmask 261120
      %v528 = vsel %vm526, %v482, 0
      %v531 = vsel %vm526, %v483, 0
      %v534 = vsel %vm526, %v484, 0
      %v537 = vsel %vm526, %v485, 0
      %v540 = vsel %vm526, %v486, 0
      %v543 = vsel %vm526, %v487, 0
      %v546 = vsel %vm526, %v488, 0
      %v549 = vsel %vm526, %v489, 0
      %v552 = vsel %vm526, %v490, 0
      %v555 = vsel %vm526, %v491, 0
      %v558 = vsel %vm526, %v492, 0
      %v561 = vsel %vm526, %v493, 0
      %v564 = vsel %vm526, %v494, 0
      %v567 = vsel %vm526, %v495, 0
      %v570 = vsel %vm526, %v496, 0
      %v573 = vsel %vm526, %v497, 0
      %v576 = vsel %vm526, %v498, 0
      %v579 = vsel %vm526, %v499, 0
      %v582 = vsel %vm526, %v500, 0
      %v585 = vsel %vm526, %v501, 0
      %v588 = vsel %vm526, %v502, 0
      %v591 = vsel %vm526, %v503, 0
      %v594 = vsel %vm526, %v504, 0
      %v597 = vsel %vm526, %v505, 0
      %v600 = vsel %vm526, %v506, 0
      %v603 = vsel %vm526, %v507, 0
      %v606 = vsel %vm526, %v508, 0
      %v609 = vsel %vm526, %v509, 0
      %v612 = vsel %vm526, %v510, 0
      %v615 = vsel %vm526, %v511, 0
      %v618 = vsel %vm526, %v512, 0
      %v621 = vsel %vm526, %v513, 0
      %623 = vmatprep.subr.bf16.mxu0 0
      %624 = vmatpush1.bf16.msra.mxu0 %v522
      %625 = vmatprep.subr.bf16.mxu0 0
      %626 = vmatpush1.bf16.msra.mxu0 %v523
      %627 = vmatprep.subr.bf16.mxu0 0
      %628 = vmatpush1.bf16.msra.mxu0 0
      %629 = vmatprep.subr.bf16.mxu0 0
      %630 = vmatpush1.bf16.msra.mxu0 0
      %631 = vmatprep.subr.bf16.mxu0 0
      %632 = vmatpush1.bf16.msra.mxu0 0
      %633 = vmatprep.subr.bf16.mxu0 0
      %634 = vmatpush1.bf16.msra.mxu0 0
      %635 = vmatprep.subr.bf16.mxu0 0
      %636 = vmatpush1.bf16.msra.mxu0 0
      %637 = vmatprep.subr.bf16.mxu0 0
      %638 = vmatpush1.bf16.msra.mxu0 0
      %639 = vmatprep.subr.bf16.mxu0 0
      %640 = vmatpush1.bf16.msra.mxu0 0
      %641 = vmatprep.subr.bf16.mxu0 0
      %642 = vmatpush1.bf16.msra.mxu0 0
      %643 = vmatprep.subr.bf16.mxu0 0
      %644 = vmatpush1.bf16.msra.mxu0 0
      %645 = vmatprep.subr.bf16.mxu0 0
      %646 = vmatpush1.bf16.msra.mxu0 0
      %647 = vmatprep.subr.bf16.mxu0 0
      %648 = vmatpush1.bf16.msra.mxu0 0
      %649 = vmatprep.subr.bf16.mxu0 0
      %650 = vmatpush1.bf16.msra.mxu0 0
      %651 = vmatprep.subr.bf16.mxu0 0
      %652 = vmatpush1.bf16.msra.mxu0 0
      %653 = vmatprep.subr.bf16.mxu0 0
      %654 = vmatpush1.bf16.msra.mxu0 0
      %655 = vmatprep.mubr.bf16.mxu0 0
      %656 = vmatmul.mubr.bf16.gmra.mrb[0].mxu0 %v528
      %v657 = vpop.f32.mrb[0].mxu0
      %v658 = vadd.f32 0.0, %v657
      %v659 = vpop.f32.mrb[0].mxu0
      %v660 = vpop.f32.mrb[0].mxu0
      %v661 = vadd.f32 0.0, %v660
      %v662 = vpop.f32.mrb[0].mxu0
      %663 = vmatprep.mubr.bf16.mxu0 0
      %664 = vmatmul.mubr.bf16.gmra.mrb[0].mxu0 %v531
      %v665 = vpop.f32.mrb[0].mxu0
      %v666 = vadd.f32 0.0, %v665
      %v667 = vpop.f32.mrb[0].mxu0
      %v668 = vpop.f32.mrb[0].mxu0
      %v669 = vadd.f32 0.0, %v668
      %v670 = vpop.f32.mrb[0].mxu0
      %671 = vmatprep.mubr.bf16.mxu0 0
      %672 = vmatmul.mubr.bf16.gmra.mrb[0].mxu0 %v534
      %v673 = vpop.f32.mrb[0].mxu0
      %v674 = vadd.f32 0.0, %v673
      %v675 = vpop.f32.mrb[0].mxu0
      %v676 = vpop.f32.mrb[0].mxu0
      %v677 = vadd.f32 0.0, %v676
      %v678 = vpop.f32.mrb[0].mxu0
      %679 = vmatprep.mubr.bf16.mxu0 0
      %680 = vmatmul.mubr.bf16.gmra.mrb[0].mxu0 %v537
      %v681 = vpop.f32.mrb[0].mxu0
      %v682 = vadd.f32 0.0, %v681
      %v683 = vpop.f32.mrb[0].mxu0
      %v684 = vpop.f32.mrb[0].mxu0
      %v685 = vadd.f32 0.0, %v684
      %v686 = vpop.f32.mrb[0].mxu0
      %687 = vmatprep.mubr.bf16.mxu0 0
      %688 = vmatmul.mubr.bf16.gmra.mrb[0].mxu0 %v540
      %v689 = vpop.f32.mrb[0].mxu0
      %v690 = vadd.f32 0.0, %v689
      %v691 = vpop.f32.mrb[0].mxu0
      %v692 = vpop.f32.mrb[0].mxu0
      %v693 = vadd.f32 0.0, %v692
      %v694 = vpop.f32.mrb[0].mxu0
      %695 = vmatprep.mubr.bf16.mxu0 0
      %696 = vmatmul.mubr.bf16.gmra.mrb[0].mxu0 %v543
      %v697 = vpop.f32.mrb[0].mxu0
      %v698 = vadd.f32 0.0, %v697
      %v699 = vpop.f32.mrb[0].mxu0
      %v700 = vpop.f32.mrb[0].mxu0
      %v701 = vadd.f32 0.0, %v700
      %v702 = vpop.f32.mrb[0].mxu0
      %703 = vmatprep.mubr.bf16.mxu0 0
      %704 = vmatmul.mubr.bf16.gmra.mrb[0].mxu0 %v546
      %v705 = vpop.f32.mrb[0].mxu0
      %v706 = vadd.f32 0.0, %v705
      %v707 = vpop.f32.mrb[0].mxu0
      %v708 = vpop.f32.mrb[0].mxu0
      %v709 = vadd.f32 0.0, %v708
      %v710 = vpop.f32.mrb[0].mxu0
      %711 = vmatprep.mubr.bf16.mxu0 0
      %712 = vmatmul.mubr.bf16.gmra.mrb[0].mxu0 %v549
      %v713 = vpop.f32.mrb[0].mxu0
      %v714 = vadd.f32 0.0, %v713
      %v715 = vpop.f32.mrb[0].mxu0
      %v716 = vpop.f32.mrb[0].mxu0
      %v717 = vadd.f32 0.0, %v716
      %v718 = vpop.f32.mrb[0].mxu0
      %719 = vmatprep.mubr.bf16.mxu0 0
      %720 = vmatmul.mubr.bf16.gmra.mrb[0].mxu0 %v552
      %v721 = vpop.f32.mrb[0].mxu0
      %v722 = vadd.f32 0.0, %v721
      %v723 = vpop.f32.mrb[0].mxu0
      %v724 = vpop.f32.mrb[0].mxu0
      %v725 = vadd.f32 0.0, %v724
      %v726 = vpop.f32.mrb[0].mxu0
      %727 = vmatprep.mubr.bf16.mxu0 0
      %728 = vmatmul.mubr.bf16.gmra.mrb[0].mxu0 %v555
      %v729 = vpop.f32.mrb[0].mxu0
      %v730 = vadd.f32 0.0, %v729
      %v731 = vpop.f32.mrb[0].mxu0
      %v732 = vpop.f32.mrb[0].mxu0
      %v733 = vadd.f32 0.0, %v732
      %v734 = vpop.f32.mrb[0].mxu0
      %735 = vmatprep.mubr.bf16.mxu0 0
      %736 = vmatmul.mubr.bf16.gmra.mrb[0].mxu0 %v558
      %v737 = vpop.f32.mrb[0].mxu0
      %v738 = vadd.f32 0.0, %v737
      %v739 = vpop.f32.mrb[0].mxu0
      %v740 = vpop.f32.mrb[0].mxu0
      %v741 = vadd.f32 0.0, %v740
      %v742 = vpop.f32.mrb[0].mxu0
      %743 = vmatprep.mubr.bf16.mxu0 0
      %744 = vmatmul.mubr.bf16.gmra.mrb[0].mxu0 %v561
      %v745 = vpop.f32.mrb[0].mxu0
      %v746 = vadd.f32 0.0, %v745
      %v747 = vpop.f32.mrb[0].mxu0
      %v748 = vpop.f32.mrb[0].mxu0
      %v749 = vadd.f32 0.0, %v748
      %v750 = vpop.f32.mrb[0].mxu0
      %751 = vmatprep.mubr.bf16.mxu0 0
      %752 = vmatmul.mubr.bf16.gmra.mrb[0].mxu0 %v564
      %v753 = vpop.f32.mrb[0].mxu0
      %v754 = vadd.f32 0.0, %v753
      %v755 = vpop.f32.mrb[0].mxu0
      %v756 = vpop.f32.mrb[0].mxu0
      %v757 = vadd.f32 0.0, %v756
      %v758 = vpop.f32.mrb[0].mxu0
      %759 = vmatprep.mubr.bf16.mxu0 0
      %760 = vmatmul.mubr.bf16.gmra.mrb[0].mxu0 %v567
      %v761 = vpop.f32.mrb[0].mxu0
      %v762 = vadd.f32 0.0, %v761
      %v763 = vpop.f32.mrb[0].mxu0
      %v764 = vpop.f32.mrb[0].mxu0
      %v765 = vadd.f32 0.0, %v764
      %v766 = vpop.f32.mrb[0].mxu0
      %767 = vmatprep.mubr.bf16.mxu0 0
      %768 = vmatmul.mubr.bf16.gmra.mrb[0].mxu0 %v570
      %v769 = vpop.f32.mrb[0].mxu0
      %v770 = vadd.f32 0.0, %v769
      %v771 = vpop.f32.mrb[0].mxu0
      %v772 = vpop.f32.mrb[0].mxu0
      %v773 = vadd.f32 0.0, %v772
      %v774 = vpop.f32.mrb[0].mxu0
      %775 = vmatprep.mubr.bf16.mxu0 0
      %776 = vmatmul.mubr.bf16.gmra.mrb[0].mxu0 %v573
      %v777 = vpop.f32.mrb[0].mxu0
      %v778 = vadd.f32 0.0, %v777
      %v779 = vpop.f32.mrb[0].mxu0
      %v780 = vpop.f32.mrb[0].mxu0
      %v781 = vadd.f32 0.0, %v780
      %v782 = vpop.f32.mrb[0].mxu0
      %783 = vmatprep.mubr.bf16.mxu0 0
      %784 = vmatmul.mubr.bf16.gmra.mrb[0].mxu0 %v576
      %v785 = vpop.f32.mrb[0].mxu0
      %v786 = vadd.f32 0.0, %v785
      %v787 = vpop.f32.mrb[0].mxu0
      %v788 = vpop.f32.mrb[0].mxu0
      %v789 = vadd.f32 0.0, %v788
      %v790 = vpop.f32.mrb[0].mxu0
      %791 = vmatprep.mubr.bf16.mxu0 0
      %792 = vmatmul.mubr.bf16.gmra.mrb[0].mxu0 %v579
      %v793 = vpop.f32.mrb[0].mxu0
      %v794 = vadd.f32 0.0, %v793
      %v795 = vpop.f32.mrb[0].mxu0
      %v796 = vpop.f32.mrb[0].mxu0
      %v797 = vadd.f32 0.0, %v796
      %v798 = vpop.f32.mrb[0].mxu0
      %799 = vmatprep.mubr.bf16.mxu0 0
      %800 = vmatmul.mubr.bf16.gmra.mrb[0].mxu0 %v582
      %v801 = vpop.f32.mrb[0].mxu0
      %v802 = vadd.f32 0.0, %v801
      %v803 = vpop.f32.mrb[0].mxu0
      %v804 = vpop.f32.mrb[0].mxu0
      %v805 = vadd.f32 0.0, %v804
      %v806 = vpop.f32.mrb[0].mxu0
      %807 = vmatprep.mubr.bf16.mxu0 0
      %808 = vmatmul.mubr.bf16.gmra.mrb[0].mxu0 %v585
      %v809 = vpop.f32.mrb[0].mxu0
      %v810 = vadd.f32 0.0, %v809
      %v811 = vpop.f32.mrb[0].mxu0
      %v812 = vpop.f32.mrb[0].mxu0
      %v813 = vadd.f32 0.0, %v812
      %v814 = vpop.f32.mrb[0].mxu0
      %815 = vmatprep.mubr.bf16.mxu0 0
      %816 = vmatmul.mubr.bf16.gmra.mrb[0].mxu0 %v588
      %v817 = vpop.f32.mrb[0].mxu0
      %v818 = vadd.f32 0.0, %v817
      %v819 = vpop.f32.mrb[0].mxu0
      %v820 = vpop.f32.mrb[0].mxu0
      %v821 = vadd.f32 0.0, %v820
      %v822 = vpop.f32.mrb[0].mxu0
      %823 = vmatprep.mubr.bf16.mxu0 0
      %824 = vmatmul.mubr.bf16.gmra.mrb[0].mxu0 %v591
      %v825 = vpop.f32.mrb[0].mxu0
      %v826 = vadd.f32 0.0, %v825
      %v827 = vpop.f32.mrb[0].mxu0
      %v828 = vpop.f32.mrb[0].mxu0
      %v829 = vadd.f32 0.0, %v828
      %v830 = vpop.f32.mrb[0].mxu0
      %831 = vmatprep.mubr.bf16.mxu0 0
      %832 = vmatmul.mubr.bf16.gmra.mrb[0].mxu0 %v594
      %v833 = vpop.f32.mrb[0].mxu0
      %v834 = vadd.f32 0.0, %v833
      %v835 = vpop.f32.mrb[0].mxu0
      %v836 = vpop.f32.mrb[0].mxu0
      %v837 = vadd.f32 0.0, %v836
      %v838 = vpop.f32.mrb[0].mxu0
      %839 = vmatprep.mubr.bf16.mxu0 0
      %840 = vmatmul.mubr.bf16.gmra.mrb[0].mxu0 %v597
      %v841 = vpop.f32.mrb[0].mxu0
      %v842 = vadd.f32 0.0, %v841
      %v843 = vpop.f32.mrb[0].mxu0
      %v844 = vpop.f32.mrb[0].mxu0
      %v845 = vadd.f32 0.0, %v844
      %v846 = vpop.f32.mrb[0].mxu0
      %847 = vmatprep.mubr.bf16.mxu0 0
      %848 = vmatmul.mubr.bf16.gmra.mrb[0].mxu0 %v600
      %v849 = vpop.f32.mrb[0].mxu0
      %v850 = vadd.f32 0.0, %v849
      %v851 = vpop.f32.mrb[0].mxu0
      %v852 = vpop.f32.mrb[0].mxu0
      %v853 = vadd.f32 0.0, %v852
      %v854 = vpop.f32.mrb[0].mxu0
      %855 = vmatprep.mubr.bf16.mxu0 0
      %856 = vmatmul.mubr.bf16.gmra.mrb[0].mxu0 %v603
      %v857 = vpop.f32.mrb[0].mxu0
      %v858 = vadd.f32 0.0, %v857
      %v859 = vpop.f32.mrb[0].mxu0
      %v860 = vpop.f32.mrb[0].mxu0
      %v861 = vadd.f32 0.0, %v860
      %v862 = vpop.f32.mrb[0].mxu0
      %863 = vmatprep.mubr.bf16.mxu0 0
      %864 = vmatmul.mubr.bf16.gmra.mrb[0].mxu0 %v606
      %v865 = vpop.f32.mrb[0].mxu0
      %v866 = vadd.f32 0.0, %v865
      %v867 = vpop.f32.mrb[0].mxu0
      %v868 = vpop.f32.mrb[0].mxu0
      %v869 = vadd.f32 0.0, %v868
      %v870 = vpop.f32.mrb[0].mxu0
      %871 = vmatprep.mubr.bf16.mxu0 0
      %872 = vmatmul.mubr.bf16.gmra.mrb[0].mxu0 %v609
      %v873 = vpop.f32.mrb[0].mxu0
      %v874 = vadd.f32 0.0, %v873
      %v875 = vpop.f32.mrb[0].mxu0
      %v876 = vpop.f32.mrb[0].mxu0
      %v877 = vadd.f32 0.0, %v876
      %v878 = vpop.f32.mrb[0].mxu0
      %879 = vmatprep.mubr.bf16.mxu0 0
      %880 = vmatmul.mubr.bf16.gmra.mrb[0].mxu0 %v612
      %v881 = vpop.f32.mrb[0].mxu0
      %v882 = vadd.f32 0.0, %v881
      %v883 = vpop.f32.mrb[0].mxu0
      %v884 = vpop.f32.mrb[0].mxu0
      %v885 = vadd.f32 0.0, %v884
      %v886 = vpop.f32.mrb[0].mxu0
      %887 = vmatprep.mubr.bf16.mxu0 0
      %888 = vmatmul.mubr.bf16.gmra.mrb[0].mxu0 %v615
      %v889 = vpop.f32.mrb[0].mxu0
      %v890 = vadd.f32 0.0, %v889
      %v891 = vpop.f32.mrb[0].mxu0
      %v892 = vpop.f32.mrb[0].mxu0
      %v893 = vadd.f32 0.0, %v892
      %v894 = vpop.f32.mrb[0].mxu0
      %895 = vmatprep.mubr.bf16.mxu0 0
      %896 = vmatmul.mubr.bf16.gmra.mrb[0].mxu0 %v618
      %v897 = vpop.f32.mrb[0].mxu0
      %v898 = vadd.f32 0.0, %v897
      %v899 = vpop.f32.mrb[0].mxu0
      %v900 = vpop.f32.mrb[0].mxu0
      %v901 = vadd.f32 0.0, %v900
      %v902 = vpop.f32.mrb[0].mxu0
      %903 = vmatprep.mubr.bf16.mxu0 0
      %904 = vmatmul.mubr.bf16.gmra.mrb[0].mxu0 %v621
      %v905 = vpop.f32.mrb[0].mxu0
      %v906 = vadd.f32 0.0, %v905
      %v907 = vpop.f32.mrb[0].mxu0
      %v908 = vpop.f32.mrb[0].mxu0
      %v909 = vadd.f32 0.0, %v908
      %v910 = vpop.f32.mrb[0].mxu0
      %911 = vdwg.mxu0
      %v912 = vpack.c.bf16 %v661, %v658
      %v913 = vpack.c.bf16 %v669, %v666
      %v914 = vpack.c.bf16 %v677, %v674
      %v915 = vpack.c.bf16 %v685, %v682
      %v916 = vpack.c.bf16 %v693, %v690
      %v917 = vpack.c.bf16 %v701, %v698
      %v918 = vpack.c.bf16 %v709, %v706
      %v919 = vpack.c.bf16 %v717, %v714
      %v920 = vpack.c.bf16 %v725, %v722
      %v921 = vpack.c.bf16 %v733, %v730
      %v922 = vpack.c.bf16 %v741, %v738
      %v923 = vpack.c.bf16 %v749, %v746
      %v924 = vpack.c.bf16 %v757, %v754
      %v925 = vpack.c.bf16 %v765, %v762
      %v926 = vpack.c.bf16 %v773, %v770
      %v927 = vpack.c.bf16 %v781, %v778
      %v928 = vpack.c.bf16 %v789, %v786
      %v929 = vpack.c.bf16 %v797, %v794
      %v930 = vpack.c.bf16 %v805, %v802
      %v931 = vpack.c.bf16 %v813, %v810
      %v932 = vpack.c.bf16 %v821, %v818
      %v933 = vpack.c.bf16 %v829, %v826
      %v934 = vpack.c.bf16 %v837, %v834
      %v935 = vpack.c.bf16 %v845, %v842
      %v936 = vpack.c.bf16 %v853, %v850
      %v937 = vpack.c.bf16 %v861, %v858
      %v938 = vpack.c.bf16 %v869, %v866
      %v939 = vpack.c.bf16 %v877, %v874
      %v940 = vpack.c.bf16 %v885, %v882
      %v941 = vpack.c.bf16 %v893, %v890
      %v942 = vpack.c.bf16 %v901, %v898
      %v943 = vpack.c.bf16 %v909, %v906
      %v944 = vld [vmem:[%s2] sm:$0xf]
      %v945 = vld [vmem:[%s2 + $0x4] sm:$0xf]
      %v946 = vld [vmem:[%s2 + $0x8] sm:$0xf]
      %v947 = vld [vmem:[%s2 + $0xc] sm:$0xf]
      %v952 = vunpack.c.l.b16 %v944
      %v953 = vunpack.c.l.b16 %v945
      %v954 = vunpack.c.l.b16 %v946
      %v955 = vunpack.c.l.b16 %v947
      %v956 = vpack.c.b16 %v953, %v952
      %v957 = vpack.c.b16 %v955, %v954
      %v961 = vsel %vm526, %v912, 0
      %v964 = vsel %vm526, %v913, 0
      %v967 = vsel %vm526, %v914, 0
      %v970 = vsel %vm526, %v915, 0
      %v973 = vsel %vm526, %v916, 0
      %v976 = vsel %vm526, %v917, 0
      %v979 = vsel %vm526, %v918, 0
      %v982 = vsel %vm526, %v919, 0
      %v985 = vsel %vm526, %v920, 0
      %v988 = vsel %vm526, %v921, 0
      %v991 = vsel %vm526, %v922, 0
      %v994 = vsel %vm526, %v923, 0
      %v997 = vsel %vm526, %v924, 0
      %v1000 = vsel %vm526, %v925, 0
      %v1003 = vsel %vm526, %v926, 0
      %v1006 = vsel %vm526, %v927, 0
      %v1009 = vsel %vm526, %v928, 0
      %v1012 = vsel %vm526, %v929, 0
      %v1015 = vsel %vm526, %v930, 0
      %v1018 = vsel %vm526, %v931, 0
      %v1021 = vsel %vm526, %v932, 0
      %v1024 = vsel %vm526, %v933, 0
      %v1027 = vsel %vm526, %v934, 0
      %v1030 = vsel %vm526, %v935, 0
      %v1033 = vsel %vm526, %v936, 0
      %v1036 = vsel %vm526, %v937, 0
      %v1039 = vsel %vm526, %v938, 0
      %v1042 = vsel %vm526, %v939, 0
      %v1045 = vsel %vm526, %v940, 0
      %v1048 = vsel %vm526, %v941, 0
      %v1051 = vsel %vm526, %v942, 0
      %v1054 = vsel %vm526, %v943, 0
      %1056 = vmatprep.subr.bf16.mxu0 0
      %1057 = vmatpush1.bf16.msra.mxu0 %v956
      %1058 = vmatprep.subr.bf16.mxu0 0
      %1059 = vmatpush1.bf16.msra.mxu0 %v957
      %1060 = vmatprep.subr.bf16.mxu0 0
      %1061 = vmatpush1.bf16.msra.mxu0 0
      %1062 = vmatprep.subr.bf16.mxu0 0
      %1063 = vmatpush1.bf16.msra.mxu0 0
      %1064 = vmatprep.subr.bf16.mxu0 0
      %1065 = vmatpush1.bf16.msra.mxu0 0
      %1066 = vmatprep.subr.bf16.mxu0 0
      %1067 = vmatpush1.bf16.msra.mxu0 0
      %1068 = vmatprep.subr.bf16.mxu0 0
      %1069 = vmatpush1.bf16.msra.mxu0 0
      %1070 = vmatprep.subr.bf16.mxu0 0
      %1071 = vmatpush1.bf16.msra.mxu0 0
      %1072 = vmatprep.subr.bf16.mxu0 0
      %1073 = vmatpush1.bf16.msra.mxu0 0
      %1074 = vmatprep.subr.bf16.mxu0 0
      %1075 = vmatpush1.bf16.msra.mxu0 0
      %1076 = vmatprep.subr.bf16.mxu0 0
      %1077 = vmatpush1.bf16.msra.mxu0 0
      %1078 = vmatprep.subr.bf16.mxu0 0
      %1079 = vmatpush1.bf16.msra.mxu0 0
      %1080 = vmatprep.subr.bf16.mxu0 0
      %1081 = vmatpush1.bf16.msra.mxu0 0
      %1082 = vmatprep.subr.bf16.mxu0 0
      %1083 = vmatpush1.bf16.msra.mxu0 0
      %1084 = vmatprep.subr.bf16.mxu0 0
      %1085 = vmatpush1.bf16.msra.mxu0 0
      %1086 = vmatprep.subr.bf16.mxu0 0
      %1087 = vmatpush1.bf16.msra.mxu0 0
      %1088 = vmatprep.mubr.bf16.mxu0 0
      %1089 = vmatmul.mubr.bf16.gmra.mrb[0].mxu0 %v961
      %v1090 = vpop.f32.mrb[0].mxu0
      %v1091 = vadd.f32 0.0, %v1090
      %v1092 = vpop.f32.mrb[0].mxu0
      %v1093 = vpop.f32.mrb[0].mxu0
      %v1094 = vadd.f32 0.0, %v1093
      %v1095 = vpop.f32.mrb[0].mxu0
      %1096 = vmatprep.mubr.bf16.mxu0 0
      %1097 = vmatmul.mubr.bf16.gmra.mrb[0].mxu0 %v964
      %v1098 = vpop.f32.mrb[0].mxu0
      %v1099 = vadd.f32 0.0, %v1098
      %v1100 = vpop.f32.mrb[0].mxu0
      %v1101 = vpop.f32.mrb[0].mxu0
      %v1102 = vadd.f32 0.0, %v1101
      %v1103 = vpop.f32.mrb[0].mxu0
      %1104 = vmatprep.mubr.bf16.mxu0 0
      %1105 = vmatmul.mubr.bf16.gmra.mrb[0].mxu0 %v967
      %v1106 = vpop.f32.mrb[0].mxu0
      %v1107 = vadd.f32 0.0, %v1106
      %v1108 = vpop.f32.mrb[0].mxu0
      %v1109 = vpop.f32.mrb[0].mxu0
      %v1110 = vadd.f32 0.0, %v1109
      %v1111 = vpop.f32.mrb[0].mxu0
      %1112 = vmatprep.mubr.bf16.mxu0 0
      %1113 = vmatmul.mubr.bf16.gmra.mrb[0].mxu0 %v970
      %v1114 = vpop.f32.mrb[0].mxu0
      %v1115 = vadd.f32 0.0, %v1114
      %v1116 = vpop.f32.mrb[0].mxu0
      %v1117 = vpop.f32.mrb[0].mxu0
      %v1118 = vadd.f32 0.0, %v1117
      %v1119 = vpop.f32.mrb[0].mxu0
      %1120 = vmatprep.mubr.bf16.mxu0 0
      %1121 = vmatmul.mubr.bf16.gmra.mrb[0].mxu0 %v973
      %v1122 = vpop.f32.mrb[0].mxu0
      %v1123 = vadd.f32 0.0, %v1122
      %v1124 = vpop.f32.mrb[0].mxu0
      %v1125 = vpop.f32.mrb[0].mxu0
      %v1126 = vadd.f32 0.0, %v1125
      %v1127 = vpop.f32.mrb[0].mxu0
      %1128 = vmatprep.mubr.bf16.mxu0 0
      %1129 = vmatmul.mubr.bf16.gmra.mrb[0].mxu0 %v976
      %v1130 = vpop.f32.mrb[0].mxu0
      %v1131 = vadd.f32 0.0, %v1130
      %v1132 = vpop.f32.mrb[0].mxu0
      %v1133 = vpop.f32.mrb[0].mxu0
      %v1134 = vadd.f32 0.0, %v1133
      %v1135 = vpop.f32.mrb[0].mxu0
      %1136 = vmatprep.mubr.bf16.mxu0 0
      %1137 = vmatmul.mubr.bf16.gmra.mrb[0].mxu0 %v979
      %v1138 = vpop.f32.mrb[0].mxu0
      %v1139 = vadd.f32 0.0, %v1138
      %v1140 = vpop.f32.mrb[0].mxu0
      %v1141 = vpop.f32.mrb[0].mxu0
      %v1142 = vadd.f32 0.0, %v1141
      %v1143 = vpop.f32.mrb[0].mxu0
      %1144 = vmatprep.mubr.bf16.mxu0 0
      %1145 = vmatmul.mubr.bf16.gmra.mrb[0].mxu0 %v982
      %v1146 = vpop.f32.mrb[0].mxu0
      %v1147 = vadd.f32 0.0, %v1146
      %v1148 = vpop.f32.mrb[0].mxu0
      %v1149 = vpop.f32.mrb[0].mxu0
      %v1150 = vadd.f32 0.0, %v1149
      %v1151 = vpop.f32.mrb[0].mxu0
      %1152 = vmatprep.mubr.bf16.mxu0 0
      %1153 = vmatmul.mubr.bf16.gmra.mrb[0].mxu0 %v985
      %v1154 = vpop.f32.mrb[0].mxu0
      %v1155 = vadd.f32 0.0, %v1154
      %v1156 = vpop.f32.mrb[0].mxu0
      %v1157 = vpop.f32.mrb[0].mxu0
      %v1158 = vadd.f32 0.0, %v1157
      %v1159 = vpop.f32.mrb[0].mxu0
      %1160 = vmatprep.mubr.bf16.mxu0 0
      %1161 = vmatmul.mubr.bf16.gmra.mrb[0].mxu0 %v988
      %v1162 = vpop.f32.mrb[0].mxu0
      %v1163 = vadd.f32 0.0, %v1162
      %v1164 = vpop.f32.mrb[0].mxu0
      %v1165 = vpop.f32.mrb[0].mxu0
      %v1166 = vadd.f32 0.0, %v1165
      %v1167 = vpop.f32.mrb[0].mxu0
      %1168 = vmatprep.mubr.bf16.mxu0 0
      %1169 = vmatmul.mubr.bf16.gmra.mrb[0].mxu0 %v991
      %v1170 = vpop.f32.mrb[0].mxu0
      %v1171 = vadd.f32 0.0, %v1170
      %v1172 = vpop.f32.mrb[0].mxu0
      %v1173 = vpop.f32.mrb[0].mxu0
      %v1174 = vadd.f32 0.0, %v1173
      %v1175 = vpop.f32.mrb[0].mxu0
      %1176 = vmatprep.mubr.bf16.mxu0 0
      %1177 = vmatmul.mubr.bf16.gmra.mrb[0].mxu0 %v994
      %v1178 = vpop.f32.mrb[0].mxu0
      %v1179 = vadd.f32 0.0, %v1178
      %v1180 = vpop.f32.mrb[0].mxu0
      %v1181 = vpop.f32.mrb[0].mxu0
      %v1182 = vadd.f32 0.0, %v1181
      %v1183 = vpop.f32.mrb[0].mxu0
      %1184 = vmatprep.mubr.bf16.mxu0 0
      %1185 = vmatmul.mubr.bf16.gmra.mrb[0].mxu0 %v997
      %v1186 = vpop.f32.mrb[0].mxu0
      %v1187 = vadd.f32 0.0, %v1186
      %v1188 = vpop.f32.mrb[0].mxu0
      %v1189 = vpop.f32.mrb[0].mxu0
      %v1190 = vadd.f32 0.0, %v1189
      %v1191 = vpop.f32.mrb[0].mxu0
      %1192 = vmatprep.mubr.bf16.mxu0 0
      %1193 = vmatmul.mubr.bf16.gmra.mrb[0].mxu0 %v1000
      %v1194 = vpop.f32.mrb[0].mxu0
      %v1195 = vadd.f32 0.0, %v1194
      %v1196 = vpop.f32.mrb[0].mxu0
      %v1197 = vpop.f32.mrb[0].mxu0
      %v1198 = vadd.f32 0.0, %v1197
      %v1199 = vpop.f32.mrb[0].mxu0
      %1200 = vmatprep.mubr.bf16.mxu0 0
      %1201 = vmatmul.mubr.bf16.gmra.mrb[0].mxu0 %v1003
      %v1202 = vpop.f32.mrb[0].mxu0
      %v1203 = vadd.f32 0.0, %v1202
      %v1204 = vpop.f32.mrb[0].mxu0
      %v1205 = vpop.f32.mrb[0].mxu0
      %v1206 = vadd.f32 0.0, %v1205
      %v1207 = vpop.f32.mrb[0].mxu0
      %1208 = vmatprep.mubr.bf16.mxu0 0
      %1209 = vmatmul.mubr.bf16.gmra.mrb[0].mxu0 %v1006
      %v1210 = vpop.f32.mrb[0].mxu0
      %v1211 = vadd.f32 0.0, %v1210
      %v1212 = vpop.f32.mrb[0].mxu0
      %v1213 = vpop.f32.mrb[0].mxu0
      %v1214 = vadd.f32 0.0, %v1213
      %v1215 = vpop.f32.mrb[0].mxu0
      %1216 = vmatprep.mubr.bf16.mxu0 0
      %1217 = vmatmul.mubr.bf16.gmra.mrb[0].mxu0 %v1009
      %v1218 = vpop.f32.mrb[0].mxu0
      %v1219 = vadd.f32 0.0, %v1218
      %v1220 = vpop.f32.mrb[0].mxu0
      %v1221 = vpop.f32.mrb[0].mxu0
      %v1222 = vadd.f32 0.0, %v1221
      %v1223 = vpop.f32.mrb[0].mxu0
      %1224 = vmatprep.mubr.bf16.mxu0 0
      %1225 = vmatmul.mubr.bf16.gmra.mrb[0].mxu0 %v1012
      %v1226 = vpop.f32.mrb[0].mxu0
      %v1227 = vadd.f32 0.0, %v1226
      %v1228 = vpop.f32.mrb[0].mxu0
      %v1229 = vpop.f32.mrb[0].mxu0
      %v1230 = vadd.f32 0.0, %v1229
      %v1231 = vpop.f32.mrb[0].mxu0
      %1232 = vmatprep.mubr.bf16.mxu0 0
      %1233 = vmatmul.mubr.bf16.gmra.mrb[0].mxu0 %v1015
      %v1234 = vpop.f32.mrb[0].mxu0
      %v1235 = vadd.f32 0.0, %v1234
      %v1236 = vpop.f32.mrb[0].mxu0
      %v1237 = vpop.f32.mrb[0].mxu0
      %v1238 = vadd.f32 0.0, %v1237
      %v1239 = vpop.f32.mrb[0].mxu0
      %1240 = vmatprep.mubr.bf16.mxu0 0
      %1241 = vmatmul.mubr.bf16.gmra.mrb[0].mxu0 %v1018
      %v1242 = vpop.f32.mrb[0].mxu0
      %v1243 = vadd.f32 0.0, %v1242
      %v1244 = vpop.f32.mrb[0].mxu0
      %v1245 = vpop.f32.mrb[0].mxu0
      %v1246 = vadd.f32 0.0, %v1245
      %v1247 = vpop.f32.mrb[0].mxu0
      %1248 = vmatprep.mubr.bf16.mxu0 0
      %1249 = vmatmul.mubr.bf16.gmra.mrb[0].mxu0 %v1021
      %v1250 = vpop.f32.mrb[0].mxu0
      %v1251 = vadd.f32 0.0, %v1250
      %v1252 = vpop.f32.mrb[0].mxu0
      %v1253 = vpop.f32.mrb[0].mxu0
      %v1254 = vadd.f32 0.0, %v1253
      %v1255 = vpop.f32.mrb[0].mxu0
      %1256 = vmatprep.mubr.bf16.mxu0 0
      %1257 = vmatmul.mubr.bf16.gmra.mrb[0].mxu0 %v1024
      %v1258 = vpop.f32.mrb[0].mxu0
      %v1259 = vadd.f32 0.0, %v1258
      %v1260 = vpop.f32.mrb[0].mxu0
      %v1261 = vpop.f32.mrb[0].mxu0
      %v1262 = vadd.f32 0.0, %v1261
      %v1263 = vpop.f32.mrb[0].mxu0
      %1264 = vmatprep.mubr.bf16.mxu0 0
      %1265 = vmatmul.mubr.bf16.gmra.mrb[0].mxu0 %v1027
      %v1266 = vpop.f32.mrb[0].mxu0
      %v1267 = vadd.f32 0.0, %v1266
      %v1268 = vpop.f32.mrb[0].mxu0
      %v1269 = vpop.f32.mrb[0].mxu0
      %v1270 = vadd.f32 0.0, %v1269
      %v1271 = vpop.f32.mrb[0].mxu0
      %1272 = vmatprep.mubr.bf16.mxu0 0
      %1273 = vmatmul.mubr.bf16.gmra.mrb[0].mxu0 %v1030
      %v1274 = vpop.f32.mrb[0].mxu0
      %v1275 = vadd.f32 0.0, %v1274
      %v1276 = vpop.f32.mrb[0].mxu0
      %v1277 = vpop.f32.mrb[0].mxu0
      %v1278 = vadd.f32 0.0, %v1277
      %v1279 = vpop.f32.mrb[0].mxu0
      %1280 = vmatprep.mubr.bf16.mxu0 0
      %1281 = vmatmul.mubr.bf16.gmra.mrb[0].mxu0 %v1033
      %v1282 = vpop.f32.mrb[0].mxu0
      %v1283 = vadd.f32 0.0, %v1282
      %v1284 = vpop.f32.mrb[0].mxu0
      %v1285 = vpop.f32.mrb[0].mxu0
      %v1286 = vadd.f32 0.0, %v1285
      %v1287 = vpop.f32.mrb[0].mxu0
      %1288 = vmatprep.mubr.bf16.mxu0 0
      %1289 = vmatmul.mubr.bf16.gmra.mrb[0].mxu0 %v1036
      %v1290 = vpop.f32.mrb[0].mxu0
      %v1291 = vadd.f32 0.0, %v1290
      %v1292 = vpop.f32.mrb[0].mxu0
      %v1293 = vpop.f32.mrb[0].mxu0
      %v1294 = vadd.f32 0.0, %v1293
      %v1295 = vpop.f32.mrb[0].mxu0
      %1296 = vmatprep.mubr.bf16.mxu0 0
      %1297 = vmatmul.mubr.bf16.gmra.mrb[0].mxu0 %v1039
      %v1298 = vpop.f32.mrb[0].mxu0
      %v1299 = vadd.f32 0.0, %v1298
      %v1300 = vpop.f32.mrb[0].mxu0
      %v1301 = vpop.f32.mrb[0].mxu0
      %v1302 = vadd.f32 0.0, %v1301
      %v1303 = vpop.f32.mrb[0].mxu0
      %1304 = vmatprep.mubr.bf16.mxu0 0
      %1305 = vmatmul.mubr.bf16.gmra.mrb[0].mxu0 %v1042
      %v1306 = vpop.f32.mrb[0].mxu0
      %v1307 = vadd.f32 0.0, %v1306
      %v1308 = vpop.f32.mrb[0].mxu0
      %v1309 = vpop.f32.mrb[0].mxu0
      %v1310 = vadd.f32 0.0, %v1309
      %v1311 = vpop.f32.mrb[0].mxu0
      %1312 = vmatprep.mubr.bf16.mxu0 0
      %1313 = vmatmul.mubr.bf16.gmra.mrb[0].mxu0 %v1045
      %v1314 = vpop.f32.mrb[0].mxu0
      %v1315 = vadd.f32 0.0, %v1314
      %v1316 = vpop.f32.mrb[0].mxu0
      %v1317 = vpop.f32.mrb[0].mxu0
      %v1318 = vadd.f32 0.0, %v1317
      %v1319 = vpop.f32.mrb[0].mxu0
      %1320 = vmatprep.mubr.bf16.mxu0 0
      %1321 = vmatmul.mubr.bf16.gmra.mrb[0].mxu0 %v1048
      %v1322 = vpop.f32.mrb[0].mxu0
      %v1323 = vadd.f32 0.0, %v1322
      %v1324 = vpop.f32.mrb[0].mxu0
      %v1325 = vpop.f32.mrb[0].mxu0
      %v1326 = vadd.f32 0.0, %v1325
      %v1327 = vpop.f32.mrb[0].mxu0
      %1328 = vmatprep.mubr.bf16.mxu0 0
      %1329 = vmatmul.mubr.bf16.gmra.mrb[0].mxu0 %v1051
      %v1330 = vpop.f32.mrb[0].mxu0
      %v1331 = vadd.f32 0.0, %v1330
      %v1332 = vpop.f32.mrb[0].mxu0
      %v1333 = vpop.f32.mrb[0].mxu0
      %v1334 = vadd.f32 0.0, %v1333
      %v1335 = vpop.f32.mrb[0].mxu0
      %1336 = vmatprep.mubr.bf16.mxu0 0
      %1337 = vmatmul.mubr.bf16.gmra.mrb[0].mxu0 %v1054
      %v1338 = vpop.f32.mrb[0].mxu0
      %v1339 = vadd.f32 0.0, %v1338
      %v1340 = vpop.f32.mrb[0].mxu0
      %v1341 = vpop.f32.mrb[0].mxu0
      %v1342 = vadd.f32 0.0, %v1341
      %v1343 = vpop.f32.mrb[0].mxu0
      %1344 = vdwg.mxu0
      %v1345 = vlaneseq
      %v1346 = vshrl.u32 %v1345, 7
      %v1347 = vsub.s32 0, %v1346
      %v1348 = vrot.slane %v284, %v1347
      %v1349 = vadd.f32 %v1091, %v1348
      %v1350 = vadd.f32 %v1094, %v1348
      %v1351 = vadd.f32 %v1099, %v1348
      %v1352 = vadd.f32 %v1102, %v1348
      %v1353 = vadd.f32 %v1107, %v1348
      %v1354 = vadd.f32 %v1110, %v1348
      %v1355 = vadd.f32 %v1115, %v1348
      %v1356 = vadd.f32 %v1118, %v1348
      %v1357 = vadd.f32 %v1123, %v1348
      %v1358 = vadd.f32 %v1126, %v1348
      %v1359 = vadd.f32 %v1131, %v1348
      %v1360 = vadd.f32 %v1134, %v1348
      %v1361 = vadd.f32 %v1139, %v1348
      %v1362 = vadd.f32 %v1142, %v1348
      %v1363 = vadd.f32 %v1147, %v1348
      %v1364 = vadd.f32 %v1150, %v1348
      %v1365 = vadd.f32 %v1155, %v1348
      %v1366 = vadd.f32 %v1158, %v1348
      %v1367 = vadd.f32 %v1163, %v1348
      %v1368 = vadd.f32 %v1166, %v1348
      %v1369 = vadd.f32 %v1171, %v1348
      %v1370 = vadd.f32 %v1174, %v1348
      %v1371 = vadd.f32 %v1179, %v1348
      %v1372 = vadd.f32 %v1182, %v1348
      %v1373 = vadd.f32 %v1187, %v1348
      %v1374 = vadd.f32 %v1190, %v1348
      %v1375 = vadd.f32 %v1195, %v1348
      %v1376 = vadd.f32 %v1198, %v1348
      %v1377 = vadd.f32 %v1203, %v1348
      %v1378 = vadd.f32 %v1206, %v1348
      %v1379 = vadd.f32 %v1211, %v1348
      %v1380 = vadd.f32 %v1214, %v1348
      %v1381 = vadd.f32 %v1219, %v1348
      %v1382 = vadd.f32 %v1222, %v1348
      %v1383 = vadd.f32 %v1227, %v1348
      %v1384 = vadd.f32 %v1230, %v1348
      %v1385 = vadd.f32 %v1235, %v1348
      %v1386 = vadd.f32 %v1238, %v1348
      %v1387 = vadd.f32 %v1243, %v1348
      %v1388 = vadd.f32 %v1246, %v1348
      %v1389 = vadd.f32 %v1251, %v1348
      %v1390 = vadd.f32 %v1254, %v1348
      %v1391 = vadd.f32 %v1259, %v1348
      %v1392 = vadd.f32 %v1262, %v1348
      %v1393 = vadd.f32 %v1267, %v1348
      %v1394 = vadd.f32 %v1270, %v1348
      %v1395 = vadd.f32 %v1275, %v1348
      %v1396 = vadd.f32 %v1278, %v1348
      %v1397 = vadd.f32 %v1283, %v1348
      %v1398 = vadd.f32 %v1286, %v1348
      %v1399 = vadd.f32 %v1291, %v1348
      %v1400 = vadd.f32 %v1294, %v1348
      %v1401 = vadd.f32 %v1299, %v1348
      %v1402 = vadd.f32 %v1302, %v1348
      %v1403 = vadd.f32 %v1307, %v1348
      %v1404 = vadd.f32 %v1310, %v1348
      %v1405 = vadd.f32 %v1315, %v1348
      %v1406 = vadd.f32 %v1318, %v1348
      %v1407 = vadd.f32 %v1323, %v1348
      %v1408 = vadd.f32 %v1326, %v1348
      %v1409 = vadd.f32 %v1331, %v1348
      %v1410 = vadd.f32 %v1334, %v1348
      %v1411 = vadd.f32 %v1339, %v1348
      %v1412 = vadd.f32 %v1342, %v1348
      %v1413 = vmax.f32 %v1349, 0.0
      %v1414 = vmax.f32 %v1350, 0.0
      %v1415 = vmax.f32 %v1351, 0.0
      %v1416 = vmax.f32 %v1352, 0.0
      %v1417 = vmax.f32 %v1353, 0.0
      %v1418 = vmax.f32 %v1354, 0.0
      %v1419 = vmax.f32 %v1355, 0.0
      %v1420 = vmax.f32 %v1356, 0.0
      %v1421 = vmax.f32 %v1357, 0.0
      %v1422 = vmax.f32 %v1358, 0.0
      %v1423 = vmax.f32 %v1359, 0.0
      %v1424 = vmax.f32 %v1360, 0.0
      %v1425 = vmax.f32 %v1361, 0.0
      %v1426 = vmax.f32 %v1362, 0.0
      %v1427 = vmax.f32 %v1363, 0.0
      %v1428 = vmax.f32 %v1364, 0.0
      %v1429 = vmax.f32 %v1365, 0.0
      %v1430 = vmax.f32 %v1366, 0.0
      %v1431 = vmax.f32 %v1367, 0.0
      %v1432 = vmax.f32 %v1368, 0.0
      %v1433 = vmax.f32 %v1369, 0.0
      %v1434 = vmax.f32 %v1370, 0.0
      %v1435 = vmax.f32 %v1371, 0.0
      %v1436 = vmax.f32 %v1372, 0.0
      %v1437 = vmax.f32 %v1373, 0.0
      %v1438 = vmax.f32 %v1374, 0.0
      %v1439 = vmax.f32 %v1375, 0.0
      %v1440 = vmax.f32 %v1376, 0.0
      %v1441 = vmax.f32 %v1377, 0.0
      %v1442 = vmax.f32 %v1378, 0.0
      %v1443 = vmax.f32 %v1379, 0.0
      %v1444 = vmax.f32 %v1380, 0.0
      %v1445 = vmax.f32 %v1381, 0.0
      %v1446 = vmax.f32 %v1382, 0.0
      %v1447 = vmax.f32 %v1383, 0.0
      %v1448 = vmax.f32 %v1384, 0.0
      %v1449 = vmax.f32 %v1385, 0.0
      %v1450 = vmax.f32 %v1386, 0.0
      %v1451 = vmax.f32 %v1387, 0.0
      %v1452 = vmax.f32 %v1388, 0.0
      %v1453 = vmax.f32 %v1389, 0.0
      %v1454 = vmax.f32 %v1390, 0.0
      %v1455 = vmax.f32 %v1391, 0.0
      %v1456 = vmax.f32 %v1392, 0.0
      %v1457 = vmax.f32 %v1393, 0.0
      %v1458 = vmax.f32 %v1394, 0.0
      %v1459 = vmax.f32 %v1395, 0.0
      %v1460 = vmax.f32 %v1396, 0.0
      %v1461 = vmax.f32 %v1397, 0.0
      %v1462 = vmax.f32 %v1398, 0.0
      %v1463 = vmax.f32 %v1399, 0.0
      %v1464 = vmax.f32 %v1400, 0.0
      %v1465 = vmax.f32 %v1401, 0.0
      %v1466 = vmax.f32 %v1402, 0.0
      %v1467 = vmax.f32 %v1403, 0.0
      %v1468 = vmax.f32 %v1404, 0.0
      %v1469 = vmax.f32 %v1405, 0.0
      %v1470 = vmax.f32 %v1406, 0.0
      %v1471 = vmax.f32 %v1407, 0.0
      %v1472 = vmax.f32 %v1408, 0.0
      %v1473 = vmax.f32 %v1409, 0.0
      %v1474 = vmax.f32 %v1410, 0.0
      %v1475 = vmax.f32 %v1411, 0.0
      %v1476 = vmax.f32 %v1412, 0.0
      %v1477 = vpack.c.bf16 %v1414, %v1413
      %v1478 = vpack.c.bf16 %v1416, %v1415
      %v1479 = vpack.c.bf16 %v1418, %v1417
      %v1480 = vpack.c.bf16 %v1420, %v1419
      %v1481 = vpack.c.bf16 %v1422, %v1421
      %v1482 = vpack.c.bf16 %v1424, %v1423
      %v1483 = vpack.c.bf16 %v1426, %v1425
      %v1484 = vpack.c.bf16 %v1428, %v1427
      %v1485 = vpack.c.bf16 %v1430, %v1429
      %v1486 = vpack.c.bf16 %v1432, %v1431
      %v1487 = vpack.c.bf16 %v1434, %v1433
      %v1488 = vpack.c.bf16 %v1436, %v1435
      %v1489 = vpack.c.bf16 %v1438, %v1437
      %v1490 = vpack.c.bf16 %v1440, %v1439
      %v1491 = vpack.c.bf16 %v1442, %v1441
      %v1492 = vpack.c.bf16 %v1444, %v1443
      %v1493 = vpack.c.bf16 %v1446, %v1445
      %v1494 = vpack.c.bf16 %v1448, %v1447
      %v1495 = vpack.c.bf16 %v1450, %v1449
      %v1496 = vpack.c.bf16 %v1452, %v1451
      %v1497 = vpack.c.bf16 %v1454, %v1453
      %v1498 = vpack.c.bf16 %v1456, %v1455
      %v1499 = vpack.c.bf16 %v1458, %v1457
      %v1500 = vpack.c.bf16 %v1460, %v1459
      %v1501 = vpack.c.bf16 %v1462, %v1461
      %v1502 = vpack.c.bf16 %v1464, %v1463
      %v1503 = vpack.c.bf16 %v1466, %v1465
      %v1504 = vpack.c.bf16 %v1468, %v1467
      %v1505 = vpack.c.bf16 %v1470, %v1469
      %v1506 = vpack.c.bf16 %v1472, %v1471
      %v1507 = vpack.c.bf16 %v1474, %v1473
      %v1508 = vpack.c.bf16 %v1476, %v1475
      %v1509 = vlaneseq
      %v1510 = vshrl.u32 %v1509, 7
      %v1511 = vsub.s32 0, %v1510
      %v1512 = vrot.slane %v285, %v1511
      %v1517 = vunpack.c.l.b16 %v260
      %v1518 = vunpack.c.l.b16 %v261
      %v1519 = vunpack.c.l.b16 %v262
      %v1520 = vunpack.c.l.b16 %v263
      %v1521 = vpack.c.b16 %v1518, %v1517
      %v1522 = vpack.c.b16 %v1520, %v1519
      %v1526 = vsel %vm526, %v1477, 0
      %v1529 = vsel %vm526, %v1478, 0
      %v1532 = vsel %vm526, %v1479, 0
      %v1535 = vsel %vm526, %v1480, 0
      %v1538 = vsel %vm526, %v1481, 0
      %v1541 = vsel %vm526, %v1482, 0
      %v1544 = vsel %vm526, %v1483, 0
      %v1547 = vsel %vm526, %v1484, 0
      %v1550 = vsel %vm526, %v1485, 0
      %v1553 = vsel %vm526, %v1486, 0
      %v1556 = vsel %vm526, %v1487, 0
      %v1559 = vsel %vm526, %v1488, 0
      %v1562 = vsel %vm526, %v1489, 0
      %v1565 = vsel %vm526, %v1490, 0
      %v1568 = vsel %vm526, %v1491, 0
      %v1571 = vsel %vm526, %v1492, 0
      %v1574 = vsel %vm526, %v1493, 0
      %v1577 = vsel %vm526, %v1494, 0
      %v1580 = vsel %vm526, %v1495, 0
      %v1583 = vsel %vm526, %v1496, 0
      %v1586 = vsel %vm526, %v1497, 0
      %v1589 = vsel %vm526, %v1498, 0
      %v1592 = vsel %vm526, %v1499, 0
      %v1595 = vsel %vm526, %v1500, 0
      %v1598 = vsel %vm526, %v1501, 0
      %v1601 = vsel %vm526, %v1502, 0
      %v1604 = vsel %vm526, %v1503, 0
      %v1607 = vsel %vm526, %v1504, 0
      %v1610 = vsel %vm526, %v1505, 0
      %v1613 = vsel %vm526, %v1506, 0
      %v1616 = vsel %vm526, %v1507, 0
      %v1619 = vsel %vm526, %v1508, 0
      %1621 = vmatprep.subr.bf16.mxu0 0
      %1622 = vmatpush1.bf16.msra.mxu0 %v1521
      %1623 = vmatprep.subr.bf16.mxu0 0
      %1624 = vmatpush1.bf16.msra.mxu0 %v1522
      %1625 = vmatprep.subr.bf16.mxu0 0
      %1626 = vmatpush1.bf16.msra.mxu0 0
      %1627 = vmatprep.subr.bf16.mxu0 0
      %1628 = vmatpush1.bf16.msra.mxu0 0
      %1629 = vmatprep.subr.bf16.mxu0 0
      %1630 = vmatpush1.bf16.msra.mxu0 0
      %1631 = vmatprep.subr.bf16.mxu0 0
      %1632 = vmatpush1.bf16.msra.mxu0 0
      %1633 = vmatprep.subr.bf16.mxu0 0
      %1634 = vmatpush1.bf16.msra.mxu0 0
      %1635 = vmatprep.subr.bf16.mxu0 0
      %1636 = vmatpush1.bf16.msra.mxu0 0
      %1637 = vmatprep.subr.bf16.mxu0 0
      %1638 = vmatpush1.bf16.msra.mxu0 0
      %1639 = vmatprep.subr.bf16.mxu0 0
      %1640 = vmatpush1.bf16.msra.mxu0 0
      %1641 = vmatprep.subr.bf16.mxu0 0
      %1642 = vmatpush1.bf16.msra.mxu0 0
      %1643 = vmatprep.subr.bf16.mxu0 0
      %1644 = vmatpush1.bf16.msra.mxu0 0
      %1645 = vmatprep.subr.bf16.mxu0 0
      %1646 = vmatpush1.bf16.msra.mxu0 0
      %1647 = vmatprep.subr.bf16.mxu0 0
      %1648 = vmatpush1.bf16.msra.mxu0 0
      %1649 = vmatprep.subr.bf16.mxu0 0
      %1650 = vmatpush1.bf16.msra.mxu0 0
      %1651 = vmatprep.subr.bf16.mxu0 0
      %1652 = vmatpush1.bf16.msra.mxu0 0
      %1653 = vmatprep.mubr.bf16.mxu0 0
      %1654 = vmatmul.mubr.bf16.gmra.mrb[0].mxu0 %v1526
      %v1655 = vpop.f32.mrb[0].mxu0
      %v1656 = vadd.f32 %v1512, %v1655
      %v1657 = vpop.f32.mrb[0].mxu0
      %v1658 = vpop.f32.mrb[0].mxu0
      %v1659 = vadd.f32 %v1512, %v1658
      %v1660 = vpop.f32.mrb[0].mxu0
      %1661 = vmatprep.mubr.bf16.mxu0 0
      %1662 = vmatmul.mubr.bf16.gmra.mrb[0].mxu0 %v1529
      %v1663 = vpop.f32.mrb[0].mxu0
      %v1664 = vadd.f32 %v1512, %v1663
      %v1665 = vpop.f32.mrb[0].mxu0
      %v1666 = vpop.f32.mrb[0].mxu0
      %v1667 = vadd.f32 %v1512, %v1666
      %v1668 = vpop.f32.mrb[0].mxu0
      %1669 = vmatprep.mubr.bf16.mxu0 0
      %1670 = vmatmul.mubr.bf16.gmra.mrb[0].mxu0 %v1532
      %v1671 = vpop.f32.mrb[0].mxu0
      %v1672 = vadd.f32 %v1512, %v1671
      %v1673 = vpop.f32.mrb[0].mxu0
      %v1674 = vpop.f32.mrb[0].mxu0
      %v1675 = vadd.f32 %v1512, %v1674
      %v1676 = vpop.f32.mrb[0].mxu0
      %1677 = vmatprep.mubr.bf16.mxu0 0
      %1678 = vmatmul.mubr.bf16.gmra.mrb[0].mxu0 %v1535
      %v1679 = vpop.f32.mrb[0].mxu0
      %v1680 = vadd.f32 %v1512, %v1679
      %v1681 = vpop.f32.mrb[0].mxu0
      %v1682 = vpop.f32.mrb[0].mxu0
      %v1683 = vadd.f32 %v1512, %v1682
      %v1684 = vpop.f32.mrb[0].mxu0
      %1685 = vmatprep.mubr.bf16.mxu0 0
      %1686 = vmatmul.mubr.bf16.gmra.mrb[0].mxu0 %v1538
      %v1687 = vpop.f32.mrb[0].mxu0
      %v1688 = vadd.f32 %v1512, %v1687
      %v1689 = vpop.f32.mrb[0].mxu0
      %v1690 = vpop.f32.mrb[0].mxu0
      %v1691 = vadd.f32 %v1512, %v1690
      %v1692 = vpop.f32.mrb[0].mxu0
      %1693 = vmatprep.mubr.bf16.mxu0 0
      %1694 = vmatmul.mubr.bf16.gmra.mrb[0].mxu0 %v1541
      %v1695 = vpop.f32.mrb[0].mxu0
      %v1696 = vadd.f32 %v1512, %v1695
      %v1697 = vpop.f32.mrb[0].mxu0
      %v1698 = vpop.f32.mrb[0].mxu0
      %v1699 = vadd.f32 %v1512, %v1698
      %v1700 = vpop.f32.mrb[0].mxu0
      %1701 = vmatprep.mubr.bf16.mxu0 0
      %1702 = vmatmul.mubr.bf16.gmra.mrb[0].mxu0 %v1544
      %v1703 = vpop.f32.mrb[0].mxu0
      %v1704 = vadd.f32 %v1512, %v1703
      %v1705 = vpop.f32.mrb[0].mxu0
      %v1706 = vpop.f32.mrb[0].mxu0
      %v1707 = vadd.f32 %v1512, %v1706
      %v1708 = vpop.f32.mrb[0].mxu0
      %1709 = vmatprep.mubr.bf16.mxu0 0
      %1710 = vmatmul.mubr.bf16.gmra.mrb[0].mxu0 %v1547
      %v1711 = vpop.f32.mrb[0].mxu0
      %v1712 = vadd.f32 %v1512, %v1711
      %v1713 = vpop.f32.mrb[0].mxu0
      %v1714 = vpop.f32.mrb[0].mxu0
      %v1715 = vadd.f32 %v1512, %v1714
      %v1716 = vpop.f32.mrb[0].mxu0
      %1717 = vmatprep.mubr.bf16.mxu0 0
      %1718 = vmatmul.mubr.bf16.gmra.mrb[0].mxu0 %v1550
      %v1719 = vpop.f32.mrb[0].mxu0
      %v1720 = vadd.f32 %v1512, %v1719
      %v1721 = vpop.f32.mrb[0].mxu0
      %v1722 = vpop.f32.mrb[0].mxu0
      %v1723 = vadd.f32 %v1512, %v1722
      %v1724 = vpop.f32.mrb[0].mxu0
      %1725 = vmatprep.mubr.bf16.mxu0 0
      %1726 = vmatmul.mubr.bf16.gmra.mrb[0].mxu0 %v1553
      %v1727 = vpop.f32.mrb[0].mxu0
      %v1728 = vadd.f32 %v1512, %v1727
      %v1729 = vpop.f32.mrb[0].mxu0
      %v1730 = vpop.f32.mrb[0].mxu0
      %v1731 = vadd.f32 %v1512, %v1730
      %v1732 = vpop.f32.mrb[0].mxu0
      %1733 = vmatprep.mubr.bf16.mxu0 0
      %1734 = vmatmul.mubr.bf16.gmra.mrb[0].mxu0 %v1556
      %v1735 = vpop.f32.mrb[0].mxu0
      %v1736 = vadd.f32 %v1512, %v1735
      %v1737 = vpop.f32.mrb[0].mxu0
      %v1738 = vpop.f32.mrb[0].mxu0
      %v1739 = vadd.f32 %v1512, %v1738
      %v1740 = vpop.f32.mrb[0].mxu0
      %1741 = vmatprep.mubr.bf16.mxu0 0
      %1742 = vmatmul.mubr.bf16.gmra.mrb[0].mxu0 %v1559
      %v1743 = vpop.f32.mrb[0].mxu0
      %v1744 = vadd.f32 %v1512, %v1743
      %v1745 = vpop.f32.mrb[0].mxu0
      %v1746 = vpop.f32.mrb[0].mxu0
      %v1747 = vadd.f32 %v1512, %v1746
      %v1748 = vpop.f32.mrb[0].mxu0
      %1749 = vmatprep.mubr.bf16.mxu0 0
      %1750 = vmatmul.mubr.bf16.gmra.mrb[0].mxu0 %v1562
      %v1751 = vpop.f32.mrb[0].mxu0
      %v1752 = vadd.f32 %v1512, %v1751
      %v1753 = vpop.f32.mrb[0].mxu0
      %v1754 = vpop.f32.mrb[0].mxu0
      %v1755 = vadd.f32 %v1512, %v1754
      %v1756 = vpop.f32.mrb[0].mxu0
      %1757 = vmatprep.mubr.bf16.mxu0 0
      %1758 = vmatmul.mubr.bf16.gmra.mrb[0].mxu0 %v1565
      %v1759 = vpop.f32.mrb[0].mxu0
      %v1760 = vadd.f32 %v1512, %v1759
      %v1761 = vpop.f32.mrb[0].mxu0
      %v1762 = vpop.f32.mrb[0].mxu0
      %v1763 = vadd.f32 %v1512, %v1762
      %v1764 = vpop.f32.mrb[0].mxu0
      %1765 = vmatprep.mubr.bf16.mxu0 0
      %1766 = vmatmul.mubr.bf16.gmra.mrb[0].mxu0 %v1568
      %v1767 = vpop.f32.mrb[0].mxu0
      %v1768 = vadd.f32 %v1512, %v1767
      %v1769 = vpop.f32.mrb[0].mxu0
      %v1770 = vpop.f32.mrb[0].mxu0
      %v1771 = vadd.f32 %v1512, %v1770
      %v1772 = vpop.f32.mrb[0].mxu0
      %1773 = vmatprep.mubr.bf16.mxu0 0
      %1774 = vmatmul.mubr.bf16.gmra.mrb[0].mxu0 %v1571
      %v1775 = vpop.f32.mrb[0].mxu0
      %v1776 = vadd.f32 %v1512, %v1775
      %v1777 = vpop.f32.mrb[0].mxu0
      %v1778 = vpop.f32.mrb[0].mxu0
      %v1779 = vadd.f32 %v1512, %v1778
      %v1780 = vpop.f32.mrb[0].mxu0
      %1781 = vmatprep.mubr.bf16.mxu0 0
      %1782 = vmatmul.mubr.bf16.gmra.mrb[0].mxu0 %v1574
      %v1783 = vpop.f32.mrb[0].mxu0
      %v1784 = vadd.f32 %v1512, %v1783
      %v1785 = vpop.f32.mrb[0].mxu0
      %v1786 = vpop.f32.mrb[0].mxu0
      %v1787 = vadd.f32 %v1512, %v1786
      %v1788 = vpop.f32.mrb[0].mxu0
      %1789 = vmatprep.mubr.bf16.mxu0 0
      %1790 = vmatmul.mubr.bf16.gmra.mrb[0].mxu0 %v1577
      %v1791 = vpop.f32.mrb[0].mxu0
      %v1792 = vadd.f32 %v1512, %v1791
      %v1793 = vpop.f32.mrb[0].mxu0
      %v1794 = vpop.f32.mrb[0].mxu0
      %v1795 = vadd.f32 %v1512, %v1794
      %v1796 = vpop.f32.mrb[0].mxu0
      %1797 = vmatprep.mubr.bf16.mxu0 0
      %1798 = vmatmul.mubr.bf16.gmra.mrb[0].mxu0 %v1580
      %v1799 = vpop.f32.mrb[0].mxu0
      %v1800 = vadd.f32 %v1512, %v1799
      %v1801 = vpop.f32.mrb[0].mxu0
      %v1802 = vpop.f32.mrb[0].mxu0
      %v1803 = vadd.f32 %v1512, %v1802
      %v1804 = vpop.f32.mrb[0].mxu0
      %1805 = vmatprep.mubr.bf16.mxu0 0
      %1806 = vmatmul.mubr.bf16.gmra.mrb[0].mxu0 %v1583
      %v1807 = vpop.f32.mrb[0].mxu0
      %v1808 = vadd.f32 %v1512, %v1807
      %v1809 = vpop.f32.mrb[0].mxu0
      %v1810 = vpop.f32.mrb[0].mxu0
      %v1811 = vadd.f32 %v1512, %v1810
      %v1812 = vpop.f32.mrb[0].mxu0
      %1813 = vmatprep.mubr.bf16.mxu0 0
      %1814 = vmatmul.mubr.bf16.gmra.mrb[0].mxu0 %v1586
      %v1815 = vpop.f32.mrb[0].mxu0
      %v1816 = vadd.f32 %v1512, %v1815
      %v1817 = vpop.f32.mrb[0].mxu0
      %v1818 = vpop.f32.mrb[0].mxu0
      %v1819 = vadd.f32 %v1512, %v1818
      %v1820 = vpop.f32.mrb[0].mxu0
      %1821 = vmatprep.mubr.bf16.mxu0 0
      %1822 = vmatmul.mubr.bf16.gmra.mrb[0].mxu0 %v1589
      %v1823 = vpop.f32.mrb[0].mxu0
      %v1824 = vadd.f32 %v1512, %v1823
      %v1825 = vpop.f32.mrb[0].mxu0
      %v1826 = vpop.f32.mrb[0].mxu0
      %v1827 = vadd.f32 %v1512, %v1826
      %v1828 = vpop.f32.mrb[0].mxu0
      %1829 = vmatprep.mubr.bf16.mxu0 0
      %1830 = vmatmul.mubr.bf16.gmra.mrb[0].mxu0 %v1592
      %v1831 = vpop.f32.mrb[0].mxu0
      %v1832 = vadd.f32 %v1512, %v1831
      %v1833 = vpop.f32.mrb[0].mxu0
      %v1834 = vpop.f32.mrb[0].mxu0
      %v1835 = vadd.f32 %v1512, %v1834
      %v1836 = vpop.f32.mrb[0].mxu0
      %1837 = vmatprep.mubr.bf16.mxu0 0
      %1838 = vmatmul.mubr.bf16.gmra.mrb[0].mxu0 %v1595
      %v1839 = vpop.f32.mrb[0].mxu0
      %v1840 = vadd.f32 %v1512, %v1839
      %v1841 = vpop.f32.mrb[0].mxu0
      %v1842 = vpop.f32.mrb[0].mxu0
      %v1843 = vadd.f32 %v1512, %v1842
      %v1844 = vpop.f32.mrb[0].mxu0
      %1845 = vmatprep.mubr.bf16.mxu0 0
      %1846 = vmatmul.mubr.bf16.gmra.mrb[0].mxu0 %v1598
      %v1847 = vpop.f32.mrb[0].mxu0
      %v1848 = vadd.f32 %v1512, %v1847
      %v1849 = vpop.f32.mrb[0].mxu0
      %v1850 = vpop.f32.mrb[0].mxu0
      %v1851 = vadd.f32 %v1512, %v1850
      %v1852 = vpop.f32.mrb[0].mxu0
      %1853 = vmatprep.mubr.bf16.mxu0 0
      %1854 = vmatmul.mubr.bf16.gmra.mrb[0].mxu0 %v1601
      %v1855 = vpop.f32.mrb[0].mxu0
      %v1856 = vadd.f32 %v1512, %v1855
      %v1857 = vpop.f32.mrb[0].mxu0
      %v1858 = vpop.f32.mrb[0].mxu0
      %v1859 = vadd.f32 %v1512, %v1858
      %v1860 = vpop.f32.mrb[0].mxu0
      %1861 = vmatprep.mubr.bf16.mxu0 0
      %1862 = vmatmul.mubr.bf16.gmra.mrb[0].mxu0 %v1604
      %v1863 = vpop.f32.mrb[0].mxu0
      %v1864 = vadd.f32 %v1512, %v1863
      %v1865 = vpop.f32.mrb[0].mxu0
      %v1866 = vpop.f32.mrb[0].mxu0
      %v1867 = vadd.f32 %v1512, %v1866
      %v1868 = vpop.f32.mrb[0].mxu0
      %1869 = vmatprep.mubr.bf16.mxu0 0
      %1870 = vmatmul.mubr.bf16.gmra.mrb[0].mxu0 %v1607
      %v1871 = vpop.f32.mrb[0].mxu0
      %v1872 = vadd.f32 %v1512, %v1871
      %v1873 = vpop.f32.mrb[0].mxu0
      %v1874 = vpop.f32.mrb[0].mxu0
      %v1875 = vadd.f32 %v1512, %v1874
      %v1876 = vpop.f32.mrb[0].mxu0
      %1877 = vmatprep.mubr.bf16.mxu0 0
      %1878 = vmatmul.mubr.bf16.gmra.mrb[0].mxu0 %v1610
      %v1879 = vpop.f32.mrb[0].mxu0
      %v1880 = vadd.f32 %v1512, %v1879
      %v1881 = vpop.f32.mrb[0].mxu0
      %v1882 = vpop.f32.mrb[0].mxu0
      %v1883 = vadd.f32 %v1512, %v1882
      %v1884 = vpop.f32.mrb[0].mxu0
      %1885 = vmatprep.mubr.bf16.mxu0 0
      %1886 = vmatmul.mubr.bf16.gmra.mrb[0].mxu0 %v1613
      %v1887 = vpop.f32.mrb[0].mxu0
      %v1888 = vadd.f32 %v1512, %v1887
      %v1889 = vpop.f32.mrb[0].mxu0
      %v1890 = vpop.f32.mrb[0].mxu0
      %v1891 = vadd.f32 %v1512, %v1890
      %v1892 = vpop.f32.mrb[0].mxu0
      %1893 = vmatprep.mubr.bf16.mxu0 0
      %1894 = vmatmul.mubr.bf16.gmra.mrb[0].mxu0 %v1616
      %v1895 = vpop.f32.mrb[0].mxu0
      %v1896 = vadd.f32 %v1512, %v1895
      %v1897 = vpop.f32.mrb[0].mxu0
      %v1898 = vpop.f32.mrb[0].mxu0
      %v1899 = vadd.f32 %v1512, %v1898
      %v1900 = vpop.f32.mrb[0].mxu0
      %1901 = vmatprep.mubr.bf16.mxu0 0
      %1902 = vmatmul.mubr.bf16.gmra.mrb[0].mxu0 %v1619
      %v1903 = vpop.f32.mrb[0].mxu0
      %v1904 = vadd.f32 %v1512, %v1903
      %v1905 = vpop.f32.mrb[0].mxu0
      %v1906 = vpop.f32.mrb[0].mxu0
      %v1907 = vadd.f32 %v1512, %v1906
      %v1908 = vpop.f32.mrb[0].mxu0
      %1909 = vdwg.mxu0
      %v1910 = vmax.f32 %v1656, 0.0
      %v1911 = vmax.f32 %v1659, 0.0
      %v1912 = vmax.f32 %v1664, 0.0
      %v1913 = vmax.f32 %v1667, 0.0
      %v1914 = vmax.f32 %v1672, 0.0
      %v1915 = vmax.f32 %v1675, 0.0
      %v1916 = vmax.f32 %v1680, 0.0
      %v1917 = vmax.f32 %v1683, 0.0
      %v1918 = vmax.f32 %v1688, 0.0
      %v1919 = vmax.f32 %v1691, 0.0
      %v1920 = vmax.f32 %v1696, 0.0
      %v1921 = vmax.f32 %v1699, 0.0
      %v1922 = vmax.f32 %v1704, 0.0
      %v1923 = vmax.f32 %v1707, 0.0
      %v1924 = vmax.f32 %v1712, 0.0
      %v1925 = vmax.f32 %v1715, 0.0
      %v1926 = vmax.f32 %v1720, 0.0
      %v1927 = vmax.f32 %v1723, 0.0
      %v1928 = vmax.f32 %v1728, 0.0
      %v1929 = vmax.f32 %v1731, 0.0
      %v1930 = vmax.f32 %v1736, 0.0
      %v1931 = vmax.f32 %v1739, 0.0
      %v1932 = vmax.f32 %v1744, 0.0
      %v1933 = vmax.f32 %v1747, 0.0
      %v1934 = vmax.f32 %v1752, 0.0
      %v1935 = vmax.f32 %v1755, 0.0
      %v1936 = vmax.f32 %v1760, 0.0
      %v1937 = vmax.f32 %v1763, 0.0
      %v1938 = vmax.f32 %v1768, 0.0
      %v1939 = vmax.f32 %v1771, 0.0
      %v1940 = vmax.f32 %v1776, 0.0
      %v1941 = vmax.f32 %v1779, 0.0
      %v1942 = vmax.f32 %v1784, 0.0
      %v1943 = vmax.f32 %v1787, 0.0
      %v1944 = vmax.f32 %v1792, 0.0
      %v1945 = vmax.f32 %v1795, 0.0
      %v1946 = vmax.f32 %v1800, 0.0
      %v1947 = vmax.f32 %v1803, 0.0
      %v1948 = vmax.f32 %v1808, 0.0
      %v1949 = vmax.f32 %v1811, 0.0
      %v1950 = vmax.f32 %v1816, 0.0
      %v1951 = vmax.f32 %v1819, 0.0
      %v1952 = vmax.f32 %v1824, 0.0
      %v1953 = vmax.f32 %v1827, 0.0
      %v1954 = vmax.f32 %v1832, 0.0
      %v1955 = vmax.f32 %v1835, 0.0
      %v1956 = vmax.f32 %v1840, 0.0
      %v1957 = vmax.f32 %v1843, 0.0
      %v1958 = vmax.f32 %v1848, 0.0
      %v1959 = vmax.f32 %v1851, 0.0
      %v1960 = vmax.f32 %v1856, 0.0
      %v1961 = vmax.f32 %v1859, 0.0
      %v1962 = vmax.f32 %v1864, 0.0
      %v1963 = vmax.f32 %v1867, 0.0
      %v1964 = vmax.f32 %v1872, 0.0
      %v1965 = vmax.f32 %v1875, 0.0
      %v1966 = vmax.f32 %v1880, 0.0
      %v1967 = vmax.f32 %v1883, 0.0
      %v1968 = vmax.f32 %v1888, 0.0
      %v1969 = vmax.f32 %v1891, 0.0
      %v1970 = vmax.f32 %v1896, 0.0
      %v1971 = vmax.f32 %v1899, 0.0
      %v1972 = vmax.f32 %v1904, 0.0
      %v1973 = vmax.f32 %v1907, 0.0
      %v1974 = vpack.c.bf16 %v1911, %v1910
      %v1975 = vpack.c.bf16 %v1913, %v1912
      %v1976 = vpack.c.bf16 %v1915, %v1914
      %v1977 = vpack.c.bf16 %v1917, %v1916
      %v1978 = vpack.c.bf16 %v1919, %v1918
      %v1979 = vpack.c.bf16 %v1921, %v1920
      %v1980 = vpack.c.bf16 %v1923, %v1922
      %v1981 = vpack.c.bf16 %v1925, %v1924
      %v1982 = vpack.c.bf16 %v1927, %v1926
      %v1983 = vpack.c.bf16 %v1929, %v1928
      %v1984 = vpack.c.bf16 %v1931, %v1930
      %v1985 = vpack.c.bf16 %v1933, %v1932
      %v1986 = vpack.c.bf16 %v1935, %v1934
      %v1987 = vpack.c.bf16 %v1937, %v1936
      %v1988 = vpack.c.bf16 %v1939, %v1938
      %v1989 = vpack.c.bf16 %v1941, %v1940
      %v1990 = vpack.c.bf16 %v1943, %v1942
      %v1991 = vpack.c.bf16 %v1945, %v1944
      %v1992 = vpack.c.bf16 %v1947, %v1946
      %v1993 = vpack.c.bf16 %v1949, %v1948
      %v1994 = vpack.c.bf16 %v1951, %v1950
      %v1995 = vpack.c.bf16 %v1953, %v1952
      %v1996 = vpack.c.bf16 %v1955, %v1954
      %v1997 = vpack.c.bf16 %v1957, %v1956
      %v1998 = vpack.c.bf16 %v1959, %v1958
      %v1999 = vpack.c.bf16 %v1961, %v1960
      %v2000 = vpack.c.bf16 %v1963, %v1962
      %v2001 = vpack.c.bf16 %v1965, %v1964
      %v2002 = vpack.c.bf16 %v1967, %v1966
      %v2003 = vpack.c.bf16 %v1969, %v1968
      %v2004 = vpack.c.bf16 %v1971, %v1970
      %v2005 = vpack.c.bf16 %v1973, %v1972
      %v2006 = vlaneseq
      %v2007 = vshrl.u32 %v2006, 7
      %v2008 = vadd.s32 %v2007, 8
      %v2009 = vlaneseq
      %v2010 = vand.u32 %v2009, 127
      %vm2011 = vcmp.lt.s32.totalorder %v2007, 8
      %vm2012 = vcmp.lt.s32.totalorder %v2008, 8
      %vm2013 = vcmp.lt.s32.totalorder %v2010, 8
      %vm2014 = vmxor %vm2011, %vm2013
      %vm2015 = vmxor %vm2012, %vm2013
      %vm2016 = vmxor %vm2014, 1
      %vm2017 = vmxor %vm2015, 1
      %v2018 = vsel %vm2016, -1e+30, 0.0
      %v2019 = vsel %vm2017, -1e+30, 0.0
      %v2021 = vsel %vm526, %v1974, 0
      %2023 = vmatprep.subr.bf16.mxu0 0
      %2024 = vmatpush1.bf16.xpose.msra.mxu0 %v2021
      %2025 = vmatprep.subr.bf16.mxu0 0
      %2026 = vmatpush1.bf16.xpose.msra.mxu0 0
      %2027 = vmatprep.subr.bf16.mxu0 0
      %2028 = vmatpush1.bf16.xpose.msra.mxu0 0
      %2029 = vmatprep.subr.bf16.mxu0 0
      %2030 = vmatpush1.bf16.xpose.msra.mxu0 0
      %2031 = vmatprep.subr.bf16.mxu0 0
      %2032 = vmatpush1.bf16.xpose.msra.mxu0 0
      %2033 = vmatprep.subr.bf16.mxu0 0
      %2034 = vmatpush1.bf16.xpose.msra.mxu0 0
      %2035 = vmatprep.subr.bf16.mxu0 0
      %2036 = vmatpush1.bf16.xpose.msra.mxu0 0
      %2037 = vmatprep.subr.bf16.mxu0 0
      %2038 = vmatpush1.bf16.xpose.msra.mxu0 0
      %2039 = vmatprep.subr.bf16.mxu0 0
      %2040 = vmatpush1.bf16.xpose.msra.mxu0 0
      %2041 = vmatprep.subr.bf16.mxu0 0
      %2042 = vmatpush1.bf16.xpose.msra.mxu0 0
      %2043 = vmatprep.subr.bf16.mxu0 0
      %2044 = vmatpush1.bf16.xpose.msra.mxu0 0
      %2045 = vmatprep.subr.bf16.mxu0 0
      %2046 = vmatpush1.bf16.xpose.msra.mxu0 0
      %2047 = vmatprep.subr.bf16.mxu0 0
      %2048 = vmatpush1.bf16.xpose.msra.mxu0 0
      %2049 = vmatprep.subr.bf16.mxu0 0
      %2050 = vmatpush1.bf16.xpose.msra.mxu0 0
      %2051 = vmatprep.subr.bf16.mxu0 0
      %2052 = vmatpush1.bf16.xpose.msra.mxu0 0
      %2053 = vmatprep.subr.bf16.mxu0 0
      %2054 = vmatpush1.bf16.xpose.msra.mxu0 0
      %2055 = vmatprep.mubr.bf16.mxu0 0
      %2056 = vmatmul.mubr.bf16.gmra.mrb[0].mxu0 %v2021
      %v2057 = vpop.f32.mrb[0].mxu0
      %v2058 = vadd.f32 %v2018, %v2057
      %v2059 = vpop.f32.mrb[0].mxu0
      %v2060 = vpop.f32.mrb[0].mxu0
      %v2061 = vadd.f32 %v2019, %v2060
      %v2062 = vpop.f32.mrb[0].mxu0
      %2063 = vdwg.mxu0
      %v2065 = vsel %vm526, %v1975, 0
      %2067 = vmatprep.subr.bf16.mxu0 0
      %2068 = vmatpush1.bf16.xpose.msra.mxu0 %v2065
      %2069 = vmatprep.subr.bf16.mxu0 0
      %2070 = vmatpush1.bf16.xpose.msra.mxu0 0
      %2071 = vmatprep.subr.bf16.mxu0 0
      %2072 = vmatpush1.bf16.xpose.msra.mxu0 0
      %2073 = vmatprep.subr.bf16.mxu0 0
      %2074 = vmatpush1.bf16.xpose.msra.mxu0 0
      %2075 = vmatprep.subr.bf16.mxu0 0
      %2076 = vmatpush1.bf16.xpose.msra.mxu0 0
      %2077 = vmatprep.subr.bf16.mxu0 0
      %2078 = vmatpush1.bf16.xpose.msra.mxu0 0
      %2079 = vmatprep.subr.bf16.mxu0 0
      %2080 = vmatpush1.bf16.xpose.msra.mxu0 0
      %2081 = vmatprep.subr.bf16.mxu0 0
      %2082 = vmatpush1.bf16.xpose.msra.mxu0 0
      %2083 = vmatprep.subr.bf16.mxu0 0
      %2084 = vmatpush1.bf16.xpose.msra.mxu0 0
      %2085 = vmatprep.subr.bf16.mxu0 0
      %2086 = vmatpush1.bf16.xpose.msra.mxu0 0
      %2087 = vmatprep.subr.bf16.mxu0 0
      %2088 = vmatpush1.bf16.xpose.msra.mxu0 0
      %2089 = vmatprep.subr.bf16.mxu0 0
      %2090 = vmatpush1.bf16.xpose.msra.mxu0 0
      %2091 = vmatprep.subr.bf16.mxu0 0
      %2092 = vmatpush1.bf16.xpose.msra.mxu0 0
      %2093 = vmatprep.subr.bf16.mxu0 0
      %2094 = vmatpush1.bf16.xpose.msra.mxu0 0
      %2095 = vmatprep.subr.bf16.mxu0 0
      %2096 = vmatpush1.bf16.xpose.msra.mxu0 0
      %2097 = vmatprep.subr.bf16.mxu0 0
      %2098 = vmatpush1.bf16.xpose.msra.mxu0 0
      %2099 = vmatprep.mubr.bf16.mxu0 0
      %2100 = vmatmul.mubr.bf16.gmra.mrb[0].mxu0 %v2065
      %v2101 = vpop.f32.mrb[0].mxu0
      %v2102 = vadd.f32 %v2018, %v2101
      %v2103 = vpop.f32.mrb[0].mxu0
      %v2104 = vpop.f32.mrb[0].mxu0
      %v2105 = vadd.f32 %v2019, %v2104
      %v2106 = vpop.f32.mrb[0].mxu0
      %2107 = vdwg.mxu0
      %v2109 = vsel %vm526, %v1976, 0
      %2111 = vmatprep.subr.bf16.mxu0 0
      %2112 = vmatpush1.bf16.xpose.msra.mxu0 %v2109
      %2113 = vmatprep.subr.bf16.mxu0 0
      %2114 = vmatpush1.bf16.xpose.msra.mxu0 0
      %2115 = vmatprep.subr.bf16.mxu0 0
      %2116 = vmatpush1.bf16.xpose.msra.mxu0 0
      %2117 = vmatprep.subr.bf16.mxu0 0
      %2118 = vmatpush1.bf16.xpose.msra.mxu0 0
      %2119 = vmatprep.subr.bf16.mxu0 0
      %2120 = vmatpush1.bf16.xpose.msra.mxu0 0
      %2121 = vmatprep.subr.bf16.mxu0 0
      %2122 = vmatpush1.bf16.xpose.msra.mxu0 0
      %2123 = vmatprep.subr.bf16.mxu0 0
      %2124 = vmatpush1.bf16.xpose.msra.mxu0 0
      %2125 = vmatprep.subr.bf16.mxu0 0
      %2126 = vmatpush1.bf16.xpose.msra.mxu0 0
      %2127 = vmatprep.subr.bf16.mxu0 0
      %2128 = vmatpush1.bf16.xpose.msra.mxu0 0
      %2129 = vmatprep.subr.bf16.mxu0 0
      %2130 = vmatpush1.bf16.xpose.msra.mxu0 0
      %2131 = vmatprep.subr.bf16.mxu0 0
      %2132 = vmatpush1.bf16.xpose.msra.mxu0 0
      %2133 = vmatprep.subr.bf16.mxu0 0
      %2134 = vmatpush1.bf16.xpose.msra.mxu0 0
      %2135 = vmatprep.subr.bf16.mxu0 0
      %2136 = vmatpush1.bf16.xpose.msra.mxu0 0
      %2137 = vmatprep.subr.bf16.mxu0 0
      %2138 = vmatpush1.bf16.xpose.msra.mxu0 0
      %2139 = vmatprep.subr.bf16.mxu0 0
      %2140 = vmatpush1.bf16.xpose.msra.mxu0 0
      %2141 = vmatprep.subr.bf16.mxu0 0
      %2142 = vmatpush1.bf16.xpose.msra.mxu0 0
      %2143 = vmatprep.mubr.bf16.mxu0 0
      %2144 = vmatmul.mubr.bf16.gmra.mrb[0].mxu0 %v2109
      %v2145 = vpop.f32.mrb[0].mxu0
      %v2146 = vadd.f32 %v2018, %v2145
      %v2147 = vpop.f32.mrb[0].mxu0
      %v2148 = vpop.f32.mrb[0].mxu0
      %v2149 = vadd.f32 %v2019, %v2148
      %v2150 = vpop.f32.mrb[0].mxu0
      %2151 = vdwg.mxu0
      %v2153 = vsel %vm526, %v1977, 0
      %2155 = vmatprep.subr.bf16.mxu0 0
      %2156 = vmatpush1.bf16.xpose.msra.mxu0 %v2153
      %2157 = vmatprep.subr.bf16.mxu0 0
      %2158 = vmatpush1.bf16.xpose.msra.mxu0 0
      %2159 = vmatprep.subr.bf16.mxu0 0
      %2160 = vmatpush1.bf16.xpose.msra.mxu0 0
      %2161 = vmatprep.subr.bf16.mxu0 0
      %2162 = vmatpush1.bf16.xpose.msra.mxu0 0
      %2163 = vmatprep.subr.bf16.mxu0 0
      %2164 = vmatpush1.bf16.xpose.msra.mxu0 0
      %2165 = vmatprep.subr.bf16.mxu0 0
      %2166 = vmatpush1.bf16.xpose.msra.mxu0 0
      %2167 = vmatprep.subr.bf16.mxu0 0
      %2168 = vmatpush1.bf16.xpose.msra.mxu0 0
      %2169 = vmatprep.subr.bf16.mxu0 0
      %2170 = vmatpush1.bf16.xpose.msra.mxu0 0
      %2171 = vmatprep.subr.bf16.mxu0 0
      %2172 = vmatpush1.bf16.xpose.msra.mxu0 0
      %2173 = vmatprep.subr.bf16.mxu0 0
      %2174 = vmatpush1.bf16.xpose.msra.mxu0 0
      %2175 = vmatprep.subr.bf16.mxu0 0
      %2176 = vmatpush1.bf16.xpose.msra.mxu0 0
      %2177 = vmatprep.subr.bf16.mxu0 0
      %2178 = vmatpush1.bf16.xpose.msra.mxu0 0
      %2179 = vmatprep.subr.bf16.mxu0 0
      %2180 = vmatpush1.bf16.xpose.msra.mxu0 0
      %2181 = vmatprep.subr.bf16.mxu0 0
      %2182 = vmatpush1.bf16.xpose.msra.mxu0 0
      %2183 = vmatprep.subr.bf16.mxu0 0
      %2184 = vmatpush1.bf16.xpose.msra.mxu0 0
      %2185 = vmatprep.subr.bf16.mxu0 0
      %2186 = vmatpush1.bf16.xpose.msra.mxu0 0
      %2187 = vmatprep.mubr.bf16.mxu0 0
      %2188 = vmatmul.mubr.bf16.gmra.mrb[0].mxu0 %v2153
      %v2189 = vpop.f32.mrb[0].mxu0
      %v2190 = vadd.f32 %v2018, %v2189
      %v2191 = vpop.f32.mrb[0].mxu0
      %v2192 = vpop.f32.mrb[0].mxu0
      %v2193 = vadd.f32 %v2019, %v2192
      %v2194 = vpop.f32.mrb[0].mxu0
      %2195 = vdwg.mxu0
      %v2197 = vsel %vm526, %v1978, 0
      %2199 = vmatprep.subr.bf16.mxu0 0
      %2200 = vmatpush1.bf16.xpose.msra.mxu0 %v2197
      %2201 = vmatprep.subr.bf16.mxu0 0
      %2202 = vmatpush1.bf16.xpose.msra.mxu0 0
      %2203 = vmatprep.subr.bf16.mxu0 0
      %2204 = vmatpush1.bf16.xpose.msra.mxu0 0
      %2205 = vmatprep.subr.bf16.mxu0 0
      %2206 = vmatpush1.bf16.xpose.msra.mxu0 0
      %2207 = vmatprep.subr.bf16.mxu0 0
      %2208 = vmatpush1.bf16.xpose.msra.mxu0 0
      %2209 = vmatprep.subr.bf16.mxu0 0
      %2210 = vmatpush1.bf16.xpose.msra.mxu0 0
      %2211 = vmatprep.subr.bf16.mxu0 0
      %2212 = vmatpush1.bf16.xpose.msra.mxu0 0
      %2213 = vmatprep.subr.bf16.mxu0 0
      %2214 = vmatpush1.bf16.xpose.msra.mxu0 0
      %2215 = vmatprep.subr.bf16.mxu0 0
      %2216 = vmatpush1.bf16.xpose.msra.mxu0 0
      %2217 = vmatprep.subr.bf16.mxu0 0
      %2218 = vmatpush1.bf16.xpose.msra.mxu0 0
      %2219 = vmatprep.subr.bf16.mxu0 0
      %2220 = vmatpush1.bf16.xpose.msra.mxu0 0
      %2221 = vmatprep.subr.bf16.mxu0 0
      %2222 = vmatpush1.bf16.xpose.msra.mxu0 0
      %2223 = vmatprep.subr.bf16.mxu0 0
      %2224 = vmatpush1.bf16.xpose.msra.mxu0 0
      %2225 = vmatprep.subr.bf16.mxu0 0
      %2226 = vmatpush1.bf16.xpose.msra.mxu0 0
      %2227 = vmatprep.subr.bf16.mxu0 0
      %2228 = vmatpush1.bf16.xpose.msra.mxu0 0
      %2229 = vmatprep.subr.bf16.mxu0 0
      %2230 = vmatpush1.bf16.xpose.msra.mxu0 0
      %2231 = vmatprep.mubr.bf16.mxu0 0
      %2232 = vmatmul.mubr.bf16.gmra.mrb[0].mxu0 %v2197
      %v2233 = vpop.f32.mrb[0].mxu0
      %v2234 = vadd.f32 %v2018, %v2233
      %v2235 = vpop.f32.mrb[0].mxu0
      %v2236 = vpop.f32.mrb[0].mxu0
      %v2237 = vadd.f32 %v2019, %v2236
      %v2238 = vpop.f32.mrb[0].mxu0
      %2239 = vdwg.mxu0
      %v2241 = vsel %vm526, %v1979, 0
      %2243 = vmatprep.subr.bf16.mxu0 0
      %2244 = vmatpush1.bf16.xpose.msra.mxu0 %v2241
      %2245 = vmatprep.subr.bf16.mxu0 0
      %2246 = vmatpush1.bf16.xpose.msra.mxu0 0
      %2247 = vmatprep.subr.bf16.mxu0 0
      %2248 = vmatpush1.bf16.xpose.msra.mxu0 0
      %2249 = vmatprep.subr.bf16.mxu0 0
      %2250 = vmatpush1.bf16.xpose.msra.mxu0 0
      %2251 = vmatprep.subr.bf16.mxu0 0
      %2252 = vmatpush1.bf16.xpose.msra.mxu0 0
      %2253 = vmatprep.subr.bf16.mxu0 0
      %2254 = vmatpush1.bf16.xpose.msra.mxu0 0
      %2255 = vmatprep.subr.bf16.mxu0 0
      %2256 = vmatpush1.bf16.xpose.msra.mxu0 0
      %2257 = vmatprep.subr.bf16.mxu0 0
      %2258 = vmatpush1.bf16.xpose.msra.mxu0 0
      %2259 = vmatprep.subr.bf16.mxu0 0
      %2260 = vmatpush1.bf16.xpose.msra.mxu0 0
      %2261 = vmatprep.subr.bf16.mxu0 0
      %2262 = vmatpush1.bf16.xpose.msra.mxu0 0
      %2263 = vmatprep.subr.bf16.mxu0 0
      %2264 = vmatpush1.bf16.xpose.msra.mxu0 0
      %2265 = vmatprep.subr.bf16.mxu0 0
      %2266 = vmatpush1.bf16.xpose.msra.mxu0 0
      %2267 = vmatprep.subr.bf16.mxu0 0
      %2268 = vmatpush1.bf16.xpose.msra.mxu0 0
      %2269 = vmatprep.subr.bf16.mxu0 0
      %2270 = vmatpush1.bf16.xpose.msra.mxu0 0
      %2271 = vmatprep.subr.bf16.mxu0 0
      %2272 = vmatpush1.bf16.xpose.msra.mxu0 0
      %2273 = vmatprep.subr.bf16.mxu0 0
      %2274 = vmatpush1.bf16.xpose.msra.mxu0 0
      %2275 = vmatprep.mubr.bf16.mxu0 0
      %2276 = vmatmul.mubr.bf16.gmra.mrb[0].mxu0 %v2241
      %v2277 = vpop.f32.mrb[0].mxu0
      %v2278 = vadd.f32 %v2018, %v2277
      %v2279 = vpop.f32.mrb[0].mxu0
      %v2280 = vpop.f32.mrb[0].mxu0
      %v2281 = vadd.f32 %v2019, %v2280
      %v2282 = vpop.f32.mrb[0].mxu0
      %2283 = vdwg.mxu0
      %v2285 = vsel %vm526, %v1980, 0
      %2287 = vmatprep.subr.bf16.mxu0 0
      %2288 = vmatpush1.bf16.xpose.msra.mxu0 %v2285
      %2289 = vmatprep.subr.bf16.mxu0 0
      %2290 = vmatpush1.bf16.xpose.msra.mxu0 0
      %2291 = vmatprep.subr.bf16.mxu0 0
      %2292 = vmatpush1.bf16.xpose.msra.mxu0 0
      %2293 = vmatprep.subr.bf16.mxu0 0
      %2294 = vmatpush1.bf16.xpose.msra.mxu0 0
      %2295 = vmatprep.subr.bf16.mxu0 0
      %2296 = vmatpush1.bf16.xpose.msra.mxu0 0
      %2297 = vmatprep.subr.bf16.mxu0 0
      %2298 = vmatpush1.bf16.xpose.msra.mxu0 0
      %2299 = vmatprep.subr.bf16.mxu0 0
      %2300 = vmatpush1.bf16.xpose.msra.mxu0 0
      %2301 = vmatprep.subr.bf16.mxu0 0
      %2302 = vmatpush1.bf16.xpose.msra.mxu0 0
      %2303 = vmatprep.subr.bf16.mxu0 0
      %2304 = vmatpush1.bf16.xpose.msra.mxu0 0
      %2305 = vmatprep.subr.bf16.mxu0 0
      %2306 = vmatpush1.bf16.xpose.msra.mxu0 0
      %2307 = vmatprep.subr.bf16.mxu0 0
      %2308 = vmatpush1.bf16.xpose.msra.mxu0 0
      %2309 = vmatprep.subr.bf16.mxu0 0
      %2310 = vmatpush1.bf16.xpose.msra.mxu0 0
      %2311 = vmatprep.subr.bf16.mxu0 0
      %2312 = vmatpush1.bf16.xpose.msra.mxu0 0
      %2313 = vmatprep.subr.bf16.mxu0 0
      %2314 = vmatpush1.bf16.xpose.msra.mxu0 0
      %2315 = vmatprep.subr.bf16.mxu0 0
      %2316 = vmatpush1.bf16.xpose.msra.mxu0 0
      %2317 = vmatprep.subr.bf16.mxu0 0
      %2318 = vmatpush1.bf16.xpose.msra.mxu0 0
      %2319 = vmatprep.mubr.bf16.mxu0 0
      %2320 = vmatmul.mubr.bf16.gmra.mrb[0].mxu0 %v2285
      %v2321 = vpop.f32.mrb[0].mxu0
      %v2322 = vadd.f32 %v2018, %v2321
      %v2323 = vpop.f32.mrb[0].mxu0
      %v2324 = vpop.f32.mrb[0].mxu0
      %v2325 = vadd.f32 %v2019, %v2324
      %v2326 = vpop.f32.mrb[0].mxu0
      %2327 = vdwg.mxu0
      %v2329 = vsel %vm526, %v1981, 0
      %2331 = vmatprep.subr.bf16.mxu0 0
      %2332 = vmatpush1.bf16.xpose.msra.mxu0 %v2329
      %2333 = vmatprep.subr.bf16.mxu0 0
      %2334 = vmatpush1.bf16.xpose.msra.mxu0 0
      %2335 = vmatprep.subr.bf16.mxu0 0
      %2336 = vmatpush1.bf16.xpose.msra.mxu0 0
      %2337 = vmatprep.subr.bf16.mxu0 0
      %2338 = vmatpush1.bf16.xpose.msra.mxu0 0
      %2339 = vmatprep.subr.bf16.mxu0 0
      %2340 = vmatpush1.bf16.xpose.msra.mxu0 0
      %2341 = vmatprep.subr.bf16.mxu0 0
      %2342 = vmatpush1.bf16.xpose.msra.mxu0 0
      %2343 = vmatprep.subr.bf16.mxu0 0
      %2344 = vmatpush1.bf16.xpose.msra.mxu0 0
      %2345 = vmatprep.subr.bf16.mxu0 0
      %2346 = vmatpush1.bf16.xpose.msra.mxu0 0
      %2347 = vmatprep.subr.bf16.mxu0 0
      %2348 = vmatpush1.bf16.xpose.msra.mxu0 0
      %2349 = vmatprep.subr.bf16.mxu0 0
      %2350 = vmatpush1.bf16.xpose.msra.mxu0 0
      %2351 = vmatprep.subr.bf16.mxu0 0
      %2352 = vmatpush1.bf16.xpose.msra.mxu0 0
      %2353 = vmatprep.subr.bf16.mxu0 0
      %2354 = vmatpush1.bf16.xpose.msra.mxu0 0
      %2355 = vmatprep.subr.bf16.mxu0 0
      %2356 = vmatpush1.bf16.xpose.msra.mxu0 0
      %2357 = vmatprep.subr.bf16.mxu0 0
      %2358 = vmatpush1.bf16.xpose.msra.mxu0 0
      %2359 = vmatprep.subr.bf16.mxu0 0
      %2360 = vmatpush1.bf16.xpose.msra.mxu0 0
      %2361 = vmatprep.subr.bf16.mxu0 0
      %2362 = vmatpush1.bf16.xpose.msra.mxu0 0
      %2363 = vmatprep.mubr.bf16.mxu0 0
      %2364 = vmatmul.mubr.bf16.gmra.mrb[0].mxu0 %v2329
      %v2365 = vpop.f32.mrb[0].mxu0
      %v2366 = vadd.f32 %v2018, %v2365
      %v2367 = vpop.f32.mrb[0].mxu0
      %v2368 = vpop.f32.mrb[0].mxu0
      %v2369 = vadd.f32 %v2019, %v2368
      %v2370 = vpop.f32.mrb[0].mxu0
      %2371 = vdwg.mxu0
      %v2373 = vsel %vm526, %v1982, 0
      %2375 = vmatprep.subr.bf16.mxu0 0
      %2376 = vmatpush1.bf16.xpose.msra.mxu0 %v2373
      %2377 = vmatprep.subr.bf16.mxu0 0
      %2378 = vmatpush1.bf16.xpose.msra.mxu0 0
      %2379 = vmatprep.subr.bf16.mxu0 0
      %2380 = vmatpush1.bf16.xpose.msra.mxu0 0
      %2381 = vmatprep.subr.bf16.mxu0 0
      %2382 = vmatpush1.bf16.xpose.msra.mxu0 0
      %2383 = vmatprep.subr.bf16.mxu0 0
      %2384 = vmatpush1.bf16.xpose.msra.mxu0 0
      %2385 = vmatprep.subr.bf16.mxu0 0
      %2386 = vmatpush1.bf16.xpose.msra.mxu0 0
      %2387 = vmatprep.subr.bf16.mxu0 0
      %2388 = vmatpush1.bf16.xpose.msra.mxu0 0
      %2389 = vmatprep.subr.bf16.mxu0 0
      %2390 = vmatpush1.bf16.xpose.msra.mxu0 0
      %2391 = vmatprep.subr.bf16.mxu0 0
      %2392 = vmatpush1.bf16.xpose.msra.mxu0 0
      %2393 = vmatprep.subr.bf16.mxu0 0
      %2394 = vmatpush1.bf16.xpose.msra.mxu0 0
      %2395 = vmatprep.subr.bf16.mxu0 0
      %2396 = vmatpush1.bf16.xpose.msra.mxu0 0
      %2397 = vmatprep.subr.bf16.mxu0 0
      %2398 = vmatpush1.bf16.xpose.msra.mxu0 0
      %2399 = vmatprep.subr.bf16.mxu0 0
      %2400 = vmatpush1.bf16.xpose.msra.mxu0 0
      %2401 = vmatprep.subr.bf16.mxu0 0
      %2402 = vmatpush1.bf16.xpose.msra.mxu0 0
      %2403 = vmatprep.subr.bf16.mxu0 0
      %2404 = vmatpush1.bf16.xpose.msra.mxu0 0
      %2405 = vmatprep.subr.bf16.mxu0 0
      %2406 = vmatpush1.bf16.xpose.msra.mxu0 0
      %2407 = vmatprep.mubr.bf16.mxu0 0
      %2408 = vmatmul.mubr.bf16.gmra.mrb[0].mxu0 %v2373
      %v2409 = vpop.f32.mrb[0].mxu0
      %v2410 = vadd.f32 %v2018, %v2409
      %v2411 = vpop.f32.mrb[0].mxu0
      %v2412 = vpop.f32.mrb[0].mxu0
      %v2413 = vadd.f32 %v2019, %v2412
      %v2414 = vpop.f32.mrb[0].mxu0
      %2415 = vdwg.mxu0
      %v2417 = vsel %vm526, %v1983, 0
      %2419 = vmatprep.subr.bf16.mxu0 0
      %2420 = vmatpush1.bf16.xpose.msra.mxu0 %v2417
      %2421 = vmatprep.subr.bf16.mxu0 0
      %2422 = vmatpush1.bf16.xpose.msra.mxu0 0
      %2423 = vmatprep.subr.bf16.mxu0 0
      %2424 = vmatpush1.bf16.xpose.msra.mxu0 0
      %2425 = vmatprep.subr.bf16.mxu0 0
      %2426 = vmatpush1.bf16.xpose.msra.mxu0 0
      %2427 = vmatprep.subr.bf16.mxu0 0
      %2428 = vmatpush1.bf16.xpose.msra.mxu0 0
      %2429 = vmatprep.subr.bf16.mxu0 0
      %2430 = vmatpush1.bf16.xpose.msra.mxu0 0
      %2431 = vmatprep.subr.bf16.mxu0 0
      %2432 = vmatpush1.bf16.xpose.msra.mxu0 0
      %2433 = vmatprep.subr.bf16.mxu0 0
      %2434 = vmatpush1.bf16.xpose.msra.mxu0 0
      %2435 = vmatprep.subr.bf16.mxu0 0
      %2436 = vmatpush1.bf16.xpose.msra.mxu0 0
      %2437 = vmatprep.subr.bf16.mxu0 0
      %2438 = vmatpush1.bf16.xpose.msra.mxu0 0
      %2439 = vmatprep.subr.bf16.mxu0 0
      %2440 = vmatpush1.bf16.xpose.msra.mxu0 0
      %2441 = vmatprep.subr.bf16.mxu0 0
      %2442 = vmatpush1.bf16.xpose.msra.mxu0 0
      %2443 = vmatprep.subr.bf16.mxu0 0
      %2444 = vmatpush1.bf16.xpose.msra.mxu0 0
      %2445 = vmatprep.subr.bf16.mxu0 0
      %2446 = vmatpush1.bf16.xpose.msra.mxu0 0
      %2447 = vmatprep.subr.bf16.mxu0 0
      %2448 = vmatpush1.bf16.xpose.msra.mxu0 0
      %2449 = vmatprep.subr.bf16.mxu0 0
      %2450 = vmatpush1.bf16.xpose.msra.mxu0 0
      %2451 = vmatprep.mubr.bf16.mxu0 0
      %2452 = vmatmul.mubr.bf16.gmra.mrb[0].mxu0 %v2417
      %v2453 = vpop.f32.mrb[0].mxu0
      %v2454 = vadd.f32 %v2018, %v2453
      %v2455 = vpop.f32.mrb[0].mxu0
      %v2456 = vpop.f32.mrb[0].mxu0
      %v2457 = vadd.f32 %v2019, %v2456
      %v2458 = vpop.f32.mrb[0].mxu0
      %2459 = vdwg.mxu0
      %v2461 = vsel %vm526, %v1984, 0
      %2463 = vmatprep.subr.bf16.mxu0 0
      %2464 = vmatpush1.bf16.xpose.msra.mxu0 %v2461
      %2465 = vmatprep.subr.bf16.mxu0 0
      %2466 = vmatpush1.bf16.xpose.msra.mxu0 0
      %2467 = vmatprep.subr.bf16.mxu0 0
      %2468 = vmatpush1.bf16.xpose.msra.mxu0 0
      %2469 = vmatprep.subr.bf16.mxu0 0
      %2470 = vmatpush1.bf16.xpose.msra.mxu0 0
      %2471 = vmatprep.subr.bf16.mxu0 0
      %2472 = vmatpush1.bf16.xpose.msra.mxu0 0
      %2473 = vmatprep.subr.bf16.mxu0 0
      %2474 = vmatpush1.bf16.xpose.msra.mxu0 0
      %2475 = vmatprep.subr.bf16.mxu0 0
      %2476 = vmatpush1.bf16.xpose.msra.mxu0 0
      %2477 = vmatprep.subr.bf16.mxu0 0
      %2478 = vmatpush1.bf16.xpose.msra.mxu0 0
      %2479 = vmatprep.subr.bf16.mxu0 0
      %2480 = vmatpush1.bf16.xpose.msra.mxu0 0
      %2481 = vmatprep.subr.bf16.mxu0 0
      %2482 = vmatpush1.bf16.xpose.msra.mxu0 0
      %2483 = vmatprep.subr.bf16.mxu0 0
      %2484 = vmatpush1.bf16.xpose.msra.mxu0 0
      %2485 = vmatprep.subr.bf16.mxu0 0
      %2486 = vmatpush1.bf16.xpose.msra.mxu0 0
      %2487 = vmatprep.subr.bf16.mxu0 0
      %2488 = vmatpush1.bf16.xpose.msra.mxu0 0
      %2489 = vmatprep.subr.bf16.mxu0 0
      %2490 = vmatpush1.bf16.xpose.msra.mxu0 0
      %2491 = vmatprep.subr.bf16.mxu0 0
      %2492 = vmatpush1.bf16.xpose.msra.mxu0 0
      %2493 = vmatprep.subr.bf16.mxu0 0
      %2494 = vmatpush1.bf16.xpose.msra.mxu0 0
      %2495 = vmatprep.mubr.bf16.mxu0 0
      %2496 = vmatmul.mubr.bf16.gmra.mrb[0].mxu0 %v2461
      %v2497 = vpop.f32.mrb[0].mxu0
      %v2498 = vadd.f32 %v2018, %v2497
      %v2499 = vpop.f32.mrb[0].mxu0
      %v2500 = vpop.f32.mrb[0].mxu0
      %v2501 = vadd.f32 %v2019, %v2500
      %v2502 = vpop.f32.mrb[0].mxu0
      %2503 = vdwg.mxu0
      %v2505 = vsel %vm526, %v1985, 0
      %2507 = vmatprep.subr.bf16.mxu0 0
      %2508 = vmatpush1.bf16.xpose.msra.mxu0 %v2505
      %2509 = vmatprep.subr.bf16.mxu0 0
      %2510 = vmatpush1.bf16.xpose.msra.mxu0 0
      %2511 = vmatprep.subr.bf16.mxu0 0
      %2512 = vmatpush1.bf16.xpose.msra.mxu0 0
      %2513 = vmatprep.subr.bf16.mxu0 0
      %2514 = vmatpush1.bf16.xpose.msra.mxu0 0
      %2515 = vmatprep.subr.bf16.mxu0 0
      %2516 = vmatpush1.bf16.xpose.msra.mxu0 0
      %2517 = vmatprep.subr.bf16.mxu0 0
      %2518 = vmatpush1.bf16.xpose.msra.mxu0 0
      %2519 = vmatprep.subr.bf16.mxu0 0
      %2520 = vmatpush1.bf16.xpose.msra.mxu0 0
      %2521 = vmatprep.subr.bf16.mxu0 0
      %2522 = vmatpush1.bf16.xpose.msra.mxu0 0
      %2523 = vmatprep.subr.bf16.mxu0 0
      %2524 = vmatpush1.bf16.xpose.msra.mxu0 0
      %2525 = vmatprep.subr.bf16.mxu0 0
      %2526 = vmatpush1.bf16.xpose.msra.mxu0 0
      %2527 = vmatprep.subr.bf16.mxu0 0
      %2528 = vmatpush1.bf16.xpose.msra.mxu0 0
      %2529 = vmatprep.subr.bf16.mxu0 0
      %2530 = vmatpush1.bf16.xpose.msra.mxu0 0
      %2531 = vmatprep.subr.bf16.mxu0 0
      %2532 = vmatpush1.bf16.xpose.msra.mxu0 0
      %2533 = vmatprep.subr.bf16.mxu0 0
      %2534 = vmatpush1.bf16.xpose.msra.mxu0 0
      %2535 = vmatprep.subr.bf16.mxu0 0
      %2536 = vmatpush1.bf16.xpose.msra.mxu0 0
      %2537 = vmatprep.subr.bf16.mxu0 0
      %2538 = vmatpush1.bf16.xpose.msra.mxu0 0
      %2539 = vmatprep.mubr.bf16.mxu0 0
      %2540 = vmatmul.mubr.bf16.gmra.mrb[0].mxu0 %v2505
      %v2541 = vpop.f32.mrb[0].mxu0
      %v2542 = vadd.f32 %v2018, %v2541
      %v2543 = vpop.f32.mrb[0].mxu0
      %v2544 = vpop.f32.mrb[0].mxu0
      %v2545 = vadd.f32 %v2019, %v2544
      %v2546 = vpop.f32.mrb[0].mxu0
      %2547 = vdwg.mxu0
      %v2549 = vsel %vm526, %v1986, 0
      %2551 = vmatprep.subr.bf16.mxu0 0
      %2552 = vmatpush1.bf16.xpose.msra.mxu0 %v2549
      %2553 = vmatprep.subr.bf16.mxu0 0
      %2554 = vmatpush1.bf16.xpose.msra.mxu0 0
      %2555 = vmatprep.subr.bf16.mxu0 0
      %2556 = vmatpush1.bf16.xpose.msra.mxu0 0
      %2557 = vmatprep.subr.bf16.mxu0 0
      %2558 = vmatpush1.bf16.xpose.msra.mxu0 0
      %2559 = vmatprep.subr.bf16.mxu0 0
      %2560 = vmatpush1.bf16.xpose.msra.mxu0 0
      %2561 = vmatprep.subr.bf16.mxu0 0
      %2562 = vmatpush1.bf16.xpose.msra.mxu0 0
      %2563 = vmatprep.subr.bf16.mxu0 0
      %2564 = vmatpush1.bf16.xpose.msra.mxu0 0
      %2565 = vmatprep.subr.bf16.mxu0 0
      %2566 = vmatpush1.bf16.xpose.msra.mxu0 0
      %2567 = vmatprep.subr.bf16.mxu0 0
      %2568 = vmatpush1.bf16.xpose.msra.mxu0 0
      %2569 = vmatprep.subr.bf16.mxu0 0
      %2570 = vmatpush1.bf16.xpose.msra.mxu0 0
      %2571 = vmatprep.subr.bf16.mxu0 0
      %2572 = vmatpush1.bf16.xpose.msra.mxu0 0
      %2573 = vmatprep.subr.bf16.mxu0 0
      %2574 = vmatpush1.bf16.xpose.msra.mxu0 0
      %2575 = vmatprep.subr.bf16.mxu0 0
      %2576 = vmatpush1.bf16.xpose.msra.mxu0 0
      %2577 = vmatprep.subr.bf16.mxu0 0
      %2578 = vmatpush1.bf16.xpose.msra.mxu0 0
      %2579 = vmatprep.subr.bf16.mxu0 0
      %2580 = vmatpush1.bf16.xpose.msra.mxu0 0
      %2581 = vmatprep.subr.bf16.mxu0 0
      %2582 = vmatpush1.bf16.xpose.msra.mxu0 0
      %2583 = vmatprep.mubr.bf16.mxu0 0
      %2584 = vmatmul.mubr.bf16.gmra.mrb[0].mxu0 %v2549
      %v2585 = vpop.f32.mrb[0].mxu0
      %v2586 = vadd.f32 %v2018, %v2585
      %v2587 = vpop.f32.mrb[0].mxu0
      %v2588 = vpop.f32.mrb[0].mxu0
      %v2589 = vadd.f32 %v2019, %v2588
      %v2590 = vpop.f32.mrb[0].mxu0
      %2591 = vdwg.mxu0
      %v2593 = vsel %vm526, %v1987, 0
      %2595 = vmatprep.subr.bf16.mxu0 0
      %2596 = vmatpush1.bf16.xpose.msra.mxu0 %v2593
      %2597 = vmatprep.subr.bf16.mxu0 0
      %2598 = vmatpush1.bf16.xpose.msra.mxu0 0
      %2599 = vmatprep.subr.bf16.mxu0 0
      %2600 = vmatpush1.bf16.xpose.msra.mxu0 0
      %2601 = vmatprep.subr.bf16.mxu0 0
      %2602 = vmatpush1.bf16.xpose.msra.mxu0 0
      %2603 = vmatprep.subr.bf16.mxu0 0
      %2604 = vmatpush1.bf16.xpose.msra.mxu0 0
      %2605 = vmatprep.subr.bf16.mxu0 0
      %2606 = vmatpush1.bf16.xpose.msra.mxu0 0
      %2607 = vmatprep.subr.bf16.mxu0 0
      %2608 = vmatpush1.bf16.xpose.msra.mxu0 0
      %2609 = vmatprep.subr.bf16.mxu0 0
      %2610 = vmatpush1.bf16.xpose.msra.mxu0 0
      %2611 = vmatprep.subr.bf16.mxu0 0
      %2612 = vmatpush1.bf16.xpose.msra.mxu0 0
      %2613 = vmatprep.subr.bf16.mxu0 0
      %2614 = vmatpush1.bf16.xpose.msra.mxu0 0
      %2615 = vmatprep.subr.bf16.mxu0 0
      %2616 = vmatpush1.bf16.xpose.msra.mxu0 0
      %2617 = vmatprep.subr.bf16.mxu0 0
      %2618 = vmatpush1.bf16.xpose.msra.mxu0 0
      %2619 = vmatprep.subr.bf16.mxu0 0
      %2620 = vmatpush1.bf16.xpose.msra.mxu0 0
      %2621 = vmatprep.subr.bf16.mxu0 0
      %2622 = vmatpush1.bf16.xpose.msra.mxu0 0
      %2623 = vmatprep.subr.bf16.mxu0 0
      %2624 = vmatpush1.bf16.xpose.msra.mxu0 0
      %2625 = vmatprep.subr.bf16.mxu0 0
      %2626 = vmatpush1.bf16.xpose.msra.mxu0 0
      %2627 = vmatprep.mubr.bf16.mxu0 0
      %2628 = vmatmul.mubr.bf16.gmra.mrb[0].mxu0 %v2593
      %v2629 = vpop.f32.mrb[0].mxu0
      %v2630 = vadd.f32 %v2018, %v2629
      %v2631 = vpop.f32.mrb[0].mxu0
      %v2632 = vpop.f32.mrb[0].mxu0
      %v2633 = vadd.f32 %v2019, %v2632
      %v2634 = vpop.f32.mrb[0].mxu0
      %2635 = vdwg.mxu0
      %v2637 = vsel %vm526, %v1988, 0
      %2639 = vmatprep.subr.bf16.mxu0 0
      %2640 = vmatpush1.bf16.xpose.msra.mxu0 %v2637
      %2641 = vmatprep.subr.bf16.mxu0 0
      %2642 = vmatpush1.bf16.xpose.msra.mxu0 0
      %2643 = vmatprep.subr.bf16.mxu0 0
      %2644 = vmatpush1.bf16.xpose.msra.mxu0 0
      %2645 = vmatprep.subr.bf16.mxu0 0
      %2646 = vmatpush1.bf16.xpose.msra.mxu0 0
      %2647 = vmatprep.subr.bf16.mxu0 0
      %2648 = vmatpush1.bf16.xpose.msra.mxu0 0
      %2649 = vmatprep.subr.bf16.mxu0 0
      %2650 = vmatpush1.bf16.xpose.msra.mxu0 0
      %2651 = vmatprep.subr.bf16.mxu0 0
      %2652 = vmatpush1.bf16.xpose.msra.mxu0 0
      %2653 = vmatprep.subr.bf16.mxu0 0
      %2654 = vmatpush1.bf16.xpose.msra.mxu0 0
      %2655 = vmatprep.subr.bf16.mxu0 0
      %2656 = vmatpush1.bf16.xpose.msra.mxu0 0
      %2657 = vmatprep.subr.bf16.mxu0 0
      %2658 = vmatpush1.bf16.xpose.msra.mxu0 0
      %2659 = vmatprep.subr.bf16.mxu0 0
      %2660 = vmatpush1.bf16.xpose.msra.mxu0 0
      %2661 = vmatprep.subr.bf16.mxu0 0
      %2662 = vmatpush1.bf16.xpose.msra.mxu0 0
      %2663 = vmatprep.subr.bf16.mxu0 0
      %2664 = vmatpush1.bf16.xpose.msra.mxu0 0
      %2665 = vmatprep.subr.bf16.mxu0 0
      %2666 = vmatpush1.bf16.xpose.msra.mxu0 0
      %2667 = vmatprep.subr.bf16.mxu0 0
      %2668 = vmatpush1.bf16.xpose.msra.mxu0 0
      %2669 = vmatprep.subr.bf16.mxu0 0
      %2670 = vmatpush1.bf16.xpose.msra.mxu0 0
      %2671 = vmatprep.mubr.bf16.mxu0 0
      %2672 = vmatmul.mubr.bf16.gmra.mrb[0].mxu0 %v2637
      %v2673 = vpop.f32.mrb[0].mxu0
      %v2674 = vadd.f32 %v2018, %v2673
      %v2675 = vpop.f32.mrb[0].mxu0
      %v2676 = vpop.f32.mrb[0].mxu0
      %v2677 = vadd.f32 %v2019, %v2676
      %v2678 = vpop.f32.mrb[0].mxu0
      %2679 = vdwg.mxu0
      %v2681 = vsel %vm526, %v1989, 0
      %2683 = vmatprep.subr.bf16.mxu0 0
      %2684 = vmatpush1.bf16.xpose.msra.mxu0 %v2681
      %2685 = vmatprep.subr.bf16.mxu0 0
      %2686 = vmatpush1.bf16.xpose.msra.mxu0 0
      %2687 = vmatprep.subr.bf16.mxu0 0
      %2688 = vmatpush1.bf16.xpose.msra.mxu0 0
      %2689 = vmatprep.subr.bf16.mxu0 0
      %2690 = vmatpush1.bf16.xpose.msra.mxu0 0
      %2691 = vmatprep.subr.bf16.mxu0 0
      %2692 = vmatpush1.bf16.xpose.msra.mxu0 0
      %2693 = vmatprep.subr.bf16.mxu0 0
      %2694 = vmatpush1.bf16.xpose.msra.mxu0 0
      %2695 = vmatprep.subr.bf16.mxu0 0
      %2696 = vmatpush1.bf16.xpose.msra.mxu0 0
      %2697 = vmatprep.subr.bf16.mxu0 0
      %2698 = vmatpush1.bf16.xpose.msra.mxu0 0
      %2699 = vmatprep.subr.bf16.mxu0 0
      %2700 = vmatpush1.bf16.xpose.msra.mxu0 0
      %2701 = vmatprep.subr.bf16.mxu0 0
      %2702 = vmatpush1.bf16.xpose.msra.mxu0 0
      %2703 = vmatprep.subr.bf16.mxu0 0
      %2704 = vmatpush1.bf16.xpose.msra.mxu0 0
      %2705 = vmatprep.subr.bf16.mxu0 0
      %2706 = vmatpush1.bf16.xpose.msra.mxu0 0
      %2707 = vmatprep.subr.bf16.mxu0 0
      %2708 = vmatpush1.bf16.xpose.msra.mxu0 0
      %2709 = vmatprep.subr.bf16.mxu0 0
      %2710 = vmatpush1.bf16.xpose.msra.mxu0 0
      %2711 = vmatprep.subr.bf16.mxu0 0
      %2712 = vmatpush1.bf16.xpose.msra.mxu0 0
      %2713 = vmatprep.subr.bf16.mxu0 0
      %2714 = vmatpush1.bf16.xpose.msra.mxu0 0
      %2715 = vmatprep.mubr.bf16.mxu0 0
      %2716 = vmatmul.mubr.bf16.gmra.mrb[0].mxu0 %v2681
      %v2717 = vpop.f32.mrb[0].mxu0
      %v2718 = vadd.f32 %v2018, %v2717
      %v2719 = vpop.f32.mrb[0].mxu0
      %v2720 = vpop.f32.mrb[0].mxu0
      %v2721 = vadd.f32 %v2019, %v2720
      %v2722 = vpop.f32.mrb[0].mxu0
      %2723 = vdwg.mxu0
      %v2725 = vsel %vm526, %v1990, 0
      %2727 = vmatprep.subr.bf16.mxu0 0
      %2728 = vmatpush1.bf16.xpose.msra.mxu0 %v2725
      %2729 = vmatprep.subr.bf16.mxu0 0
      %2730 = vmatpush1.bf16.xpose.msra.mxu0 0
      %2731 = vmatprep.subr.bf16.mxu0 0
      %2732 = vmatpush1.bf16.xpose.msra.mxu0 0
      %2733 = vmatprep.subr.bf16.mxu0 0
      %2734 = vmatpush1.bf16.xpose.msra.mxu0 0
      %2735 = vmatprep.subr.bf16.mxu0 0
      %2736 = vmatpush1.bf16.xpose.msra.mxu0 0
      %2737 = vmatprep.subr.bf16.mxu0 0
      %2738 = vmatpush1.bf16.xpose.msra.mxu0 0
      %2739 = vmatprep.subr.bf16.mxu0 0
      %2740 = vmatpush1.bf16.xpose.msra.mxu0 0
      %2741 = vmatprep.subr.bf16.mxu0 0
      %2742 = vmatpush1.bf16.xpose.msra.mxu0 0
      %2743 = vmatprep.subr.bf16.mxu0 0
      %2744 = vmatpush1.bf16.xpose.msra.mxu0 0
      %2745 = vmatprep.subr.bf16.mxu0 0
      %2746 = vmatpush1.bf16.xpose.msra.mxu0 0
      %2747 = vmatprep.subr.bf16.mxu0 0
      %2748 = vmatpush1.bf16.xpose.msra.mxu0 0
      %2749 = vmatprep.subr.bf16.mxu0 0
      %2750 = vmatpush1.bf16.xpose.msra.mxu0 0
      %2751 = vmatprep.subr.bf16.mxu0 0
      %2752 = vmatpush1.bf16.xpose.msra.mxu0 0
      %2753 = vmatprep.subr.bf16.mxu0 0
      %2754 = vmatpush1.bf16.xpose.msra.mxu0 0
      %2755 = vmatprep.subr.bf16.mxu0 0
      %2756 = vmatpush1.bf16.xpose.msra.mxu0 0
      %2757 = vmatprep.subr.bf16.mxu0 0
      %2758 = vmatpush1.bf16.xpose.msra.mxu0 0
      %2759 = vmatprep.mubr.bf16.mxu0 0
      %2760 = vmatmul.mubr.bf16.gmra.mrb[0].mxu0 %v2725
      %v2761 = vpop.f32.mrb[0].mxu0
      %v2762 = vadd.f32 %v2018, %v2761
      %v2763 = vpop.f32.mrb[0].mxu0
      %v2764 = vpop.f32.mrb[0].mxu0
      %v2765 = vadd.f32 %v2019, %v2764
      %v2766 = vpop.f32.mrb[0].mxu0
      %2767 = vdwg.mxu0
      %v2769 = vsel %vm526, %v1991, 0
      %2771 = vmatprep.subr.bf16.mxu0 0
      %2772 = vmatpush1.bf16.xpose.msra.mxu0 %v2769
      %2773 = vmatprep.subr.bf16.mxu0 0
      %2774 = vmatpush1.bf16.xpose.msra.mxu0 0
      %2775 = vmatprep.subr.bf16.mxu0 0
      %2776 = vmatpush1.bf16.xpose.msra.mxu0 0
      %2777 = vmatprep.subr.bf16.mxu0 0
      %2778 = vmatpush1.bf16.xpose.msra.mxu0 0
      %2779 = vmatprep.subr.bf16.mxu0 0
      %2780 = vmatpush1.bf16.xpose.msra.mxu0 0
      %2781 = vmatprep.subr.bf16.mxu0 0
      %2782 = vmatpush1.bf16.xpose.msra.mxu0 0
      %2783 = vmatprep.subr.bf16.mxu0 0
      %2784 = vmatpush1.bf16.xpose.msra.mxu0 0
      %2785 = vmatprep.subr.bf16.mxu0 0
      %2786 = vmatpush1.bf16.xpose.msra.mxu0 0
      %2787 = vmatprep.subr.bf16.mxu0 0
      %2788 = vmatpush1.bf16.xpose.msra.mxu0 0
      %2789 = vmatprep.subr.bf16.mxu0 0
      %2790 = vmatpush1.bf16.xpose.msra.mxu0 0
      %2791 = vmatprep.subr.bf16.mxu0 0
      %2792 = vmatpush1.bf16.xpose.msra.mxu0 0
      %2793 = vmatprep.subr.bf16.mxu0 0
      %2794 = vmatpush1.bf16.xpose.msra.mxu0 0
      %2795 = vmatprep.subr.bf16.mxu0 0
      %2796 = vmatpush1.bf16.xpose.msra.mxu0 0
      %2797 = vmatprep.subr.bf16.mxu0 0
      %2798 = vmatpush1.bf16.xpose.msra.mxu0 0
      %2799 = vmatprep.subr.bf16.mxu0 0
      %2800 = vmatpush1.bf16.xpose.msra.mxu0 0
      %2801 = vmatprep.subr.bf16.mxu0 0
      %2802 = vmatpush1.bf16.xpose.msra.mxu0 0
      %2803 = vmatprep.mubr.bf16.mxu0 0
      %2804 = vmatmul.mubr.bf16.gmra.mrb[0].mxu0 %v2769
      %v2805 = vpop.f32.mrb[0].mxu0
      %v2806 = vadd.f32 %v2018, %v2805
      %v2807 = vpop.f32.mrb[0].mxu0
      %v2808 = vpop.f32.mrb[0].mxu0
      %v2809 = vadd.f32 %v2019, %v2808
      %v2810 = vpop.f32.mrb[0].mxu0
      %2811 = vdwg.mxu0
      %v2813 = vsel %vm526, %v1992, 0
      %2815 = vmatprep.subr.bf16.mxu0 0
      %2816 = vmatpush1.bf16.xpose.msra.mxu0 %v2813
      %2817 = vmatprep.subr.bf16.mxu0 0
      %2818 = vmatpush1.bf16.xpose.msra.mxu0 0
      %2819 = vmatprep.subr.bf16.mxu0 0
      %2820 = vmatpush1.bf16.xpose.msra.mxu0 0
      %2821 = vmatprep.subr.bf16.mxu0 0
      %2822 = vmatpush1.bf16.xpose.msra.mxu0 0
      %2823 = vmatprep.subr.bf16.mxu0 0
      %2824 = vmatpush1.bf16.xpose.msra.mxu0 0
      %2825 = vmatprep.subr.bf16.mxu0 0
      %2826 = vmatpush1.bf16.xpose.msra.mxu0 0
      %2827 = vmatprep.subr.bf16.mxu0 0
      %2828 = vmatpush1.bf16.xpose.msra.mxu0 0
      %2829 = vmatprep.subr.bf16.mxu0 0
      %2830 = vmatpush1.bf16.xpose.msra.mxu0 0
      %2831 = vmatprep.subr.bf16.mxu0 0
      %2832 = vmatpush1.bf16.xpose.msra.mxu0 0
      %2833 = vmatprep.subr.bf16.mxu0 0
      %2834 = vmatpush1.bf16.xpose.msra.mxu0 0
      %2835 = vmatprep.subr.bf16.mxu0 0
      %2836 = vmatpush1.bf16.xpose.msra.mxu0 0
      %2837 = vmatprep.subr.bf16.mxu0 0
      %2838 = vmatpush1.bf16.xpose.msra.mxu0 0
      %2839 = vmatprep.subr.bf16.mxu0 0
      %2840 = vmatpush1.bf16.xpose.msra.mxu0 0
      %2841 = vmatprep.subr.bf16.mxu0 0
      %2842 = vmatpush1.bf16.xpose.msra.mxu0 0
      %2843 = vmatprep.subr.bf16.mxu0 0
      %2844 = vmatpush1.bf16.xpose.msra.mxu0 0
      %2845 = vmatprep.subr.bf16.mxu0 0
      %2846 = vmatpush1.bf16.xpose.msra.mxu0 0
      %2847 = vmatprep.mubr.bf16.mxu0 0
      %2848 = vmatmul.mubr.bf16.gmra.mrb[0].mxu0 %v2813
      %v2849 = vpop.f32.mrb[0].mxu0
      %v2850 = vadd.f32 %v2018, %v2849
      %v2851 = vpop.f32.mrb[0].mxu0
      %v2852 = vpop.f32.mrb[0].mxu0
      %v2853 = vadd.f32 %v2019, %v2852
      %v2854 = vpop.f32.mrb[0].mxu0
      %2855 = vdwg.mxu0
      %v2857 = vsel %vm526, %v1993, 0
      %2859 = vmatprep.subr.bf16.mxu0 0
      %2860 = vmatpush1.bf16.xpose.msra.mxu0 %v2857
      %2861 = vmatprep.subr.bf16.mxu0 0
      %2862 = vmatpush1.bf16.xpose.msra.mxu0 0
      %2863 = vmatprep.subr.bf16.mxu0 0
      %2864 = vmatpush1.bf16.xpose.msra.mxu0 0
      %2865 = vmatprep.subr.bf16.mxu0 0
      %2866 = vmatpush1.bf16.xpose.msra.mxu0 0
      %2867 = vmatprep.subr.bf16.mxu0 0
      %2868 = vmatpush1.bf16.xpose.msra.mxu0 0
      %2869 = vmatprep.subr.bf16.mxu0 0
      %2870 = vmatpush1.bf16.xpose.msra.mxu0 0
      %2871 = vmatprep.subr.bf16.mxu0 0
      %2872 = vmatpush1.bf16.xpose.msra.mxu0 0
      %2873 = vmatprep.subr.bf16.mxu0 0
      %2874 = vmatpush1.bf16.xpose.msra.mxu0 0
      %2875 = vmatprep.subr.bf16.mxu0 0
      %2876 = vmatpush1.bf16.xpose.msra.mxu0 0
      %2877 = vmatprep.subr.bf16.mxu0 0
      %2878 = vmatpush1.bf16.xpose.msra.mxu0 0
      %2879 = vmatprep.subr.bf16.mxu0 0
      %2880 = vmatpush1.bf16.xpose.msra.mxu0 0
      %2881 = vmatprep.subr.bf16.mxu0 0
      %2882 = vmatpush1.bf16.xpose.msra.mxu0 0
      %2883 = vmatprep.subr.bf16.mxu0 0
      %2884 = vmatpush1.bf16.xpose.msra.mxu0 0
      %2885 = vmatprep.subr.bf16.mxu0 0
      %2886 = vmatpush1.bf16.xpose.msra.mxu0 0
      %2887 = vmatprep.subr.bf16.mxu0 0
      %2888 = vmatpush1.bf16.xpose.msra.mxu0 0
      %2889 = vmatprep.subr.bf16.mxu0 0
      %2890 = vmatpush1.bf16.xpose.msra.mxu0 0
      %2891 = vmatprep.mubr.bf16.mxu0 0
      %2892 = vmatmul.mubr.bf16.gmra.mrb[0].mxu0 %v2857
      %v2893 = vpop.f32.mrb[0].mxu0
      %v2894 = vadd.f32 %v2018, %v2893
      %v2895 = vpop.f32.mrb[0].mxu0
      %v2896 = vpop.f32.mrb[0].mxu0
      %v2897 = vadd.f32 %v2019, %v2896
      %v2898 = vpop.f32.mrb[0].mxu0
      %2899 = vdwg.mxu0
      %v2901 = vsel %vm526, %v1994, 0
      %2903 = vmatprep.subr.bf16.mxu0 0
      %2904 = vmatpush1.bf16.xpose.msra.mxu0 %v2901
      %2905 = vmatprep.subr.bf16.mxu0 0
      %2906 = vmatpush1.bf16.xpose.msra.mxu0 0
      %2907 = vmatprep.subr.bf16.mxu0 0
      %2908 = vmatpush1.bf16.xpose.msra.mxu0 0
      %2909 = vmatprep.subr.bf16.mxu0 0
      %2910 = vmatpush1.bf16.xpose.msra.mxu0 0
      %2911 = vmatprep.subr.bf16.mxu0 0
      %2912 = vmatpush1.bf16.xpose.msra.mxu0 0
      %2913 = vmatprep.subr.bf16.mxu0 0
      %2914 = vmatpush1.bf16.xpose.msra.mxu0 0
      %2915 = vmatprep.subr.bf16.mxu0 0
      %2916 = vmatpush1.bf16.xpose.msra.mxu0 0
      %2917 = vmatprep.subr.bf16.mxu0 0
      %2918 = vmatpush1.bf16.xpose.msra.mxu0 0
      %2919 = vmatprep.subr.bf16.mxu0 0
      %2920 = vmatpush1.bf16.xpose.msra.mxu0 0
      %2921 = vmatprep.subr.bf16.mxu0 0
      %2922 = vmatpush1.bf16.xpose.msra.mxu0 0
      %2923 = vmatprep.subr.bf16.mxu0 0
      %2924 = vmatpush1.bf16.xpose.msra.mxu0 0
      %2925 = vmatprep.subr.bf16.mxu0 0
      %2926 = vmatpush1.bf16.xpose.msra.mxu0 0
      %2927 = vmatprep.subr.bf16.mxu0 0
      %2928 = vmatpush1.bf16.xpose.msra.mxu0 0
      %2929 = vmatprep.subr.bf16.mxu0 0
      %2930 = vmatpush1.bf16.xpose.msra.mxu0 0
      %2931 = vmatprep.subr.bf16.mxu0 0
      %2932 = vmatpush1.bf16.xpose.msra.mxu0 0
      %2933 = vmatprep.subr.bf16.mxu0 0
      %2934 = vmatpush1.bf16.xpose.msra.mxu0 0
      %2935 = vmatprep.mubr.bf16.mxu0 0
      %2936 = vmatmul.mubr.bf16.gmra.mrb[0].mxu0 %v2901
      %v2937 = vpop.f32.mrb[0].mxu0
      %v2938 = vadd.f32 %v2018, %v2937
      %v2939 = vpop.f32.mrb[0].mxu0
      %v2940 = vpop.f32.mrb[0].mxu0
      %v2941 = vadd.f32 %v2019, %v2940
      %v2942 = vpop.f32.mrb[0].mxu0
      %2943 = vdwg.mxu0
      %v2945 = vsel %vm526, %v1995, 0
      %2947 = vmatprep.subr.bf16.mxu0 0
      %2948 = vmatpush1.bf16.xpose.msra.mxu0 %v2945
      %2949 = vmatprep.subr.bf16.mxu0 0
      %2950 = vmatpush1.bf16.xpose.msra.mxu0 0
      %2951 = vmatprep.subr.bf16.mxu0 0
      %2952 = vmatpush1.bf16.xpose.msra.mxu0 0
      %2953 = vmatprep.subr.bf16.mxu0 0
      %2954 = vmatpush1.bf16.xpose.msra.mxu0 0
      %2955 = vmatprep.subr.bf16.mxu0 0
      %2956 = vmatpush1.bf16.xpose.msra.mxu0 0
      %2957 = vmatprep.subr.bf16.mxu0 0
      %2958 = vmatpush1.bf16.xpose.msra.mxu0 0
      %2959 = vmatprep.subr.bf16.mxu0 0
      %2960 = vmatpush1.bf16.xpose.msra.mxu0 0
      %2961 = vmatprep.subr.bf16.mxu0 0
      %2962 = vmatpush1.bf16.xpose.msra.mxu0 0
      %2963 = vmatprep.subr.bf16.mxu0 0
      %2964 = vmatpush1.bf16.xpose.msra.mxu0 0
      %2965 = vmatprep.subr.bf16.mxu0 0
      %2966 = vmatpush1.bf16.xpose.msra.mxu0 0
      %2967 = vmatprep.subr.bf16.mxu0 0
      %2968 = vmatpush1.bf16.xpose.msra.mxu0 0
      %2969 = vmatprep.subr.bf16.mxu0 0
      %2970 = vmatpush1.bf16.xpose.msra.mxu0 0
      %2971 = vmatprep.subr.bf16.mxu0 0
      %2972 = vmatpush1.bf16.xpose.msra.mxu0 0
      %2973 = vmatprep.subr.bf16.mxu0 0
      %2974 = vmatpush1.bf16.xpose.msra.mxu0 0
      %2975 = vmatprep.subr.bf16.mxu0 0
      %2976 = vmatpush1.bf16.xpose.msra.mxu0 0
      %2977 = vmatprep.subr.bf16.mxu0 0
      %2978 = vmatpush1.bf16.xpose.msra.mxu0 0
      %2979 = vmatprep.mubr.bf16.mxu0 0
      %2980 = vmatmul.mubr.bf16.gmra.mrb[0].mxu0 %v2945
      %v2981 = vpop.f32.mrb[0].mxu0
      %v2982 = vadd.f32 %v2018, %v2981
      %v2983 = vpop.f32.mrb[0].mxu0
      %v2984 = vpop.f32.mrb[0].mxu0
      %v2985 = vadd.f32 %v2019, %v2984
      %v2986 = vpop.f32.mrb[0].mxu0
      %2987 = vdwg.mxu0
      %v2989 = vsel %vm526, %v1996, 0
      %2991 = vmatprep.subr.bf16.mxu0 0
      %2992 = vmatpush1.bf16.xpose.msra.mxu0 %v2989
      %2993 = vmatprep.subr.bf16.mxu0 0
      %2994 = vmatpush1.bf16.xpose.msra.mxu0 0
      %2995 = vmatprep.subr.bf16.mxu0 0
      %2996 = vmatpush1.bf16.xpose.msra.mxu0 0
      %2997 = vmatprep.subr.bf16.mxu0 0
      %2998 = vmatpush1.bf16.xpose.msra.mxu0 0
      %2999 = vmatprep.subr.bf16.mxu0 0
      %3000 = vmatpush1.bf16.xpose.msra.mxu0 0
      %3001 = vmatprep.subr.bf16.mxu0 0
      %3002 = vmatpush1.bf16.xpose.msra.mxu0 0
      %3003 = vmatprep.subr.bf16.mxu0 0
      %3004 = vmatpush1.bf16.xpose.msra.mxu0 0
      %3005 = vmatprep.subr.bf16.mxu0 0
      %3006 = vmatpush1.bf16.xpose.msra.mxu0 0
      %3007 = vmatprep.subr.bf16.mxu0 0
      %3008 = vmatpush1.bf16.xpose.msra.mxu0 0
      %3009 = vmatprep.subr.bf16.mxu0 0
      %3010 = vmatpush1.bf16.xpose.msra.mxu0 0
      %3011 = vmatprep.subr.bf16.mxu0 0
      %3012 = vmatpush1.bf16.xpose.msra.mxu0 0
      %3013 = vmatprep.subr.bf16.mxu0 0
      %3014 = vmatpush1.bf16.xpose.msra.mxu0 0
      %3015 = vmatprep.subr.bf16.mxu0 0
      %3016 = vmatpush1.bf16.xpose.msra.mxu0 0
      %3017 = vmatprep.subr.bf16.mxu0 0
      %3018 = vmatpush1.bf16.xpose.msra.mxu0 0
      %3019 = vmatprep.subr.bf16.mxu0 0
      %3020 = vmatpush1.bf16.xpose.msra.mxu0 0
      %3021 = vmatprep.subr.bf16.mxu0 0
      %3022 = vmatpush1.bf16.xpose.msra.mxu0 0
      %3023 = vmatprep.mubr.bf16.mxu0 0
      %3024 = vmatmul.mubr.bf16.gmra.mrb[0].mxu0 %v2989
      %v3025 = vpop.f32.mrb[0].mxu0
      %v3026 = vadd.f32 %v2018, %v3025
      %v3027 = vpop.f32.mrb[0].mxu0
      %v3028 = vpop.f32.mrb[0].mxu0
      %v3029 = vadd.f32 %v2019, %v3028
      %v3030 = vpop.f32.mrb[0].mxu0
      %3031 = vdwg.mxu0
      %v3033 = vsel %vm526, %v1997, 0
      %3035 = vmatprep.subr.bf16.mxu0 0
      %3036 = vmatpush1.bf16.xpose.msra.mxu0 %v3033
      %3037 = vmatprep.subr.bf16.mxu0 0
      %3038 = vmatpush1.bf16.xpose.msra.mxu0 0
      %3039 = vmatprep.subr.bf16.mxu0 0
      %3040 = vmatpush1.bf16.xpose.msra.mxu0 0
      %3041 = vmatprep.subr.bf16.mxu0 0
      %3042 = vmatpush1.bf16.xpose.msra.mxu0 0
      %3043 = vmatprep.subr.bf16.mxu0 0
      %3044 = vmatpush1.bf16.xpose.msra.mxu0 0
      %3045 = vmatprep.subr.bf16.mxu0 0
      %3046 = vmatpush1.bf16.xpose.msra.mxu0 0
      %3047 = vmatprep.subr.bf16.mxu0 0
      %3048 = vmatpush1.bf16.xpose.msra.mxu0 0
      %3049 = vmatprep.subr.bf16.mxu0 0
      %3050 = vmatpush1.bf16.xpose.msra.mxu0 0
      %3051 = vmatprep.subr.bf16.mxu0 0
      %3052 = vmatpush1.bf16.xpose.msra.mxu0 0
      %3053 = vmatprep.subr.bf16.mxu0 0
      %3054 = vmatpush1.bf16.xpose.msra.mxu0 0
      %3055 = vmatprep.subr.bf16.mxu0 0
      %3056 = vmatpush1.bf16.xpose.msra.mxu0 0
      %3057 = vmatprep.subr.bf16.mxu0 0
      %3058 = vmatpush1.bf16.xpose.msra.mxu0 0
      %3059 = vmatprep.subr.bf16.mxu0 0
      %3060 = vmatpush1.bf16.xpose.msra.mxu0 0
      %3061 = vmatprep.subr.bf16.mxu0 0
      %3062 = vmatpush1.bf16.xpose.msra.mxu0 0
      %3063 = vmatprep.subr.bf16.mxu0 0
      %3064 = vmatpush1.bf16.xpose.msra.mxu0 0
      %3065 = vmatprep.subr.bf16.mxu0 0
      %3066 = vmatpush1.bf16.xpose.msra.mxu0 0
      %3067 = vmatprep.mubr.bf16.mxu0 0
      %3068 = vmatmul.mubr.bf16.gmra.mrb[0].mxu0 %v3033
      %v3069 = vpop.f32.mrb[0].mxu0
      %v3070 = vadd.f32 %v2018, %v3069
      %v3071 = vpop.f32.mrb[0].mxu0
      %v3072 = vpop.f32.mrb[0].mxu0
      %v3073 = vadd.f32 %v2019, %v3072
      %v3074 = vpop.f32.mrb[0].mxu0
      %3075 = vdwg.mxu0
      %v3077 = vsel %vm526, %v1998, 0
      %3079 = vmatprep.subr.bf16.mxu0 0
      %3080 = vmatpush1.bf16.xpose.msra.mxu0 %v3077
      %3081 = vmatprep.subr.bf16.mxu0 0
      %3082 = vmatpush1.bf16.xpose.msra.mxu0 0
      %3083 = vmatprep.subr.bf16.mxu0 0
      %3084 = vmatpush1.bf16.xpose.msra.mxu0 0
      %3085 = vmatprep.subr.bf16.mxu0 0
      %3086 = vmatpush1.bf16.xpose.msra.mxu0 0
      %3087 = vmatprep.subr.bf16.mxu0 0
      %3088 = vmatpush1.bf16.xpose.msra.mxu0 0
      %3089 = vmatprep.subr.bf16.mxu0 0
      %3090 = vmatpush1.bf16.xpose.msra.mxu0 0
      %3091 = vmatprep.subr.bf16.mxu0 0
      %3092 = vmatpush1.bf16.xpose.msra.mxu0 0
      %3093 = vmatprep.subr.bf16.mxu0 0
      %3094 = vmatpush1.bf16.xpose.msra.mxu0 0
      %3095 = vmatprep.subr.bf16.mxu0 0
      %3096 = vmatpush1.bf16.xpose.msra.mxu0 0
      %3097 = vmatprep.subr.bf16.mxu0 0
      %3098 = vmatpush1.bf16.xpose.msra.mxu0 0
      %3099 = vmatprep.subr.bf16.mxu0 0
      %3100 = vmatpush1.bf16.xpose.msra.mxu0 0
      %3101 = vmatprep.subr.bf16.mxu0 0
      %3102 = vmatpush1.bf16.xpose.msra.mxu0 0
      %3103 = vmatprep.subr.bf16.mxu0 0
      %3104 = vmatpush1.bf16.xpose.msra.mxu0 0
      %3105 = vmatprep.subr.bf16.mxu0 0
      %3106 = vmatpush1.bf16.xpose.msra.mxu0 0
      %3107 = vmatprep.subr.bf16.mxu0 0
      %3108 = vmatpush1.bf16.xpose.msra.mxu0 0
      %3109 = vmatprep.subr.bf16.mxu0 0
      %3110 = vmatpush1.bf16.xpose.msra.mxu0 0
      %3111 = vmatprep.mubr.bf16.mxu0 0
      %3112 = vmatmul.mubr.bf16.gmra.mrb[0].mxu0 %v3077
      %v3113 = vpop.f32.mrb[0].mxu0
      %v3114 = vadd.f32 %v2018, %v3113
      %v3115 = vpop.f32.mrb[0].mxu0
      %v3116 = vpop.f32.mrb[0].mxu0
      %v3117 = vadd.f32 %v2019, %v3116
      %v3118 = vpop.f32.mrb[0].mxu0
      %3119 = vdwg.mxu0
      %v3121 = vsel %vm526, %v1999, 0
      %3123 = vmatprep.subr.bf16.mxu0 0
      %3124 = vmatpush1.bf16.xpose.msra.mxu0 %v3121
      %3125 = vmatprep.subr.bf16.mxu0 0
      %3126 = vmatpush1.bf16.xpose.msra.mxu0 0
      %3127 = vmatprep.subr.bf16.mxu0 0
      %3128 = vmatpush1.bf16.xpose.msra.mxu0 0
      %3129 = vmatprep.subr.bf16.mxu0 0
      %3130 = vmatpush1.bf16.xpose.msra.mxu0 0
      %3131 = vmatprep.subr.bf16.mxu0 0
      %3132 = vmatpush1.bf16.xpose.msra.mxu0 0
      %3133 = vmatprep.subr.bf16.mxu0 0
      %3134 = vmatpush1.bf16.xpose.msra.mxu0 0
      %3135 = vmatprep.subr.bf16.mxu0 0
      %3136 = vmatpush1.bf16.xpose.msra.mxu0 0
      %3137 = vmatprep.subr.bf16.mxu0 0
      %3138 = vmatpush1.bf16.xpose.msra.mxu0 0
      %3139 = vmatprep.subr.bf16.mxu0 0
      %3140 = vmatpush1.bf16.xpose.msra.mxu0 0
      %3141 = vmatprep.subr.bf16.mxu0 0
      %3142 = vmatpush1.bf16.xpose.msra.mxu0 0
      %3143 = vmatprep.subr.bf16.mxu0 0
      %3144 = vmatpush1.bf16.xpose.msra.mxu0 0
      %3145 = vmatprep.subr.bf16.mxu0 0
      %3146 = vmatpush1.bf16.xpose.msra.mxu0 0
      %3147 = vmatprep.subr.bf16.mxu0 0
      %3148 = vmatpush1.bf16.xpose.msra.mxu0 0
      %3149 = vmatprep.subr.bf16.mxu0 0
      %3150 = vmatpush1.bf16.xpose.msra.mxu0 0
      %3151 = vmatprep.subr.bf16.mxu0 0
      %3152 = vmatpush1.bf16.xpose.msra.mxu0 0
      %3153 = vmatprep.subr.bf16.mxu0 0
      %3154 = vmatpush1.bf16.xpose.msra.mxu0 0
      %3155 = vmatprep.mubr.bf16.mxu0 0
      %3156 = vmatmul.mubr.bf16.gmra.mrb[0].mxu0 %v3121
      %v3157 = vpop.f32.mrb[0].mxu0
      %v3158 = vadd.f32 %v2018, %v3157
      %v3159 = vpop.f32.mrb[0].mxu0
      %v3160 = vpop.f32.mrb[0].mxu0
      %v3161 = vadd.f32 %v2019, %v3160
      %v3162 = vpop.f32.mrb[0].mxu0
      %3163 = vdwg.mxu0
      %v3165 = vsel %vm526, %v2000, 0
      %3167 = vmatprep.subr.bf16.mxu0 0
      %3168 = vmatpush1.bf16.xpose.msra.mxu0 %v3165
      %3169 = vmatprep.subr.bf16.mxu0 0
      %3170 = vmatpush1.bf16.xpose.msra.mxu0 0
      %3171 = vmatprep.subr.bf16.mxu0 0
      %3172 = vmatpush1.bf16.xpose.msra.mxu0 0
      %3173 = vmatprep.subr.bf16.mxu0 0
      %3174 = vmatpush1.bf16.xpose.msra.mxu0 0
      %3175 = vmatprep.subr.bf16.mxu0 0
      %3176 = vmatpush1.bf16.xpose.msra.mxu0 0
      %3177 = vmatprep.subr.bf16.mxu0 0
      %3178 = vmatpush1.bf16.xpose.msra.mxu0 0
      %3179 = vmatprep.subr.bf16.mxu0 0
      %3180 = vmatpush1.bf16.xpose.msra.mxu0 0
      %3181 = vmatprep.subr.bf16.mxu0 0
      %3182 = vmatpush1.bf16.xpose.msra.mxu0 0
      %3183 = vmatprep.subr.bf16.mxu0 0
      %3184 = vmatpush1.bf16.xpose.msra.mxu0 0
      %3185 = vmatprep.subr.bf16.mxu0 0
      %3186 = vmatpush1.bf16.xpose.msra.mxu0 0
      %3187 = vmatprep.subr.bf16.mxu0 0
      %3188 = vmatpush1.bf16.xpose.msra.mxu0 0
      %3189 = vmatprep.subr.bf16.mxu0 0
      %3190 = vmatpush1.bf16.xpose.msra.mxu0 0
      %3191 = vmatprep.subr.bf16.mxu0 0
      %3192 = vmatpush1.bf16.xpose.msra.mxu0 0
      %3193 = vmatprep.subr.bf16.mxu0 0
      %3194 = vmatpush1.bf16.xpose.msra.mxu0 0
      %3195 = vmatprep.subr.bf16.mxu0 0
      %3196 = vmatpush1.bf16.xpose.msra.mxu0 0
      %3197 = vmatprep.subr.bf16.mxu0 0
      %3198 = vmatpush1.bf16.xpose.msra.mxu0 0
      %3199 = vmatprep.mubr.bf16.mxu0 0
      %3200 = vmatmul.mubr.bf16.gmra.mrb[0].mxu0 %v3165
      %v3201 = vpop.f32.mrb[0].mxu0
      %v3202 = vadd.f32 %v2018, %v3201
      %v3203 = vpop.f32.mrb[0].mxu0
      %v3204 = vpop.f32.mrb[0].mxu0
      %v3205 = vadd.f32 %v2019, %v3204
      %v3206 = vpop.f32.mrb[0].mxu0
      %3207 = vdwg.mxu0
      %v3209 = vsel %vm526, %v2001, 0
      %3211 = vmatprep.subr.bf16.mxu0 0
      %3212 = vmatpush1.bf16.xpose.msra.mxu0 %v3209
      %3213 = vmatprep.subr.bf16.mxu0 0
      %3214 = vmatpush1.bf16.xpose.msra.mxu0 0
      %3215 = vmatprep.subr.bf16.mxu0 0
      %3216 = vmatpush1.bf16.xpose.msra.mxu0 0
      %3217 = vmatprep.subr.bf16.mxu0 0
      %3218 = vmatpush1.bf16.xpose.msra.mxu0 0
      %3219 = vmatprep.subr.bf16.mxu0 0
      %3220 = vmatpush1.bf16.xpose.msra.mxu0 0
      %3221 = vmatprep.subr.bf16.mxu0 0
      %3222 = vmatpush1.bf16.xpose.msra.mxu0 0
      %3223 = vmatprep.subr.bf16.mxu0 0
      %3224 = vmatpush1.bf16.xpose.msra.mxu0 0
      %3225 = vmatprep.subr.bf16.mxu0 0
      %3226 = vmatpush1.bf16.xpose.msra.mxu0 0
      %3227 = vmatprep.subr.bf16.mxu0 0
      %3228 = vmatpush1.bf16.xpose.msra.mxu0 0
      %3229 = vmatprep.subr.bf16.mxu0 0
      %3230 = vmatpush1.bf16.xpose.msra.mxu0 0
      %3231 = vmatprep.subr.bf16.mxu0 0
      %3232 = vmatpush1.bf16.xpose.msra.mxu0 0
      %3233 = vmatprep.subr.bf16.mxu0 0
      %3234 = vmatpush1.bf16.xpose.msra.mxu0 0
      %3235 = vmatprep.subr.bf16.mxu0 0
      %3236 = vmatpush1.bf16.xpose.msra.mxu0 0
      %3237 = vmatprep.subr.bf16.mxu0 0
      %3238 = vmatpush1.bf16.xpose.msra.mxu0 0
      %3239 = vmatprep.subr.bf16.mxu0 0
      %3240 = vmatpush1.bf16.xpose.msra.mxu0 0
      %3241 = vmatprep.subr.bf16.mxu0 0
      %3242 = vmatpush1.bf16.xpose.msra.mxu0 0
      %3243 = vmatprep.mubr.bf16.mxu0 0
      %3244 = vmatmul.mubr.bf16.gmra.mrb[0].mxu0 %v3209
      %v3245 = vpop.f32.mrb[0].mxu0
      %v3246 = vadd.f32 %v2018, %v3245
      %v3247 = vpop.f32.mrb[0].mxu0
      %v3248 = vpop.f32.mrb[0].mxu0
      %v3249 = vadd.f32 %v2019, %v3248
      %v3250 = vpop.f32.mrb[0].mxu0
      %3251 = vdwg.mxu0
      %v3253 = vsel %vm526, %v2002, 0
      %3255 = vmatprep.subr.bf16.mxu0 0
      %3256 = vmatpush1.bf16.xpose.msra.mxu0 %v3253
      %3257 = vmatprep.subr.bf16.mxu0 0
      %3258 = vmatpush1.bf16.xpose.msra.mxu0 0
      %3259 = vmatprep.subr.bf16.mxu0 0
      %3260 = vmatpush1.bf16.xpose.msra.mxu0 0
      %3261 = vmatprep.subr.bf16.mxu0 0
      %3262 = vmatpush1.bf16.xpose.msra.mxu0 0
      %3263 = vmatprep.subr.bf16.mxu0 0
      %3264 = vmatpush1.bf16.xpose.msra.mxu0 0
      %3265 = vmatprep.subr.bf16.mxu0 0
      %3266 = vmatpush1.bf16.xpose.msra.mxu0 0
      %3267 = vmatprep.subr.bf16.mxu0 0
      %3268 = vmatpush1.bf16.xpose.msra.mxu0 0
      %3269 = vmatprep.subr.bf16.mxu0 0
      %3270 = vmatpush1.bf16.xpose.msra.mxu0 0
      %3271 = vmatprep.subr.bf16.mxu0 0
      %3272 = vmatpush1.bf16.xpose.msra.mxu0 0
      %3273 = vmatprep.subr.bf16.mxu0 0
      %3274 = vmatpush1.bf16.xpose.msra.mxu0 0
      %3275 = vmatprep.subr.bf16.mxu0 0
      %3276 = vmatpush1.bf16.xpose.msra.mxu0 0
      %3277 = vmatprep.subr.bf16.mxu0 0
      %3278 = vmatpush1.bf16.xpose.msra.mxu0 0
      %3279 = vmatprep.subr.bf16.mxu0 0
      %3280 = vmatpush1.bf16.xpose.msra.mxu0 0
      %3281 = vmatprep.subr.bf16.mxu0 0
      %3282 = vmatpush1.bf16.xpose.msra.mxu0 0
      %3283 = vmatprep.subr.bf16.mxu0 0
      %3284 = vmatpush1.bf16.xpose.msra.mxu0 0
      %3285 = vmatprep.subr.bf16.mxu0 0
      %3286 = vmatpush1.bf16.xpose.msra.mxu0 0
      %3287 = vmatprep.mubr.bf16.mxu0 0
      %3288 = vmatmul.mubr.bf16.gmra.mrb[0].mxu0 %v3253
      %v3289 = vpop.f32.mrb[0].mxu0
      %v3290 = vadd.f32 %v2018, %v3289
      %v3291 = vpop.f32.mrb[0].mxu0
      %v3292 = vpop.f32.mrb[0].mxu0
      %v3293 = vadd.f32 %v2019, %v3292
      %v3294 = vpop.f32.mrb[0].mxu0
      %3295 = vdwg.mxu0
      %v3297 = vsel %vm526, %v2003, 0
      %3299 = vmatprep.subr.bf16.mxu0 0
      %3300 = vmatpush1.bf16.xpose.msra.mxu0 %v3297
      %3301 = vmatprep.subr.bf16.mxu0 0
      %3302 = vmatpush1.bf16.xpose.msra.mxu0 0
      %3303 = vmatprep.subr.bf16.mxu0 0
      %3304 = vmatpush1.bf16.xpose.msra.mxu0 0
      %3305 = vmatprep.subr.bf16.mxu0 0
      %3306 = vmatpush1.bf16.xpose.msra.mxu0 0
      %3307 = vmatprep.subr.bf16.mxu0 0
      %3308 = vmatpush1.bf16.xpose.msra.mxu0 0
      %3309 = vmatprep.subr.bf16.mxu0 0
      %3310 = vmatpush1.bf16.xpose.msra.mxu0 0
      %3311 = vmatprep.subr.bf16.mxu0 0
      %3312 = vmatpush1.bf16.xpose.msra.mxu0 0
      %3313 = vmatprep.subr.bf16.mxu0 0
      %3314 = vmatpush1.bf16.xpose.msra.mxu0 0
      %3315 = vmatprep.subr.bf16.mxu0 0
      %3316 = vmatpush1.bf16.xpose.msra.mxu0 0
      %3317 = vmatprep.subr.bf16.mxu0 0
      %3318 = vmatpush1.bf16.xpose.msra.mxu0 0
      %3319 = vmatprep.subr.bf16.mxu0 0
      %3320 = vmatpush1.bf16.xpose.msra.mxu0 0
      %3321 = vmatprep.subr.bf16.mxu0 0
      %3322 = vmatpush1.bf16.xpose.msra.mxu0 0
      %3323 = vmatprep.subr.bf16.mxu0 0
      %3324 = vmatpush1.bf16.xpose.msra.mxu0 0
      %3325 = vmatprep.subr.bf16.mxu0 0
      %3326 = vmatpush1.bf16.xpose.msra.mxu0 0
      %3327 = vmatprep.subr.bf16.mxu0 0
      %3328 = vmatpush1.bf16.xpose.msra.mxu0 0
      %3329 = vmatprep.subr.bf16.mxu0 0
      %3330 = vmatpush1.bf16.xpose.msra.mxu0 0
      %3331 = vmatprep.mubr.bf16.mxu0 0
      %3332 = vmatmul.mubr.bf16.gmra.mrb[0].mxu0 %v3297
      %v3333 = vpop.f32.mrb[0].mxu0
      %v3334 = vadd.f32 %v2018, %v3333
      %v3335 = vpop.f32.mrb[0].mxu0
      %v3336 = vpop.f32.mrb[0].mxu0
      %v3337 = vadd.f32 %v2019, %v3336
      %v3338 = vpop.f32.mrb[0].mxu0
      %3339 = vdwg.mxu0
      %v3341 = vsel %vm526, %v2004, 0
      %3343 = vmatprep.subr.bf16.mxu0 0
      %3344 = vmatpush1.bf16.xpose.msra.mxu0 %v3341
      %3345 = vmatprep.subr.bf16.mxu0 0
      %3346 = vmatpush1.bf16.xpose.msra.mxu0 0
      %3347 = vmatprep.subr.bf16.mxu0 0
      %3348 = vmatpush1.bf16.xpose.msra.mxu0 0
      %3349 = vmatprep.subr.bf16.mxu0 0
      %3350 = vmatpush1.bf16.xpose.msra.mxu0 0
      %3351 = vmatprep.subr.bf16.mxu0 0
      %3352 = vmatpush1.bf16.xpose.msra.mxu0 0
      %3353 = vmatprep.subr.bf16.mxu0 0
      %3354 = vmatpush1.bf16.xpose.msra.mxu0 0
      %3355 = vmatprep.subr.bf16.mxu0 0
      %3356 = vmatpush1.bf16.xpose.msra.mxu0 0
      %3357 = vmatprep.subr.bf16.mxu0 0
      %3358 = vmatpush1.bf16.xpose.msra.mxu0 0
      %3359 = vmatprep.subr.bf16.mxu0 0
      %3360 = vmatpush1.bf16.xpose.msra.mxu0 0
      %3361 = vmatprep.subr.bf16.mxu0 0
      %3362 = vmatpush1.bf16.xpose.msra.mxu0 0
      %3363 = vmatprep.subr.bf16.mxu0 0
      %3364 = vmatpush1.bf16.xpose.msra.mxu0 0
      %3365 = vmatprep.subr.bf16.mxu0 0
      %3366 = vmatpush1.bf16.xpose.msra.mxu0 0
      %3367 = vmatprep.subr.bf16.mxu0 0
      %3368 = vmatpush1.bf16.xpose.msra.mxu0 0
      %3369 = vmatprep.subr.bf16.mxu0 0
      %3370 = vmatpush1.bf16.xpose.msra.mxu0 0
      %3371 = vmatprep.subr.bf16.mxu0 0
      %3372 = vmatpush1.bf16.xpose.msra.mxu0 0
      %3373 = vmatprep.subr.bf16.mxu0 0
      %3374 = vmatpush1.bf16.xpose.msra.mxu0 0
      %3375 = vmatprep.mubr.bf16.mxu0 0
      %3376 = vmatmul.mubr.bf16.gmra.mrb[0].mxu0 %v3341
      %v3377 = vpop.f32.mrb[0].mxu0
      %v3378 = vadd.f32 %v2018, %v3377
      %v3379 = vpop.f32.mrb[0].mxu0
      %v3380 = vpop.f32.mrb[0].mxu0
      %v3381 = vadd.f32 %v2019, %v3380
      %v3382 = vpop.f32.mrb[0].mxu0
      %3383 = vdwg.mxu0
      %v3385 = vsel %vm526, %v2005, 0
      %3387 = vmatprep.subr.bf16.mxu0 0
      %3388 = vmatpush1.bf16.xpose.msra.mxu0 %v3385
      %3389 = vmatprep.subr.bf16.mxu0 0
      %3390 = vmatpush1.bf16.xpose.msra.mxu0 0
      %3391 = vmatprep.subr.bf16.mxu0 0
      %3392 = vmatpush1.bf16.xpose.msra.mxu0 0
      %3393 = vmatprep.subr.bf16.mxu0 0
      %3394 = vmatpush1.bf16.xpose.msra.mxu0 0
      %3395 = vmatprep.subr.bf16.mxu0 0
      %3396 = vmatpush1.bf16.xpose.msra.mxu0 0
      %3397 = vmatprep.subr.bf16.mxu0 0
      %3398 = vmatpush1.bf16.xpose.msra.mxu0 0
      %3399 = vmatprep.subr.bf16.mxu0 0
      %3400 = vmatpush1.bf16.xpose.msra.mxu0 0
      %3401 = vmatprep.subr.bf16.mxu0 0
      %3402 = vmatpush1.bf16.xpose.msra.mxu0 0
      %3403 = vmatprep.subr.bf16.mxu0 0
      %3404 = vmatpush1.bf16.xpose.msra.mxu0 0
      %3405 = vmatprep.subr.bf16.mxu0 0
      %3406 = vmatpush1.bf16.xpose.msra.mxu0 0
      %3407 = vmatprep.subr.bf16.mxu0 0
      %3408 = vmatpush1.bf16.xpose.msra.mxu0 0
      %3409 = vmatprep.subr.bf16.mxu0 0
      %3410 = vmatpush1.bf16.xpose.msra.mxu0 0
      %3411 = vmatprep.subr.bf16.mxu0 0
      %3412 = vmatpush1.bf16.xpose.msra.mxu0 0
      %3413 = vmatprep.subr.bf16.mxu0 0
      %3414 = vmatpush1.bf16.xpose.msra.mxu0 0
      %3415 = vmatprep.subr.bf16.mxu0 0
      %3416 = vmatpush1.bf16.xpose.msra.mxu0 0
      %3417 = vmatprep.subr.bf16.mxu0 0
      %3418 = vmatpush1.bf16.xpose.msra.mxu0 0
      %3419 = vmatprep.mubr.bf16.mxu0 0
      %3420 = vmatmul.mubr.bf16.gmra.mrb[0].mxu0 %v3385
      %v3421 = vpop.f32.mrb[0].mxu0
      %v3422 = vadd.f32 %v2018, %v3421
      %v3423 = vpop.f32.mrb[0].mxu0
      %v3424 = vpop.f32.mrb[0].mxu0
      %v3425 = vadd.f32 %v2019, %v3424
      %v3426 = vpop.f32.mrb[0].mxu0
      %3427 = vdwg.mxu0
      %vm3428 = vcmask 130048
      %v3429 = vsel %vm3428, %v2058, -inf
      %3430 = vmax.xlane.f32.xlu0 %v3429
      %v3431 = vpop.xlane.xlu0 %3430
      %v3432 = vsel %vm3428, %v2061, -inf
      %3433 = vmax.xlane.f32.xlu0 %v3432
      %v3434 = vpop.xlane.xlu0 %3433
      %v3435 = vsel %vm3428, %v2102, -inf
      %3436 = vmax.xlane.f32.xlu0 %v3435
      %v3437 = vpop.xlane.xlu0 %3436
      %v3438 = vsel %vm3428, %v2105, -inf
      %3439 = vmax.xlane.f32.xlu0 %v3438
      %v3440 = vpop.xlane.xlu0 %3439
      %v3441 = vsel %vm3428, %v2146, -inf
      %3442 = vmax.xlane.f32.xlu0 %v3441
      %v3443 = vpop.xlane.xlu0 %3442
      %v3444 = vsel %vm3428, %v2149, -inf
      %3445 = vmax.xlane.f32.xlu0 %v3444
      %v3446 = vpop.xlane.xlu0 %3445
      %v3447 = vsel %vm3428, %v2190, -inf
      %3448 = vmax.xlane.f32.xlu0 %v3447
      %v3449 = vpop.xlane.xlu0 %3448
      %v3450 = vsel %vm3428, %v2193, -inf
      %3451 = vmax.xlane.f32.xlu0 %v3450
      %v3452 = vpop.xlane.xlu0 %3451
      %v3453 = vsel %vm3428, %v2234, -inf
      %3454 = vmax.xlane.f32.xlu0 %v3453
      %v3455 = vpop.xlane.xlu0 %3454
      %v3456 = vsel %vm3428, %v2237, -inf
      %3457 = vmax.xlane.f32.xlu0 %v3456
      %v3458 = vpop.xlane.xlu0 %3457
      %v3459 = vsel %vm3428, %v2278, -inf
      %3460 = vmax.xlane.f32.xlu0 %v3459
      %v3461 = vpop.xlane.xlu0 %3460
      %v3462 = vsel %vm3428, %v2281, -inf
      %3463 = vmax.xlane.f32.xlu0 %v3462
      %v3464 = vpop.xlane.xlu0 %3463
      %v3465 = vsel %vm3428, %v2322, -inf
      %3466 = vmax.xlane.f32.xlu0 %v3465
      %v3467 = vpop.xlane.xlu0 %3466
      %v3468 = vsel %vm3428, %v2325, -inf
      %3469 = vmax.xlane.f32.xlu0 %v3468
      %v3470 = vpop.xlane.xlu0 %3469
      %v3471 = vsel %vm3428, %v2366, -inf
      %3472 = vmax.xlane.f32.xlu0 %v3471
      %v3473 = vpop.xlane.xlu0 %3472
      %v3474 = vsel %vm3428, %v2369, -inf
      %3475 = vmax.xlane.f32.xlu0 %v3474
      %v3476 = vpop.xlane.xlu0 %3475
      %v3477 = vsel %vm3428, %v2410, -inf
      %3478 = vmax.xlane.f32.xlu0 %v3477
      %v3479 = vpop.xlane.xlu0 %3478
      %v3480 = vsel %vm3428, %v2413, -inf
      %3481 = vmax.xlane.f32.xlu0 %v3480
      %v3482 = vpop.xlane.xlu0 %3481
      %v3483 = vsel %vm3428, %v2454, -inf
      %3484 = vmax.xlane.f32.xlu0 %v3483
      %v3485 = vpop.xlane.xlu0 %3484
      %v3486 = vsel %vm3428, %v2457, -inf
      %3487 = vmax.xlane.f32.xlu0 %v3486
      %v3488 = vpop.xlane.xlu0 %3487
      %v3489 = vsel %vm3428, %v2498, -inf
      %3490 = vmax.xlane.f32.xlu0 %v3489
      %v3491 = vpop.xlane.xlu0 %3490
      %v3492 = vsel %vm3428, %v2501, -inf
      %3493 = vmax.xlane.f32.xlu0 %v3492
      %v3494 = vpop.xlane.xlu0 %3493
      %v3495 = vsel %vm3428, %v2542, -inf
      %3496 = vmax.xlane.f32.xlu0 %v3495
      %v3497 = vpop.xlane.xlu0 %3496
      %v3498 = vsel %vm3428, %v2545, -inf
      %3499 = vmax.xlane.f32.xlu0 %v3498
      %v3500 = vpop.xlane.xlu0 %3499
      %v3501 = vsel %vm3428, %v2586, -inf
      %3502 = vmax.xlane.f32.xlu0 %v3501
      %v3503 = vpop.xlane.xlu0 %3502
      %v3504 = vsel %vm3428, %v2589, -inf
      %3505 = vmax.xlane.f32.xlu0 %v3504
      %v3506 = vpop.xlane.xlu0 %3505
      %v3507 = vsel %vm3428, %v2630, -inf
      %3508 = vmax.xlane.f32.xlu0 %v3507
      %v3509 = vpop.xlane.xlu0 %3508
      %v3510 = vsel %vm3428, %v2633, -inf
      %3511 = vmax.xlane.f32.xlu0 %v3510
      %v3512 = vpop.xlane.xlu0 %3511
      %v3513 = vsel %vm3428, %v2674, -inf
      %3514 = vmax.xlane.f32.xlu0 %v3513
      %v3515 = vpop.xlane.xlu0 %3514
      %v3516 = vsel %vm3428, %v2677, -inf
      %3517 = vmax.xlane.f32.xlu0 %v3516
      %v3518 = vpop.xlane.xlu0 %3517
      %v3519 = vsel %vm3428, %v2718, -inf
      %3520 = vmax.xlane.f32.xlu0 %v3519
      %v3521 = vpop.xlane.xlu0 %3520
      %v3522 = vsel %vm3428, %v2721, -inf
      %3523 = vmax.xlane.f32.xlu0 %v3522
      %v3524 = vpop.xlane.xlu0 %3523
      %v3525 = vsel %vm3428, %v2762, -inf
      %3526 = vmax.xlane.f32.xlu0 %v3525
      %v3527 = vpop.xlane.xlu0 %3526
      %v3528 = vsel %vm3428, %v2765, -inf
      %3529 = vmax.xlane.f32.xlu0 %v3528
      %v3530 = vpop.xlane.xlu0 %3529
      %v3531 = vsel %vm3428, %v2806, -inf
      %3532 = vmax.xlane.f32.xlu0 %v3531
      %v3533 = vpop.xlane.xlu0 %3532
      %v3534 = vsel %vm3428, %v2809, -inf
      %3535 = vmax.xlane.f32.xlu0 %v3534
      %v3536 = vpop.xlane.xlu0 %3535
      %v3537 = vsel %vm3428, %v2850, -inf
      %3538 = vmax.xlane.f32.xlu0 %v3537
      %v3539 = vpop.xlane.xlu0 %3538
      %v3540 = vsel %vm3428, %v2853, -inf
      %3541 = vmax.xlane.f32.xlu0 %v3540
      %v3542 = vpop.xlane.xlu0 %3541
      %v3543 = vsel %vm3428, %v2894, -inf
      %3544 = vmax.xlane.f32.xlu0 %v3543
      %v3545 = vpop.xlane.xlu0 %3544
      %v3546 = vsel %vm3428, %v2897, -inf
      %3547 = vmax.xlane.f32.xlu0 %v3546
      %v3548 = vpop.xlane.xlu0 %3547
      %v3549 = vsel %vm3428, %v2938, -inf
      %3550 = vmax.xlane.f32.xlu0 %v3549
      %v3551 = vpop.xlane.xlu0 %3550
      %v3552 = vsel %vm3428, %v2941, -inf
      %3553 = vmax.xlane.f32.xlu0 %v3552
      %v3554 = vpop.xlane.xlu0 %3553
      %v3555 = vsel %vm3428, %v2982, -inf
      %3556 = vmax.xlane.f32.xlu0 %v3555
      %v3557 = vpop.xlane.xlu0 %3556
      %v3558 = vsel %vm3428, %v2985, -inf
      %3559 = vmax.xlane.f32.xlu0 %v3558
      %v3560 = vpop.xlane.xlu0 %3559
      %v3561 = vsel %vm3428, %v3026, -inf
      %3562 = vmax.xlane.f32.xlu0 %v3561
      %v3563 = vpop.xlane.xlu0 %3562
      %v3564 = vsel %vm3428, %v3029, -inf
      %3565 = vmax.xlane.f32.xlu0 %v3564
      %v3566 = vpop.xlane.xlu0 %3565
      %v3567 = vsel %vm3428, %v3070, -inf
      %3568 = vmax.xlane.f32.xlu0 %v3567
      %v3569 = vpop.xlane.xlu0 %3568
      %v3570 = vsel %vm3428, %v3073, -inf
      %3571 = vmax.xlane.f32.xlu0 %v3570
      %v3572 = vpop.xlane.xlu0 %3571
      %v3573 = vsel %vm3428, %v3114, -inf
      %3574 = vmax.xlane.f32.xlu0 %v3573
      %v3575 = vpop.xlane.xlu0 %3574
      %v3576 = vsel %vm3428, %v3117, -inf
      %3577 = vmax.xlane.f32.xlu0 %v3576
      %v3578 = vpop.xlane.xlu0 %3577
      %v3579 = vsel %vm3428, %v3158, -inf
      %3580 = vmax.xlane.f32.xlu0 %v3579
      %v3581 = vpop.xlane.xlu0 %3580
      %v3582 = vsel %vm3428, %v3161, -inf
      %3583 = vmax.xlane.f32.xlu0 %v3582
      %v3584 = vpop.xlane.xlu0 %3583
      %v3585 = vsel %vm3428, %v3202, -inf
      %3586 = vmax.xlane.f32.xlu0 %v3585
      %v3587 = vpop.xlane.xlu0 %3586
      %v3588 = vsel %vm3428, %v3205, -inf
      %3589 = vmax.xlane.f32.xlu0 %v3588
      %v3590 = vpop.xlane.xlu0 %3589
      %v3591 = vsel %vm3428, %v3246, -inf
      %3592 = vmax.xlane.f32.xlu0 %v3591
      %v3593 = vpop.xlane.xlu0 %3592
      %v3594 = vsel %vm3428, %v3249, -inf
      %3595 = vmax.xlane.f32.xlu0 %v3594
      %v3596 = vpop.xlane.xlu0 %3595
      %v3597 = vsel %vm3428, %v3290, -inf
      %3598 = vmax.xlane.f32.xlu0 %v3597
      %v3599 = vpop.xlane.xlu0 %3598
      %v3600 = vsel %vm3428, %v3293, -inf
      %3601 = vmax.xlane.f32.xlu0 %v3600
      %v3602 = vpop.xlane.xlu0 %3601
      %v3603 = vsel %vm3428, %v3334, -inf
      %3604 = vmax.xlane.f32.xlu0 %v3603
      %v3605 = vpop.xlane.xlu0 %3604
      %v3606 = vsel %vm3428, %v3337, -inf
      %3607 = vmax.xlane.f32.xlu0 %v3606
      %v3608 = vpop.xlane.xlu0 %3607
      %v3609 = vsel %vm3428, %v3378, -inf
      %3610 = vmax.xlane.f32.xlu0 %v3609
      %v3611 = vpop.xlane.xlu0 %3610
      %v3612 = vsel %vm3428, %v3381, -inf
      %3613 = vmax.xlane.f32.xlu0 %v3612
      %v3614 = vpop.xlane.xlu0 %3613
      %v3615 = vsel %vm3428, %v3422, -inf
      %3616 = vmax.xlane.f32.xlu0 %v3615
      %v3617 = vpop.xlane.xlu0 %3616
      %v3618 = vsel %vm3428, %v3425, -inf
      %3619 = vmax.xlane.f32.xlu0 %v3618
      %v3620 = vpop.xlane.xlu0 %3619
      %v3621 = vsub.f32 %v2058, %v3431
      %v3622 = vsub.f32 %v2061, %v3434
      %v3623 = vsub.f32 %v2102, %v3437
      %v3624 = vsub.f32 %v2105, %v3440
      %v3625 = vsub.f32 %v2146, %v3443
      %v3626 = vsub.f32 %v2149, %v3446
      %v3627 = vsub.f32 %v2190, %v3449
      %v3628 = vsub.f32 %v2193, %v3452
      %v3629 = vsub.f32 %v2234, %v3455
      %v3630 = vsub.f32 %v2237, %v3458
      %v3631 = vsub.f32 %v2278, %v3461
      %v3632 = vsub.f32 %v2281, %v3464
      %v3633 = vsub.f32 %v2322, %v3467
      %v3634 = vsub.f32 %v2325, %v3470
      %v3635 = vsub.f32 %v2366, %v3473
      %v3636 = vsub.f32 %v2369, %v3476
      %v3637 = vsub.f32 %v2410, %v3479
      %v3638 = vsub.f32 %v2413, %v3482
      %v3639 = vsub.f32 %v2454, %v3485
      %v3640 = vsub.f32 %v2457, %v3488
      %v3641 = vsub.f32 %v2498, %v3491
      %v3642 = vsub.f32 %v2501, %v3494
      %v3643 = vsub.f32 %v2542, %v3497
      %v3644 = vsub.f32 %v2545, %v3500
      %v3645 = vsub.f32 %v2586, %v3503
      %v3646 = vsub.f32 %v2589, %v3506
      %v3647 = vsub.f32 %v2630, %v3509
      %v3648 = vsub.f32 %v2633, %v3512
      %v3649 = vsub.f32 %v2674, %v3515
      %v3650 = vsub.f32 %v2677, %v3518
      %v3651 = vsub.f32 %v2718, %v3521
      %v3652 = vsub.f32 %v2721, %v3524
      %v3653 = vsub.f32 %v2762, %v3527
      %v3654 = vsub.f32 %v2765, %v3530
      %v3655 = vsub.f32 %v2806, %v3533
      %v3656 = vsub.f32 %v2809, %v3536
      %v3657 = vsub.f32 %v2850, %v3539
      %v3658 = vsub.f32 %v2853, %v3542
      %v3659 = vsub.f32 %v2894, %v3545
      %v3660 = vsub.f32 %v2897, %v3548
      %v3661 = vsub.f32 %v2938, %v3551
      %v3662 = vsub.f32 %v2941, %v3554
      %v3663 = vsub.f32 %v2982, %v3557
      %v3664 = vsub.f32 %v2985, %v3560
      %v3665 = vsub.f32 %v3026, %v3563
      %v3666 = vsub.f32 %v3029, %v3566
      %v3667 = vsub.f32 %v3070, %v3569
      %v3668 = vsub.f32 %v3073, %v3572
      %v3669 = vsub.f32 %v3114, %v3575
      %v3670 = vsub.f32 %v3117, %v3578
      %v3671 = vsub.f32 %v3158, %v3581
      %v3672 = vsub.f32 %v3161, %v3584
      %v3673 = vsub.f32 %v3202, %v3587
      %v3674 = vsub.f32 %v3205, %v3590
      %v3675 = vsub.f32 %v3246, %v3593
      %v3676 = vsub.f32 %v3249, %v3596
      %v3677 = vsub.f32 %v3290, %v3599
      %v3678 = vsub.f32 %v3293, %v3602
      %v3679 = vsub.f32 %v3334, %v3605
      %v3680 = vsub.f32 %v3337, %v3608
      %v3681 = vsub.f32 %v3378, %v3611
      %v3682 = vsub.f32 %v3381, %v3614
      %v3683 = vsub.f32 %v3422, %v3617
      %v3684 = vsub.f32 %v3425, %v3620
      %v3685 = vmul.f32 %v3621, 1.442695
      %v3686 = vpow.pop %v3685
      %v3687 = vmul.f32 %v3622, 1.442695
      %v3688 = vpow.pop %v3687
      %v3689 = vmul.f32 %v3623, 1.442695
      %v3690 = vpow.pop %v3689
      %v3691 = vmul.f32 %v3624, 1.442695
      %v3692 = vpow.pop %v3691
      %v3693 = vmul.f32 %v3625, 1.442695
      %v3694 = vpow.pop %v3693
      %v3695 = vmul.f32 %v3626, 1.442695
      %v3696 = vpow.pop %v3695
      %v3697 = vmul.f32 %v3627, 1.442695
      %v3698 = vpow.pop %v3697
      %v3699 = vmul.f32 %v3628, 1.442695
      %v3700 = vpow.pop %v3699
      %v3701 = vmul.f32 %v3629, 1.442695
      %v3702 = vpow.pop %v3701
      %v3703 = vmul.f32 %v3630, 1.442695
      %v3704 = vpow.pop %v3703
      %v3705 = vmul.f32 %v3631, 1.442695
      %v3706 = vpow.pop %v3705
      %v3707 = vmul.f32 %v3632, 1.442695
      %v3708 = vpow.pop %v3707
      %v3709 = vmul.f32 %v3633, 1.442695
      %v3710 = vpow.pop %v3709
      %v3711 = vmul.f32 %v3634, 1.442695
      %v3712 = vpow.pop %v3711
      %v3713 = vmul.f32 %v3635, 1.442695
      %v3714 = vpow.pop %v3713
      %v3715 = vmul.f32 %v3636, 1.442695
      %v3716 = vpow.pop %v3715
      %v3717 = vmul.f32 %v3637, 1.442695
      %v3718 = vpow.pop %v3717
      %v3719 = vmul.f32 %v3638, 1.442695
      %v3720 = vpow.pop %v3719
      %v3721 = vmul.f32 %v3639, 1.442695
      %v3722 = vpow.pop %v3721
      %v3723 = vmul.f32 %v3640, 1.442695
      %v3724 = vpow.pop %v3723
      %v3725 = vmul.f32 %v3641, 1.442695
      %v3726 = vpow.pop %v3725
      %v3727 = vmul.f32 %v3642, 1.442695
      %v3728 = vpow.pop %v3727
      %v3729 = vmul.f32 %v3643, 1.442695
      %v3730 = vpow.pop %v3729
      %v3731 = vmul.f32 %v3644, 1.442695
      %v3732 = vpow.pop %v3731
      %v3733 = vmul.f32 %v3645, 1.442695
      %v3734 = vpow.pop %v3733
      %v3735 = vmul.f32 %v3646, 1.442695
      %v3736 = vpow.pop %v3735
      %v3737 = vmul.f32 %v3647, 1.442695
      %v3738 = vpow.pop %v3737
      %v3739 = vmul.f32 %v3648, 1.442695
      %v3740 = vpow.pop %v3739
      %v3741 = vmul.f32 %v3649, 1.442695
      %v3742 = vpow.pop %v3741
      %v3743 = vmul.f32 %v3650, 1.442695
      %v3744 = vpow.pop %v3743
      %v3745 = vmul.f32 %v3651, 1.442695
      %v3746 = vpow.pop %v3745
      %v3747 = vmul.f32 %v3652, 1.442695
      %v3748 = vpow.pop %v3747
      %v3749 = vmul.f32 %v3653, 1.442695
      %v3750 = vpow.pop %v3749
      %v3751 = vmul.f32 %v3654, 1.442695
      %v3752 = vpow.pop %v3751
      %v3753 = vmul.f32 %v3655, 1.442695
      %v3754 = vpow.pop %v3753
      %v3755 = vmul.f32 %v3656, 1.442695
      %v3756 = vpow.pop %v3755
      %v3757 = vmul.f32 %v3657, 1.442695
      %v3758 = vpow.pop %v3757
      %v3759 = vmul.f32 %v3658, 1.442695
      %v3760 = vpow.pop %v3759
      %v3761 = vmul.f32 %v3659, 1.442695
      %v3762 = vpow.pop %v3761
      %v3763 = vmul.f32 %v3660, 1.442695
      %v3764 = vpow.pop %v3763
      %v3765 = vmul.f32 %v3661, 1.442695
      %v3766 = vpow.pop %v3765
      %v3767 = vmul.f32 %v3662, 1.442695
      %v3768 = vpow.pop %v3767
      %v3769 = vmul.f32 %v3663, 1.442695
      %v3770 = vpow.pop %v3769
      %v3771 = vmul.f32 %v3664, 1.442695
      %v3772 = vpow.pop %v3771
      %v3773 = vmul.f32 %v3665, 1.442695
      %v3774 = vpow.pop %v3773
      %v3775 = vmul.f32 %v3666, 1.442695
      %v3776 = vpow.pop %v3775
      %v3777 = vmul.f32 %v3667, 1.442695
      %v3778 = vpow.pop %v3777
      %v3779 = vmul.f32 %v3668, 1.442695
      %v3780 = vpow.pop %v3779
      %v3781 = vmul.f32 %v3669, 1.442695
      %v3782 = vpow.pop %v3781
      %v3783 = vmul.f32 %v3670, 1.442695
      %v3784 = vpow.pop %v3783
      %v3785 = vmul.f32 %v3671, 1.442695
      %v3786 = vpow.pop %v3785
      %v3787 = vmul.f32 %v3672, 1.442695
      %v3788 = vpow.pop %v3787
      %v3789 = vmul.f32 %v3673, 1.442695
      %v3790 = vpow.pop %v3789
      %v3791 = vmul.f32 %v3674, 1.442695
      %v3792 = vpow.pop %v3791
      %v3793 = vmul.f32 %v3675, 1.442695
      %v3794 = vpow.pop %v3793
      %v3795 = vmul.f32 %v3676, 1.442695
      %v3796 = vpow.pop %v3795
      %v3797 = vmul.f32 %v3677, 1.442695
      %v3798 = vpow.pop %v3797
      %v3799 = vmul.f32 %v3678, 1.442695
      %v3800 = vpow.pop %v3799
      %v3801 = vmul.f32 %v3679, 1.442695
      %v3802 = vpow.pop %v3801
      %v3803 = vmul.f32 %v3680, 1.442695
      %v3804 = vpow.pop %v3803
      %v3805 = vmul.f32 %v3681, 1.442695
      %v3806 = vpow.pop %v3805
      %v3807 = vmul.f32 %v3682, 1.442695
      %v3808 = vpow.pop %v3807
      %v3809 = vmul.f32 %v3683, 1.442695
      %v3810 = vpow.pop %v3809
      %v3811 = vmul.f32 %v3684, 1.442695
      %v3812 = vpow.pop %v3811
      %v3813 = vsel %vm3428, %v3686, 0.0
      %3814 = vadd.xlane.f32.xlu0 %v3813
      %v3815 = vpop.xlane.xlu0 %3814
      %v3816 = vsel %vm3428, %v3688, 0.0
      %3817 = vadd.xlane.f32.xlu0 %v3816
      %v3818 = vpop.xlane.xlu0 %3817
      %v3819 = vsel %vm3428, %v3690, 0.0
      %3820 = vadd.xlane.f32.xlu0 %v3819
      %v3821 = vpop.xlane.xlu0 %3820
      %v3822 = vsel %vm3428, %v3692, 0.0
      %3823 = vadd.xlane.f32.xlu0 %v3822
      %v3824 = vpop.xlane.xlu0 %3823
      %v3825 = vsel %vm3428, %v3694, 0.0
      %3826 = vadd.xlane.f32.xlu0 %v3825
      %v3827 = vpop.xlane.xlu0 %3826
      %v3828 = vsel %vm3428, %v3696, 0.0
      %3829 = vadd.xlane.f32.xlu0 %v3828
      %v3830 = vpop.xlane.xlu0 %3829
      %v3831 = vsel %vm3428, %v3698, 0.0
      %3832 = vadd.xlane.f32.xlu0 %v3831
      %v3833 = vpop.xlane.xlu0 %3832
      %v3834 = vsel %vm3428, %v3700, 0.0
      %3835 = vadd.xlane.f32.xlu0 %v3834
      %v3836 = vpop.xlane.xlu0 %3835
      %v3837 = vsel %vm3428, %v3702, 0.0
      %3838 = vadd.xlane.f32.xlu0 %v3837
      %v3839 = vpop.xlane.xlu0 %3838
      %v3840 = vsel %vm3428, %v3704, 0.0
      %3841 = vadd.xlane.f32.xlu0 %v3840
      %v3842 = vpop.xlane.xlu0 %3841
      %v3843 = vsel %vm3428, %v3706, 0.0
      %3844 = vadd.xlane.f32.xlu0 %v3843
      %v3845 = vpop.xlane.xlu0 %3844
      %v3846 = vsel %vm3428, %v3708, 0.0
      %3847 = vadd.xlane.f32.xlu0 %v3846
      %v3848 = vpop.xlane.xlu0 %3847
      %v3849 = vsel %vm3428, %v3710, 0.0
      %3850 = vadd.xlane.f32.xlu0 %v3849
      %v3851 = vpop.xlane.xlu0 %3850
      %v3852 = vsel %vm3428, %v3712, 0.0
      %3853 = vadd.xlane.f32.xlu0 %v3852
      %v3854 = vpop.xlane.xlu0 %3853
      %v3855 = vsel %vm3428, %v3714, 0.0
      %3856 = vadd.xlane.f32.xlu0 %v3855
      %v3857 = vpop.xlane.xlu0 %3856
      %v3858 = vsel %vm3428, %v3716, 0.0
      %3859 = vadd.xlane.f32.xlu0 %v3858
      %v3860 = vpop.xlane.xlu0 %3859
      %v3861 = vsel %vm3428, %v3718, 0.0
      %3862 = vadd.xlane.f32.xlu0 %v3861
      %v3863 = vpop.xlane.xlu0 %3862
      %v3864 = vsel %vm3428, %v3720, 0.0
      %3865 = vadd.xlane.f32.xlu0 %v3864
      %v3866 = vpop.xlane.xlu0 %3865
      %v3867 = vsel %vm3428, %v3722, 0.0
      %3868 = vadd.xlane.f32.xlu0 %v3867
      %v3869 = vpop.xlane.xlu0 %3868
      %v3870 = vsel %vm3428, %v3724, 0.0
      %3871 = vadd.xlane.f32.xlu0 %v3870
      %v3872 = vpop.xlane.xlu0 %3871
      %v3873 = vsel %vm3428, %v3726, 0.0
      %3874 = vadd.xlane.f32.xlu0 %v3873
      %v3875 = vpop.xlane.xlu0 %3874
      %v3876 = vsel %vm3428, %v3728, 0.0
      %3877 = vadd.xlane.f32.xlu0 %v3876
      %v3878 = vpop.xlane.xlu0 %3877
      %v3879 = vsel %vm3428, %v3730, 0.0
      %3880 = vadd.xlane.f32.xlu0 %v3879
      %v3881 = vpop.xlane.xlu0 %3880
      %v3882 = vsel %vm3428, %v3732, 0.0
      %3883 = vadd.xlane.f32.xlu0 %v3882
      %v3884 = vpop.xlane.xlu0 %3883
      %v3885 = vsel %vm3428, %v3734, 0.0
      %3886 = vadd.xlane.f32.xlu0 %v3885
      %v3887 = vpop.xlane.xlu0 %3886
      %v3888 = vsel %vm3428, %v3736, 0.0
      %3889 = vadd.xlane.f32.xlu0 %v3888
      %v3890 = vpop.xlane.xlu0 %3889
      %v3891 = vsel %vm3428, %v3738, 0.0
      %3892 = vadd.xlane.f32.xlu0 %v3891
      %v3893 = vpop.xlane.xlu0 %3892
      %v3894 = vsel %vm3428, %v3740, 0.0
      %3895 = vadd.xlane.f32.xlu0 %v3894
      %v3896 = vpop.xlane.xlu0 %3895
      %v3897 = vsel %vm3428, %v3742, 0.0
      %3898 = vadd.xlane.f32.xlu0 %v3897
      %v3899 = vpop.xlane.xlu0 %3898
      %v3900 = vsel %vm3428, %v3744, 0.0
      %3901 = vadd.xlane.f32.xlu0 %v3900
      %v3902 = vpop.xlane.xlu0 %3901
      %v3903 = vsel %vm3428, %v3746, 0.0
      %3904 = vadd.xlane.f32.xlu0 %v3903
      %v3905 = vpop.xlane.xlu0 %3904
      %v3906 = vsel %vm3428, %v3748, 0.0
      %3907 = vadd.xlane.f32.xlu0 %v3906
      %v3908 = vpop.xlane.xlu0 %3907
      %v3909 = vsel %vm3428, %v3750, 0.0
      %3910 = vadd.xlane.f32.xlu0 %v3909
      %v3911 = vpop.xlane.xlu0 %3910
      %v3912 = vsel %vm3428, %v3752, 0.0
      %3913 = vadd.xlane.f32.xlu0 %v3912
      %v3914 = vpop.xlane.xlu0 %3913
      %v3915 = vsel %vm3428, %v3754, 0.0
      %3916 = vadd.xlane.f32.xlu0 %v3915
      %v3917 = vpop.xlane.xlu0 %3916
      %v3918 = vsel %vm3428, %v3756, 0.0
      %3919 = vadd.xlane.f32.xlu0 %v3918
      %v3920 = vpop.xlane.xlu0 %3919
      %v3921 = vsel %vm3428, %v3758, 0.0
      %3922 = vadd.xlane.f32.xlu0 %v3921
      %v3923 = vpop.xlane.xlu0 %3922
      %v3924 = vsel %vm3428, %v3760, 0.0
      %3925 = vadd.xlane.f32.xlu0 %v3924
      %v3926 = vpop.xlane.xlu0 %3925
      %v3927 = vsel %vm3428, %v3762, 0.0
      %3928 = vadd.xlane.f32.xlu0 %v3927
      %v3929 = vpop.xlane.xlu0 %3928
      %v3930 = vsel %vm3428, %v3764, 0.0
      %3931 = vadd.xlane.f32.xlu0 %v3930
      %v3932 = vpop.xlane.xlu0 %3931
      %v3933 = vsel %vm3428, %v3766, 0.0
      %3934 = vadd.xlane.f32.xlu0 %v3933
      %v3935 = vpop.xlane.xlu0 %3934
      %v3936 = vsel %vm3428, %v3768, 0.0
      %3937 = vadd.xlane.f32.xlu0 %v3936
      %v3938 = vpop.xlane.xlu0 %3937
      %v3939 = vsel %vm3428, %v3770, 0.0
      %3940 = vadd.xlane.f32.xlu0 %v3939
      %v3941 = vpop.xlane.xlu0 %3940
      %v3942 = vsel %vm3428, %v3772, 0.0
      %3943 = vadd.xlane.f32.xlu0 %v3942
      %v3944 = vpop.xlane.xlu0 %3943
      %v3945 = vsel %vm3428, %v3774, 0.0
      %3946 = vadd.xlane.f32.xlu0 %v3945
      %v3947 = vpop.xlane.xlu0 %3946
      %v3948 = vsel %vm3428, %v3776, 0.0
      %3949 = vadd.xlane.f32.xlu0 %v3948
      %v3950 = vpop.xlane.xlu0 %3949
      %v3951 = vsel %vm3428, %v3778, 0.0
      %3952 = vadd.xlane.f32.xlu0 %v3951
      %v3953 = vpop.xlane.xlu0 %3952
      %v3954 = vsel %vm3428, %v3780, 0.0
      %3955 = vadd.xlane.f32.xlu0 %v3954
      %v3956 = vpop.xlane.xlu0 %3955
      %v3957 = vsel %vm3428, %v3782, 0.0
      %3958 = vadd.xlane.f32.xlu0 %v3957
      %v3959 = vpop.xlane.xlu0 %3958
      %v3960 = vsel %vm3428, %v3784, 0.0
      %3961 = vadd.xlane.f32.xlu0 %v3960
      %v3962 = vpop.xlane.xlu0 %3961
      %v3963 = vsel %vm3428, %v3786, 0.0
      %3964 = vadd.xlane.f32.xlu0 %v3963
      %v3965 = vpop.xlane.xlu0 %3964
      %v3966 = vsel %vm3428, %v3788, 0.0
      %3967 = vadd.xlane.f32.xlu0 %v3966
      %v3968 = vpop.xlane.xlu0 %3967
      %v3969 = vsel %vm3428, %v3790, 0.0
      %3970 = vadd.xlane.f32.xlu0 %v3969
      %v3971 = vpop.xlane.xlu0 %3970
      %v3972 = vsel %vm3428, %v3792, 0.0
      %3973 = vadd.xlane.f32.xlu0 %v3972
      %v3974 = vpop.xlane.xlu0 %3973
      %v3975 = vsel %vm3428, %v3794, 0.0
      %3976 = vadd.xlane.f32.xlu0 %v3975
      %v3977 = vpop.xlane.xlu0 %3976
      %v3978 = vsel %vm3428, %v3796, 0.0
      %3979 = vadd.xlane.f32.xlu0 %v3978
      %v3980 = vpop.xlane.xlu0 %3979
      %v3981 = vsel %vm3428, %v3798, 0.0
      %3982 = vadd.xlane.f32.xlu0 %v3981
      %v3983 = vpop.xlane.xlu0 %3982
      %v3984 = vsel %vm3428, %v3800, 0.0
      %3985 = vadd.xlane.f32.xlu0 %v3984
      %v3986 = vpop.xlane.xlu0 %3985
      %v3987 = vsel %vm3428, %v3802, 0.0
      %3988 = vadd.xlane.f32.xlu0 %v3987
      %v3989 = vpop.xlane.xlu0 %3988
      %v3990 = vsel %vm3428, %v3804, 0.0
      %3991 = vadd.xlane.f32.xlu0 %v3990
      %v3992 = vpop.xlane.xlu0 %3991
      %v3993 = vsel %vm3428, %v3806, 0.0
      %3994 = vadd.xlane.f32.xlu0 %v3993
      %v3995 = vpop.xlane.xlu0 %3994
      %v3996 = vsel %vm3428, %v3808, 0.0
      %3997 = vadd.xlane.f32.xlu0 %v3996
      %v3998 = vpop.xlane.xlu0 %3997
      %v3999 = vsel %vm3428, %v3810, 0.0
      %4000 = vadd.xlane.f32.xlu0 %v3999
      %v4001 = vpop.xlane.xlu0 %4000
      %v4002 = vsel %vm3428, %v3812, 0.0
      %4003 = vadd.xlane.f32.xlu0 %v4002
      %v4004 = vpop.xlane.xlu0 %4003
      %v4005 = vrcp.pop %v3815
      %v4006 = vrcp.pop %v3818
      %v4007 = vrcp.pop %v3821
      %v4008 = vrcp.pop %v3824
      %v4009 = vrcp.pop %v3827
      %v4010 = vrcp.pop %v3830
      %v4011 = vrcp.pop %v3833
      %v4012 = vrcp.pop %v3836
      %v4013 = vrcp.pop %v3839
      %v4014 = vrcp.pop %v3842
      %v4015 = vrcp.pop %v3845
      %v4016 = vrcp.pop %v3848
      %v4017 = vrcp.pop %v3851
      %v4018 = vrcp.pop %v3854
      %v4019 = vrcp.pop %v3857
      %v4020 = vrcp.pop %v3860
      %v4021 = vrcp.pop %v3863
      %v4022 = vrcp.pop %v3866
      %v4023 = vrcp.pop %v3869
      %v4024 = vrcp.pop %v3872
      %v4025 = vrcp.pop %v3875
      %v4026 = vrcp.pop %v3878
      %v4027 = vrcp.pop %v3881
      %v4028 = vrcp.pop %v3884
      %v4029 = vrcp.pop %v3887
      %v4030 = vrcp.pop %v3890
      %v4031 = vrcp.pop %v3893
      %v4032 = vrcp.pop %v3896
      %v4033 = vrcp.pop %v3899
      %v4034 = vrcp.pop %v3902
      %v4035 = vrcp.pop %v3905
      %v4036 = vrcp.pop %v3908
      %v4037 = vrcp.pop %v3911
      %v4038 = vrcp.pop %v3914
      %v4039 = vrcp.pop %v3917
      %v4040 = vrcp.pop %v3920
      %v4041 = vrcp.pop %v3923
      %v4042 = vrcp.pop %v3926
      %v4043 = vrcp.pop %v3929
      %v4044 = vrcp.pop %v3932
      %v4045 = vrcp.pop %v3935
      %v4046 = vrcp.pop %v3938
      %v4047 = vrcp.pop %v3941
      %v4048 = vrcp.pop %v3944
      %v4049 = vrcp.pop %v3947
      %v4050 = vrcp.pop %v3950
      %v4051 = vrcp.pop %v3953
      %v4052 = vrcp.pop %v3956
      %v4053 = vrcp.pop %v3959
      %v4054 = vrcp.pop %v3962
      %v4055 = vrcp.pop %v3965
      %v4056 = vrcp.pop %v3968
      %v4057 = vrcp.pop %v3971
      %v4058 = vrcp.pop %v3974
      %v4059 = vrcp.pop %v3977
      %v4060 = vrcp.pop %v3980
      %v4061 = vrcp.pop %v3983
      %v4062 = vrcp.pop %v3986
      %v4063 = vrcp.pop %v3989
      %v4064 = vrcp.pop %v3992
      %v4065 = vrcp.pop %v3995
      %v4066 = vrcp.pop %v3998
      %v4067 = vrcp.pop %v4001
      %v4068 = vrcp.pop %v4004
      %v4069 = vmul.f32 %v3686, %v4005
      %v4070 = vmul.f32 %v3688, %v4006
      %v4071 = vmul.f32 %v3690, %v4007
      %v4072 = vmul.f32 %v3692, %v4008
      %v4073 = vmul.f32 %v3694, %v4009
      %v4074 = vmul.f32 %v3696, %v4010
      %v4075 = vmul.f32 %v3698, %v4011
      %v4076 = vmul.f32 %v3700, %v4012
      %v4077 = vmul.f32 %v3702, %v4013
      %v4078 = vmul.f32 %v3704, %v4014
      %v4079 = vmul.f32 %v3706, %v4015
      %v4080 = vmul.f32 %v3708, %v4016
      %v4081 = vmul.f32 %v3710, %v4017
      %v4082 = vmul.f32 %v3712, %v4018
      %v4083 = vmul.f32 %v3714, %v4019
      %v4084 = vmul.f32 %v3716, %v4020
      %v4085 = vmul.f32 %v3718, %v4021
      %v4086 = vmul.f32 %v3720, %v4022
      %v4087 = vmul.f32 %v3722, %v4023
      %v4088 = vmul.f32 %v3724, %v4024
      %v4089 = vmul.f32 %v3726, %v4025
      %v4090 = vmul.f32 %v3728, %v4026
      %v4091 = vmul.f32 %v3730, %v4027
      %v4092 = vmul.f32 %v3732, %v4028
      %v4093 = vmul.f32 %v3734, %v4029
      %v4094 = vmul.f32 %v3736, %v4030
      %v4095 = vmul.f32 %v3738, %v4031
      %v4096 = vmul.f32 %v3740, %v4032
      %v4097 = vmul.f32 %v3742, %v4033
      %v4098 = vmul.f32 %v3744, %v4034
      %v4099 = vmul.f32 %v3746, %v4035
      %v4100 = vmul.f32 %v3748, %v4036
      %v4101 = vmul.f32 %v3750, %v4037
      %v4102 = vmul.f32 %v3752, %v4038
      %v4103 = vmul.f32 %v3754, %v4039
      %v4104 = vmul.f32 %v3756, %v4040
      %v4105 = vmul.f32 %v3758, %v4041
      %v4106 = vmul.f32 %v3760, %v4042
      %v4107 = vmul.f32 %v3762, %v4043
      %v4108 = vmul.f32 %v3764, %v4044
      %v4109 = vmul.f32 %v3766, %v4045
      %v4110 = vmul.f32 %v3768, %v4046
      %v4111 = vmul.f32 %v3770, %v4047
      %v4112 = vmul.f32 %v3772, %v4048
      %v4113 = vmul.f32 %v3774, %v4049
      %v4114 = vmul.f32 %v3776, %v4050
      %v4115 = vmul.f32 %v3778, %v4051
      %v4116 = vmul.f32 %v3780, %v4052
      %v4117 = vmul.f32 %v3782, %v4053
      %v4118 = vmul.f32 %v3784, %v4054
      %v4119 = vmul.f32 %v3786, %v4055
      %v4120 = vmul.f32 %v3788, %v4056
      %v4121 = vmul.f32 %v3790, %v4057
      %v4122 = vmul.f32 %v3792, %v4058
      %v4123 = vmul.f32 %v3794, %v4059
      %v4124 = vmul.f32 %v3796, %v4060
      %v4125 = vmul.f32 %v3798, %v4061
      %v4126 = vmul.f32 %v3800, %v4062
      %v4127 = vmul.f32 %v3802, %v4063
      %v4128 = vmul.f32 %v3804, %v4064
      %v4129 = vmul.f32 %v3806, %v4065
      %v4130 = vmul.f32 %v3808, %v4066
      %v4131 = vmul.f32 %v3810, %v4067
      %v4132 = vmul.f32 %v3812, %v4068
      %v4133 = vpack.c.bf16 %v4070, %v4069
      %v4134 = vpack.c.bf16 %v4072, %v4071
      %v4135 = vpack.c.bf16 %v4074, %v4073
      %v4136 = vpack.c.bf16 %v4076, %v4075
      %v4137 = vpack.c.bf16 %v4078, %v4077
      %v4138 = vpack.c.bf16 %v4080, %v4079
      %v4139 = vpack.c.bf16 %v4082, %v4081
      %v4140 = vpack.c.bf16 %v4084, %v4083
      %v4141 = vpack.c.bf16 %v4086, %v4085
      %v4142 = vpack.c.bf16 %v4088, %v4087
      %v4143 = vpack.c.bf16 %v4090, %v4089
      %v4144 = vpack.c.bf16 %v4092, %v4091
      %v4145 = vpack.c.bf16 %v4094, %v4093
      %v4146 = vpack.c.bf16 %v4096, %v4095
      %v4147 = vpack.c.bf16 %v4098, %v4097
      %v4148 = vpack.c.bf16 %v4100, %v4099
      %v4149 = vpack.c.bf16 %v4102, %v4101
      %v4150 = vpack.c.bf16 %v4104, %v4103
      %v4151 = vpack.c.bf16 %v4106, %v4105
      %v4152 = vpack.c.bf16 %v4108, %v4107
      %v4153 = vpack.c.bf16 %v4110, %v4109
      %v4154 = vpack.c.bf16 %v4112, %v4111
      %v4155 = vpack.c.bf16 %v4114, %v4113
      %v4156 = vpack.c.bf16 %v4116, %v4115
      %v4157 = vpack.c.bf16 %v4118, %v4117
      %v4158 = vpack.c.bf16 %v4120, %v4119
      %v4159 = vpack.c.bf16 %v4122, %v4121
      %v4160 = vpack.c.bf16 %v4124, %v4123
      %v4161 = vpack.c.bf16 %v4126, %v4125
      %v4162 = vpack.c.bf16 %v4128, %v4127
      %v4163 = vpack.c.bf16 %v4130, %v4129
      %v4164 = vpack.c.bf16 %v4132, %v4131
      %v4166 = vsel %vm3428, %v4133, 0
      %4168 = vmatprep.subr.bf16.mxu0 0
      %4169 = vmatpush1.bf16.msra.mxu0 %v912
      %4170 = vmatprep.subr.bf16.mxu0 0
      %4171 = vmatpush1.bf16.msra.mxu0 0
      %4172 = vmatprep.subr.bf16.mxu0 0
      %4173 = vmatpush1.bf16.msra.mxu0 0
      %4174 = vmatprep.subr.bf16.mxu0 0
      %4175 = vmatpush1.bf16.msra.mxu0 0
      %4176 = vmatprep.subr.bf16.mxu0 0
      %4177 = vmatpush1.bf16.msra.mxu0 0
      %4178 = vmatprep.subr.bf16.mxu0 0
      %4179 = vmatpush1.bf16.msra.mxu0 0
      %4180 = vmatprep.subr.bf16.mxu0 0
      %4181 = vmatpush1.bf16.msra.mxu0 0
      %4182 = vmatprep.subr.bf16.mxu0 0
      %4183 = vmatpush1.bf16.msra.mxu0 0
      %4184 = vmatprep.subr.bf16.mxu0 0
      %4185 = vmatpush1.bf16.msra.mxu0 0
      %4186 = vmatprep.subr.bf16.mxu0 0
      %4187 = vmatpush1.bf16.msra.mxu0 0
      %4188 = vmatprep.subr.bf16.mxu0 0
      %4189 = vmatpush1.bf16.msra.mxu0 0
      %4190 = vmatprep.subr.bf16.mxu0 0
      %4191 = vmatpush1.bf16.msra.mxu0 0
      %4192 = vmatprep.subr.bf16.mxu0 0
      %4193 = vmatpush1.bf16.msra.mxu0 0
      %4194 = vmatprep.subr.bf16.mxu0 0
      %4195 = vmatpush1.bf16.msra.mxu0 0
      %4196 = vmatprep.subr.bf16.mxu0 0
      %4197 = vmatpush1.bf16.msra.mxu0 0
      %4198 = vmatprep.subr.bf16.mxu0 0
      %4199 = vmatpush1.bf16.msra.mxu0 0
      %4200 = vmatprep.mubr.bf16.mxu0 0
      %4201 = vmatmul.mubr.bf16.gmra.mrb[0].mxu0 %v4166
      %v4202 = vpop.f32.mrb[0].mxu0
      %v4203 = vadd.f32 0.0, %v4202
      %v4204 = vpop.f32.mrb[0].mxu0
      %v4205 = vpop.f32.mrb[0].mxu0
      %v4206 = vadd.f32 0.0, %v4205
      %v4207 = vpop.f32.mrb[0].mxu0
      %4208 = vdwg.mxu0
      %v4210 = vsel %vm3428, %v4134, 0
      %4212 = vmatprep.subr.bf16.mxu0 0
      %4213 = vmatpush1.bf16.msra.mxu0 %v913
      %4214 = vmatprep.subr.bf16.mxu0 0
      %4215 = vmatpush1.bf16.msra.mxu0 0
      %4216 = vmatprep.subr.bf16.mxu0 0
      %4217 = vmatpush1.bf16.msra.mxu0 0
      %4218 = vmatprep.subr.bf16.mxu0 0
      %4219 = vmatpush1.bf16.msra.mxu0 0
      %4220 = vmatprep.subr.bf16.mxu0 0
      %4221 = vmatpush1.bf16.msra.mxu0 0
      %4222 = vmatprep.subr.bf16.mxu0 0
      %4223 = vmatpush1.bf16.msra.mxu0 0
      %4224 = vmatprep.subr.bf16.mxu0 0
      %4225 = vmatpush1.bf16.msra.mxu0 0
      %4226 = vmatprep.subr.bf16.mxu0 0
      %4227 = vmatpush1.bf16.msra.mxu0 0
      %4228 = vmatprep.subr.bf16.mxu0 0
      %4229 = vmatpush1.bf16.msra.mxu0 0
      %4230 = vmatprep.subr.bf16.mxu0 0
      %4231 = vmatpush1.bf16.msra.mxu0 0
      %4232 = vmatprep.subr.bf16.mxu0 0
      %4233 = vmatpush1.bf16.msra.mxu0 0
      %4234 = vmatprep.subr.bf16.mxu0 0
      %4235 = vmatpush1.bf16.msra.mxu0 0
      %4236 = vmatprep.subr.bf16.mxu0 0
      %4237 = vmatpush1.bf16.msra.mxu0 0
      %4238 = vmatprep.subr.bf16.mxu0 0
      %4239 = vmatpush1.bf16.msra.mxu0 0
      %4240 = vmatprep.subr.bf16.mxu0 0
      %4241 = vmatpush1.bf16.msra.mxu0 0
      %4242 = vmatprep.subr.bf16.mxu0 0
      %4243 = vmatpush1.bf16.msra.mxu0 0
      %4244 = vmatprep.mubr.bf16.mxu0 0
      %4245 = vmatmul.mubr.bf16.gmra.mrb[0].mxu0 %v4210
      %v4246 = vpop.f32.mrb[0].mxu0
      %v4247 = vadd.f32 0.0, %v4246
      %v4248 = vpop.f32.mrb[0].mxu0
      %v4249 = vpop.f32.mrb[0].mxu0
      %v4250 = vadd.f32 0.0, %v4249
      %v4251 = vpop.f32.mrb[0].mxu0
      %4252 = vdwg.mxu0
      %v4254 = vsel %vm3428, %v4135, 0
      %4256 = vmatprep.subr.bf16.mxu0 0
      %4257 = vmatpush1.bf16.msra.mxu0 %v914
      %4258 = vmatprep.subr.bf16.mxu0 0
      %4259 = vmatpush1.bf16.msra.mxu0 0
      %4260 = vmatprep.subr.bf16.mxu0 0
      %4261 = vmatpush1.bf16.msra.mxu0 0
      %4262 = vmatprep.subr.bf16.mxu0 0
      %4263 = vmatpush1.bf16.msra.mxu0 0
      %4264 = vmatprep.subr.bf16.mxu0 0
      %4265 = vmatpush1.bf16.msra.mxu0 0
      %4266 = vmatprep.subr.bf16.mxu0 0
      %4267 = vmatpush1.bf16.msra.mxu0 0
      %4268 = vmatprep.subr.bf16.mxu0 0
      %4269 = vmatpush1.bf16.msra.mxu0 0
      %4270 = vmatprep.subr.bf16.mxu0 0
      %4271 = vmatpush1.bf16.msra.mxu0 0
      %4272 = vmatprep.subr.bf16.mxu0 0
      %4273 = vmatpush1.bf16.msra.mxu0 0
      %4274 = vmatprep.subr.bf16.mxu0 0
      %4275 = vmatpush1.bf16.msra.mxu0 0
      %4276 = vmatprep.subr.bf16.mxu0 0
      %4277 = vmatpush1.bf16.msra.mxu0 0
      %4278 = vmatprep.subr.bf16.mxu0 0
      %4279 = vmatpush1.bf16.msra.mxu0 0
      %4280 = vmatprep.subr.bf16.mxu0 0
      %4281 = vmatpush1.bf16.msra.mxu0 0
      %4282 = vmatprep.subr.bf16.mxu0 0
      %4283 = vmatpush1.bf16.msra.mxu0 0
      %4284 = vmatprep.subr.bf16.mxu0 0
      %4285 = vmatpush1.bf16.msra.mxu0 0
      %4286 = vmatprep.subr.bf16.mxu0 0
      %4287 = vmatpush1.bf16.msra.mxu0 0
      %4288 = vmatprep.mubr.bf16.mxu0 0
      %4289 = vmatmul.mubr.bf16.gmra.mrb[0].mxu0 %v4254
      %v4290 = vpop.f32.mrb[0].mxu0
      %v4291 = vadd.f32 0.0, %v4290
      %v4292 = vpop.f32.mrb[0].mxu0
      %v4293 = vpop.f32.mrb[0].mxu0
      %v4294 = vadd.f32 0.0, %v4293
      %v4295 = vpop.f32.mrb[0].mxu0
      %4296 = vdwg.mxu0
      %v4298 = vsel %vm3428, %v4136, 0
      %4300 = vmatprep.subr.bf16.mxu0 0
      %4301 = vmatpush1.bf16.msra.mxu0 %v915
      %4302 = vmatprep.subr.bf16.mxu0 0
      %4303 = vmatpush1.bf16.msra.mxu0 0
      %4304 = vmatprep.subr.bf16.mxu0 0
      %4305 = vmatpush1.bf16.msra.mxu0 0
      %4306 = vmatprep.subr.bf16.mxu0 0
      %4307 = vmatpush1.bf16.msra.mxu0 0
      %4308 = vmatprep.subr.bf16.mxu0 0
      %4309 = vmatpush1.bf16.msra.mxu0 0
      %4310 = vmatprep.subr.bf16.mxu0 0
      %4311 = vmatpush1.bf16.msra.mxu0 0
      %4312 = vmatprep.subr.bf16.mxu0 0
      %4313 = vmatpush1.bf16.msra.mxu0 0
      %4314 = vmatprep.subr.bf16.mxu0 0
      %4315 = vmatpush1.bf16.msra.mxu0 0
      %4316 = vmatprep.subr.bf16.mxu0 0
      %4317 = vmatpush1.bf16.msra.mxu0 0
      %4318 = vmatprep.subr.bf16.mxu0 0
      %4319 = vmatpush1.bf16.msra.mxu0 0
      %4320 = vmatprep.subr.bf16.mxu0 0
      %4321 = vmatpush1.bf16.msra.mxu0 0
      %4322 = vmatprep.subr.bf16.mxu0 0
      %4323 = vmatpush1.bf16.msra.mxu0 0
      %4324 = vmatprep.subr.bf16.mxu0 0
      %4325 = vmatpush1.bf16.msra.mxu0 0
      %4326 = vmatprep.subr.bf16.mxu0 0
      %4327 = vmatpush1.bf16.msra.mxu0 0
      %4328 = vmatprep.subr.bf16.mxu0 0
      %4329 = vmatpush1.bf16.msra.mxu0 0
      %4330 = vmatprep.subr.bf16.mxu0 0
      %4331 = vmatpush1.bf16.msra.mxu0 0
      %4332 = vmatprep.mubr.bf16.mxu0 0
      %4333 = vmatmul.mubr.bf16.gmra.mrb[0].mxu0 %v4298
      %v4334 = vpop.f32.mrb[0].mxu0
      %v4335 = vadd.f32 0.0, %v4334
      %v4336 = vpop.f32.mrb[0].mxu0
      %v4337 = vpop.f32.mrb[0].mxu0
      %v4338 = vadd.f32 0.0, %v4337
      %v4339 = vpop.f32.mrb[0].mxu0
      %4340 = vdwg.mxu0
      %v4342 = vsel %vm3428, %v4137, 0
      %4344 = vmatprep.subr.bf16.mxu0 0
      %4345 = vmatpush1.bf16.msra.mxu0 %v916
      %4346 = vmatprep.subr.bf16.mxu0 0
      %4347 = vmatpush1.bf16.msra.mxu0 0
      %4348 = vmatprep.subr.bf16.mxu0 0
      %4349 = vmatpush1.bf16.msra.mxu0 0
      %4350 = vmatprep.subr.bf16.mxu0 0
      %4351 = vmatpush1.bf16.msra.mxu0 0
      %4352 = vmatprep.subr.bf16.mxu0 0
      %4353 = vmatpush1.bf16.msra.mxu0 0
      %4354 = vmatprep.subr.bf16.mxu0 0
      %4355 = vmatpush1.bf16.msra.mxu0 0
      %4356 = vmatprep.subr.bf16.mxu0 0
      %4357 = vmatpush1.bf16.msra.mxu0 0
      %4358 = vmatprep.subr.bf16.mxu0 0
      %4359 = vmatpush1.bf16.msra.mxu0 0
      %4360 = vmatprep.subr.bf16.mxu0 0
      %4361 = vmatpush1.bf16.msra.mxu0 0
      %4362 = vmatprep.subr.bf16.mxu0 0
      %4363 = vmatpush1.bf16.msra.mxu0 0
      %4364 = vmatprep.subr.bf16.mxu0 0
      %4365 = vmatpush1.bf16.msra.mxu0 0
      %4366 = vmatprep.subr.bf16.mxu0 0
      %4367 = vmatpush1.bf16.msra.mxu0 0
      %4368 = vmatprep.subr.bf16.mxu0 0
      %4369 = vmatpush1.bf16.msra.mxu0 0
      %4370 = vmatprep.subr.bf16.mxu0 0
      %4371 = vmatpush1.bf16.msra.mxu0 0
      %4372 = vmatprep.subr.bf16.mxu0 0
      %4373 = vmatpush1.bf16.msra.mxu0 0
      %4374 = vmatprep.subr.bf16.mxu0 0
      %4375 = vmatpush1.bf16.msra.mxu0 0
      %4376 = vmatprep.mubr.bf16.mxu0 0
      %4377 = vmatmul.mubr.bf16.gmra.mrb[0].mxu0 %v4342
      %v4378 = vpop.f32.mrb[0].mxu0
      %v4379 = vadd.f32 0.0, %v4378
      %v4380 = vpop.f32.mrb[0].mxu0
      %v4381 = vpop.f32.mrb[0].mxu0
      %v4382 = vadd.f32 0.0, %v4381
      %v4383 = vpop.f32.mrb[0].mxu0
      %4384 = vdwg.mxu0
      %v4386 = vsel %vm3428, %v4138, 0
      %4388 = vmatprep.subr.bf16.mxu0 0
      %4389 = vmatpush1.bf16.msra.mxu0 %v917
      %4390 = vmatprep.subr.bf16.mxu0 0
      %4391 = vmatpush1.bf16.msra.mxu0 0
      %4392 = vmatprep.subr.bf16.mxu0 0
      %4393 = vmatpush1.bf16.msra.mxu0 0
      %4394 = vmatprep.subr.bf16.mxu0 0
      %4395 = vmatpush1.bf16.msra.mxu0 0
      %4396 = vmatprep.subr.bf16.mxu0 0
      %4397 = vmatpush1.bf16.msra.mxu0 0
      %4398 = vmatprep.subr.bf16.mxu0 0
      %4399 = vmatpush1.bf16.msra.mxu0 0
      %4400 = vmatprep.subr.bf16.mxu0 0
      %4401 = vmatpush1.bf16.msra.mxu0 0
      %4402 = vmatprep.subr.bf16.mxu0 0
      %4403 = vmatpush1.bf16.msra.mxu0 0
      %4404 = vmatprep.subr.bf16.mxu0 0
      %4405 = vmatpush1.bf16.msra.mxu0 0
      %4406 = vmatprep.subr.bf16.mxu0 0
      %4407 = vmatpush1.bf16.msra.mxu0 0
      %4408 = vmatprep.subr.bf16.mxu0 0
      %4409 = vmatpush1.bf16.msra.mxu0 0
      %4410 = vmatprep.subr.bf16.mxu0 0
      %4411 = vmatpush1.bf16.msra.mxu0 0
      %4412 = vmatprep.subr.bf16.mxu0 0
      %4413 = vmatpush1.bf16.msra.mxu0 0
      %4414 = vmatprep.subr.bf16.mxu0 0
      %4415 = vmatpush1.bf16.msra.mxu0 0
      %4416 = vmatprep.subr.bf16.mxu0 0
      %4417 = vmatpush1.bf16.msra.mxu0 0
      %4418 = vmatprep.subr.bf16.mxu0 0
      %4419 = vmatpush1.bf16.msra.mxu0 0
      %4420 = vmatprep.mubr.bf16.mxu0 0
      %4421 = vmatmul.mubr.bf16.gmra.mrb[0].mxu0 %v4386
      %v4422 = vpop.f32.mrb[0].mxu0
      %v4423 = vadd.f32 0.0, %v4422
      %v4424 = vpop.f32.mrb[0].mxu0
      %v4425 = vpop.f32.mrb[0].mxu0
      %v4426 = vadd.f32 0.0, %v4425
      %v4427 = vpop.f32.mrb[0].mxu0
      %4428 = vdwg.mxu0
      %v4430 = vsel %vm3428, %v4139, 0
      %4432 = vmatprep.subr.bf16.mxu0 0
      %4433 = vmatpush1.bf16.msra.mxu0 %v918
      %4434 = vmatprep.subr.bf16.mxu0 0
      %4435 = vmatpush1.bf16.msra.mxu0 0
      %4436 = vmatprep.subr.bf16.mxu0 0
      %4437 = vmatpush1.bf16.msra.mxu0 0
      %4438 = vmatprep.subr.bf16.mxu0 0
      %4439 = vmatpush1.bf16.msra.mxu0 0
      %4440 = vmatprep.subr.bf16.mxu0 0
      %4441 = vmatpush1.bf16.msra.mxu0 0
      %4442 = vmatprep.subr.bf16.mxu0 0
      %4443 = vmatpush1.bf16.msra.mxu0 0
      %4444 = vmatprep.subr.bf16.mxu0 0
      %4445 = vmatpush1.bf16.msra.mxu0 0
      %4446 = vmatprep.subr.bf16.mxu0 0
      %4447 = vmatpush1.bf16.msra.mxu0 0
      %4448 = vmatprep.subr.bf16.mxu0 0
      %4449 = vmatpush1.bf16.msra.mxu0 0
      %4450 = vmatprep.subr.bf16.mxu0 0
      %4451 = vmatpush1.bf16.msra.mxu0 0
      %4452 = vmatprep.subr.bf16.mxu0 0
      %4453 = vmatpush1.bf16.msra.mxu0 0
      %4454 = vmatprep.subr.bf16.mxu0 0
      %4455 = vmatpush1.bf16.msra.mxu0 0
      %4456 = vmatprep.subr.bf16.mxu0 0
      %4457 = vmatpush1.bf16.msra.mxu0 0
      %4458 = vmatprep.subr.bf16.mxu0 0
      %4459 = vmatpush1.bf16.msra.mxu0 0
      %4460 = vmatprep.subr.bf16.mxu0 0
      %4461 = vmatpush1.bf16.msra.mxu0 0
      %4462 = vmatprep.subr.bf16.mxu0 0
      %4463 = vmatpush1.bf16.msra.mxu0 0
      %4464 = vmatprep.mubr.bf16.mxu0 0
      %4465 = vmatmul.mubr.bf16.gmra.mrb[0].mxu0 %v4430
      %v4466 = vpop.f32.mrb[0].mxu0
      %v4467 = vadd.f32 0.0, %v4466
      %v4468 = vpop.f32.mrb[0].mxu0
      %v4469 = vpop.f32.mrb[0].mxu0
      %v4470 = vadd.f32 0.0, %v4469
      %v4471 = vpop.f32.mrb[0].mxu0
      %4472 = vdwg.mxu0
      %v4474 = vsel %vm3428, %v4140, 0
      %4476 = vmatprep.subr.bf16.mxu0 0
      %4477 = vmatpush1.bf16.msra.mxu0 %v919
      %4478 = vmatprep.subr.bf16.mxu0 0
      %4479 = vmatpush1.bf16.msra.mxu0 0
      %4480 = vmatprep.subr.bf16.mxu0 0
      %4481 = vmatpush1.bf16.msra.mxu0 0
      %4482 = vmatprep.subr.bf16.mxu0 0
      %4483 = vmatpush1.bf16.msra.mxu0 0
      %4484 = vmatprep.subr.bf16.mxu0 0
      %4485 = vmatpush1.bf16.msra.mxu0 0
      %4486 = vmatprep.subr.bf16.mxu0 0
      %4487 = vmatpush1.bf16.msra.mxu0 0
      %4488 = vmatprep.subr.bf16.mxu0 0
      %4489 = vmatpush1.bf16.msra.mxu0 0
      %4490 = vmatprep.subr.bf16.mxu0 0
      %4491 = vmatpush1.bf16.msra.mxu0 0
      %4492 = vmatprep.subr.bf16.mxu0 0
      %4493 = vmatpush1.bf16.msra.mxu0 0
      %4494 = vmatprep.subr.bf16.mxu0 0
      %4495 = vmatpush1.bf16.msra.mxu0 0
      %4496 = vmatprep.subr.bf16.mxu0 0
      %4497 = vmatpush1.bf16.msra.mxu0 0
      %4498 = vmatprep.subr.bf16.mxu0 0
      %4499 = vmatpush1.bf16.msra.mxu0 0
      %4500 = vmatprep.subr.bf16.mxu0 0
      %4501 = vmatpush1.bf16.msra.mxu0 0
      %4502 = vmatprep.subr.bf16.mxu0 0
      %4503 = vmatpush1.bf16.msra.mxu0 0
      %4504 = vmatprep.subr.bf16.mxu0 0
      %4505 = vmatpush1.bf16.msra.mxu0 0
      %4506 = vmatprep.subr.bf16.mxu0 0
      %4507 = vmatpush1.bf16.msra.mxu0 0
      %4508 = vmatprep.mubr.bf16.mxu0 0
      %4509 = vmatmul.mubr.bf16.gmra.mrb[0].mxu0 %v4474
      %v4510 = vpop.f32.mrb[0].mxu0
      %v4511 = vadd.f32 0.0, %v4510
      %v4512 = vpop.f32.mrb[0].mxu0
      %v4513 = vpop.f32.mrb[0].mxu0
      %v4514 = vadd.f32 0.0, %v4513
      %v4515 = vpop.f32.mrb[0].mxu0
      %4516 = vdwg.mxu0
      %v4518 = vsel %vm3428, %v4141, 0
      %4520 = vmatprep.subr.bf16.mxu0 0
      %4521 = vmatpush1.bf16.msra.mxu0 %v920
      %4522 = vmatprep.subr.bf16.mxu0 0
      %4523 = vmatpush1.bf16.msra.mxu0 0
      %4524 = vmatprep.subr.bf16.mxu0 0
      %4525 = vmatpush1.bf16.msra.mxu0 0
      %4526 = vmatprep.subr.bf16.mxu0 0
      %4527 = vmatpush1.bf16.msra.mxu0 0
      %4528 = vmatprep.subr.bf16.mxu0 0
      %4529 = vmatpush1.bf16.msra.mxu0 0
      %4530 = vmatprep.subr.bf16.mxu0 0
      %4531 = vmatpush1.bf16.msra.mxu0 0
      %4532 = vmatprep.subr.bf16.mxu0 0
      %4533 = vmatpush1.bf16.msra.mxu0 0
      %4534 = vmatprep.subr.bf16.mxu0 0
      %4535 = vmatpush1.bf16.msra.mxu0 0
      %4536 = vmatprep.subr.bf16.mxu0 0
      %4537 = vmatpush1.bf16.msra.mxu0 0
      %4538 = vmatprep.subr.bf16.mxu0 0
      %4539 = vmatpush1.bf16.msra.mxu0 0
      %4540 = vmatprep.subr.bf16.mxu0 0
      %4541 = vmatpush1.bf16.msra.mxu0 0
      %4542 = vmatprep.subr.bf16.mxu0 0
      %4543 = vmatpush1.bf16.msra.mxu0 0
      %4544 = vmatprep.subr.bf16.mxu0 0
      %4545 = vmatpush1.bf16.msra.mxu0 0
      %4546 = vmatprep.subr.bf16.mxu0 0
      %4547 = vmatpush1.bf16.msra.mxu0 0
      %4548 = vmatprep.subr.bf16.mxu0 0
      %4549 = vmatpush1.bf16.msra.mxu0 0
      %4550 = vmatprep.subr.bf16.mxu0 0
      %4551 = vmatpush1.bf16.msra.mxu0 0
      %4552 = vmatprep.mubr.bf16.mxu0 0
      %4553 = vmatmul.mubr.bf16.gmra.mrb[0].mxu0 %v4518
      %v4554 = vpop.f32.mrb[0].mxu0
      %v4555 = vadd.f32 0.0, %v4554
      %v4556 = vpop.f32.mrb[0].mxu0
      %v4557 = vpop.f32.mrb[0].mxu0
      %v4558 = vadd.f32 0.0, %v4557
      %v4559 = vpop.f32.mrb[0].mxu0
      %4560 = vdwg.mxu0
      %v4562 = vsel %vm3428, %v4142, 0
      %4564 = vmatprep.subr.bf16.mxu0 0
      %4565 = vmatpush1.bf16.msra.mxu0 %v921
      %4566 = vmatprep.subr.bf16.mxu0 0
      %4567 = vmatpush1.bf16.msra.mxu0 0
      %4568 = vmatprep.subr.bf16.mxu0 0
      %4569 = vmatpush1.bf16.msra.mxu0 0
      %4570 = vmatprep.subr.bf16.mxu0 0
      %4571 = vmatpush1.bf16.msra.mxu0 0
      %4572 = vmatprep.subr.bf16.mxu0 0
      %4573 = vmatpush1.bf16.msra.mxu0 0
      %4574 = vmatprep.subr.bf16.mxu0 0
      %4575 = vmatpush1.bf16.msra.mxu0 0
      %4576 = vmatprep.subr.bf16.mxu0 0
      %4577 = vmatpush1.bf16.msra.mxu0 0
      %4578 = vmatprep.subr.bf16.mxu0 0
      %4579 = vmatpush1.bf16.msra.mxu0 0
      %4580 = vmatprep.subr.bf16.mxu0 0
      %4581 = vmatpush1.bf16.msra.mxu0 0
      %4582 = vmatprep.subr.bf16.mxu0 0
      %4583 = vmatpush1.bf16.msra.mxu0 0
      %4584 = vmatprep.subr.bf16.mxu0 0
      %4585 = vmatpush1.bf16.msra.mxu0 0
      %4586 = vmatprep.subr.bf16.mxu0 0
      %4587 = vmatpush1.bf16.msra.mxu0 0
      %4588 = vmatprep.subr.bf16.mxu0 0
      %4589 = vmatpush1.bf16.msra.mxu0 0
      %4590 = vmatprep.subr.bf16.mxu0 0
      %4591 = vmatpush1.bf16.msra.mxu0 0
      %4592 = vmatprep.subr.bf16.mxu0 0
      %4593 = vmatpush1.bf16.msra.mxu0 0
      %4594 = vmatprep.subr.bf16.mxu0 0
      %4595 = vmatpush1.bf16.msra.mxu0 0
      %4596 = vmatprep.mubr.bf16.mxu0 0
      %4597 = vmatmul.mubr.bf16.gmra.mrb[0].mxu0 %v4562
      %v4598 = vpop.f32.mrb[0].mxu0
      %v4599 = vadd.f32 0.0, %v4598
      %v4600 = vpop.f32.mrb[0].mxu0
      %v4601 = vpop.f32.mrb[0].mxu0
      %v4602 = vadd.f32 0.0, %v4601
      %v4603 = vpop.f32.mrb[0].mxu0
      %4604 = vdwg.mxu0
      %v4606 = vsel %vm3428, %v4143, 0
      %4608 = vmatprep.subr.bf16.mxu0 0
      %4609 = vmatpush1.bf16.msra.mxu0 %v922
      %4610 = vmatprep.subr.bf16.mxu0 0
      %4611 = vmatpush1.bf16.msra.mxu0 0
      %4612 = vmatprep.subr.bf16.mxu0 0
      %4613 = vmatpush1.bf16.msra.mxu0 0
      %4614 = vmatprep.subr.bf16.mxu0 0
      %4615 = vmatpush1.bf16.msra.mxu0 0
      %4616 = vmatprep.subr.bf16.mxu0 0
      %4617 = vmatpush1.bf16.msra.mxu0 0
      %4618 = vmatprep.subr.bf16.mxu0 0
      %4619 = vmatpush1.bf16.msra.mxu0 0
      %4620 = vmatprep.subr.bf16.mxu0 0
      %4621 = vmatpush1.bf16.msra.mxu0 0
      %4622 = vmatprep.subr.bf16.mxu0 0
      %4623 = vmatpush1.bf16.msra.mxu0 0
      %4624 = vmatprep.subr.bf16.mxu0 0
      %4625 = vmatpush1.bf16.msra.mxu0 0
      %4626 = vmatprep.subr.bf16.mxu0 0
      %4627 = vmatpush1.bf16.msra.mxu0 0
      %4628 = vmatprep.subr.bf16.mxu0 0
      %4629 = vmatpush1.bf16.msra.mxu0 0
      %4630 = vmatprep.subr.bf16.mxu0 0
      %4631 = vmatpush1.bf16.msra.mxu0 0
      %4632 = vmatprep.subr.bf16.mxu0 0
      %4633 = vmatpush1.bf16.msra.mxu0 0
      %4634 = vmatprep.subr.bf16.mxu0 0
      %4635 = vmatpush1.bf16.msra.mxu0 0
      %4636 = vmatprep.subr.bf16.mxu0 0
      %4637 = vmatpush1.bf16.msra.mxu0 0
      %4638 = vmatprep.subr.bf16.mxu0 0
      %4639 = vmatpush1.bf16.msra.mxu0 0
      %4640 = vmatprep.mubr.bf16.mxu0 0
      %4641 = vmatmul.mubr.bf16.gmra.mrb[0].mxu0 %v4606
      %v4642 = vpop.f32.mrb[0].mxu0
      %v4643 = vadd.f32 0.0, %v4642
      %v4644 = vpop.f32.mrb[0].mxu0
      %v4645 = vpop.f32.mrb[0].mxu0
      %v4646 = vadd.f32 0.0, %v4645
      %v4647 = vpop.f32.mrb[0].mxu0
      %4648 = vdwg.mxu0
      %v4650 = vsel %vm3428, %v4144, 0
      %4652 = vmatprep.subr.bf16.mxu0 0
      %4653 = vmatpush1.bf16.msra.mxu0 %v923
      %4654 = vmatprep.subr.bf16.mxu0 0
      %4655 = vmatpush1.bf16.msra.mxu0 0
      %4656 = vmatprep.subr.bf16.mxu0 0
      %4657 = vmatpush1.bf16.msra.mxu0 0
      %4658 = vmatprep.subr.bf16.mxu0 0
      %4659 = vmatpush1.bf16.msra.mxu0 0
      %4660 = vmatprep.subr.bf16.mxu0 0
      %4661 = vmatpush1.bf16.msra.mxu0 0
      %4662 = vmatprep.subr.bf16.mxu0 0
      %4663 = vmatpush1.bf16.msra.mxu0 0
      %4664 = vmatprep.subr.bf16.mxu0 0
      %4665 = vmatpush1.bf16.msra.mxu0 0
      %4666 = vmatprep.subr.bf16.mxu0 0
      %4667 = vmatpush1.bf16.msra.mxu0 0
      %4668 = vmatprep.subr.bf16.mxu0 0
      %4669 = vmatpush1.bf16.msra.mxu0 0
      %4670 = vmatprep.subr.bf16.mxu0 0
      %4671 = vmatpush1.bf16.msra.mxu0 0
      %4672 = vmatprep.subr.bf16.mxu0 0
      %4673 = vmatpush1.bf16.msra.mxu0 0
      %4674 = vmatprep.subr.bf16.mxu0 0
      %4675 = vmatpush1.bf16.msra.mxu0 0
      %4676 = vmatprep.subr.bf16.mxu0 0
      %4677 = vmatpush1.bf16.msra.mxu0 0
      %4678 = vmatprep.subr.bf16.mxu0 0
      %4679 = vmatpush1.bf16.msra.mxu0 0
      %4680 = vmatprep.subr.bf16.mxu0 0
      %4681 = vmatpush1.bf16.msra.mxu0 0
      %4682 = vmatprep.subr.bf16.mxu0 0
      %4683 = vmatpush1.bf16.msra.mxu0 0
      %4684 = vmatprep.mubr.bf16.mxu0 0
      %4685 = vmatmul.mubr.bf16.gmra.mrb[0].mxu0 %v4650
      %v4686 = vpop.f32.mrb[0].mxu0
      %v4687 = vadd.f32 0.0, %v4686
      %v4688 = vpop.f32.mrb[0].mxu0
      %v4689 = vpop.f32.mrb[0].mxu0
      %v4690 = vadd.f32 0.0, %v4689
      %v4691 = vpop.f32.mrb[0].mxu0
      %4692 = vdwg.mxu0
      %v4694 = vsel %vm3428, %v4145, 0
      %4696 = vmatprep.subr.bf16.mxu0 0
      %4697 = vmatpush1.bf16.msra.mxu0 %v924
      %4698 = vmatprep.subr.bf16.mxu0 0
      %4699 = vmatpush1.bf16.msra.mxu0 0
      %4700 = vmatprep.subr.bf16.mxu0 0
      %4701 = vmatpush1.bf16.msra.mxu0 0
      %4702 = vmatprep.subr.bf16.mxu0 0
      %4703 = vmatpush1.bf16.msra.mxu0 0
      %4704 = vmatprep.subr.bf16.mxu0 0
      %4705 = vmatpush1.bf16.msra.mxu0 0
      %4706 = vmatprep.subr.bf16.mxu0 0
      %4707 = vmatpush1.bf16.msra.mxu0 0
      %4708 = vmatprep.subr.bf16.mxu0 0
      %4709 = vmatpush1.bf16.msra.mxu0 0
      %4710 = vmatprep.subr.bf16.mxu0 0
      %4711 = vmatpush1.bf16.msra.mxu0 0
      %4712 = vmatprep.subr.bf16.mxu0 0
      %4713 = vmatpush1.bf16.msra.mxu0 0
      %4714 = vmatprep.subr.bf16.mxu0 0
      %4715 = vmatpush1.bf16.msra.mxu0 0
      %4716 = vmatprep.subr.bf16.mxu0 0
      %4717 = vmatpush1.bf16.msra.mxu0 0
      %4718 = vmatprep.subr.bf16.mxu0 0
      %4719 = vmatpush1.bf16.msra.mxu0 0
      %4720 = vmatprep.subr.bf16.mxu0 0
      %4721 = vmatpush1.bf16.msra.mxu0 0
      %4722 = vmatprep.subr.bf16.mxu0 0
      %4723 = vmatpush1.bf16.msra.mxu0 0
      %4724 = vmatprep.subr.bf16.mxu0 0
      %4725 = vmatpush1.bf16.msra.mxu0 0
      %4726 = vmatprep.subr.bf16.mxu0 0
      %4727 = vmatpush1.bf16.msra.mxu0 0
      %4728 = vmatprep.mubr.bf16.mxu0 0
      %4729 = vmatmul.mubr.bf16.gmra.mrb[0].mxu0 %v4694
      %v4730 = vpop.f32.mrb[0].mxu0
      %v4731 = vadd.f32 0.0, %v4730
      %v4732 = vpop.f32.mrb[0].mxu0
      %v4733 = vpop.f32.mrb[0].mxu0
      %v4734 = vadd.f32 0.0, %v4733
      %v4735 = vpop.f32.mrb[0].mxu0
      %4736 = vdwg.mxu0
      %v4738 = vsel %vm3428, %v4146, 0
      %4740 = vmatprep.subr.bf16.mxu0 0
      %4741 = vmatpush1.bf16.msra.mxu0 %v925
      %4742 = vmatprep.subr.bf16.mxu0 0
      %4743 = vmatpush1.bf16.msra.mxu0 0
      %4744 = vmatprep.subr.bf16.mxu0 0
      %4745 = vmatpush1.bf16.msra.mxu0 0
      %4746 = vmatprep.subr.bf16.mxu0 0
      %4747 = vmatpush1.bf16.msra.mxu0 0
      %4748 = vmatprep.subr.bf16.mxu0 0
      %4749 = vmatpush1.bf16.msra.mxu0 0
      %4750 = vmatprep.subr.bf16.mxu0 0
      %4751 = vmatpush1.bf16.msra.mxu0 0
      %4752 = vmatprep.subr.bf16.mxu0 0
      %4753 = vmatpush1.bf16.msra.mxu0 0
      %4754 = vmatprep.subr.bf16.mxu0 0
      %4755 = vmatpush1.bf16.msra.mxu0 0
      %4756 = vmatprep.subr.bf16.mxu0 0
      %4757 = vmatpush1.bf16.msra.mxu0 0
      %4758 = vmatprep.subr.bf16.mxu0 0
      %4759 = vmatpush1.bf16.msra.mxu0 0
      %4760 = vmatprep.subr.bf16.mxu0 0
      %4761 = vmatpush1.bf16.msra.mxu0 0
      %4762 = vmatprep.subr.bf16.mxu0 0
      %4763 = vmatpush1.bf16.msra.mxu0 0
      %4764 = vmatprep.subr.bf16.mxu0 0
      %4765 = vmatpush1.bf16.msra.mxu0 0
      %4766 = vmatprep.subr.bf16.mxu0 0
      %4767 = vmatpush1.bf16.msra.mxu0 0
      %4768 = vmatprep.subr.bf16.mxu0 0
      %4769 = vmatpush1.bf16.msra.mxu0 0
      %4770 = vmatprep.subr.bf16.mxu0 0
      %4771 = vmatpush1.bf16.msra.mxu0 0
      %4772 = vmatprep.mubr.bf16.mxu0 0
      %4773 = vmatmul.mubr.bf16.gmra.mrb[0].mxu0 %v4738
      %v4774 = vpop.f32.mrb[0].mxu0
      %v4775 = vadd.f32 0.0, %v4774
      %v4776 = vpop.f32.mrb[0].mxu0
      %v4777 = vpop.f32.mrb[0].mxu0
      %v4778 = vadd.f32 0.0, %v4777
      %v4779 = vpop.f32.mrb[0].mxu0
      %4780 = vdwg.mxu0
      %v4782 = vsel %vm3428, %v4147, 0
      %4784 = vmatprep.subr.bf16.mxu0 0
      %4785 = vmatpush1.bf16.msra.mxu0 %v926
      %4786 = vmatprep.subr.bf16.mxu0 0
      %4787 = vmatpush1.bf16.msra.mxu0 0
      %4788 = vmatprep.subr.bf16.mxu0 0
      %4789 = vmatpush1.bf16.msra.mxu0 0
      %4790 = vmatprep.subr.bf16.mxu0 0
      %4791 = vmatpush1.bf16.msra.mxu0 0
      %4792 = vmatprep.subr.bf16.mxu0 0
      %4793 = vmatpush1.bf16.msra.mxu0 0
      %4794 = vmatprep.subr.bf16.mxu0 0
      %4795 = vmatpush1.bf16.msra.mxu0 0
      %4796 = vmatprep.subr.bf16.mxu0 0
      %4797 = vmatpush1.bf16.msra.mxu0 0
      %4798 = vmatprep.subr.bf16.mxu0 0
      %4799 = vmatpush1.bf16.msra.mxu0 0
      %4800 = vmatprep.subr.bf16.mxu0 0
      %4801 = vmatpush1.bf16.msra.mxu0 0
      %4802 = vmatprep.subr.bf16.mxu0 0
      %4803 = vmatpush1.bf16.msra.mxu0 0
      %4804 = vmatprep.subr.bf16.mxu0 0
      %4805 = vmatpush1.bf16.msra.mxu0 0
      %4806 = vmatprep.subr.bf16.mxu0 0
      %4807 = vmatpush1.bf16.msra.mxu0 0
      %4808 = vmatprep.subr.bf16.mxu0 0
      %4809 = vmatpush1.bf16.msra.mxu0 0
      %4810 = vmatprep.subr.bf16.mxu0 0
      %4811 = vmatpush1.bf16.msra.mxu0 0
      %4812 = vmatprep.subr.bf16.mxu0 0
      %4813 = vmatpush1.bf16.msra.mxu0 0
      %4814 = vmatprep.subr.bf16.mxu0 0
      %4815 = vmatpush1.bf16.msra.mxu0 0
      %4816 = vmatprep.mubr.bf16.mxu0 0
      %4817 = vmatmul.mubr.bf16.gmra.mrb[0].mxu0 %v4782
      %v4818 = vpop.f32.mrb[0].mxu0
      %v4819 = vadd.f32 0.0, %v4818
      %v4820 = vpop.f32.mrb[0].mxu0
      %v4821 = vpop.f32.mrb[0].mxu0
      %v4822 = vadd.f32 0.0, %v4821
      %v4823 = vpop.f32.mrb[0].mxu0
      %4824 = vdwg.mxu0
      %v4826 = vsel %vm3428, %v4148, 0
      %4828 = vmatprep.subr.bf16.mxu0 0
      %4829 = vmatpush1.bf16.msra.mxu0 %v927
      %4830 = vmatprep.subr.bf16.mxu0 0
      %4831 = vmatpush1.bf16.msra.mxu0 0
      %4832 = vmatprep.subr.bf16.mxu0 0
      %4833 = vmatpush1.bf16.msra.mxu0 0
      %4834 = vmatprep.subr.bf16.mxu0 0
      %4835 = vmatpush1.bf16.msra.mxu0 0
      %4836 = vmatprep.subr.bf16.mxu0 0
      %4837 = vmatpush1.bf16.msra.mxu0 0
      %4838 = vmatprep.subr.bf16.mxu0 0
      %4839 = vmatpush1.bf16.msra.mxu0 0
      %4840 = vmatprep.subr.bf16.mxu0 0
      %4841 = vmatpush1.bf16.msra.mxu0 0
      %4842 = vmatprep.subr.bf16.mxu0 0
      %4843 = vmatpush1.bf16.msra.mxu0 0
      %4844 = vmatprep.subr.bf16.mxu0 0
      %4845 = vmatpush1.bf16.msra.mxu0 0
      %4846 = vmatprep.subr.bf16.mxu0 0
      %4847 = vmatpush1.bf16.msra.mxu0 0
      %4848 = vmatprep.subr.bf16.mxu0 0
      %4849 = vmatpush1.bf16.msra.mxu0 0
      %4850 = vmatprep.subr.bf16.mxu0 0
      %4851 = vmatpush1.bf16.msra.mxu0 0
      %4852 = vmatprep.subr.bf16.mxu0 0
      %4853 = vmatpush1.bf16.msra.mxu0 0
      %4854 = vmatprep.subr.bf16.mxu0 0
      %4855 = vmatpush1.bf16.msra.mxu0 0
      %4856 = vmatprep.subr.bf16.mxu0 0
      %4857 = vmatpush1.bf16.msra.mxu0 0
      %4858 = vmatprep.subr.bf16.mxu0 0
      %4859 = vmatpush1.bf16.msra.mxu0 0
      %4860 = vmatprep.mubr.bf16.mxu0 0
      %4861 = vmatmul.mubr.bf16.gmra.mrb[0].mxu0 %v4826
      %v4862 = vpop.f32.mrb[0].mxu0
      %v4863 = vadd.f32 0.0, %v4862
      %v4864 = vpop.f32.mrb[0].mxu0
      %v4865 = vpop.f32.mrb[0].mxu0
      %v4866 = vadd.f32 0.0, %v4865
      %v4867 = vpop.f32.mrb[0].mxu0
      %4868 = vdwg.mxu0
      %v4870 = vsel %vm3428, %v4149, 0
      %4872 = vmatprep.subr.bf16.mxu0 0
      %4873 = vmatpush1.bf16.msra.mxu0 %v928
      %4874 = vmatprep.subr.bf16.mxu0 0
      %4875 = vmatpush1.bf16.msra.mxu0 0
      %4876 = vmatprep.subr.bf16.mxu0 0
      %4877 = vmatpush1.bf16.msra.mxu0 0
      %4878 = vmatprep.subr.bf16.mxu0 0
      %4879 = vmatpush1.bf16.msra.mxu0 0
      %4880 = vmatprep.subr.bf16.mxu0 0
      %4881 = vmatpush1.bf16.msra.mxu0 0
      %4882 = vmatprep.subr.bf16.mxu0 0
      %4883 = vmatpush1.bf16.msra.mxu0 0
      %4884 = vmatprep.subr.bf16.mxu0 0
      %4885 = vmatpush1.bf16.msra.mxu0 0
      %4886 = vmatprep.subr.bf16.mxu0 0
      %4887 = vmatpush1.bf16.msra.mxu0 0
      %4888 = vmatprep.subr.bf16.mxu0 0
      %4889 = vmatpush1.bf16.msra.mxu0 0
      %4890 = vmatprep.subr.bf16.mxu0 0
      %4891 = vmatpush1.bf16.msra.mxu0 0
      %4892 = vmatprep.subr.bf16.mxu0 0
      %4893 = vmatpush1.bf16.msra.mxu0 0
      %4894 = vmatprep.subr.bf16.mxu0 0
      %4895 = vmatpush1.bf16.msra.mxu0 0
      %4896 = vmatprep.subr.bf16.mxu0 0
      %4897 = vmatpush1.bf16.msra.mxu0 0
      %4898 = vmatprep.subr.bf16.mxu0 0
      %4899 = vmatpush1.bf16.msra.mxu0 0
      %4900 = vmatprep.subr.bf16.mxu0 0
      %4901 = vmatpush1.bf16.msra.mxu0 0
      %4902 = vmatprep.subr.bf16.mxu0 0
      %4903 = vmatpush1.bf16.msra.mxu0 0
      %4904 = vmatprep.mubr.bf16.mxu0 0
      %4905 = vmatmul.mubr.bf16.gmra.mrb[0].mxu0 %v4870
      %v4906 = vpop.f32.mrb[0].mxu0
      %v4907 = vadd.f32 0.0, %v4906
      %v4908 = vpop.f32.mrb[0].mxu0
      %v4909 = vpop.f32.mrb[0].mxu0
      %v4910 = vadd.f32 0.0, %v4909
      %v4911 = vpop.f32.mrb[0].mxu0
      %4912 = vdwg.mxu0
      %v4914 = vsel %vm3428, %v4150, 0
      %4916 = vmatprep.subr.bf16.mxu0 0
      %4917 = vmatpush1.bf16.msra.mxu0 %v929
      %4918 = vmatprep.subr.bf16.mxu0 0
      %4919 = vmatpush1.bf16.msra.mxu0 0
      %4920 = vmatprep.subr.bf16.mxu0 0
      %4921 = vmatpush1.bf16.msra.mxu0 0
      %4922 = vmatprep.subr.bf16.mxu0 0
      %4923 = vmatpush1.bf16.msra.mxu0 0
      %4924 = vmatprep.subr.bf16.mxu0 0
      %4925 = vmatpush1.bf16.msra.mxu0 0
      %4926 = vmatprep.subr.bf16.mxu0 0
      %4927 = vmatpush1.bf16.msra.mxu0 0
      %4928 = vmatprep.subr.bf16.mxu0 0
      %4929 = vmatpush1.bf16.msra.mxu0 0
      %4930 = vmatprep.subr.bf16.mxu0 0
      %4931 = vmatpush1.bf16.msra.mxu0 0
      %4932 = vmatprep.subr.bf16.mxu0 0
      %4933 = vmatpush1.bf16.msra.mxu0 0
      %4934 = vmatprep.subr.bf16.mxu0 0
      %4935 = vmatpush1.bf16.msra.mxu0 0
      %4936 = vmatprep.subr.bf16.mxu0 0
      %4937 = vmatpush1.bf16.msra.mxu0 0
      %4938 = vmatprep.subr.bf16.mxu0 0
      %4939 = vmatpush1.bf16.msra.mxu0 0
      %4940 = vmatprep.subr.bf16.mxu0 0
      %4941 = vmatpush1.bf16.msra.mxu0 0
      %4942 = vmatprep.subr.bf16.mxu0 0
      %4943 = vmatpush1.bf16.msra.mxu0 0
      %4944 = vmatprep.subr.bf16.mxu0 0
      %4945 = vmatpush1.bf16.msra.mxu0 0
      %4946 = vmatprep.subr.bf16.mxu0 0
      %4947 = vmatpush1.bf16.msra.mxu0 0
      %4948 = vmatprep.mubr.bf16.mxu0 0
      %4949 = vmatmul.mubr.bf16.gmra.mrb[0].mxu0 %v4914
      %v4950 = vpop.f32.mrb[0].mxu0
      %v4951 = vadd.f32 0.0, %v4950
      %v4952 = vpop.f32.mrb[0].mxu0
      %v4953 = vpop.f32.mrb[0].mxu0
      %v4954 = vadd.f32 0.0, %v4953
      %v4955 = vpop.f32.mrb[0].mxu0
      %4956 = vdwg.mxu0
      %v4958 = vsel %vm3428, %v4151, 0
      %4960 = vmatprep.subr.bf16.mxu0 0
      %4961 = vmatpush1.bf16.msra.mxu0 %v930
      %4962 = vmatprep.subr.bf16.mxu0 0
      %4963 = vmatpush1.bf16.msra.mxu0 0
      %4964 = vmatprep.subr.bf16.mxu0 0
      %4965 = vmatpush1.bf16.msra.mxu0 0
      %4966 = vmatprep.subr.bf16.mxu0 0
      %4967 = vmatpush1.bf16.msra.mxu0 0
      %4968 = vmatprep.subr.bf16.mxu0 0
      %4969 = vmatpush1.bf16.msra.mxu0 0
      %4970 = vmatprep.subr.bf16.mxu0 0
      %4971 = vmatpush1.bf16.msra.mxu0 0
      %4972 = vmatprep.subr.bf16.mxu0 0
      %4973 = vmatpush1.bf16.msra.mxu0 0
      %4974 = vmatprep.subr.bf16.mxu0 0
      %4975 = vmatpush1.bf16.msra.mxu0 0
      %4976 = vmatprep.subr.bf16.mxu0 0
      %4977 = vmatpush1.bf16.msra.mxu0 0
      %4978 = vmatprep.subr.bf16.mxu0 0
      %4979 = vmatpush1.bf16.msra.mxu0 0
      %4980 = vmatprep.subr.bf16.mxu0 0
      %4981 = vmatpush1.bf16.msra.mxu0 0
      %4982 = vmatprep.subr.bf16.mxu0 0
      %4983 = vmatpush1.bf16.msra.mxu0 0
      %4984 = vmatprep.subr.bf16.mxu0 0
      %4985 = vmatpush1.bf16.msra.mxu0 0
      %4986 = vmatprep.subr.bf16.mxu0 0
      %4987 = vmatpush1.bf16.msra.mxu0 0
      %4988 = vmatprep.subr.bf16.mxu0 0
      %4989 = vmatpush1.bf16.msra.mxu0 0
      %4990 = vmatprep.subr.bf16.mxu0 0
      %4991 = vmatpush1.bf16.msra.mxu0 0
      %4992 = vmatprep.mubr.bf16.mxu0 0
      %4993 = vmatmul.mubr.bf16.gmra.mrb[0].mxu0 %v4958
      %v4994 = vpop.f32.mrb[0].mxu0
      %v4995 = vadd.f32 0.0, %v4994
      %v4996 = vpop.f32.mrb[0].mxu0
      %v4997 = vpop.f32.mrb[0].mxu0
      %v4998 = vadd.f32 0.0, %v4997
      %v4999 = vpop.f32.mrb[0].mxu0
      %5000 = vdwg.mxu0
      %v5002 = vsel %vm3428, %v4152, 0
      %5004 = vmatprep.subr.bf16.mxu0 0
      %5005 = vmatpush1.bf16.msra.mxu0 %v931
      %5006 = vmatprep.subr.bf16.mxu0 0
      %5007 = vmatpush1.bf16.msra.mxu0 0
      %5008 = vmatprep.subr.bf16.mxu0 0
      %5009 = vmatpush1.bf16.msra.mxu0 0
      %5010 = vmatprep.subr.bf16.mxu0 0
      %5011 = vmatpush1.bf16.msra.mxu0 0
      %5012 = vmatprep.subr.bf16.mxu0 0
      %5013 = vmatpush1.bf16.msra.mxu0 0
      %5014 = vmatprep.subr.bf16.mxu0 0
      %5015 = vmatpush1.bf16.msra.mxu0 0
      %5016 = vmatprep.subr.bf16.mxu0 0
      %5017 = vmatpush1.bf16.msra.mxu0 0
      %5018 = vmatprep.subr.bf16.mxu0 0
      %5019 = vmatpush1.bf16.msra.mxu0 0
      %5020 = vmatprep.subr.bf16.mxu0 0
      %5021 = vmatpush1.bf16.msra.mxu0 0
      %5022 = vmatprep.subr.bf16.mxu0 0
      %5023 = vmatpush1.bf16.msra.mxu0 0
      %5024 = vmatprep.subr.bf16.mxu0 0
      %5025 = vmatpush1.bf16.msra.mxu0 0
      %5026 = vmatprep.subr.bf16.mxu0 0
      %5027 = vmatpush1.bf16.msra.mxu0 0
      %5028 = vmatprep.subr.bf16.mxu0 0
      %5029 = vmatpush1.bf16.msra.mxu0 0
      %5030 = vmatprep.subr.bf16.mxu0 0
      %5031 = vmatpush1.bf16.msra.mxu0 0
      %5032 = vmatprep.subr.bf16.mxu0 0
      %5033 = vmatpush1.bf16.msra.mxu0 0
      %5034 = vmatprep.subr.bf16.mxu0 0
      %5035 = vmatpush1.bf16.msra.mxu0 0
      %5036 = vmatprep.mubr.bf16.mxu0 0
      %5037 = vmatmul.mubr.bf16.gmra.mrb[0].mxu0 %v5002
      %v5038 = vpop.f32.mrb[0].mxu0
      %v5039 = vadd.f32 0.0, %v5038
      %v5040 = vpop.f32.mrb[0].mxu0
      %v5041 = vpop.f32.mrb[0].mxu0
      %v5042 = vadd.f32 0.0, %v5041
      %v5043 = vpop.f32.mrb[0].mxu0
      %5044 = vdwg.mxu0
      %v5046 = vsel %vm3428, %v4153, 0
      %5048 = vmatprep.subr.bf16.mxu0 0
      %5049 = vmatpush1.bf16.msra.mxu0 %v932
      %5050 = vmatprep.subr.bf16.mxu0 0
      %5051 = vmatpush1.bf16.msra.mxu0 0
      %5052 = vmatprep.subr.bf16.mxu0 0
      %5053 = vmatpush1.bf16.msra.mxu0 0
      %5054 = vmatprep.subr.bf16.mxu0 0
      %5055 = vmatpush1.bf16.msra.mxu0 0
      %5056 = vmatprep.subr.bf16.mxu0 0
      %5057 = vmatpush1.bf16.msra.mxu0 0
      %5058 = vmatprep.subr.bf16.mxu0 0
      %5059 = vmatpush1.bf16.msra.mxu0 0
      %5060 = vmatprep.subr.bf16.mxu0 0
      %5061 = vmatpush1.bf16.msra.mxu0 0
      %5062 = vmatprep.subr.bf16.mxu0 0
      %5063 = vmatpush1.bf16.msra.mxu0 0
      %5064 = vmatprep.subr.bf16.mxu0 0
      %5065 = vmatpush1.bf16.msra.mxu0 0
      %5066 = vmatprep.subr.bf16.mxu0 0
      %5067 = vmatpush1.bf16.msra.mxu0 0
      %5068 = vmatprep.subr.bf16.mxu0 0
      %5069 = vmatpush1.bf16.msra.mxu0 0
      %5070 = vmatprep.subr.bf16.mxu0 0
      %5071 = vmatpush1.bf16.msra.mxu0 0
      %5072 = vmatprep.subr.bf16.mxu0 0
      %5073 = vmatpush1.bf16.msra.mxu0 0
      %5074 = vmatprep.subr.bf16.mxu0 0
      %5075 = vmatpush1.bf16.msra.mxu0 0
      %5076 = vmatprep.subr.bf16.mxu0 0
      %5077 = vmatpush1.bf16.msra.mxu0 0
      %5078 = vmatprep.subr.bf16.mxu0 0
      %5079 = vmatpush1.bf16.msra.mxu0 0
      %5080 = vmatprep.mubr.bf16.mxu0 0
      %5081 = vmatmul.mubr.bf16.gmra.mrb[0].mxu0 %v5046
      %v5082 = vpop.f32.mrb[0].mxu0
      %v5083 = vadd.f32 0.0, %v5082
      %v5084 = vpop.f32.mrb[0].mxu0
      %v5085 = vpop.f32.mrb[0].mxu0
      %v5086 = vadd.f32 0.0, %v5085
      %v5087 = vpop.f32.mrb[0].mxu0
      %5088 = vdwg.mxu0
      %v5090 = vsel %vm3428, %v4154, 0
      %5092 = vmatprep.subr.bf16.mxu0 0
      %5093 = vmatpush1.bf16.msra.mxu0 %v933
      %5094 = vmatprep.subr.bf16.mxu0 0
      %5095 = vmatpush1.bf16.msra.mxu0 0
      %5096 = vmatprep.subr.bf16.mxu0 0
      %5097 = vmatpush1.bf16.msra.mxu0 0
      %5098 = vmatprep.subr.bf16.mxu0 0
      %5099 = vmatpush1.bf16.msra.mxu0 0
      %5100 = vmatprep.subr.bf16.mxu0 0
      %5101 = vmatpush1.bf16.msra.mxu0 0
      %5102 = vmatprep.subr.bf16.mxu0 0
      %5103 = vmatpush1.bf16.msra.mxu0 0
      %5104 = vmatprep.subr.bf16.mxu0 0
      %5105 = vmatpush1.bf16.msra.mxu0 0
      %5106 = vmatprep.subr.bf16.mxu0 0
      %5107 = vmatpush1.bf16.msra.mxu0 0
      %5108 = vmatprep.subr.bf16.mxu0 0
      %5109 = vmatpush1.bf16.msra.mxu0 0
      %5110 = vmatprep.subr.bf16.mxu0 0
      %5111 = vmatpush1.bf16.msra.mxu0 0
      %5112 = vmatprep.subr.bf16.mxu0 0
      %5113 = vmatpush1.bf16.msra.mxu0 0
      %5114 = vmatprep.subr.bf16.mxu0 0
      %5115 = vmatpush1.bf16.msra.mxu0 0
      %5116 = vmatprep.subr.bf16.mxu0 0
      %5117 = vmatpush1.bf16.msra.mxu0 0
      %5118 = vmatprep.subr.bf16.mxu0 0
      %5119 = vmatpush1.bf16.msra.mxu0 0
      %5120 = vmatprep.subr.bf16.mxu0 0
      %5121 = vmatpush1.bf16.msra.mxu0 0
      %5122 = vmatprep.subr.bf16.mxu0 0
      %5123 = vmatpush1.bf16.msra.mxu0 0
      %5124 = vmatprep.mubr.bf16.mxu0 0
      %5125 = vmatmul.mubr.bf16.gmra.mrb[0].mxu0 %v5090
      %v5126 = vpop.f32.mrb[0].mxu0
      %v5127 = vadd.f32 0.0, %v5126
      %v5128 = vpop.f32.mrb[0].mxu0
      %v5129 = vpop.f32.mrb[0].mxu0
      %v5130 = vadd.f32 0.0, %v5129
      %v5131 = vpop.f32.mrb[0].mxu0
      %5132 = vdwg.mxu0
      %v5134 = vsel %vm3428, %v4155, 0
      %5136 = vmatprep.subr.bf16.mxu0 0
      %5137 = vmatpush1.bf16.msra.mxu0 %v934
      %5138 = vmatprep.subr.bf16.mxu0 0
      %5139 = vmatpush1.bf16.msra.mxu0 0
      %5140 = vmatprep.subr.bf16.mxu0 0
      %5141 = vmatpush1.bf16.msra.mxu0 0
      %5142 = vmatprep.subr.bf16.mxu0 0
      %5143 = vmatpush1.bf16.msra.mxu0 0
      %5144 = vmatprep.subr.bf16.mxu0 0
      %5145 = vmatpush1.bf16.msra.mxu0 0
      %5146 = vmatprep.subr.bf16.mxu0 0
      %5147 = vmatpush1.bf16.msra.mxu0 0
      %5148 = vmatprep.subr.bf16.mxu0 0
      %5149 = vmatpush1.bf16.msra.mxu0 0
      %5150 = vmatprep.subr.bf16.mxu0 0
      %5151 = vmatpush1.bf16.msra.mxu0 0
      %5152 = vmatprep.subr.bf16.mxu0 0
      %5153 = vmatpush1.bf16.msra.mxu0 0
      %5154 = vmatprep.subr.bf16.mxu0 0
      %5155 = vmatpush1.bf16.msra.mxu0 0
      %5156 = vmatprep.subr.bf16.mxu0 0
      %5157 = vmatpush1.bf16.msra.mxu0 0
      %5158 = vmatprep.subr.bf16.mxu0 0
      %5159 = vmatpush1.bf16.msra.mxu0 0
      %5160 = vmatprep.subr.bf16.mxu0 0
      %5161 = vmatpush1.bf16.msra.mxu0 0
      %5162 = vmatprep.subr.bf16.mxu0 0
      %5163 = vmatpush1.bf16.msra.mxu0 0
      %5164 = vmatprep.subr.bf16.mxu0 0
      %5165 = vmatpush1.bf16.msra.mxu0 0
      %5166 = vmatprep.subr.bf16.mxu0 0
      %5167 = vmatpush1.bf16.msra.mxu0 0
      %5168 = vmatprep.mubr.bf16.mxu0 0
      %5169 = vmatmul.mubr.bf16.gmra.mrb[0].mxu0 %v5134
      %v5170 = vpop.f32.mrb[0].mxu0
      %v5171 = vadd.f32 0.0, %v5170
      %v5172 = vpop.f32.mrb[0].mxu0
      %v5173 = vpop.f32.mrb[0].mxu0
      %v5174 = vadd.f32 0.0, %v5173
      %v5175 = vpop.f32.mrb[0].mxu0
      %5176 = vdwg.mxu0
      %v5178 = vsel %vm3428, %v4156, 0
      %5180 = vmatprep.subr.bf16.mxu0 0
      %5181 = vmatpush1.bf16.msra.mxu0 %v935
      %5182 = vmatprep.subr.bf16.mxu0 0
      %5183 = vmatpush1.bf16.msra.mxu0 0
      %5184 = vmatprep.subr.bf16.mxu0 0
      %5185 = vmatpush1.bf16.msra.mxu0 0
      %5186 = vmatprep.subr.bf16.mxu0 0
      %5187 = vmatpush1.bf16.msra.mxu0 0
      %5188 = vmatprep.subr.bf16.mxu0 0
      %5189 = vmatpush1.bf16.msra.mxu0 0
      %5190 = vmatprep.subr.bf16.mxu0 0
      %5191 = vmatpush1.bf16.msra.mxu0 0
      %5192 = vmatprep.subr.bf16.mxu0 0
      %5193 = vmatpush1.bf16.msra.mxu0 0
      %5194 = vmatprep.subr.bf16.mxu0 0
      %5195 = vmatpush1.bf16.msra.mxu0 0
      %5196 = vmatprep.subr.bf16.mxu0 0
      %5197 = vmatpush1.bf16.msra.mxu0 0
      %5198 = vmatprep.subr.bf16.mxu0 0
      %5199 = vmatpush1.bf16.msra.mxu0 0
      %5200 = vmatprep.subr.bf16.mxu0 0
      %5201 = vmatpush1.bf16.msra.mxu0 0
      %5202 = vmatprep.subr.bf16.mxu0 0
      %5203 = vmatpush1.bf16.msra.mxu0 0
      %5204 = vmatprep.subr.bf16.mxu0 0
      %5205 = vmatpush1.bf16.msra.mxu0 0
      %5206 = vmatprep.subr.bf16.mxu0 0
      %5207 = vmatpush1.bf16.msra.mxu0 0
      %5208 = vmatprep.subr.bf16.mxu0 0
      %5209 = vmatpush1.bf16.msra.mxu0 0
      %5210 = vmatprep.subr.bf16.mxu0 0
      %5211 = vmatpush1.bf16.msra.mxu0 0
      %5212 = vmatprep.mubr.bf16.mxu0 0
      %5213 = vmatmul.mubr.bf16.gmra.mrb[0].mxu0 %v5178
      %v5214 = vpop.f32.mrb[0].mxu0
      %v5215 = vadd.f32 0.0, %v5214
      %v5216 = vpop.f32.mrb[0].mxu0
      %v5217 = vpop.f32.mrb[0].mxu0
      %v5218 = vadd.f32 0.0, %v5217
      %v5219 = vpop.f32.mrb[0].mxu0
      %5220 = vdwg.mxu0
      %v5222 = vsel %vm3428, %v4157, 0
      %5224 = vmatprep.subr.bf16.mxu0 0
      %5225 = vmatpush1.bf16.msra.mxu0 %v936
      %5226 = vmatprep.subr.bf16.mxu0 0
      %5227 = vmatpush1.bf16.msra.mxu0 0
      %5228 = vmatprep.subr.bf16.mxu0 0
      %5229 = vmatpush1.bf16.msra.mxu0 0
      %5230 = vmatprep.subr.bf16.mxu0 0
      %5231 = vmatpush1.bf16.msra.mxu0 0
      %5232 = vmatprep.subr.bf16.mxu0 0
      %5233 = vmatpush1.bf16.msra.mxu0 0
      %5234 = vmatprep.subr.bf16.mxu0 0
      %5235 = vmatpush1.bf16.msra.mxu0 0
      %5236 = vmatprep.subr.bf16.mxu0 0
      %5237 = vmatpush1.bf16.msra.mxu0 0
      %5238 = vmatprep.subr.bf16.mxu0 0
      %5239 = vmatpush1.bf16.msra.mxu0 0
      %5240 = vmatprep.subr.bf16.mxu0 0
      %5241 = vmatpush1.bf16.msra.mxu0 0
      %5242 = vmatprep.subr.bf16.mxu0 0
      %5243 = vmatpush1.bf16.msra.mxu0 0
      %5244 = vmatprep.subr.bf16.mxu0 0
      %5245 = vmatpush1.bf16.msra.mxu0 0
      %5246 = vmatprep.subr.bf16.mxu0 0
      %5247 = vmatpush1.bf16.msra.mxu0 0
      %5248 = vmatprep.subr.bf16.mxu0 0
      %5249 = vmatpush1.bf16.msra.mxu0 0
      %5250 = vmatprep.subr.bf16.mxu0 0
      %5251 = vmatpush1.bf16.msra.mxu0 0
      %5252 = vmatprep.subr.bf16.mxu0 0
      %5253 = vmatpush1.bf16.msra.mxu0 0
      %5254 = vmatprep.subr.bf16.mxu0 0
      %5255 = vmatpush1.bf16.msra.mxu0 0
      %5256 = vmatprep.mubr.bf16.mxu0 0
      %5257 = vmatmul.mubr.bf16.gmra.mrb[0].mxu0 %v5222
      %v5258 = vpop.f32.mrb[0].mxu0
      %v5259 = vadd.f32 0.0, %v5258
      %v5260 = vpop.f32.mrb[0].mxu0
      %v5261 = vpop.f32.mrb[0].mxu0
      %v5262 = vadd.f32 0.0, %v5261
      %v5263 = vpop.f32.mrb[0].mxu0
      %5264 = vdwg.mxu0
      %v5266 = vsel %vm3428, %v4158, 0
      %5268 = vmatprep.subr.bf16.mxu0 0
      %5269 = vmatpush1.bf16.msra.mxu0 %v937
      %5270 = vmatprep.subr.bf16.mxu0 0
      %5271 = vmatpush1.bf16.msra.mxu0 0
      %5272 = vmatprep.subr.bf16.mxu0 0
      %5273 = vmatpush1.bf16.msra.mxu0 0
      %5274 = vmatprep.subr.bf16.mxu0 0
      %5275 = vmatpush1.bf16.msra.mxu0 0
      %5276 = vmatprep.subr.bf16.mxu0 0
      %5277 = vmatpush1.bf16.msra.mxu0 0
      %5278 = vmatprep.subr.bf16.mxu0 0
      %5279 = vmatpush1.bf16.msra.mxu0 0
      %5280 = vmatprep.subr.bf16.mxu0 0
      %5281 = vmatpush1.bf16.msra.mxu0 0
      %5282 = vmatprep.subr.bf16.mxu0 0
      %5283 = vmatpush1.bf16.msra.mxu0 0
      %5284 = vmatprep.subr.bf16.mxu0 0
      %5285 = vmatpush1.bf16.msra.mxu0 0
      %5286 = vmatprep.subr.bf16.mxu0 0
      %5287 = vmatpush1.bf16.msra.mxu0 0
      %5288 = vmatprep.subr.bf16.mxu0 0
      %5289 = vmatpush1.bf16.msra.mxu0 0
      %5290 = vmatprep.subr.bf16.mxu0 0
      %5291 = vmatpush1.bf16.msra.mxu0 0
      %5292 = vmatprep.subr.bf16.mxu0 0
      %5293 = vmatpush1.bf16.msra.mxu0 0
      %5294 = vmatprep.subr.bf16.mxu0 0
      %5295 = vmatpush1.bf16.msra.mxu0 0
      %5296 = vmatprep.subr.bf16.mxu0 0
      %5297 = vmatpush1.bf16.msra.mxu0 0
      %5298 = vmatprep.subr.bf16.mxu0 0
      %5299 = vmatpush1.bf16.msra.mxu0 0
      %5300 = vmatprep.mubr.bf16.mxu0 0
      %5301 = vmatmul.mubr.bf16.gmra.mrb[0].mxu0 %v5266
      %v5302 = vpop.f32.mrb[0].mxu0
      %v5303 = vadd.f32 0.0, %v5302
      %v5304 = vpop.f32.mrb[0].mxu0
      %v5305 = vpop.f32.mrb[0].mxu0
      %v5306 = vadd.f32 0.0, %v5305
      %v5307 = vpop.f32.mrb[0].mxu0
      %5308 = vdwg.mxu0
      %v5310 = vsel %vm3428, %v4159, 0
      %5312 = vmatprep.subr.bf16.mxu0 0
      %5313 = vmatpush1.bf16.msra.mxu0 %v938
      %5314 = vmatprep.subr.bf16.mxu0 0
      %5315 = vmatpush1.bf16.msra.mxu0 0
      %5316 = vmatprep.subr.bf16.mxu0 0
      %5317 = vmatpush1.bf16.msra.mxu0 0
      %5318 = vmatprep.subr.bf16.mxu0 0
      %5319 = vmatpush1.bf16.msra.mxu0 0
      %5320 = vmatprep.subr.bf16.mxu0 0
      %5321 = vmatpush1.bf16.msra.mxu0 0
      %5322 = vmatprep.subr.bf16.mxu0 0
      %5323 = vmatpush1.bf16.msra.mxu0 0
      %5324 = vmatprep.subr.bf16.mxu0 0
      %5325 = vmatpush1.bf16.msra.mxu0 0
      %5326 = vmatprep.subr.bf16.mxu0 0
      %5327 = vmatpush1.bf16.msra.mxu0 0
      %5328 = vmatprep.subr.bf16.mxu0 0
      %5329 = vmatpush1.bf16.msra.mxu0 0
      %5330 = vmatprep.subr.bf16.mxu0 0
      %5331 = vmatpush1.bf16.msra.mxu0 0
      %5332 = vmatprep.subr.bf16.mxu0 0
      %5333 = vmatpush1.bf16.msra.mxu0 0
      %5334 = vmatprep.subr.bf16.mxu0 0
      %5335 = vmatpush1.bf16.msra.mxu0 0
      %5336 = vmatprep.subr.bf16.mxu0 0
      %5337 = vmatpush1.bf16.msra.mxu0 0
      %5338 = vmatprep.subr.bf16.mxu0 0
      %5339 = vmatpush1.bf16.msra.mxu0 0
      %5340 = vmatprep.subr.bf16.mxu0 0
      %5341 = vmatpush1.bf16.msra.mxu0 0
      %5342 = vmatprep.subr.bf16.mxu0 0
      %5343 = vmatpush1.bf16.msra.mxu0 0
      %5344 = vmatprep.mubr.bf16.mxu0 0
      %5345 = vmatmul.mubr.bf16.gmra.mrb[0].mxu0 %v5310
      %v5346 = vpop.f32.mrb[0].mxu0
      %v5347 = vadd.f32 0.0, %v5346
      %v5348 = vpop.f32.mrb[0].mxu0
      %v5349 = vpop.f32.mrb[0].mxu0
      %v5350 = vadd.f32 0.0, %v5349
      %v5351 = vpop.f32.mrb[0].mxu0
      %5352 = vdwg.mxu0
      %v5354 = vsel %vm3428, %v4160, 0
      %5356 = vmatprep.subr.bf16.mxu0 0
      %5357 = vmatpush1.bf16.msra.mxu0 %v939
      %5358 = vmatprep.subr.bf16.mxu0 0
      %5359 = vmatpush1.bf16.msra.mxu0 0
      %5360 = vmatprep.subr.bf16.mxu0 0
      %5361 = vmatpush1.bf16.msra.mxu0 0
      %5362 = vmatprep.subr.bf16.mxu0 0
      %5363 = vmatpush1.bf16.msra.mxu0 0
      %5364 = vmatprep.subr.bf16.mxu0 0
      %5365 = vmatpush1.bf16.msra.mxu0 0
      %5366 = vmatprep.subr.bf16.mxu0 0
      %5367 = vmatpush1.bf16.msra.mxu0 0
      %5368 = vmatprep.subr.bf16.mxu0 0
      %5369 = vmatpush1.bf16.msra.mxu0 0
      %5370 = vmatprep.subr.bf16.mxu0 0
      %5371 = vmatpush1.bf16.msra.mxu0 0
      %5372 = vmatprep.subr.bf16.mxu0 0
      %5373 = vmatpush1.bf16.msra.mxu0 0
      %5374 = vmatprep.subr.bf16.mxu0 0
      %5375 = vmatpush1.bf16.msra.mxu0 0
      %5376 = vmatprep.subr.bf16.mxu0 0
      %5377 = vmatpush1.bf16.msra.mxu0 0
      %5378 = vmatprep.subr.bf16.mxu0 0
      %5379 = vmatpush1.bf16.msra.mxu0 0
      %5380 = vmatprep.subr.bf16.mxu0 0
      %5381 = vmatpush1.bf16.msra.mxu0 0
      %5382 = vmatprep.subr.bf16.mxu0 0
      %5383 = vmatpush1.bf16.msra.mxu0 0
      %5384 = vmatprep.subr.bf16.mxu0 0
      %5385 = vmatpush1.bf16.msra.mxu0 0
      %5386 = vmatprep.subr.bf16.mxu0 0
      %5387 = vmatpush1.bf16.msra.mxu0 0
      %5388 = vmatprep.mubr.bf16.mxu0 0
      %5389 = vmatmul.mubr.bf16.gmra.mrb[0].mxu0 %v5354
      %v5390 = vpop.f32.mrb[0].mxu0
      %v5391 = vadd.f32 0.0, %v5390
      %v5392 = vpop.f32.mrb[0].mxu0
      %v5393 = vpop.f32.mrb[0].mxu0
      %v5394 = vadd.f32 0.0, %v5393
      %v5395 = vpop.f32.mrb[0].mxu0
      %5396 = vdwg.mxu0
      %v5398 = vsel %vm3428, %v4161, 0
      %5400 = vmatprep.subr.bf16.mxu0 0
      %5401 = vmatpush1.bf16.msra.mxu0 %v940
      %5402 = vmatprep.subr.bf16.mxu0 0
      %5403 = vmatpush1.bf16.msra.mxu0 0
      %5404 = vmatprep.subr.bf16.mxu0 0
      %5405 = vmatpush1.bf16.msra.mxu0 0
      %5406 = vmatprep.subr.bf16.mxu0 0
      %5407 = vmatpush1.bf16.msra.mxu0 0
      %5408 = vmatprep.subr.bf16.mxu0 0
      %5409 = vmatpush1.bf16.msra.mxu0 0
      %5410 = vmatprep.subr.bf16.mxu0 0
      %5411 = vmatpush1.bf16.msra.mxu0 0
      %5412 = vmatprep.subr.bf16.mxu0 0
      %5413 = vmatpush1.bf16.msra.mxu0 0
      %5414 = vmatprep.subr.bf16.mxu0 0
      %5415 = vmatpush1.bf16.msra.mxu0 0
      %5416 = vmatprep.subr.bf16.mxu0 0
      %5417 = vmatpush1.bf16.msra.mxu0 0
      %5418 = vmatprep.subr.bf16.mxu0 0
      %5419 = vmatpush1.bf16.msra.mxu0 0
      %5420 = vmatprep.subr.bf16.mxu0 0
      %5421 = vmatpush1.bf16.msra.mxu0 0
      %5422 = vmatprep.subr.bf16.mxu0 0
      %5423 = vmatpush1.bf16.msra.mxu0 0
      %5424 = vmatprep.subr.bf16.mxu0 0
      %5425 = vmatpush1.bf16.msra.mxu0 0
      %5426 = vmatprep.subr.bf16.mxu0 0
      %5427 = vmatpush1.bf16.msra.mxu0 0
      %5428 = vmatprep.subr.bf16.mxu0 0
      %5429 = vmatpush1.bf16.msra.mxu0 0
      %5430 = vmatprep.subr.bf16.mxu0 0
      %5431 = vmatpush1.bf16.msra.mxu0 0
      %5432 = vmatprep.mubr.bf16.mxu0 0
      %5433 = vmatmul.mubr.bf16.gmra.mrb[0].mxu0 %v5398
      %v5434 = vpop.f32.mrb[0].mxu0
      %v5435 = vadd.f32 0.0, %v5434
      %v5436 = vpop.f32.mrb[0].mxu0
      %v5437 = vpop.f32.mrb[0].mxu0
      %v5438 = vadd.f32 0.0, %v5437
      %v5439 = vpop.f32.mrb[0].mxu0
      %5440 = vdwg.mxu0
      %v5442 = vsel %vm3428, %v4162, 0
      %5444 = vmatprep.subr.bf16.mxu0 0
      %5445 = vmatpush1.bf16.msra.mxu0 %v941
      %5446 = vmatprep.subr.bf16.mxu0 0
      %5447 = vmatpush1.bf16.msra.mxu0 0
      %5448 = vmatprep.subr.bf16.mxu0 0
      %5449 = vmatpush1.bf16.msra.mxu0 0
      %5450 = vmatprep.subr.bf16.mxu0 0
      %5451 = vmatpush1.bf16.msra.mxu0 0
      %5452 = vmatprep.subr.bf16.mxu0 0
      %5453 = vmatpush1.bf16.msra.mxu0 0
      %5454 = vmatprep.subr.bf16.mxu0 0
      %5455 = vmatpush1.bf16.msra.mxu0 0
      %5456 = vmatprep.subr.bf16.mxu0 0
      %5457 = vmatpush1.bf16.msra.mxu0 0
      %5458 = vmatprep.subr.bf16.mxu0 0
      %5459 = vmatpush1.bf16.msra.mxu0 0
      %5460 = vmatprep.subr.bf16.mxu0 0
      %5461 = vmatpush1.bf16.msra.mxu0 0
      %5462 = vmatprep.subr.bf16.mxu0 0
      %5463 = vmatpush1.bf16.msra.mxu0 0
      %5464 = vmatprep.subr.bf16.mxu0 0
      %5465 = vmatpush1.bf16.msra.mxu0 0
      %5466 = vmatprep.subr.bf16.mxu0 0
      %5467 = vmatpush1.bf16.msra.mxu0 0
      %5468 = vmatprep.subr.bf16.mxu0 0
      %5469 = vmatpush1.bf16.msra.mxu0 0
      %5470 = vmatprep.subr.bf16.mxu0 0
      %5471 = vmatpush1.bf16.msra.mxu0 0
      %5472 = vmatprep.subr.bf16.mxu0 0
      %5473 = vmatpush1.bf16.msra.mxu0 0
      %5474 = vmatprep.subr.bf16.mxu0 0
      %5475 = vmatpush1.bf16.msra.mxu0 0
      %5476 = vmatprep.mubr.bf16.mxu0 0
      %5477 = vmatmul.mubr.bf16.gmra.mrb[0].mxu0 %v5442
      %v5478 = vpop.f32.mrb[0].mxu0
      %v5479 = vadd.f32 0.0, %v5478
      %v5480 = vpop.f32.mrb[0].mxu0
      %v5481 = vpop.f32.mrb[0].mxu0
      %v5482 = vadd.f32 0.0, %v5481
      %v5483 = vpop.f32.mrb[0].mxu0
      %5484 = vdwg.mxu0
      %v5486 = vsel %vm3428, %v4163, 0
      %5488 = vmatprep.subr.bf16.mxu0 0
      %5489 = vmatpush1.bf16.msra.mxu0 %v942
      %5490 = vmatprep.subr.bf16.mxu0 0
      %5491 = vmatpush1.bf16.msra.mxu0 0
      %5492 = vmatprep.subr.bf16.mxu0 0
      %5493 = vmatpush1.bf16.msra.mxu0 0
      %5494 = vmatprep.subr.bf16.mxu0 0
      %5495 = vmatpush1.bf16.msra.mxu0 0
      %5496 = vmatprep.subr.bf16.mxu0 0
      %5497 = vmatpush1.bf16.msra.mxu0 0
      %5498 = vmatprep.subr.bf16.mxu0 0
      %5499 = vmatpush1.bf16.msra.mxu0 0
      %5500 = vmatprep.subr.bf16.mxu0 0
      %5501 = vmatpush1.bf16.msra.mxu0 0
      %5502 = vmatprep.subr.bf16.mxu0 0
      %5503 = vmatpush1.bf16.msra.mxu0 0
      %5504 = vmatprep.subr.bf16.mxu0 0
      %5505 = vmatpush1.bf16.msra.mxu0 0
      %5506 = vmatprep.subr.bf16.mxu0 0
      %5507 = vmatpush1.bf16.msra.mxu0 0
      %5508 = vmatprep.subr.bf16.mxu0 0
      %5509 = vmatpush1.bf16.msra.mxu0 0
      %5510 = vmatprep.subr.bf16.mxu0 0
      %5511 = vmatpush1.bf16.msra.mxu0 0
      %5512 = vmatprep.subr.bf16.mxu0 0
      %5513 = vmatpush1.bf16.msra.mxu0 0
      %5514 = vmatprep.subr.bf16.mxu0 0
      %5515 = vmatpush1.bf16.msra.mxu0 0
      %5516 = vmatprep.subr.bf16.mxu0 0
      %5517 = vmatpush1.bf16.msra.mxu0 0
      %5518 = vmatprep.subr.bf16.mxu0 0
      %5519 = vmatpush1.bf16.msra.mxu0 0
      %5520 = vmatprep.mubr.bf16.mxu0 0
      %5521 = vmatmul.mubr.bf16.gmra.mrb[0].mxu0 %v5486
      %v5522 = vpop.f32.mrb[0].mxu0
      %v5523 = vadd.f32 0.0, %v5522
      %v5524 = vpop.f32.mrb[0].mxu0
      %v5525 = vpop.f32.mrb[0].mxu0
      %v5526 = vadd.f32 0.0, %v5525
      %v5527 = vpop.f32.mrb[0].mxu0
      %5528 = vdwg.mxu0
      %v5530 = vsel %vm3428, %v4164, 0
      %5532 = vmatprep.subr.bf16.mxu0 0
      %5533 = vmatpush1.bf16.msra.mxu0 %v943
      %5534 = vmatprep.subr.bf16.mxu0 0
      %5535 = vmatpush1.bf16.msra.mxu0 0
      %5536 = vmatprep.subr.bf16.mxu0 0
      %5537 = vmatpush1.bf16.msra.mxu0 0
      %5538 = vmatprep.subr.bf16.mxu0 0
      %5539 = vmatpush1.bf16.msra.mxu0 0
      %5540 = vmatprep.subr.bf16.mxu0 0
      %5541 = vmatpush1.bf16.msra.mxu0 0
      %5542 = vmatprep.subr.bf16.mxu0 0
      %5543 = vmatpush1.bf16.msra.mxu0 0
      %5544 = vmatprep.subr.bf16.mxu0 0
      %5545 = vmatpush1.bf16.msra.mxu0 0
      %5546 = vmatprep.subr.bf16.mxu0 0
      %5547 = vmatpush1.bf16.msra.mxu0 0
      %5548 = vmatprep.subr.bf16.mxu0 0
      %5549 = vmatpush1.bf16.msra.mxu0 0
      %5550 = vmatprep.subr.bf16.mxu0 0
      %5551 = vmatpush1.bf16.msra.mxu0 0
      %5552 = vmatprep.subr.bf16.mxu0 0
      %5553 = vmatpush1.bf16.msra.mxu0 0
      %5554 = vmatprep.subr.bf16.mxu0 0
      %5555 = vmatpush1.bf16.msra.mxu0 0
      %5556 = vmatprep.subr.bf16.mxu0 0
      %5557 = vmatpush1.bf16.msra.mxu0 0
      %5558 = vmatprep.subr.bf16.mxu0 0
      %5559 = vmatpush1.bf16.msra.mxu0 0
      %5560 = vmatprep.subr.bf16.mxu0 0
      %5561 = vmatpush1.bf16.msra.mxu0 0
      %5562 = vmatprep.subr.bf16.mxu0 0
      %5563 = vmatpush1.bf16.msra.mxu0 0
      %5564 = vmatprep.mubr.bf16.mxu0 0
      %5565 = vmatmul.mubr.bf16.gmra.mrb[0].mxu0 %v5530
      %v5566 = vpop.f32.mrb[0].mxu0
      %v5567 = vadd.f32 0.0, %v5566
      %v5568 = vpop.f32.mrb[0].mxu0
      %v5569 = vpop.f32.mrb[0].mxu0
      %v5570 = vadd.f32 0.0, %v5569
      %v5571 = vpop.f32.mrb[0].mxu0
      %5572 = vdwg.mxu0
      %v5573 = vpack.c.bf16 %v4206, %v4203
      %v5574 = vpack.c.bf16 %v4250, %v4247
      %v5575 = vpack.c.bf16 %v4294, %v4291
      %v5576 = vpack.c.bf16 %v4338, %v4335
      %v5577 = vpack.c.bf16 %v4382, %v4379
      %v5578 = vpack.c.bf16 %v4426, %v4423
      %v5579 = vpack.c.bf16 %v4470, %v4467
      %v5580 = vpack.c.bf16 %v4514, %v4511
      %v5581 = vpack.c.bf16 %v4558, %v4555
      %v5582 = vpack.c.bf16 %v4602, %v4599
      %v5583 = vpack.c.bf16 %v4646, %v4643
      %v5584 = vpack.c.bf16 %v4690, %v4687
      %v5585 = vpack.c.bf16 %v4734, %v4731
      %v5586 = vpack.c.bf16 %v4778, %v4775
      %v5587 = vpack.c.bf16 %v4822, %v4819
      %v5588 = vpack.c.bf16 %v4866, %v4863
      %v5589 = vpack.c.bf16 %v4910, %v4907
      %v5590 = vpack.c.bf16 %v4954, %v4951
      %v5591 = vpack.c.bf16 %v4998, %v4995
      %v5592 = vpack.c.bf16 %v5042, %v5039
      %v5593 = vpack.c.bf16 %v5086, %v5083
      %v5594 = vpack.c.bf16 %v5130, %v5127
      %v5595 = vpack.c.bf16 %v5174, %v5171
      %v5596 = vpack.c.bf16 %v5218, %v5215
      %v5597 = vpack.c.bf16 %v5262, %v5259
      %v5598 = vpack.c.bf16 %v5306, %v5303
      %v5599 = vpack.c.bf16 %v5350, %v5347
      %v5600 = vpack.c.bf16 %v5394, %v5391
      %v5601 = vpack.c.bf16 %v5438, %v5435
      %v5602 = vpack.c.bf16 %v5482, %v5479
      %v5603 = vpack.c.bf16 %v5526, %v5523
      %v5604 = vpack.c.bf16 %v5570, %v5567
      %v5609 = vunpack.c.l.b16 %v264
      %v5610 = vunpack.c.l.b16 %v265
      %v5611 = vunpack.c.l.b16 %v266
      %v5612 = vunpack.c.l.b16 %v267
      %v5613 = vpack.c.b16 %v5610, %v5609
      %v5614 = vpack.c.b16 %v5612, %v5611
      %v5618 = vsel %vm526, %v5573, 0
      %v5621 = vsel %vm526, %v5574, 0
      %v5624 = vsel %vm526, %v5575, 0
      %v5627 = vsel %vm526, %v5576, 0
      %v5630 = vsel %vm526, %v5577, 0
      %v5633 = vsel %vm526, %v5578, 0
      %v5636 = vsel %vm526, %v5579, 0
      %v5639 = vsel %vm526, %v5580, 0
      %v5642 = vsel %vm526, %v5581, 0
      %v5645 = vsel %vm526, %v5582, 0
      %v5648 = vsel %vm526, %v5583, 0
      %v5651 = vsel %vm526, %v5584, 0
      %v5654 = vsel %vm526, %v5585, 0
      %v5657 = vsel %vm526, %v5586, 0
      %v5660 = vsel %vm526, %v5587, 0
      %v5663 = vsel %vm526, %v5588, 0
      %v5666 = vsel %vm526, %v5589, 0
      %v5669 = vsel %vm526, %v5590, 0
      %v5672 = vsel %vm526, %v5591, 0
      %v5675 = vsel %vm526, %v5592, 0
      %v5678 = vsel %vm526, %v5593, 0
      %v5681 = vsel %vm526, %v5594, 0
      %v5684 = vsel %vm526, %v5595, 0
      %v5687 = vsel %vm526, %v5596, 0
      %v5690 = vsel %vm526, %v5597, 0
      %v5693 = vsel %vm526, %v5598, 0
      %v5696 = vsel %vm526, %v5599, 0
      %v5699 = vsel %vm526, %v5600, 0
      %v5702 = vsel %vm526, %v5601, 0
      %v5705 = vsel %vm526, %v5602, 0
      %v5708 = vsel %vm526, %v5603, 0
      %v5711 = vsel %vm526, %v5604, 0
      %5713 = vmatprep.subr.bf16.mxu0 0
      %5714 = vmatpush1.bf16.msra.mxu0 %v5613
      %5715 = vmatprep.subr.bf16.mxu0 0
      %5716 = vmatpush1.bf16.msra.mxu0 %v5614
      %5717 = vmatprep.subr.bf16.mxu0 0
      %5718 = vmatpush1.bf16.msra.mxu0 0
      %5719 = vmatprep.subr.bf16.mxu0 0
      %5720 = vmatpush1.bf16.msra.mxu0 0
      %5721 = vmatprep.subr.bf16.mxu0 0
      %5722 = vmatpush1.bf16.msra.mxu0 0
      %5723 = vmatprep.subr.bf16.mxu0 0
      %5724 = vmatpush1.bf16.msra.mxu0 0
      %5725 = vmatprep.subr.bf16.mxu0 0
      %5726 = vmatpush1.bf16.msra.mxu0 0
      %5727 = vmatprep.subr.bf16.mxu0 0
      %5728 = vmatpush1.bf16.msra.mxu0 0
      %5729 = vmatprep.subr.bf16.mxu0 0
      %5730 = vmatpush1.bf16.msra.mxu0 0
      %5731 = vmatprep.subr.bf16.mxu0 0
      %5732 = vmatpush1.bf16.msra.mxu0 0
      %5733 = vmatprep.subr.bf16.mxu0 0
      %5734 = vmatpush1.bf16.msra.mxu0 0
      %5735 = vmatprep.subr.bf16.mxu0 0
      %5736 = vmatpush1.bf16.msra.mxu0 0
      %5737 = vmatprep.subr.bf16.mxu0 0
      %5738 = vmatpush1.bf16.msra.mxu0 0
      %5739 = vmatprep.subr.bf16.mxu0 0
      %5740 = vmatpush1.bf16.msra.mxu0 0
      %5741 = vmatprep.subr.bf16.mxu0 0
      %5742 = vmatpush1.bf16.msra.mxu0 0
      %5743 = vmatprep.subr.bf16.mxu0 0
      %5744 = vmatpush1.bf16.msra.mxu0 0
      %5745 = vmatprep.mubr.bf16.mxu0 0
      %5746 = vmatmul.mubr.bf16.gmra.mrb[0].mxu0 %v5618
      %v5747 = vpop.f32.mrb[0].mxu0
      %v5748 = vadd.f32 0.0, %v5747
      %v5749 = vpop.f32.mrb[0].mxu0
      %v5750 = vpop.f32.mrb[0].mxu0
      %v5751 = vadd.f32 0.0, %v5750
      %v5752 = vpop.f32.mrb[0].mxu0
      %5753 = vmatprep.mubr.bf16.mxu0 0
      %5754 = vmatmul.mubr.bf16.gmra.mrb[0].mxu0 %v5621
      %v5755 = vpop.f32.mrb[0].mxu0
      %v5756 = vadd.f32 0.0, %v5755
      %v5757 = vpop.f32.mrb[0].mxu0
      %v5758 = vpop.f32.mrb[0].mxu0
      %v5759 = vadd.f32 0.0, %v5758
      %v5760 = vpop.f32.mrb[0].mxu0
      %5761 = vmatprep.mubr.bf16.mxu0 0
      %5762 = vmatmul.mubr.bf16.gmra.mrb[0].mxu0 %v5624
      %v5763 = vpop.f32.mrb[0].mxu0
      %v5764 = vadd.f32 0.0, %v5763
      %v5765 = vpop.f32.mrb[0].mxu0
      %v5766 = vpop.f32.mrb[0].mxu0
      %v5767 = vadd.f32 0.0, %v5766
      %v5768 = vpop.f32.mrb[0].mxu0
      %5769 = vmatprep.mubr.bf16.mxu0 0
      %5770 = vmatmul.mubr.bf16.gmra.mrb[0].mxu0 %v5627
      %v5771 = vpop.f32.mrb[0].mxu0
      %v5772 = vadd.f32 0.0, %v5771
      %v5773 = vpop.f32.mrb[0].mxu0
      %v5774 = vpop.f32.mrb[0].mxu0
      %v5775 = vadd.f32 0.0, %v5774
      %v5776 = vpop.f32.mrb[0].mxu0
      %5777 = vmatprep.mubr.bf16.mxu0 0
      %5778 = vmatmul.mubr.bf16.gmra.mrb[0].mxu0 %v5630
      %v5779 = vpop.f32.mrb[0].mxu0
      %v5780 = vadd.f32 0.0, %v5779
      %v5781 = vpop.f32.mrb[0].mxu0
      %v5782 = vpop.f32.mrb[0].mxu0
      %v5783 = vadd.f32 0.0, %v5782
      %v5784 = vpop.f32.mrb[0].mxu0
      %5785 = vmatprep.mubr.bf16.mxu0 0
      %5786 = vmatmul.mubr.bf16.gmra.mrb[0].mxu0 %v5633
      %v5787 = vpop.f32.mrb[0].mxu0
      %v5788 = vadd.f32 0.0, %v5787
      %v5789 = vpop.f32.mrb[0].mxu0
      %v5790 = vpop.f32.mrb[0].mxu0
      %v5791 = vadd.f32 0.0, %v5790
      %v5792 = vpop.f32.mrb[0].mxu0
      %5793 = vmatprep.mubr.bf16.mxu0 0
      %5794 = vmatmul.mubr.bf16.gmra.mrb[0].mxu0 %v5636
      %v5795 = vpop.f32.mrb[0].mxu0
      %v5796 = vadd.f32 0.0, %v5795
      %v5797 = vpop.f32.mrb[0].mxu0
      %v5798 = vpop.f32.mrb[0].mxu0
      %v5799 = vadd.f32 0.0, %v5798
      %v5800 = vpop.f32.mrb[0].mxu0
      %5801 = vmatprep.mubr.bf16.mxu0 0
      %5802 = vmatmul.mubr.bf16.gmra.mrb[0].mxu0 %v5639
      %v5803 = vpop.f32.mrb[0].mxu0
      %v5804 = vadd.f32 0.0, %v5803
      %v5805 = vpop.f32.mrb[0].mxu0
      %v5806 = vpop.f32.mrb[0].mxu0
      %v5807 = vadd.f32 0.0, %v5806
      %v5808 = vpop.f32.mrb[0].mxu0
      %5809 = vmatprep.mubr.bf16.mxu0 0
      %5810 = vmatmul.mubr.bf16.gmra.mrb[0].mxu0 %v5642
      %v5811 = vpop.f32.mrb[0].mxu0
      %v5812 = vadd.f32 0.0, %v5811
      %v5813 = vpop.f32.mrb[0].mxu0
      %v5814 = vpop.f32.mrb[0].mxu0
      %v5815 = vadd.f32 0.0, %v5814
      %v5816 = vpop.f32.mrb[0].mxu0
      %5817 = vmatprep.mubr.bf16.mxu0 0
      %5818 = vmatmul.mubr.bf16.gmra.mrb[0].mxu0 %v5645
      %v5819 = vpop.f32.mrb[0].mxu0
      %v5820 = vadd.f32 0.0, %v5819
      %v5821 = vpop.f32.mrb[0].mxu0
      %v5822 = vpop.f32.mrb[0].mxu0
      %v5823 = vadd.f32 0.0, %v5822
      %v5824 = vpop.f32.mrb[0].mxu0
      %5825 = vmatprep.mubr.bf16.mxu0 0
      %5826 = vmatmul.mubr.bf16.gmra.mrb[0].mxu0 %v5648
      %v5827 = vpop.f32.mrb[0].mxu0
      %v5828 = vadd.f32 0.0, %v5827
      %v5829 = vpop.f32.mrb[0].mxu0
      %v5830 = vpop.f32.mrb[0].mxu0
      %v5831 = vadd.f32 0.0, %v5830
      %v5832 = vpop.f32.mrb[0].mxu0
      %5833 = vmatprep.mubr.bf16.mxu0 0
      %5834 = vmatmul.mubr.bf16.gmra.mrb[0].mxu0 %v5651
      %v5835 = vpop.f32.mrb[0].mxu0
      %v5836 = vadd.f32 0.0, %v5835
      %v5837 = vpop.f32.mrb[0].mxu0
      %v5838 = vpop.f32.mrb[0].mxu0
      %v5839 = vadd.f32 0.0, %v5838
      %v5840 = vpop.f32.mrb[0].mxu0
      %5841 = vmatprep.mubr.bf16.mxu0 0
      %5842 = vmatmul.mubr.bf16.gmra.mrb[0].mxu0 %v5654
      %v5843 = vpop.f32.mrb[0].mxu0
      %v5844 = vadd.f32 0.0, %v5843
      %v5845 = vpop.f32.mrb[0].mxu0
      %v5846 = vpop.f32.mrb[0].mxu0
      %v5847 = vadd.f32 0.0, %v5846
      %v5848 = vpop.f32.mrb[0].mxu0
      %5849 = vmatprep.mubr.bf16.mxu0 0
      %5850 = vmatmul.mubr.bf16.gmra.mrb[0].mxu0 %v5657
      %v5851 = vpop.f32.mrb[0].mxu0
      %v5852 = vadd.f32 0.0, %v5851
      %v5853 = vpop.f32.mrb[0].mxu0
      %v5854 = vpop.f32.mrb[0].mxu0
      %v5855 = vadd.f32 0.0, %v5854
      %v5856 = vpop.f32.mrb[0].mxu0
      %5857 = vmatprep.mubr.bf16.mxu0 0
      %5858 = vmatmul.mubr.bf16.gmra.mrb[0].mxu0 %v5660
      %v5859 = vpop.f32.mrb[0].mxu0
      %v5860 = vadd.f32 0.0, %v5859
      %v5861 = vpop.f32.mrb[0].mxu0
      %v5862 = vpop.f32.mrb[0].mxu0
      %v5863 = vadd.f32 0.0, %v5862
      %v5864 = vpop.f32.mrb[0].mxu0
      %5865 = vmatprep.mubr.bf16.mxu0 0
      %5866 = vmatmul.mubr.bf16.gmra.mrb[0].mxu0 %v5663
      %v5867 = vpop.f32.mrb[0].mxu0
      %v5868 = vadd.f32 0.0, %v5867
      %v5869 = vpop.f32.mrb[0].mxu0
      %v5870 = vpop.f32.mrb[0].mxu0
      %v5871 = vadd.f32 0.0, %v5870
      %v5872 = vpop.f32.mrb[0].mxu0
      %5873 = vmatprep.mubr.bf16.mxu0 0
      %5874 = vmatmul.mubr.bf16.gmra.mrb[0].mxu0 %v5666
      %v5875 = vpop.f32.mrb[0].mxu0
      %v5876 = vadd.f32 0.0, %v5875
      %v5877 = vpop.f32.mrb[0].mxu0
      %v5878 = vpop.f32.mrb[0].mxu0
      %v5879 = vadd.f32 0.0, %v5878
      %v5880 = vpop.f32.mrb[0].mxu0
      %5881 = vmatprep.mubr.bf16.mxu0 0
      %5882 = vmatmul.mubr.bf16.gmra.mrb[0].mxu0 %v5669
      %v5883 = vpop.f32.mrb[0].mxu0
      %v5884 = vadd.f32 0.0, %v5883
      %v5885 = vpop.f32.mrb[0].mxu0
      %v5886 = vpop.f32.mrb[0].mxu0
      %v5887 = vadd.f32 0.0, %v5886
      %v5888 = vpop.f32.mrb[0].mxu0
      %5889 = vmatprep.mubr.bf16.mxu0 0
      %5890 = vmatmul.mubr.bf16.gmra.mrb[0].mxu0 %v5672
      %v5891 = vpop.f32.mrb[0].mxu0
      %v5892 = vadd.f32 0.0, %v5891
      %v5893 = vpop.f32.mrb[0].mxu0
      %v5894 = vpop.f32.mrb[0].mxu0
      %v5895 = vadd.f32 0.0, %v5894
      %v5896 = vpop.f32.mrb[0].mxu0
      %5897 = vmatprep.mubr.bf16.mxu0 0
      %5898 = vmatmul.mubr.bf16.gmra.mrb[0].mxu0 %v5675
      %v5899 = vpop.f32.mrb[0].mxu0
      %v5900 = vadd.f32 0.0, %v5899
      %v5901 = vpop.f32.mrb[0].mxu0
      %v5902 = vpop.f32.mrb[0].mxu0
      %v5903 = vadd.f32 0.0, %v5902
      %v5904 = vpop.f32.mrb[0].mxu0
      %5905 = vmatprep.mubr.bf16.mxu0 0
      %5906 = vmatmul.mubr.bf16.gmra.mrb[0].mxu0 %v5678
      %v5907 = vpop.f32.mrb[0].mxu0
      %v5908 = vadd.f32 0.0, %v5907
      %v5909 = vpop.f32.mrb[0].mxu0
      %v5910 = vpop.f32.mrb[0].mxu0
      %v5911 = vadd.f32 0.0, %v5910
      %v5912 = vpop.f32.mrb[0].mxu0
      %5913 = vmatprep.mubr.bf16.mxu0 0
      %5914 = vmatmul.mubr.bf16.gmra.mrb[0].mxu0 %v5681
      %v5915 = vpop.f32.mrb[0].mxu0
      %v5916 = vadd.f32 0.0, %v5915
      %v5917 = vpop.f32.mrb[0].mxu0
      %v5918 = vpop.f32.mrb[0].mxu0
      %v5919 = vadd.f32 0.0, %v5918
      %v5920 = vpop.f32.mrb[0].mxu0
      %5921 = vmatprep.mubr.bf16.mxu0 0
      %5922 = vmatmul.mubr.bf16.gmra.mrb[0].mxu0 %v5684
      %v5923 = vpop.f32.mrb[0].mxu0
      %v5924 = vadd.f32 0.0, %v5923
      %v5925 = vpop.f32.mrb[0].mxu0
      %v5926 = vpop.f32.mrb[0].mxu0
      %v5927 = vadd.f32 0.0, %v5926
      %v5928 = vpop.f32.mrb[0].mxu0
      %5929 = vmatprep.mubr.bf16.mxu0 0
      %5930 = vmatmul.mubr.bf16.gmra.mrb[0].mxu0 %v5687
      %v5931 = vpop.f32.mrb[0].mxu0
      %v5932 = vadd.f32 0.0, %v5931
      %v5933 = vpop.f32.mrb[0].mxu0
      %v5934 = vpop.f32.mrb[0].mxu0
      %v5935 = vadd.f32 0.0, %v5934
      %v5936 = vpop.f32.mrb[0].mxu0
      %5937 = vmatprep.mubr.bf16.mxu0 0
      %5938 = vmatmul.mubr.bf16.gmra.mrb[0].mxu0 %v5690
      %v5939 = vpop.f32.mrb[0].mxu0
      %v5940 = vadd.f32 0.0, %v5939
      %v5941 = vpop.f32.mrb[0].mxu0
      %v5942 = vpop.f32.mrb[0].mxu0
      %v5943 = vadd.f32 0.0, %v5942
      %v5944 = vpop.f32.mrb[0].mxu0
      %5945 = vmatprep.mubr.bf16.mxu0 0
      %5946 = vmatmul.mubr.bf16.gmra.mrb[0].mxu0 %v5693
      %v5947 = vpop.f32.mrb[0].mxu0
      %v5948 = vadd.f32 0.0, %v5947
      %v5949 = vpop.f32.mrb[0].mxu0
      %v5950 = vpop.f32.mrb[0].mxu0
      %v5951 = vadd.f32 0.0, %v5950
      %v5952 = vpop.f32.mrb[0].mxu0
      %5953 = vmatprep.mubr.bf16.mxu0 0
      %5954 = vmatmul.mubr.bf16.gmra.mrb[0].mxu0 %v5696
      %v5955 = vpop.f32.mrb[0].mxu0
      %v5956 = vadd.f32 0.0, %v5955
      %v5957 = vpop.f32.mrb[0].mxu0
      %v5958 = vpop.f32.mrb[0].mxu0
      %v5959 = vadd.f32 0.0, %v5958
      %v5960 = vpop.f32.mrb[0].mxu0
      %5961 = vmatprep.mubr.bf16.mxu0 0
      %5962 = vmatmul.mubr.bf16.gmra.mrb[0].mxu0 %v5699
      %v5963 = vpop.f32.mrb[0].mxu0
      %v5964 = vadd.f32 0.0, %v5963
      %v5965 = vpop.f32.mrb[0].mxu0
      %v5966 = vpop.f32.mrb[0].mxu0
      %v5967 = vadd.f32 0.0, %v5966
      %v5968 = vpop.f32.mrb[0].mxu0
      %5969 = vmatprep.mubr.bf16.mxu0 0
      %5970 = vmatmul.mubr.bf16.gmra.mrb[0].mxu0 %v5702
      %v5971 = vpop.f32.mrb[0].mxu0
      %v5972 = vadd.f32 0.0, %v5971
      %v5973 = vpop.f32.mrb[0].mxu0
      %v5974 = vpop.f32.mrb[0].mxu0
      %v5975 = vadd.f32 0.0, %v5974
      %v5976 = vpop.f32.mrb[0].mxu0
      %5977 = vmatprep.mubr.bf16.mxu0 0
      %5978 = vmatmul.mubr.bf16.gmra.mrb[0].mxu0 %v5705
      %v5979 = vpop.f32.mrb[0].mxu0
      %v5980 = vadd.f32 0.0, %v5979
      %v5981 = vpop.f32.mrb[0].mxu0
      %v5982 = vpop.f32.mrb[0].mxu0
      %v5983 = vadd.f32 0.0, %v5982
      %v5984 = vpop.f32.mrb[0].mxu0
      %5985 = vmatprep.mubr.bf16.mxu0 0
      %5986 = vmatmul.mubr.bf16.gmra.mrb[0].mxu0 %v5708
      %v5987 = vpop.f32.mrb[0].mxu0
      %v5988 = vadd.f32 0.0, %v5987
      %v5989 = vpop.f32.mrb[0].mxu0
      %v5990 = vpop.f32.mrb[0].mxu0
      %v5991 = vadd.f32 0.0, %v5990
      %v5992 = vpop.f32.mrb[0].mxu0
      %5993 = vmatprep.mubr.bf16.mxu0 0
      %5994 = vmatmul.mubr.bf16.gmra.mrb[0].mxu0 %v5711
      %v5995 = vpop.f32.mrb[0].mxu0
      %v5996 = vadd.f32 0.0, %v5995
      %v5997 = vpop.f32.mrb[0].mxu0
      %v5998 = vpop.f32.mrb[0].mxu0
      %v5999 = vadd.f32 0.0, %v5998
      %v6000 = vpop.f32.mrb[0].mxu0
      %6001 = vdwg.mxu0
      %6066 = vrot.lane.b32.xlu0 %v5748, 32
      %v6067 = vpop.permute.xlu0 %6066
      %6068 = vrot.lane.b32.xlu0 %v5751, 32
      %v6069 = vpop.permute.xlu0 %6068
      %6070 = vrot.lane.b32.xlu0 %v5756, 32
      %v6071 = vpop.permute.xlu0 %6070
      %6072 = vrot.lane.b32.xlu0 %v5759, 32
      %v6073 = vpop.permute.xlu0 %6072
      %6074 = vrot.lane.b32.xlu0 %v5764, 32
      %v6075 = vpop.permute.xlu0 %6074
      %6076 = vrot.lane.b32.xlu0 %v5767, 32
      %v6077 = vpop.permute.xlu0 %6076
      %6078 = vrot.lane.b32.xlu0 %v5772, 32
      %v6079 = vpop.permute.xlu0 %6078
      %6080 = vrot.lane.b32.xlu0 %v5775, 32
      %v6081 = vpop.permute.xlu0 %6080
      %6082 = vrot.lane.b32.xlu0 %v5780, 32
      %v6083 = vpop.permute.xlu0 %6082
      %6084 = vrot.lane.b32.xlu0 %v5783, 32
      %v6085 = vpop.permute.xlu0 %6084
      %6086 = vrot.lane.b32.xlu0 %v5788, 32
      %v6087 = vpop.permute.xlu0 %6086
      %6088 = vrot.lane.b32.xlu0 %v5791, 32
      %v6089 = vpop.permute.xlu0 %6088
      %6090 = vrot.lane.b32.xlu0 %v5796, 32
      %v6091 = vpop.permute.xlu0 %6090
      %6092 = vrot.lane.b32.xlu0 %v5799, 32
      %v6093 = vpop.permute.xlu0 %6092
      %6094 = vrot.lane.b32.xlu0 %v5804, 32
      %v6095 = vpop.permute.xlu0 %6094
      %6096 = vrot.lane.b32.xlu0 %v5807, 32
      %v6097 = vpop.permute.xlu0 %6096
      %6098 = vrot.lane.b32.xlu0 %v5812, 32
      %v6099 = vpop.permute.xlu0 %6098
      %6100 = vrot.lane.b32.xlu0 %v5815, 32
      %v6101 = vpop.permute.xlu0 %6100
      %6102 = vrot.lane.b32.xlu0 %v5820, 32
      %v6103 = vpop.permute.xlu0 %6102
      %6104 = vrot.lane.b32.xlu0 %v5823, 32
      %v6105 = vpop.permute.xlu0 %6104
      %6106 = vrot.lane.b32.xlu0 %v5828, 32
      %v6107 = vpop.permute.xlu0 %6106
      %6108 = vrot.lane.b32.xlu0 %v5831, 32
      %v6109 = vpop.permute.xlu0 %6108
      %6110 = vrot.lane.b32.xlu0 %v5836, 32
      %v6111 = vpop.permute.xlu0 %6110
      %6112 = vrot.lane.b32.xlu0 %v5839, 32
      %v6113 = vpop.permute.xlu0 %6112
      %6114 = vrot.lane.b32.xlu0 %v5844, 32
      %v6115 = vpop.permute.xlu0 %6114
      %6116 = vrot.lane.b32.xlu0 %v5847, 32
      %v6117 = vpop.permute.xlu0 %6116
      %6118 = vrot.lane.b32.xlu0 %v5852, 32
      %v6119 = vpop.permute.xlu0 %6118
      %6120 = vrot.lane.b32.xlu0 %v5855, 32
      %v6121 = vpop.permute.xlu0 %6120
      %6122 = vrot.lane.b32.xlu0 %v5860, 32
      %v6123 = vpop.permute.xlu0 %6122
      %6124 = vrot.lane.b32.xlu0 %v5863, 32
      %v6125 = vpop.permute.xlu0 %6124
      %6126 = vrot.lane.b32.xlu0 %v5868, 32
      %v6127 = vpop.permute.xlu0 %6126
      %6128 = vrot.lane.b32.xlu0 %v5871, 32
      %v6129 = vpop.permute.xlu0 %6128
      %6130 = vrot.lane.b32.xlu0 %v5876, 32
      %v6131 = vpop.permute.xlu0 %6130
      %6132 = vrot.lane.b32.xlu0 %v5879, 32
      %v6133 = vpop.permute.xlu0 %6132
      %6134 = vrot.lane.b32.xlu0 %v5884, 32
      %v6135 = vpop.permute.xlu0 %6134
      %6136 = vrot.lane.b32.xlu0 %v5887, 32
      %v6137 = vpop.permute.xlu0 %6136
      %6138 = vrot.lane.b32.xlu0 %v5892, 32
      %v6139 = vpop.permute.xlu0 %6138
      %6140 = vrot.lane.b32.xlu0 %v5895, 32
      %v6141 = vpop.permute.xlu0 %6140
      %6142 = vrot.lane.b32.xlu0 %v5900, 32
      %v6143 = vpop.permute.xlu0 %6142
      %6144 = vrot.lane.b32.xlu0 %v5903, 32
      %v6145 = vpop.permute.xlu0 %6144
      %6146 = vrot.lane.b32.xlu0 %v5908, 32
      %v6147 = vpop.permute.xlu0 %6146
      %6148 = vrot.lane.b32.xlu0 %v5911, 32
      %v6149 = vpop.permute.xlu0 %6148
      %6150 = vrot.lane.b32.xlu0 %v5916, 32
      %v6151 = vpop.permute.xlu0 %6150
      %6152 = vrot.lane.b32.xlu0 %v5919, 32
      %v6153 = vpop.permute.xlu0 %6152
      %6154 = vrot.lane.b32.xlu0 %v5924, 32
      %v6155 = vpop.permute.xlu0 %6154
      %6156 = vrot.lane.b32.xlu0 %v5927, 32
      %v6157 = vpop.permute.xlu0 %6156
      %6158 = vrot.lane.b32.xlu0 %v5932, 32
      %v6159 = vpop.permute.xlu0 %6158
      %6160 = vrot.lane.b32.xlu0 %v5935, 32
      %v6161 = vpop.permute.xlu0 %6160
      %6162 = vrot.lane.b32.xlu0 %v5940, 32
      %v6163 = vpop.permute.xlu0 %6162
      %6164 = vrot.lane.b32.xlu0 %v5943, 32
      %v6165 = vpop.permute.xlu0 %6164
      %6166 = vrot.lane.b32.xlu0 %v5948, 32
      %v6167 = vpop.permute.xlu0 %6166
      %6168 = vrot.lane.b32.xlu0 %v5951, 32
      %v6169 = vpop.permute.xlu0 %6168
      %6170 = vrot.lane.b32.xlu0 %v5956, 32
      %v6171 = vpop.permute.xlu0 %6170
      %6172 = vrot.lane.b32.xlu0 %v5959, 32
      %v6173 = vpop.permute.xlu0 %6172
      %6174 = vrot.lane.b32.xlu0 %v5964, 32
      %v6175 = vpop.permute.xlu0 %6174
      %6176 = vrot.lane.b32.xlu0 %v5967, 32
      %v6177 = vpop.permute.xlu0 %6176
      %6178 = vrot.lane.b32.xlu0 %v5972, 32
      %v6179 = vpop.permute.xlu0 %6178
      %6180 = vrot.lane.b32.xlu0 %v5975, 32
      %v6181 = vpop.permute.xlu0 %6180
      %6182 = vrot.lane.b32.xlu0 %v5980, 32
      %v6183 = vpop.permute.xlu0 %6182
      %6184 = vrot.lane.b32.xlu0 %v5983, 32
      %v6185 = vpop.permute.xlu0 %6184
      %6186 = vrot.lane.b32.xlu0 %v5988, 32
      %v6187 = vpop.permute.xlu0 %6186
      %6188 = vrot.lane.b32.xlu0 %v5991, 32
      %v6189 = vpop.permute.xlu0 %6188
      %6190 = vrot.lane.b32.xlu0 %v5996, 32
      %v6191 = vpop.permute.xlu0 %6190
      %6192 = vrot.lane.b32.xlu0 %v5999, 32
      %v6193 = vpop.permute.xlu0 %6192
      %v6258 = vadd.f32 %v1091, %v6067
      %v6259 = vadd.f32 %v1094, %v6069
      %v6260 = vadd.f32 %v1099, %v6071
      %v6261 = vadd.f32 %v1102, %v6073
      %v6262 = vadd.f32 %v1107, %v6075
      %v6263 = vadd.f32 %v1110, %v6077
      %v6264 = vadd.f32 %v1115, %v6079
      %v6265 = vadd.f32 %v1118, %v6081
      %v6266 = vadd.f32 %v1123, %v6083
      %v6267 = vadd.f32 %v1126, %v6085
      %v6268 = vadd.f32 %v1131, %v6087
      %v6269 = vadd.f32 %v1134, %v6089
      %v6270 = vadd.f32 %v1139, %v6091
      %v6271 = vadd.f32 %v1142, %v6093
      %v6272 = vadd.f32 %v1147, %v6095
      %v6273 = vadd.f32 %v1150, %v6097
      %v6274 = vadd.f32 %v1155, %v6099
      %v6275 = vadd.f32 %v1158, %v6101
      %v6276 = vadd.f32 %v1163, %v6103
      %v6277 = vadd.f32 %v1166, %v6105
      %v6278 = vadd.f32 %v1171, %v6107
      %v6279 = vadd.f32 %v1174, %v6109
      %v6280 = vadd.f32 %v1179, %v6111
      %v6281 = vadd.f32 %v1182, %v6113
      %v6282 = vadd.f32 %v1187, %v6115
      %v6283 = vadd.f32 %v1190, %v6117
      %v6284 = vadd.f32 %v1195, %v6119
      %v6285 = vadd.f32 %v1198, %v6121
      %v6286 = vadd.f32 %v1203, %v6123
      %v6287 = vadd.f32 %v1206, %v6125
      %v6288 = vadd.f32 %v1211, %v6127
      %v6289 = vadd.f32 %v1214, %v6129
      %v6290 = vadd.f32 %v1219, %v6131
      %v6291 = vadd.f32 %v1222, %v6133
      %v6292 = vadd.f32 %v1227, %v6135
      %v6293 = vadd.f32 %v1230, %v6137
      %v6294 = vadd.f32 %v1235, %v6139
      %v6295 = vadd.f32 %v1238, %v6141
      %v6296 = vadd.f32 %v1243, %v6143
      %v6297 = vadd.f32 %v1246, %v6145
      %v6298 = vadd.f32 %v1251, %v6147
      %v6299 = vadd.f32 %v1254, %v6149
      %v6300 = vadd.f32 %v1259, %v6151
      %v6301 = vadd.f32 %v1262, %v6153
      %v6302 = vadd.f32 %v1267, %v6155
      %v6303 = vadd.f32 %v1270, %v6157
      %v6304 = vadd.f32 %v1275, %v6159
      %v6305 = vadd.f32 %v1278, %v6161
      %v6306 = vadd.f32 %v1283, %v6163
      %v6307 = vadd.f32 %v1286, %v6165
      %v6308 = vadd.f32 %v1291, %v6167
      %v6309 = vadd.f32 %v1294, %v6169
      %v6310 = vadd.f32 %v1299, %v6171
      %v6311 = vadd.f32 %v1302, %v6173
      %v6312 = vadd.f32 %v1307, %v6175
      %v6313 = vadd.f32 %v1310, %v6177
      %v6314 = vadd.f32 %v1315, %v6179
      %v6315 = vadd.f32 %v1318, %v6181
      %v6316 = vadd.f32 %v1323, %v6183
      %v6317 = vadd.f32 %v1326, %v6185
      %v6318 = vadd.f32 %v1331, %v6187
      %v6319 = vadd.f32 %v1334, %v6189
      %v6320 = vadd.f32 %v1339, %v6191
      %v6321 = vadd.f32 %v1342, %v6193
      %v6322 = vlaneseq
      %v6323 = vshrl.u32 %v6322, 7
      %v6324 = vsub.s32 0, %v6323
      %v6325 = vrot.slane %v286, %v6324
      %6327 = vrot.lane.b32.xlu0 %v6325, 32
      %v6328 = vpop.permute.xlu0 %6327
      %v6330 = vadd.f32 %v6258, %v6328
      %v6331 = vadd.f32 %v6259, %v6328
      %v6332 = vadd.f32 %v6260, %v6328
      %v6333 = vadd.f32 %v6261, %v6328
      %v6334 = vadd.f32 %v6262, %v6328
      %v6335 = vadd.f32 %v6263, %v6328
      %v6336 = vadd.f32 %v6264, %v6328
      %v6337 = vadd.f32 %v6265, %v6328
      %v6338 = vadd.f32 %v6266, %v6328
      %v6339 = vadd.f32 %v6267, %v6328
      %v6340 = vadd.f32 %v6268, %v6328
      %v6341 = vadd.f32 %v6269, %v6328
      %v6342 = vadd.f32 %v6270, %v6328
      %v6343 = vadd.f32 %v6271, %v6328
      %v6344 = vadd.f32 %v6272, %v6328
      %v6345 = vadd.f32 %v6273, %v6328
      %v6346 = vadd.f32 %v6274, %v6328
      %v6347 = vadd.f32 %v6275, %v6328
      %v6348 = vadd.f32 %v6276, %v6328
      %v6349 = vadd.f32 %v6277, %v6328
      %v6350 = vadd.f32 %v6278, %v6328
      %v6351 = vadd.f32 %v6279, %v6328
      %v6352 = vadd.f32 %v6280, %v6328
      %v6353 = vadd.f32 %v6281, %v6328
      %v6354 = vadd.f32 %v6282, %v6328
      %v6355 = vadd.f32 %v6283, %v6328
      %v6356 = vadd.f32 %v6284, %v6328
      %v6357 = vadd.f32 %v6285, %v6328
      %v6358 = vadd.f32 %v6286, %v6328
      %v6359 = vadd.f32 %v6287, %v6328
      %v6360 = vadd.f32 %v6288, %v6328
      %v6361 = vadd.f32 %v6289, %v6328
      %v6362 = vadd.f32 %v6290, %v6328
      %v6363 = vadd.f32 %v6291, %v6328
      %v6364 = vadd.f32 %v6292, %v6328
      %v6365 = vadd.f32 %v6293, %v6328
      %v6366 = vadd.f32 %v6294, %v6328
      %v6367 = vadd.f32 %v6295, %v6328
      %v6368 = vadd.f32 %v6296, %v6328
      %v6369 = vadd.f32 %v6297, %v6328
      %v6370 = vadd.f32 %v6298, %v6328
      %v6371 = vadd.f32 %v6299, %v6328
      %v6372 = vadd.f32 %v6300, %v6328
      %v6373 = vadd.f32 %v6301, %v6328
      %v6374 = vadd.f32 %v6302, %v6328
      %v6375 = vadd.f32 %v6303, %v6328
      %v6376 = vadd.f32 %v6304, %v6328
      %v6377 = vadd.f32 %v6305, %v6328
      %v6378 = vadd.f32 %v6306, %v6328
      %v6379 = vadd.f32 %v6307, %v6328
      %v6380 = vadd.f32 %v6308, %v6328
      %v6381 = vadd.f32 %v6309, %v6328
      %v6382 = vadd.f32 %v6310, %v6328
      %v6383 = vadd.f32 %v6311, %v6328
      %v6384 = vadd.f32 %v6312, %v6328
      %v6385 = vadd.f32 %v6313, %v6328
      %v6386 = vadd.f32 %v6314, %v6328
      %v6387 = vadd.f32 %v6315, %v6328
      %v6388 = vadd.f32 %v6316, %v6328
      %v6389 = vadd.f32 %v6317, %v6328
      %v6390 = vadd.f32 %v6318, %v6328
      %v6391 = vadd.f32 %v6319, %v6328
      %v6392 = vadd.f32 %v6320, %v6328
      %v6393 = vadd.f32 %v6321, %v6328
      %v6394 = vmax.f32 %v6330, 0.0
      %v6395 = vmax.f32 %v6331, 0.0
      %v6396 = vmax.f32 %v6332, 0.0
      %v6397 = vmax.f32 %v6333, 0.0
      %v6398 = vmax.f32 %v6334, 0.0
      %v6399 = vmax.f32 %v6335, 0.0
      %v6400 = vmax.f32 %v6336, 0.0
      %v6401 = vmax.f32 %v6337, 0.0
      %v6402 = vmax.f32 %v6338, 0.0
      %v6403 = vmax.f32 %v6339, 0.0
      %v6404 = vmax.f32 %v6340, 0.0
      %v6405 = vmax.f32 %v6341, 0.0
      %v6406 = vmax.f32 %v6342, 0.0
      %v6407 = vmax.f32 %v6343, 0.0
      %v6408 = vmax.f32 %v6344, 0.0
      %v6409 = vmax.f32 %v6345, 0.0
      %v6410 = vmax.f32 %v6346, 0.0
      %v6411 = vmax.f32 %v6347, 0.0
      %v6412 = vmax.f32 %v6348, 0.0
      %v6413 = vmax.f32 %v6349, 0.0
      %v6414 = vmax.f32 %v6350, 0.0
      %v6415 = vmax.f32 %v6351, 0.0
      %v6416 = vmax.f32 %v6352, 0.0
      %v6417 = vmax.f32 %v6353, 0.0
      %v6418 = vmax.f32 %v6354, 0.0
      %v6419 = vmax.f32 %v6355, 0.0
      %v6420 = vmax.f32 %v6356, 0.0
      %v6421 = vmax.f32 %v6357, 0.0
      %v6422 = vmax.f32 %v6358, 0.0
      %v6423 = vmax.f32 %v6359, 0.0
      %v6424 = vmax.f32 %v6360, 0.0
      %v6425 = vmax.f32 %v6361, 0.0
      %v6426 = vmax.f32 %v6362, 0.0
      %v6427 = vmax.f32 %v6363, 0.0
      %v6428 = vmax.f32 %v6364, 0.0
      %v6429 = vmax.f32 %v6365, 0.0
      %v6430 = vmax.f32 %v6366, 0.0
      %v6431 = vmax.f32 %v6367, 0.0
      %v6432 = vmax.f32 %v6368, 0.0
      %v6433 = vmax.f32 %v6369, 0.0
      %v6434 = vmax.f32 %v6370, 0.0
      %v6435 = vmax.f32 %v6371, 0.0
      %v6436 = vmax.f32 %v6372, 0.0
      %v6437 = vmax.f32 %v6373, 0.0
      %v6438 = vmax.f32 %v6374, 0.0
      %v6439 = vmax.f32 %v6375, 0.0
      %v6440 = vmax.f32 %v6376, 0.0
      %v6441 = vmax.f32 %v6377, 0.0
      %v6442 = vmax.f32 %v6378, 0.0
      %v6443 = vmax.f32 %v6379, 0.0
      %v6444 = vmax.f32 %v6380, 0.0
      %v6445 = vmax.f32 %v6381, 0.0
      %v6446 = vmax.f32 %v6382, 0.0
      %v6447 = vmax.f32 %v6383, 0.0
      %v6448 = vmax.f32 %v6384, 0.0
      %v6449 = vmax.f32 %v6385, 0.0
      %v6450 = vmax.f32 %v6386, 0.0
      %v6451 = vmax.f32 %v6387, 0.0
      %v6452 = vmax.f32 %v6388, 0.0
      %v6453 = vmax.f32 %v6389, 0.0
      %v6454 = vmax.f32 %v6390, 0.0
      %v6455 = vmax.f32 %v6391, 0.0
      %v6456 = vmax.f32 %v6392, 0.0
      %v6457 = vmax.f32 %v6393, 0.0
      %v6458 = vpack.c.bf16 %v6395, %v6394
      %v6459 = vpack.c.bf16 %v6397, %v6396
      %v6460 = vpack.c.bf16 %v6399, %v6398
      %v6461 = vpack.c.bf16 %v6401, %v6400
      %v6462 = vpack.c.bf16 %v6403, %v6402
      %v6463 = vpack.c.bf16 %v6405, %v6404
      %v6464 = vpack.c.bf16 %v6407, %v6406
      %v6465 = vpack.c.bf16 %v6409, %v6408
      %v6466 = vpack.c.bf16 %v6411, %v6410
      %v6467 = vpack.c.bf16 %v6413, %v6412
      %v6468 = vpack.c.bf16 %v6415, %v6414
      %v6469 = vpack.c.bf16 %v6417, %v6416
      %v6470 = vpack.c.bf16 %v6419, %v6418
      %v6471 = vpack.c.bf16 %v6421, %v6420
      %v6472 = vpack.c.bf16 %v6423, %v6422
      %v6473 = vpack.c.bf16 %v6425, %v6424
      %v6474 = vpack.c.bf16 %v6427, %v6426
      %v6475 = vpack.c.bf16 %v6429, %v6428
      %v6476 = vpack.c.bf16 %v6431, %v6430
      %v6477 = vpack.c.bf16 %v6433, %v6432
      %v6478 = vpack.c.bf16 %v6435, %v6434
      %v6479 = vpack.c.bf16 %v6437, %v6436
      %v6480 = vpack.c.bf16 %v6439, %v6438
      %v6481 = vpack.c.bf16 %v6441, %v6440
      %v6482 = vpack.c.bf16 %v6443, %v6442
      %v6483 = vpack.c.bf16 %v6445, %v6444
      %v6484 = vpack.c.bf16 %v6447, %v6446
      %v6485 = vpack.c.bf16 %v6449, %v6448
      %v6486 = vpack.c.bf16 %v6451, %v6450
      %v6487 = vpack.c.bf16 %v6453, %v6452
      %v6488 = vpack.c.bf16 %v6455, %v6454
      %v6489 = vpack.c.bf16 %v6457, %v6456
      %v6490 = vlaneseq
      %v6491 = vshrl.u32 %v6490, 7
      %v6492 = vsub.s32 0, %v6491
      %v6493 = vrot.slane %v287, %v6492
      %6526 = vrot.lane.b32.xlu0 %v6458, 96
      %v6527 = vpop.permute.xlu0 %6526
      %6528 = vrot.lane.b32.xlu0 %v6459, 96
      %v6529 = vpop.permute.xlu0 %6528
      %6530 = vrot.lane.b32.xlu0 %v6460, 96
      %v6531 = vpop.permute.xlu0 %6530
      %6532 = vrot.lane.b32.xlu0 %v6461, 96
      %v6533 = vpop.permute.xlu0 %6532
      %6534 = vrot.lane.b32.xlu0 %v6462, 96
      %v6535 = vpop.permute.xlu0 %6534
      %6536 = vrot.lane.b32.xlu0 %v6463, 96
      %v6537 = vpop.permute.xlu0 %6536
      %6538 = vrot.lane.b32.xlu0 %v6464, 96
      %v6539 = vpop.permute.xlu0 %6538
      %6540 = vrot.lane.b32.xlu0 %v6465, 96
      %v6541 = vpop.permute.xlu0 %6540
      %6542 = vrot.lane.b32.xlu0 %v6466, 96
      %v6543 = vpop.permute.xlu0 %6542
      %6544 = vrot.lane.b32.xlu0 %v6467, 96
      %v6545 = vpop.permute.xlu0 %6544
      %6546 = vrot.lane.b32.xlu0 %v6468, 96
      %v6547 = vpop.permute.xlu0 %6546
      %6548 = vrot.lane.b32.xlu0 %v6469, 96
      %v6549 = vpop.permute.xlu0 %6548
      %6550 = vrot.lane.b32.xlu0 %v6470, 96
      %v6551 = vpop.permute.xlu0 %6550
      %6552 = vrot.lane.b32.xlu0 %v6471, 96
      %v6553 = vpop.permute.xlu0 %6552
      %6554 = vrot.lane.b32.xlu0 %v6472, 96
      %v6555 = vpop.permute.xlu0 %6554
      %6556 = vrot.lane.b32.xlu0 %v6473, 96
      %v6557 = vpop.permute.xlu0 %6556
      %6558 = vrot.lane.b32.xlu0 %v6474, 96
      %v6559 = vpop.permute.xlu0 %6558
      %6560 = vrot.lane.b32.xlu0 %v6475, 96
      %v6561 = vpop.permute.xlu0 %6560
      %6562 = vrot.lane.b32.xlu0 %v6476, 96
      %v6563 = vpop.permute.xlu0 %6562
      %6564 = vrot.lane.b32.xlu0 %v6477, 96
      %v6565 = vpop.permute.xlu0 %6564
      %6566 = vrot.lane.b32.xlu0 %v6478, 96
      %v6567 = vpop.permute.xlu0 %6566
      %6568 = vrot.lane.b32.xlu0 %v6479, 96
      %v6569 = vpop.permute.xlu0 %6568
      %6570 = vrot.lane.b32.xlu0 %v6480, 96
      %v6571 = vpop.permute.xlu0 %6570
      %6572 = vrot.lane.b32.xlu0 %v6481, 96
      %v6573 = vpop.permute.xlu0 %6572
      %6574 = vrot.lane.b32.xlu0 %v6482, 96
      %v6575 = vpop.permute.xlu0 %6574
      %6576 = vrot.lane.b32.xlu0 %v6483, 96
      %v6577 = vpop.permute.xlu0 %6576
      %6578 = vrot.lane.b32.xlu0 %v6484, 96
      %v6579 = vpop.permute.xlu0 %6578
      %6580 = vrot.lane.b32.xlu0 %v6485, 96
      %v6581 = vpop.permute.xlu0 %6580
      %6582 = vrot.lane.b32.xlu0 %v6486, 96
      %v6583 = vpop.permute.xlu0 %6582
      %6584 = vrot.lane.b32.xlu0 %v6487, 96
      %v6585 = vpop.permute.xlu0 %6584
      %6586 = vrot.lane.b32.xlu0 %v6488, 96
      %v6587 = vpop.permute.xlu0 %6586
      %6588 = vrot.lane.b32.xlu0 %v6489, 96
      %v6589 = vpop.permute.xlu0 %6588
      %v6594 = vunpack.c.l.b16 %v268
      %v6595 = vunpack.c.l.b16 %v269
      %v6596 = vunpack.c.l.b16 %v270
      %v6597 = vunpack.c.l.b16 %v271
      %v6598 = vpack.c.b16 %v6595, %v6594
      %v6599 = vpack.c.b16 %v6597, %v6596
      %v6603 = vsel %vm526, %v6527, 0
      %v6606 = vsel %vm526, %v6529, 0
      %v6609 = vsel %vm526, %v6531, 0
      %v6612 = vsel %vm526, %v6533, 0
      %v6615 = vsel %vm526, %v6535, 0
      %v6618 = vsel %vm526, %v6537, 0
      %v6621 = vsel %vm526, %v6539, 0
      %v6624 = vsel %vm526, %v6541, 0
      %v6627 = vsel %vm526, %v6543, 0
      %v6630 = vsel %vm526, %v6545, 0
      %v6633 = vsel %vm526, %v6547, 0
      %v6636 = vsel %vm526, %v6549, 0
      %v6639 = vsel %vm526, %v6551, 0
      %v6642 = vsel %vm526, %v6553, 0
      %v6645 = vsel %vm526, %v6555, 0
      %v6648 = vsel %vm526, %v6557, 0
      %v6651 = vsel %vm526, %v6559, 0
      %v6654 = vsel %vm526, %v6561, 0
      %v6657 = vsel %vm526, %v6563, 0
      %v6660 = vsel %vm526, %v6565, 0
      %v6663 = vsel %vm526, %v6567, 0
      %v6666 = vsel %vm526, %v6569, 0
      %v6669 = vsel %vm526, %v6571, 0
      %v6672 = vsel %vm526, %v6573, 0
      %v6675 = vsel %vm526, %v6575, 0
      %v6678 = vsel %vm526, %v6577, 0
      %v6681 = vsel %vm526, %v6579, 0
      %v6684 = vsel %vm526, %v6581, 0
      %v6687 = vsel %vm526, %v6583, 0
      %v6690 = vsel %vm526, %v6585, 0
      %v6693 = vsel %vm526, %v6587, 0
      %v6696 = vsel %vm526, %v6589, 0
      %6698 = vmatprep.subr.bf16.mxu0 0
      %6699 = vmatpush1.bf16.msra.mxu0 %v6598
      %6700 = vmatprep.subr.bf16.mxu0 0
      %6701 = vmatpush1.bf16.msra.mxu0 %v6599
      %6702 = vmatprep.subr.bf16.mxu0 0
      %6703 = vmatpush1.bf16.msra.mxu0 0
      %6704 = vmatprep.subr.bf16.mxu0 0
      %6705 = vmatpush1.bf16.msra.mxu0 0
      %6706 = vmatprep.subr.bf16.mxu0 0
      %6707 = vmatpush1.bf16.msra.mxu0 0
      %6708 = vmatprep.subr.bf16.mxu0 0
      %6709 = vmatpush1.bf16.msra.mxu0 0
      %6710 = vmatprep.subr.bf16.mxu0 0
      %6711 = vmatpush1.bf16.msra.mxu0 0
      %6712 = vmatprep.subr.bf16.mxu0 0
      %6713 = vmatpush1.bf16.msra.mxu0 0
      %6714 = vmatprep.subr.bf16.mxu0 0
      %6715 = vmatpush1.bf16.msra.mxu0 0
      %6716 = vmatprep.subr.bf16.mxu0 0
      %6717 = vmatpush1.bf16.msra.mxu0 0
      %6718 = vmatprep.subr.bf16.mxu0 0
      %6719 = vmatpush1.bf16.msra.mxu0 0
      %6720 = vmatprep.subr.bf16.mxu0 0
      %6721 = vmatpush1.bf16.msra.mxu0 0
      %6722 = vmatprep.subr.bf16.mxu0 0
      %6723 = vmatpush1.bf16.msra.mxu0 0
      %6724 = vmatprep.subr.bf16.mxu0 0
      %6725 = vmatpush1.bf16.msra.mxu0 0
      %6726 = vmatprep.subr.bf16.mxu0 0
      %6727 = vmatpush1.bf16.msra.mxu0 0
      %6728 = vmatprep.subr.bf16.mxu0 0
      %6729 = vmatpush1.bf16.msra.mxu0 0
      %6730 = vmatprep.mubr.bf16.mxu0 0
      %6731 = vmatmul.mubr.bf16.gmra.mrb[0].mxu0 %v6603
      %v6732 = vpop.f32.mrb[0].mxu0
      %v6733 = vadd.f32 %v6493, %v6732
      %v6734 = vpop.f32.mrb[0].mxu0
      %v6735 = vpop.f32.mrb[0].mxu0
      %v6736 = vadd.f32 %v6493, %v6735
      %v6737 = vpop.f32.mrb[0].mxu0
      %6738 = vmatprep.mubr.bf16.mxu0 0
      %6739 = vmatmul.mubr.bf16.gmra.mrb[0].mxu0 %v6606
      %v6740 = vpop.f32.mrb[0].mxu0
      %v6741 = vadd.f32 %v6493, %v6740
      %v6742 = vpop.f32.mrb[0].mxu0
      %v6743 = vpop.f32.mrb[0].mxu0
      %v6744 = vadd.f32 %v6493, %v6743
      %v6745 = vpop.f32.mrb[0].mxu0
      %6746 = vmatprep.mubr.bf16.mxu0 0
      %6747 = vmatmul.mubr.bf16.gmra.mrb[0].mxu0 %v6609
      %v6748 = vpop.f32.mrb[0].mxu0
      %v6749 = vadd.f32 %v6493, %v6748
      %v6750 = vpop.f32.mrb[0].mxu0
      %v6751 = vpop.f32.mrb[0].mxu0
      %v6752 = vadd.f32 %v6493, %v6751
      %v6753 = vpop.f32.mrb[0].mxu0
      %6754 = vmatprep.mubr.bf16.mxu0 0
      %6755 = vmatmul.mubr.bf16.gmra.mrb[0].mxu0 %v6612
      %v6756 = vpop.f32.mrb[0].mxu0
      %v6757 = vadd.f32 %v6493, %v6756
      %v6758 = vpop.f32.mrb[0].mxu0
      %v6759 = vpop.f32.mrb[0].mxu0
      %v6760 = vadd.f32 %v6493, %v6759
      %v6761 = vpop.f32.mrb[0].mxu0
      %6762 = vmatprep.mubr.bf16.mxu0 0
      %6763 = vmatmul.mubr.bf16.gmra.mrb[0].mxu0 %v6615
      %v6764 = vpop.f32.mrb[0].mxu0
      %v6765 = vadd.f32 %v6493, %v6764
      %v6766 = vpop.f32.mrb[0].mxu0
      %v6767 = vpop.f32.mrb[0].mxu0
      %v6768 = vadd.f32 %v6493, %v6767
      %v6769 = vpop.f32.mrb[0].mxu0
      %6770 = vmatprep.mubr.bf16.mxu0 0
      %6771 = vmatmul.mubr.bf16.gmra.mrb[0].mxu0 %v6618
      %v6772 = vpop.f32.mrb[0].mxu0
      %v6773 = vadd.f32 %v6493, %v6772
      %v6774 = vpop.f32.mrb[0].mxu0
      %v6775 = vpop.f32.mrb[0].mxu0
      %v6776 = vadd.f32 %v6493, %v6775
      %v6777 = vpop.f32.mrb[0].mxu0
      %6778 = vmatprep.mubr.bf16.mxu0 0
      %6779 = vmatmul.mubr.bf16.gmra.mrb[0].mxu0 %v6621
      %v6780 = vpop.f32.mrb[0].mxu0
      %v6781 = vadd.f32 %v6493, %v6780
      %v6782 = vpop.f32.mrb[0].mxu0
      %v6783 = vpop.f32.mrb[0].mxu0
      %v6784 = vadd.f32 %v6493, %v6783
      %v6785 = vpop.f32.mrb[0].mxu0
      %6786 = vmatprep.mubr.bf16.mxu0 0
      %6787 = vmatmul.mubr.bf16.gmra.mrb[0].mxu0 %v6624
      %v6788 = vpop.f32.mrb[0].mxu0
      %v6789 = vadd.f32 %v6493, %v6788
      %v6790 = vpop.f32.mrb[0].mxu0
      %v6791 = vpop.f32.mrb[0].mxu0
      %v6792 = vadd.f32 %v6493, %v6791
      %v6793 = vpop.f32.mrb[0].mxu0
      %6794 = vmatprep.mubr.bf16.mxu0 0
      %6795 = vmatmul.mubr.bf16.gmra.mrb[0].mxu0 %v6627
      %v6796 = vpop.f32.mrb[0].mxu0
      %v6797 = vadd.f32 %v6493, %v6796
      %v6798 = vpop.f32.mrb[0].mxu0
      %v6799 = vpop.f32.mrb[0].mxu0
      %v6800 = vadd.f32 %v6493, %v6799
      %v6801 = vpop.f32.mrb[0].mxu0
      %6802 = vmatprep.mubr.bf16.mxu0 0
      %6803 = vmatmul.mubr.bf16.gmra.mrb[0].mxu0 %v6630
      %v6804 = vpop.f32.mrb[0].mxu0
      %v6805 = vadd.f32 %v6493, %v6804
      %v6806 = vpop.f32.mrb[0].mxu0
      %v6807 = vpop.f32.mrb[0].mxu0
      %v6808 = vadd.f32 %v6493, %v6807
      %v6809 = vpop.f32.mrb[0].mxu0
      %6810 = vmatprep.mubr.bf16.mxu0 0
      %6811 = vmatmul.mubr.bf16.gmra.mrb[0].mxu0 %v6633
      %v6812 = vpop.f32.mrb[0].mxu0
      %v6813 = vadd.f32 %v6493, %v6812
      %v6814 = vpop.f32.mrb[0].mxu0
      %v6815 = vpop.f32.mrb[0].mxu0
      %v6816 = vadd.f32 %v6493, %v6815
      %v6817 = vpop.f32.mrb[0].mxu0
      %6818 = vmatprep.mubr.bf16.mxu0 0
      %6819 = vmatmul.mubr.bf16.gmra.mrb[0].mxu0 %v6636
      %v6820 = vpop.f32.mrb[0].mxu0
      %v6821 = vadd.f32 %v6493, %v6820
      %v6822 = vpop.f32.mrb[0].mxu0
      %v6823 = vpop.f32.mrb[0].mxu0
      %v6824 = vadd.f32 %v6493, %v6823
      %v6825 = vpop.f32.mrb[0].mxu0
      %6826 = vmatprep.mubr.bf16.mxu0 0
      %6827 = vmatmul.mubr.bf16.gmra.mrb[0].mxu0 %v6639
      %v6828 = vpop.f32.mrb[0].mxu0
      %v6829 = vadd.f32 %v6493, %v6828
      %v6830 = vpop.f32.mrb[0].mxu0
      %v6831 = vpop.f32.mrb[0].mxu0
      %v6832 = vadd.f32 %v6493, %v6831
      %v6833 = vpop.f32.mrb[0].mxu0
      %6834 = vmatprep.mubr.bf16.mxu0 0
      %6835 = vmatmul.mubr.bf16.gmra.mrb[0].mxu0 %v6642
      %v6836 = vpop.f32.mrb[0].mxu0
      %v6837 = vadd.f32 %v6493, %v6836
      %v6838 = vpop.f32.mrb[0].mxu0
      %v6839 = vpop.f32.mrb[0].mxu0
      %v6840 = vadd.f32 %v6493, %v6839
      %v6841 = vpop.f32.mrb[0].mxu0
      %6842 = vmatprep.mubr.bf16.mxu0 0
      %6843 = vmatmul.mubr.bf16.gmra.mrb[0].mxu0 %v6645
      %v6844 = vpop.f32.mrb[0].mxu0
      %v6845 = vadd.f32 %v6493, %v6844
      %v6846 = vpop.f32.mrb[0].mxu0
      %v6847 = vpop.f32.mrb[0].mxu0
      %v6848 = vadd.f32 %v6493, %v6847
      %v6849 = vpop.f32.mrb[0].mxu0
      %6850 = vmatprep.mubr.bf16.mxu0 0
      %6851 = vmatmul.mubr.bf16.gmra.mrb[0].mxu0 %v6648
      %v6852 = vpop.f32.mrb[0].mxu0
      %v6853 = vadd.f32 %v6493, %v6852
      %v6854 = vpop.f32.mrb[0].mxu0
      %v6855 = vpop.f32.mrb[0].mxu0
      %v6856 = vadd.f32 %v6493, %v6855
      %v6857 = vpop.f32.mrb[0].mxu0
      %6858 = vmatprep.mubr.bf16.mxu0 0
      %6859 = vmatmul.mubr.bf16.gmra.mrb[0].mxu0 %v6651
      %v6860 = vpop.f32.mrb[0].mxu0
      %v6861 = vadd.f32 %v6493, %v6860
      %v6862 = vpop.f32.mrb[0].mxu0
      %v6863 = vpop.f32.mrb[0].mxu0
      %v6864 = vadd.f32 %v6493, %v6863
      %v6865 = vpop.f32.mrb[0].mxu0
      %6866 = vmatprep.mubr.bf16.mxu0 0
      %6867 = vmatmul.mubr.bf16.gmra.mrb[0].mxu0 %v6654
      %v6868 = vpop.f32.mrb[0].mxu0
      %v6869 = vadd.f32 %v6493, %v6868
      %v6870 = vpop.f32.mrb[0].mxu0
      %v6871 = vpop.f32.mrb[0].mxu0
      %v6872 = vadd.f32 %v6493, %v6871
      %v6873 = vpop.f32.mrb[0].mxu0
      %6874 = vmatprep.mubr.bf16.mxu0 0
      %6875 = vmatmul.mubr.bf16.gmra.mrb[0].mxu0 %v6657
      %v6876 = vpop.f32.mrb[0].mxu0
      %v6877 = vadd.f32 %v6493, %v6876
      %v6878 = vpop.f32.mrb[0].mxu0
      %v6879 = vpop.f32.mrb[0].mxu0
      %v6880 = vadd.f32 %v6493, %v6879
      %v6881 = vpop.f32.mrb[0].mxu0
      %6882 = vmatprep.mubr.bf16.mxu0 0
      %6883 = vmatmul.mubr.bf16.gmra.mrb[0].mxu0 %v6660
      %v6884 = vpop.f32.mrb[0].mxu0
      %v6885 = vadd.f32 %v6493, %v6884
      %v6886 = vpop.f32.mrb[0].mxu0
      %v6887 = vpop.f32.mrb[0].mxu0
      %v6888 = vadd.f32 %v6493, %v6887
      %v6889 = vpop.f32.mrb[0].mxu0
      %6890 = vmatprep.mubr.bf16.mxu0 0
      %6891 = vmatmul.mubr.bf16.gmra.mrb[0].mxu0 %v6663
      %v6892 = vpop.f32.mrb[0].mxu0
      %v6893 = vadd.f32 %v6493, %v6892
      %v6894 = vpop.f32.mrb[0].mxu0
      %v6895 = vpop.f32.mrb[0].mxu0
      %v6896 = vadd.f32 %v6493, %v6895
      %v6897 = vpop.f32.mrb[0].mxu0
      %6898 = vmatprep.mubr.bf16.mxu0 0
      %6899 = vmatmul.mubr.bf16.gmra.mrb[0].mxu0 %v6666
      %v6900 = vpop.f32.mrb[0].mxu0
      %v6901 = vadd.f32 %v6493, %v6900
      %v6902 = vpop.f32.mrb[0].mxu0
      %v6903 = vpop.f32.mrb[0].mxu0
      %v6904 = vadd.f32 %v6493, %v6903
      %v6905 = vpop.f32.mrb[0].mxu0
      %6906 = vmatprep.mubr.bf16.mxu0 0
      %6907 = vmatmul.mubr.bf16.gmra.mrb[0].mxu0 %v6669
      %v6908 = vpop.f32.mrb[0].mxu0
      %v6909 = vadd.f32 %v6493, %v6908
      %v6910 = vpop.f32.mrb[0].mxu0
      %v6911 = vpop.f32.mrb[0].mxu0
      %v6912 = vadd.f32 %v6493, %v6911
      %v6913 = vpop.f32.mrb[0].mxu0
      %6914 = vmatprep.mubr.bf16.mxu0 0
      %6915 = vmatmul.mubr.bf16.gmra.mrb[0].mxu0 %v6672
      %v6916 = vpop.f32.mrb[0].mxu0
      %v6917 = vadd.f32 %v6493, %v6916
      %v6918 = vpop.f32.mrb[0].mxu0
      %v6919 = vpop.f32.mrb[0].mxu0
      %v6920 = vadd.f32 %v6493, %v6919
      %v6921 = vpop.f32.mrb[0].mxu0
      %6922 = vmatprep.mubr.bf16.mxu0 0
      %6923 = vmatmul.mubr.bf16.gmra.mrb[0].mxu0 %v6675
      %v6924 = vpop.f32.mrb[0].mxu0
      %v6925 = vadd.f32 %v6493, %v6924
      %v6926 = vpop.f32.mrb[0].mxu0
      %v6927 = vpop.f32.mrb[0].mxu0
      %v6928 = vadd.f32 %v6493, %v6927
      %v6929 = vpop.f32.mrb[0].mxu0
      %6930 = vmatprep.mubr.bf16.mxu0 0
      %6931 = vmatmul.mubr.bf16.gmra.mrb[0].mxu0 %v6678
      %v6932 = vpop.f32.mrb[0].mxu0
      %v6933 = vadd.f32 %v6493, %v6932
      %v6934 = vpop.f32.mrb[0].mxu0
      %v6935 = vpop.f32.mrb[0].mxu0
      %v6936 = vadd.f32 %v6493, %v6935
      %v6937 = vpop.f32.mrb[0].mxu0
      %6938 = vmatprep.mubr.bf16.mxu0 0
      %6939 = vmatmul.mubr.bf16.gmra.mrb[0].mxu0 %v6681
      %v6940 = vpop.f32.mrb[0].mxu0
      %v6941 = vadd.f32 %v6493, %v6940
      %v6942 = vpop.f32.mrb[0].mxu0
      %v6943 = vpop.f32.mrb[0].mxu0
      %v6944 = vadd.f32 %v6493, %v6943
      %v6945 = vpop.f32.mrb[0].mxu0
      %6946 = vmatprep.mubr.bf16.mxu0 0
      %6947 = vmatmul.mubr.bf16.gmra.mrb[0].mxu0 %v6684
      %v6948 = vpop.f32.mrb[0].mxu0
      %v6949 = vadd.f32 %v6493, %v6948
      %v6950 = vpop.f32.mrb[0].mxu0
      %v6951 = vpop.f32.mrb[0].mxu0
      %v6952 = vadd.f32 %v6493, %v6951
      %v6953 = vpop.f32.mrb[0].mxu0
      %6954 = vmatprep.mubr.bf16.mxu0 0
      %6955 = vmatmul.mubr.bf16.gmra.mrb[0].mxu0 %v6687
      %v6956 = vpop.f32.mrb[0].mxu0
      %v6957 = vadd.f32 %v6493, %v6956
      %v6958 = vpop.f32.mrb[0].mxu0
      %v6959 = vpop.f32.mrb[0].mxu0
      %v6960 = vadd.f32 %v6493, %v6959
      %v6961 = vpop.f32.mrb[0].mxu0
      %6962 = vmatprep.mubr.bf16.mxu0 0
      %6963 = vmatmul.mubr.bf16.gmra.mrb[0].mxu0 %v6690
      %v6964 = vpop.f32.mrb[0].mxu0
      %v6965 = vadd.f32 %v6493, %v6964
      %v6966 = vpop.f32.mrb[0].mxu0
      %v6967 = vpop.f32.mrb[0].mxu0
      %v6968 = vadd.f32 %v6493, %v6967
      %v6969 = vpop.f32.mrb[0].mxu0
      %6970 = vmatprep.mubr.bf16.mxu0 0
      %6971 = vmatmul.mubr.bf16.gmra.mrb[0].mxu0 %v6693
      %v6972 = vpop.f32.mrb[0].mxu0
      %v6973 = vadd.f32 %v6493, %v6972
      %v6974 = vpop.f32.mrb[0].mxu0
      %v6975 = vpop.f32.mrb[0].mxu0
      %v6976 = vadd.f32 %v6493, %v6975
      %v6977 = vpop.f32.mrb[0].mxu0
      %6978 = vmatprep.mubr.bf16.mxu0 0
      %6979 = vmatmul.mubr.bf16.gmra.mrb[0].mxu0 %v6696
      %v6980 = vpop.f32.mrb[0].mxu0
      %v6981 = vadd.f32 %v6493, %v6980
      %v6982 = vpop.f32.mrb[0].mxu0
      %v6983 = vpop.f32.mrb[0].mxu0
      %v6984 = vadd.f32 %v6493, %v6983
      %v6985 = vpop.f32.mrb[0].mxu0
      %6986 = vdwg.mxu0
      %v6987 = vmax.f32 %v6733, 0.0
      %v6988 = vmax.f32 %v6736, 0.0
      %v6989 = vmax.f32 %v6741, 0.0
      %v6990 = vmax.f32 %v6744, 0.0
      %v6991 = vmax.f32 %v6749, 0.0
      %v6992 = vmax.f32 %v6752, 0.0
      %v6993 = vmax.f32 %v6757, 0.0
      %v6994 = vmax.f32 %v6760, 0.0
      %v6995 = vmax.f32 %v6765, 0.0
      %v6996 = vmax.f32 %v6768, 0.0
      %v6997 = vmax.f32 %v6773, 0.0
      %v6998 = vmax.f32 %v6776, 0.0
      %v6999 = vmax.f32 %v6781, 0.0
      %v7000 = vmax.f32 %v6784, 0.0
      %v7001 = vmax.f32 %v6789, 0.0
      %v7002 = vmax.f32 %v6792, 0.0
      %v7003 = vmax.f32 %v6797, 0.0
      %v7004 = vmax.f32 %v6800, 0.0
      %v7005 = vmax.f32 %v6805, 0.0
      %v7006 = vmax.f32 %v6808, 0.0
      %v7007 = vmax.f32 %v6813, 0.0
      %v7008 = vmax.f32 %v6816, 0.0
      %v7009 = vmax.f32 %v6821, 0.0
      %v7010 = vmax.f32 %v6824, 0.0
      %v7011 = vmax.f32 %v6829, 0.0
      %v7012 = vmax.f32 %v6832, 0.0
      %v7013 = vmax.f32 %v6837, 0.0
      %v7014 = vmax.f32 %v6840, 0.0
      %v7015 = vmax.f32 %v6845, 0.0
      %v7016 = vmax.f32 %v6848, 0.0
      %v7017 = vmax.f32 %v6853, 0.0
      %v7018 = vmax.f32 %v6856, 0.0
      %v7019 = vmax.f32 %v6861, 0.0
      %v7020 = vmax.f32 %v6864, 0.0
      %v7021 = vmax.f32 %v6869, 0.0
      %v7022 = vmax.f32 %v6872, 0.0
      %v7023 = vmax.f32 %v6877, 0.0
      %v7024 = vmax.f32 %v6880, 0.0
      %v7025 = vmax.f32 %v6885, 0.0
      %v7026 = vmax.f32 %v6888, 0.0
      %v7027 = vmax.f32 %v6893, 0.0
      %v7028 = vmax.f32 %v6896, 0.0
      %v7029 = vmax.f32 %v6901, 0.0
      %v7030 = vmax.f32 %v6904, 0.0
      %v7031 = vmax.f32 %v6909, 0.0
      %v7032 = vmax.f32 %v6912, 0.0
      %v7033 = vmax.f32 %v6917, 0.0
      %v7034 = vmax.f32 %v6920, 0.0
      %v7035 = vmax.f32 %v6925, 0.0
      %v7036 = vmax.f32 %v6928, 0.0
      %v7037 = vmax.f32 %v6933, 0.0
      %v7038 = vmax.f32 %v6936, 0.0
      %v7039 = vmax.f32 %v6941, 0.0
      %v7040 = vmax.f32 %v6944, 0.0
      %v7041 = vmax.f32 %v6949, 0.0
      %v7042 = vmax.f32 %v6952, 0.0
      %v7043 = vmax.f32 %v6957, 0.0
      %v7044 = vmax.f32 %v6960, 0.0
      %v7045 = vmax.f32 %v6965, 0.0
      %v7046 = vmax.f32 %v6968, 0.0
      %v7047 = vmax.f32 %v6973, 0.0
      %v7048 = vmax.f32 %v6976, 0.0
      %v7049 = vmax.f32 %v6981, 0.0
      %v7050 = vmax.f32 %v6984, 0.0
      %v7051 = vsel %vm526, %v6987, 0.0
      %v7052 = vrot.slane %v7051, 4
      %v7053 = vadd.f32 %v7051, %v7052
      %v7054 = vrot.slane %v7053, 2
      %v7055 = vadd.f32 %v7053, %v7054
      %v7056 = vrot.slane %v7055, 1
      %v7057 = vadd.f32 %v7055, %v7056
      %v7058 = vsel %vm526, %v6989, 0.0
      %v7059 = vrot.slane %v7058, 4
      %v7060 = vadd.f32 %v7058, %v7059
      %v7061 = vrot.slane %v7060, 2
      %v7062 = vadd.f32 %v7060, %v7061
      %v7063 = vrot.slane %v7062, 1
      %v7064 = vadd.f32 %v7062, %v7063
      %v7065 = vsel %vm526, %v6991, 0.0
      %v7066 = vrot.slane %v7065, 4
      %v7067 = vadd.f32 %v7065, %v7066
      %v7068 = vrot.slane %v7067, 2
      %v7069 = vadd.f32 %v7067, %v7068
      %v7070 = vrot.slane %v7069, 1
      %v7071 = vadd.f32 %v7069, %v7070
      %v7072 = vsel %vm526, %v6993, 0.0
      %v7073 = vrot.slane %v7072, 4
      %v7074 = vadd.f32 %v7072, %v7073
      %v7075 = vrot.slane %v7074, 2
      %v7076 = vadd.f32 %v7074, %v7075
      %v7077 = vrot.slane %v7076, 1
      %v7078 = vadd.f32 %v7076, %v7077
      %v7079 = vsel %vm526, %v6995, 0.0
      %v7080 = vrot.slane %v7079, 4
      %v7081 = vadd.f32 %v7079, %v7080
      %v7082 = vrot.slane %v7081, 2
      %v7083 = vadd.f32 %v7081, %v7082
      %v7084 = vrot.slane %v7083, 1
      %v7085 = vadd.f32 %v7083, %v7084
      %v7086 = vsel %vm526, %v6997, 0.0
      %v7087 = vrot.slane %v7086, 4
      %v7088 = vadd.f32 %v7086, %v7087
      %v7089 = vrot.slane %v7088, 2
      %v7090 = vadd.f32 %v7088, %v7089
      %v7091 = vrot.slane %v7090, 1
      %v7092 = vadd.f32 %v7090, %v7091
      %v7093 = vsel %vm526, %v6999, 0.0
      %v7094 = vrot.slane %v7093, 4
      %v7095 = vadd.f32 %v7093, %v7094
      %v7096 = vrot.slane %v7095, 2
      %v7097 = vadd.f32 %v7095, %v7096
      %v7098 = vrot.slane %v7097, 1
      %v7099 = vadd.f32 %v7097, %v7098
      %v7100 = vsel %vm526, %v7001, 0.0
      %v7101 = vrot.slane %v7100, 4
      %v7102 = vadd.f32 %v7100, %v7101
      %v7103 = vrot.slane %v7102, 2
      %v7104 = vadd.f32 %v7102, %v7103
      %v7105 = vrot.slane %v7104, 1
      %v7106 = vadd.f32 %v7104, %v7105
      %v7107 = vsel %vm526, %v7003, 0.0
      %v7108 = vrot.slane %v7107, 4
      %v7109 = vadd.f32 %v7107, %v7108
      %v7110 = vrot.slane %v7109, 2
      %v7111 = vadd.f32 %v7109, %v7110
      %v7112 = vrot.slane %v7111, 1
      %v7113 = vadd.f32 %v7111, %v7112
      %v7114 = vsel %vm526, %v7005, 0.0
      %v7115 = vrot.slane %v7114, 4
      %v7116 = vadd.f32 %v7114, %v7115
      %v7117 = vrot.slane %v7116, 2
      %v7118 = vadd.f32 %v7116, %v7117
      %v7119 = vrot.slane %v7118, 1
      %v7120 = vadd.f32 %v7118, %v7119
      %v7121 = vsel %vm526, %v7007, 0.0
      %v7122 = vrot.slane %v7121, 4
      %v7123 = vadd.f32 %v7121, %v7122
      %v7124 = vrot.slane %v7123, 2
      %v7125 = vadd.f32 %v7123, %v7124
      %v7126 = vrot.slane %v7125, 1
      %v7127 = vadd.f32 %v7125, %v7126
      %v7128 = vsel %vm526, %v7009, 0.0
      %v7129 = vrot.slane %v7128, 4
      %v7130 = vadd.f32 %v7128, %v7129
      %v7131 = vrot.slane %v7130, 2
      %v7132 = vadd.f32 %v7130, %v7131
      %v7133 = vrot.slane %v7132, 1
      %v7134 = vadd.f32 %v7132, %v7133
      %v7135 = vsel %vm526, %v7011, 0.0
      %v7136 = vrot.slane %v7135, 4
      %v7137 = vadd.f32 %v7135, %v7136
      %v7138 = vrot.slane %v7137, 2
      %v7139 = vadd.f32 %v7137, %v7138
      %v7140 = vrot.slane %v7139, 1
      %v7141 = vadd.f32 %v7139, %v7140
      %v7142 = vsel %vm526, %v7013, 0.0
      %v7143 = vrot.slane %v7142, 4
      %v7144 = vadd.f32 %v7142, %v7143
      %v7145 = vrot.slane %v7144, 2
      %v7146 = vadd.f32 %v7144, %v7145
      %v7147 = vrot.slane %v7146, 1
      %v7148 = vadd.f32 %v7146, %v7147
      %v7149 = vsel %vm526, %v7015, 0.0
      %v7150 = vrot.slane %v7149, 4
      %v7151 = vadd.f32 %v7149, %v7150
      %v7152 = vrot.slane %v7151, 2
      %v7153 = vadd.f32 %v7151, %v7152
      %v7154 = vrot.slane %v7153, 1
      %v7155 = vadd.f32 %v7153, %v7154
      %v7156 = vsel %vm526, %v7017, 0.0
      %v7157 = vrot.slane %v7156, 4
      %v7158 = vadd.f32 %v7156, %v7157
      %v7159 = vrot.slane %v7158, 2
      %v7160 = vadd.f32 %v7158, %v7159
      %v7161 = vrot.slane %v7160, 1
      %v7162 = vadd.f32 %v7160, %v7161
      %v7163 = vsel %vm526, %v7019, 0.0
      %v7164 = vrot.slane %v7163, 4
      %v7165 = vadd.f32 %v7163, %v7164
      %v7166 = vrot.slane %v7165, 2
      %v7167 = vadd.f32 %v7165, %v7166
      %v7168 = vrot.slane %v7167, 1
      %v7169 = vadd.f32 %v7167, %v7168
      %v7170 = vsel %vm526, %v7021, 0.0
      %v7171 = vrot.slane %v7170, 4
      %v7172 = vadd.f32 %v7170, %v7171
      %v7173 = vrot.slane %v7172, 2
      %v7174 = vadd.f32 %v7172, %v7173
      %v7175 = vrot.slane %v7174, 1
      %v7176 = vadd.f32 %v7174, %v7175
      %v7177 = vsel %vm526, %v7023, 0.0
      %v7178 = vrot.slane %v7177, 4
      %v7179 = vadd.f32 %v7177, %v7178
      %v7180 = vrot.slane %v7179, 2
      %v7181 = vadd.f32 %v7179, %v7180
      %v7182 = vrot.slane %v7181, 1
      %v7183 = vadd.f32 %v7181, %v7182
      %v7184 = vsel %vm526, %v7025, 0.0
      %v7185 = vrot.slane %v7184, 4
      %v7186 = vadd.f32 %v7184, %v7185
      %v7187 = vrot.slane %v7186, 2
      %v7188 = vadd.f32 %v7186, %v7187
      %v7189 = vrot.slane %v7188, 1
      %v7190 = vadd.f32 %v7188, %v7189
      %v7191 = vsel %vm526, %v7027, 0.0
      %v7192 = vrot.slane %v7191, 4
      %v7193 = vadd.f32 %v7191, %v7192
      %v7194 = vrot.slane %v7193, 2
      %v7195 = vadd.f32 %v7193, %v7194
      %v7196 = vrot.slane %v7195, 1
      %v7197 = vadd.f32 %v7195, %v7196
      %v7198 = vsel %vm526, %v7029, 0.0
      %v7199 = vrot.slane %v7198, 4
      %v7200 = vadd.f32 %v7198, %v7199
      %v7201 = vrot.slane %v7200, 2
      %v7202 = vadd.f32 %v7200, %v7201
      %v7203 = vrot.slane %v7202, 1
      %v7204 = vadd.f32 %v7202, %v7203
      %v7205 = vsel %vm526, %v7031, 0.0
      %v7206 = vrot.slane %v7205, 4
      %v7207 = vadd.f32 %v7205, %v7206
      %v7208 = vrot.slane %v7207, 2
      %v7209 = vadd.f32 %v7207, %v7208
      %v7210 = vrot.slane %v7209, 1
      %v7211 = vadd.f32 %v7209, %v7210
      %v7212 = vsel %vm526, %v7033, 0.0
      %v7213 = vrot.slane %v7212, 4
      %v7214 = vadd.f32 %v7212, %v7213
      %v7215 = vrot.slane %v7214, 2
      %v7216 = vadd.f32 %v7214, %v7215
      %v7217 = vrot.slane %v7216, 1
      %v7218 = vadd.f32 %v7216, %v7217
      %v7219 = vsel %vm526, %v7035, 0.0
      %v7220 = vrot.slane %v7219, 4
      %v7221 = vadd.f32 %v7219, %v7220
      %v7222 = vrot.slane %v7221, 2
      %v7223 = vadd.f32 %v7221, %v7222
      %v7224 = vrot.slane %v7223, 1
      %v7225 = vadd.f32 %v7223, %v7224
      %v7226 = vsel %vm526, %v7037, 0.0
      %v7227 = vrot.slane %v7226, 4
      %v7228 = vadd.f32 %v7226, %v7227
      %v7229 = vrot.slane %v7228, 2
      %v7230 = vadd.f32 %v7228, %v7229
      %v7231 = vrot.slane %v7230, 1
      %v7232 = vadd.f32 %v7230, %v7231
      %v7233 = vsel %vm526, %v7039, 0.0
      %v7234 = vrot.slane %v7233, 4
      %v7235 = vadd.f32 %v7233, %v7234
      %v7236 = vrot.slane %v7235, 2
      %v7237 = vadd.f32 %v7235, %v7236
      %v7238 = vrot.slane %v7237, 1
      %v7239 = vadd.f32 %v7237, %v7238
      %v7240 = vsel %vm526, %v7041, 0.0
      %v7241 = vrot.slane %v7240, 4
      %v7242 = vadd.f32 %v7240, %v7241
      %v7243 = vrot.slane %v7242, 2
      %v7244 = vadd.f32 %v7242, %v7243
      %v7245 = vrot.slane %v7244, 1
      %v7246 = vadd.f32 %v7244, %v7245
      %v7247 = vsel %vm526, %v7043, 0.0
      %v7248 = vrot.slane %v7247, 4
      %v7249 = vadd.f32 %v7247, %v7248
      %v7250 = vrot.slane %v7249, 2
      %v7251 = vadd.f32 %v7249, %v7250
      %v7252 = vrot.slane %v7251, 1
      %v7253 = vadd.f32 %v7251, %v7252
      %v7254 = vsel %vm526, %v7045, 0.0
      %v7255 = vrot.slane %v7254, 4
      %v7256 = vadd.f32 %v7254, %v7255
      %v7257 = vrot.slane %v7256, 2
      %v7258 = vadd.f32 %v7256, %v7257
      %v7259 = vrot.slane %v7258, 1
      %v7260 = vadd.f32 %v7258, %v7259
      %v7261 = vsel %vm526, %v7047, 0.0
      %v7262 = vrot.slane %v7261, 4
      %v7263 = vadd.f32 %v7261, %v7262
      %v7264 = vrot.slane %v7263, 2
      %v7265 = vadd.f32 %v7263, %v7264
      %v7266 = vrot.slane %v7265, 1
      %v7267 = vadd.f32 %v7265, %v7266
      %v7268 = vsel %vm526, %v7049, 0.0
      %v7269 = vrot.slane %v7268, 4
      %v7270 = vadd.f32 %v7268, %v7269
      %v7271 = vrot.slane %v7270, 2
      %v7272 = vadd.f32 %v7270, %v7271
      %v7273 = vrot.slane %v7272, 1
      %v7274 = vadd.f32 %v7272, %v7273
      %v7275 = vsel %vm526, %v6988, 0.0
      %v7276 = vrot.slane %v7275, 4
      %v7277 = vadd.f32 %v7275, %v7276
      %v7278 = vrot.slane %v7277, 2
      %v7279 = vadd.f32 %v7277, %v7278
      %v7280 = vrot.slane %v7279, 1
      %v7281 = vadd.f32 %v7279, %v7280
      %v7282 = vsel %vm526, %v6990, 0.0
      %v7283 = vrot.slane %v7282, 4
      %v7284 = vadd.f32 %v7282, %v7283
      %v7285 = vrot.slane %v7284, 2
      %v7286 = vadd.f32 %v7284, %v7285
      %v7287 = vrot.slane %v7286, 1
      %v7288 = vadd.f32 %v7286, %v7287
      %v7289 = vsel %vm526, %v6992, 0.0
      %v7290 = vrot.slane %v7289, 4
      %v7291 = vadd.f32 %v7289, %v7290
      %v7292 = vrot.slane %v7291, 2
      %v7293 = vadd.f32 %v7291, %v7292
      %v7294 = vrot.slane %v7293, 1
      %v7295 = vadd.f32 %v7293, %v7294
      %v7296 = vsel %vm526, %v6994, 0.0
      %v7297 = vrot.slane %v7296, 4
      %v7298 = vadd.f32 %v7296, %v7297
      %v7299 = vrot.slane %v7298, 2
      %v7300 = vadd.f32 %v7298, %v7299
      %v7301 = vrot.slane %v7300, 1
      %v7302 = vadd.f32 %v7300, %v7301
      %v7303 = vsel %vm526, %v6996, 0.0
      %v7304 = vrot.slane %v7303, 4
      %v7305 = vadd.f32 %v7303, %v7304
      %v7306 = vrot.slane %v7305, 2
      %v7307 = vadd.f32 %v7305, %v7306
      %v7308 = vrot.slane %v7307, 1
      %v7309 = vadd.f32 %v7307, %v7308
      %v7310 = vsel %vm526, %v6998, 0.0
      %v7311 = vrot.slane %v7310, 4
      %v7312 = vadd.f32 %v7310, %v7311
      %v7313 = vrot.slane %v7312, 2
      %v7314 = vadd.f32 %v7312, %v7313
      %v7315 = vrot.slane %v7314, 1
      %v7316 = vadd.f32 %v7314, %v7315
      %v7317 = vsel %vm526, %v7000, 0.0
      %v7318 = vrot.slane %v7317, 4
      %v7319 = vadd.f32 %v7317, %v7318
      %v7320 = vrot.slane %v7319, 2
      %v7321 = vadd.f32 %v7319, %v7320
      %v7322 = vrot.slane %v7321, 1
      %v7323 = vadd.f32 %v7321, %v7322
      %v7324 = vsel %vm526, %v7002, 0.0
      %v7325 = vrot.slane %v7324, 4
      %v7326 = vadd.f32 %v7324, %v7325
      %v7327 = vrot.slane %v7326, 2
      %v7328 = vadd.f32 %v7326, %v7327
      %v7329 = vrot.slane %v7328, 1
      %v7330 = vadd.f32 %v7328, %v7329
      %v7331 = vsel %vm526, %v7004, 0.0
      %v7332 = vrot.slane %v7331, 4
      %v7333 = vadd.f32 %v7331, %v7332
      %v7334 = vrot.slane %v7333, 2
      %v7335 = vadd.f32 %v7333, %v7334
      %v7336 = vrot.slane %v7335, 1
      %v7337 = vadd.f32 %v7335, %v7336
      %v7338 = vsel %vm526, %v7006, 0.0
      %v7339 = vrot.slane %v7338, 4
      %v7340 = vadd.f32 %v7338, %v7339
      %v7341 = vrot.slane %v7340, 2
      %v7342 = vadd.f32 %v7340, %v7341
      %v7343 = vrot.slane %v7342, 1
      %v7344 = vadd.f32 %v7342, %v7343
      %v7345 = vsel %vm526, %v7008, 0.0
      %v7346 = vrot.slane %v7345, 4
      %v7347 = vadd.f32 %v7345, %v7346
      %v7348 = vrot.slane %v7347, 2
      %v7349 = vadd.f32 %v7347, %v7348
      %v7350 = vrot.slane %v7349, 1
      %v7351 = vadd.f32 %v7349, %v7350
      %v7352 = vsel %vm526, %v7010, 0.0
      %v7353 = vrot.slane %v7352, 4
      %v7354 = vadd.f32 %v7352, %v7353
      %v7355 = vrot.slane %v7354, 2
      %v7356 = vadd.f32 %v7354, %v7355
      %v7357 = vrot.slane %v7356, 1
      %v7358 = vadd.f32 %v7356, %v7357
      %v7359 = vsel %vm526, %v7012, 0.0
      %v7360 = vrot.slane %v7359, 4
      %v7361 = vadd.f32 %v7359, %v7360
      %v7362 = vrot.slane %v7361, 2
      %v7363 = vadd.f32 %v7361, %v7362
      %v7364 = vrot.slane %v7363, 1
      %v7365 = vadd.f32 %v7363, %v7364
      %v7366 = vsel %vm526, %v7014, 0.0
      %v7367 = vrot.slane %v7366, 4
      %v7368 = vadd.f32 %v7366, %v7367
      %v7369 = vrot.slane %v7368, 2
      %v7370 = vadd.f32 %v7368, %v7369
      %v7371 = vrot.slane %v7370, 1
      %v7372 = vadd.f32 %v7370, %v7371
      %v7373 = vsel %vm526, %v7016, 0.0
      %v7374 = vrot.slane %v7373, 4
      %v7375 = vadd.f32 %v7373, %v7374
      %v7376 = vrot.slane %v7375, 2
      %v7377 = vadd.f32 %v7375, %v7376
      %v7378 = vrot.slane %v7377, 1
      %v7379 = vadd.f32 %v7377, %v7378
      %v7380 = vsel %vm526, %v7018, 0.0
      %v7381 = vrot.slane %v7380, 4
      %v7382 = vadd.f32 %v7380, %v7381
      %v7383 = vrot.slane %v7382, 2
      %v7384 = vadd.f32 %v7382, %v7383
      %v7385 = vrot.slane %v7384, 1
      %v7386 = vadd.f32 %v7384, %v7385
      %v7387 = vsel %vm526, %v7020, 0.0
      %v7388 = vrot.slane %v7387, 4
      %v7389 = vadd.f32 %v7387, %v7388
      %v7390 = vrot.slane %v7389, 2
      %v7391 = vadd.f32 %v7389, %v7390
      %v7392 = vrot.slane %v7391, 1
      %v7393 = vadd.f32 %v7391, %v7392
      %v7394 = vsel %vm526, %v7022, 0.0
      %v7395 = vrot.slane %v7394, 4
      %v7396 = vadd.f32 %v7394, %v7395
      %v7397 = vrot.slane %v7396, 2
      %v7398 = vadd.f32 %v7396, %v7397
      %v7399 = vrot.slane %v7398, 1
      %v7400 = vadd.f32 %v7398, %v7399
      %v7401 = vsel %vm526, %v7024, 0.0
      %v7402 = vrot.slane %v7401, 4
      %v7403 = vadd.f32 %v7401, %v7402
      %v7404 = vrot.slane %v7403, 2
      %v7405 = vadd.f32 %v7403, %v7404
      %v7406 = vrot.slane %v7405, 1
      %v7407 = vadd.f32 %v7405, %v7406
      %v7408 = vsel %vm526, %v7026, 0.0
      %v7409 = vrot.slane %v7408, 4
      %v7410 = vadd.f32 %v7408, %v7409
      %v7411 = vrot.slane %v7410, 2
      %v7412 = vadd.f32 %v7410, %v7411
      %v7413 = vrot.slane %v7412, 1
      %v7414 = vadd.f32 %v7412, %v7413
      %v7415 = vsel %vm526, %v7028, 0.0
      %v7416 = vrot.slane %v7415, 4
      %v7417 = vadd.f32 %v7415, %v7416
      %v7418 = vrot.slane %v7417, 2
      %v7419 = vadd.f32 %v7417, %v7418
      %v7420 = vrot.slane %v7419, 1
      %v7421 = vadd.f32 %v7419, %v7420
      %v7422 = vsel %vm526, %v7030, 0.0
      %v7423 = vrot.slane %v7422, 4
      %v7424 = vadd.f32 %v7422, %v7423
      %v7425 = vrot.slane %v7424, 2
      %v7426 = vadd.f32 %v7424, %v7425
      %v7427 = vrot.slane %v7426, 1
      %v7428 = vadd.f32 %v7426, %v7427
      %v7429 = vsel %vm526, %v7032, 0.0
      %v7430 = vrot.slane %v7429, 4
      %v7431 = vadd.f32 %v7429, %v7430
      %v7432 = vrot.slane %v7431, 2
      %v7433 = vadd.f32 %v7431, %v7432
      %v7434 = vrot.slane %v7433, 1
      %v7435 = vadd.f32 %v7433, %v7434
      %v7436 = vsel %vm526, %v7034, 0.0
      %v7437 = vrot.slane %v7436, 4
      %v7438 = vadd.f32 %v7436, %v7437
      %v7439 = vrot.slane %v7438, 2
      %v7440 = vadd.f32 %v7438, %v7439
      %v7441 = vrot.slane %v7440, 1
      %v7442 = vadd.f32 %v7440, %v7441
      %v7443 = vsel %vm526, %v7036, 0.0
      %v7444 = vrot.slane %v7443, 4
      %v7445 = vadd.f32 %v7443, %v7444
      %v7446 = vrot.slane %v7445, 2
      %v7447 = vadd.f32 %v7445, %v7446
      %v7448 = vrot.slane %v7447, 1
      %v7449 = vadd.f32 %v7447, %v7448
      %v7450 = vsel %vm526, %v7038, 0.0
      %v7451 = vrot.slane %v7450, 4
      %v7452 = vadd.f32 %v7450, %v7451
      %v7453 = vrot.slane %v7452, 2
      %v7454 = vadd.f32 %v7452, %v7453
      %v7455 = vrot.slane %v7454, 1
      %v7456 = vadd.f32 %v7454, %v7455
      %v7457 = vsel %vm526, %v7040, 0.0
      %v7458 = vrot.slane %v7457, 4
      %v7459 = vadd.f32 %v7457, %v7458
      %v7460 = vrot.slane %v7459, 2
      %v7461 = vadd.f32 %v7459, %v7460
      %v7462 = vrot.slane %v7461, 1
      %v7463 = vadd.f32 %v7461, %v7462
      %v7464 = vsel %vm526, %v7042, 0.0
      %v7465 = vrot.slane %v7464, 4
      %v7466 = vadd.f32 %v7464, %v7465
      %v7467 = vrot.slane %v7466, 2
      %v7468 = vadd.f32 %v7466, %v7467
      %v7469 = vrot.slane %v7468, 1
      %v7470 = vadd.f32 %v7468, %v7469
      %v7471 = vsel %vm526, %v7044, 0.0
      %v7472 = vrot.slane %v7471, 4
      %v7473 = vadd.f32 %v7471, %v7472
      %v7474 = vrot.slane %v7473, 2
      %v7475 = vadd.f32 %v7473, %v7474
      %v7476 = vrot.slane %v7475, 1
      %v7477 = vadd.f32 %v7475, %v7476
      %v7478 = vsel %vm526, %v7046, 0.0
      %v7479 = vrot.slane %v7478, 4
      %v7480 = vadd.f32 %v7478, %v7479
      %v7481 = vrot.slane %v7480, 2
      %v7482 = vadd.f32 %v7480, %v7481
      %v7483 = vrot.slane %v7482, 1
      %v7484 = vadd.f32 %v7482, %v7483
      %v7485 = vsel %vm526, %v7048, 0.0
      %v7486 = vrot.slane %v7485, 4
      %v7487 = vadd.f32 %v7485, %v7486
      %v7488 = vrot.slane %v7487, 2
      %v7489 = vadd.f32 %v7487, %v7488
      %v7490 = vrot.slane %v7489, 1
      %v7491 = vadd.f32 %v7489, %v7490
      %v7492 = vsel %vm526, %v7050, 0.0
      %v7493 = vrot.slane %v7492, 4
      %v7494 = vadd.f32 %v7492, %v7493
      %v7495 = vrot.slane %v7494, 2
      %v7496 = vadd.f32 %v7494, %v7495
      %v7497 = vrot.slane %v7496, 1
      %v7498 = vadd.f32 %v7496, %v7497
      %vm7531 = vcmask 1041409
      %v7532 = vsel %vm7531, %v7064, %v7057
      %vm7533 = vcmask 1042434
      %v7534 = vsel %vm7533, %v7071, %v7532
      %vm7535 = vcmask 1043459
      %v7536 = vsel %vm7535, %v7078, %v7534
      %vm7537 = vcmask 1044484
      %v7538 = vsel %vm7537, %v7085, %v7536
      %vm7539 = vcmask 1045509
      %v7540 = vsel %vm7539, %v7092, %v7538
      %vm7541 = vcmask 1046534
      %v7542 = vsel %vm7541, %v7099, %v7540
      %vm7543 = vcmask 1047559
      %v7544 = vsel %vm7543, %v7106, %v7542
      %v7545 = vsel %vm7531, %v7120, %v7113
      %v7546 = vsel %vm7533, %v7127, %v7545
      %v7547 = vsel %vm7535, %v7134, %v7546
      %v7548 = vsel %vm7537, %v7141, %v7547
      %v7549 = vsel %vm7539, %v7148, %v7548
      %v7550 = vsel %vm7541, %v7155, %v7549
      %v7551 = vsel %vm7543, %v7162, %v7550
      %v7552 = vsel %vm7531, %v7176, %v7169
      %v7553 = vsel %vm7533, %v7183, %v7552
      %v7554 = vsel %vm7535, %v7190, %v7553
      %v7555 = vsel %vm7537, %v7197, %v7554
      %v7556 = vsel %vm7539, %v7204, %v7555
      %v7557 = vsel %vm7541, %v7211, %v7556
      %v7558 = vsel %vm7543, %v7218, %v7557
      %v7559 = vsel %vm7531, %v7232, %v7225
      %v7560 = vsel %vm7533, %v7239, %v7559
      %v7561 = vsel %vm7535, %v7246, %v7560
      %v7562 = vsel %vm7537, %v7253, %v7561
      %v7563 = vsel %vm7539, %v7260, %v7562
      %v7564 = vsel %vm7541, %v7267, %v7563
      %v7565 = vsel %vm7543, %v7274, %v7564
      %v7602 = vsel %vm7531, %v7288, %v7281
      %v7603 = vsel %vm7533, %v7295, %v7602
      %v7604 = vsel %vm7535, %v7302, %v7603
      %v7605 = vsel %vm7537, %v7309, %v7604
      %v7606 = vsel %vm7539, %v7316, %v7605
      %v7607 = vsel %vm7541, %v7323, %v7606
      %v7608 = vsel %vm7543, %v7330, %v7607
      %v7609 = vsel %vm7531, %v7344, %v7337
      %v7610 = vsel %vm7533, %v7351, %v7609
      %v7611 = vsel %vm7535, %v7358, %v7610
      %v7612 = vsel %vm7537, %v7365, %v7611
      %v7613 = vsel %vm7539, %v7372, %v7612
      %v7614 = vsel %vm7541, %v7379, %v7613
      %v7615 = vsel %vm7543, %v7386, %v7614
      %v7616 = vsel %vm7531, %v7400, %v7393
      %v7617 = vsel %vm7533, %v7407, %v7616
      %v7618 = vsel %vm7535, %v7414, %v7617
      %v7619 = vsel %vm7537, %v7421, %v7618
      %v7620 = vsel %vm7539, %v7428, %v7619
      %v7621 = vsel %vm7541, %v7435, %v7620
      %v7622 = vsel %vm7543, %v7442, %v7621
      %v7623 = vsel %vm7531, %v7456, %v7449
      %v7624 = vsel %vm7533, %v7463, %v7623
      %v7625 = vsel %vm7535, %v7470, %v7624
      %v7626 = vsel %vm7537, %v7477, %v7625
      %v7627 = vsel %vm7539, %v7484, %v7626
      %v7628 = vsel %vm7541, %v7491, %v7627
      %v7629 = vsel %vm7543, %v7498, %v7628
      %7630 = vrot.lane.b32.xlu0 %v7608, 32
      %v7631 = vpop.permute.xlu0 %7630
      %7632 = vrot.lane.b32.xlu0 %v7615, 32
      %v7633 = vpop.permute.xlu0 %7632
      %7634 = vrot.lane.b32.xlu0 %v7622, 32
      %v7635 = vpop.permute.xlu0 %7634
      %7636 = vrot.lane.b32.xlu0 %v7629, 32
      %v7637 = vpop.permute.xlu0 %7636
      %v7642 = vsel %vm526, %v7544, %v7631
      %v7643 = vsel %vm526, %v7551, %v7633
      %v7644 = vsel %vm526, %v7558, %v7635
      %v7645 = vsel %vm526, %v7565, %v7637
      %v7646 = vpack.c.bf16 %v7643, %v7642
      %v7647 = vpack.c.bf16 %v7645, %v7644
      %v7648 = vlaneseq
      %v7649 = vshrl.u32 %v7648, 7
      %v7650 = vsub.s32 0, %v7649
      %v7651 = vrot.slane %v288, %v7650
      %v7660 = vunpack.c.l.b16 %v272
      %v7661 = vunpack.c.l.b16 %v273
      %v7662 = vunpack.c.l.b16 %v274
      %v7663 = vunpack.c.l.b16 %v275
      %v7664 = vunpack.c.l.b16 %v276
      %v7665 = vunpack.c.l.b16 %v277
      %v7666 = vunpack.c.l.b16 %v278
      %v7667 = vunpack.c.l.b16 %v279
      %v7668 = vpack.c.b16 %v7661, %v7660
      %v7669 = vpack.c.b16 %v7663, %v7662
      %v7670 = vpack.c.b16 %v7665, %v7664
      %v7671 = vpack.c.b16 %v7667, %v7666
      %vm7676 = vcmask 523264
      %v7678 = vsel %vm7676, %v7646, 0
      %v7681 = vsel %vm7676, %v7647, 0
      %7683 = vmatprep.subr.bf16.mxu0 0
      %7684 = vmatpush1.bf16.msra.mxu0 %v7668
      %7685 = vmatprep.subr.bf16.mxu0 0
      %7686 = vmatpush1.bf16.msra.mxu0 %v7669
      %7687 = vmatprep.subr.bf16.mxu0 0
      %7688 = vmatpush1.bf16.msra.mxu0 %v7670
      %7689 = vmatprep.subr.bf16.mxu0 0
      %7690 = vmatpush1.bf16.msra.mxu0 %v7671
      %7691 = vmatprep.subr.bf16.mxu0 0
      %7692 = vmatpush1.bf16.msra.mxu0 0
      %7693 = vmatprep.subr.bf16.mxu0 0
      %7694 = vmatpush1.bf16.msra.mxu0 0
      %7695 = vmatprep.subr.bf16.mxu0 0
      %7696 = vmatpush1.bf16.msra.mxu0 0
      %7697 = vmatprep.subr.bf16.mxu0 0
      %7698 = vmatpush1.bf16.msra.mxu0 0
      %7699 = vmatprep.subr.bf16.mxu0 0
      %7700 = vmatpush1.bf16.msra.mxu0 0
      %7701 = vmatprep.subr.bf16.mxu0 0
      %7702 = vmatpush1.bf16.msra.mxu0 0
      %7703 = vmatprep.subr.bf16.mxu0 0
      %7704 = vmatpush1.bf16.msra.mxu0 0
      %7705 = vmatprep.subr.bf16.mxu0 0
      %7706 = vmatpush1.bf16.msra.mxu0 0
      %7707 = vmatprep.subr.bf16.mxu0 0
      %7708 = vmatpush1.bf16.msra.mxu0 0
      %7709 = vmatprep.subr.bf16.mxu0 0
      %7710 = vmatpush1.bf16.msra.mxu0 0
      %7711 = vmatprep.subr.bf16.mxu0 0
      %7712 = vmatpush1.bf16.msra.mxu0 0
      %7713 = vmatprep.subr.bf16.mxu0 0
      %7714 = vmatpush1.bf16.msra.mxu0 0
      %7715 = vmatprep.mubr.bf16.mxu0 0
      %7716 = vmatmul.mubr.bf16.gmra.mrb[0].mxu0 %v7678
      %v7717 = vpop.f32.mrb[0].mxu0
      %v7718 = vadd.f32 %v7651, %v7717
      %v7719 = vpop.f32.mrb[0].mxu0
      %v7720 = vpop.f32.mrb[0].mxu0
      %v7721 = vadd.f32 %v7651, %v7720
      %v7722 = vpop.f32.mrb[0].mxu0
      %7723 = vmatprep.mubr.bf16.mxu0 0
      %7724 = vmatmul.mubr.bf16.gmra.mrb[0].mxu0 %v7681
      %v7725 = vpop.f32.mrb[0].mxu0
      %v7726 = vadd.f32 %v7651, %v7725
      %v7727 = vpop.f32.mrb[0].mxu0
      %v7728 = vpop.f32.mrb[0].mxu0
      %v7729 = vadd.f32 %v7651, %v7728
      %v7730 = vpop.f32.mrb[0].mxu0
      %7731 = vdwg.mxu0
      %v7732 = vmax.f32 %v7718, 0.0
      %v7733 = vmax.f32 %v7721, 0.0
      %v7734 = vmax.f32 %v7726, 0.0
      %v7735 = vmax.f32 %v7729, 0.0
      %v7736 = vpack.c.bf16 %v7733, %v7732
      %v7737 = vpack.c.bf16 %v7735, %v7734
      %v7738 = vlaneseq
      %v7739 = vshrl.u32 %v7738, 7
      %v7740 = vsub.s32 0, %v7739
      %v7741 = vrot.slane %v289, %v7740
      %v7746 = vunpack.c.l.b16 %v280
      %v7747 = vunpack.c.l.b16 %v281
      %v7748 = vunpack.c.l.b16 %v282
      %v7749 = vunpack.c.l.b16 %v283
      %v7750 = vpack.c.b16 %v7747, %v7746
      %v7751 = vpack.c.b16 %v7749, %v7748
      %v7755 = vsel %vm526, %v7736, 0
      %v7758 = vsel %vm526, %v7737, 0
      %7760 = vmatprep.subr.bf16.mxu0 0
      %7761 = vmatpush1.bf16.msra.mxu0 %v7750
      %7762 = vmatprep.subr.bf16.mxu0 0
      %7763 = vmatpush1.bf16.msra.mxu0 %v7751
      %7764 = vmatprep.subr.bf16.mxu0 0
      %7765 = vmatpush1.bf16.msra.mxu0 0
      %7766 = vmatprep.subr.bf16.mxu0 0
      %7767 = vmatpush1.bf16.msra.mxu0 0
      %7768 = vmatprep.subr.bf16.mxu0 0
      %7769 = vmatpush1.bf16.msra.mxu0 0
      %7770 = vmatprep.subr.bf16.mxu0 0
      %7771 = vmatpush1.bf16.msra.mxu0 0
      %7772 = vmatprep.subr.bf16.mxu0 0
      %7773 = vmatpush1.bf16.msra.mxu0 0
      %7774 = vmatprep.subr.bf16.mxu0 0
      %7775 = vmatpush1.bf16.msra.mxu0 0
      %7776 = vmatprep.subr.bf16.mxu0 0
      %7777 = vmatpush1.bf16.msra.mxu0 0
      %7778 = vmatprep.subr.bf16.mxu0 0
      %7779 = vmatpush1.bf16.msra.mxu0 0
      %7780 = vmatprep.subr.bf16.mxu0 0
      %7781 = vmatpush1.bf16.msra.mxu0 0
      %7782 = vmatprep.subr.bf16.mxu0 0
      %7783 = vmatpush1.bf16.msra.mxu0 0
      %7784 = vmatprep.subr.bf16.mxu0 0
      %7785 = vmatpush1.bf16.msra.mxu0 0
      %7786 = vmatprep.subr.bf16.mxu0 0
      %7787 = vmatpush1.bf16.msra.mxu0 0
      %7788 = vmatprep.subr.bf16.mxu0 0
      %7789 = vmatpush1.bf16.msra.mxu0 0
      %7790 = vmatprep.subr.bf16.mxu0 0
      %7791 = vmatpush1.bf16.msra.mxu0 0
      %7792 = vmatprep.mubr.bf16.mxu0 0
      %7793 = vmatmul.mubr.bf16.gmra.mrb[0].mxu0 %v7755
      %v7794 = vpop.f32.mrb[0].mxu0
      %v7795 = vadd.f32 %v7741, %v7794
      %v7796 = vpop.f32.mrb[0].mxu0
      %v7797 = vpop.f32.mrb[0].mxu0
      %v7798 = vadd.f32 %v7741, %v7797
      %v7799 = vpop.f32.mrb[0].mxu0
      %7800 = vmatprep.mubr.bf16.mxu0 0
      %7801 = vmatmul.mubr.bf16.gmra.mrb[0].mxu0 %v7758
      %v7802 = vpop.f32.mrb[0].mxu0
      %v7803 = vadd.f32 %v7741, %v7802
      %v7804 = vpop.f32.mrb[0].mxu0
      %v7805 = vpop.f32.mrb[0].mxu0
      %v7806 = vadd.f32 %v7741, %v7805
      %v7807 = vpop.f32.mrb[0].mxu0
      %7808 = vdwg.mxu0
      %v7809 = vmax.f32 %v7795, 0.0
      %v7810 = vmax.f32 %v7798, 0.0
      %v7811 = vmax.f32 %v7803, 0.0
      %v7812 = vmax.f32 %v7806, 0.0
      %v7813 = vpack.c.bf16 %v7810, %v7809
      %v7814 = vpack.c.bf16 %v7812, %v7811
      %v7815 = vld [vmem:[%s4] sm:$0xf]
      %v7816 = vld [vmem:[%s4 + $0x4] sm:$0xf]
      %v7817 = vld [vmem:[%s4 + $0x8] sm:$0xf]
      %v7818 = vld [vmem:[%s4 + $0xc] sm:$0xf]
      %v7819 = vld [vmem:[%s5] sm:$0x1]
      %v7821 = vlaneseq
      %v7822 = vshrl.u32 %v7821, 7
      %v7823 = vsub.s32 0, %v7822
      %v7824 = vrot.slane %v7819, %v7823
      %v7830 = vunpack.c.l.b16 %v7815
      %v7831 = vunpack.c.l.b16 %v7816
      %v7832 = vunpack.c.l.b16 %v7817
      %v7833 = vunpack.c.l.b16 %v7818
      %v7834 = vpack.c.b16 %v7831, %v7830
      %v7835 = vpack.c.b16 %v7833, %v7832
      %v7839 = vsel %vm526, %v7813, 0
      %v7842 = vsel %vm526, %v7814, 0
      %7844 = vmatprep.subr.bf16.mxu0 0
      %7845 = vmatpush1.bf16.msra.mxu0 %v7834
      %7846 = vmatprep.subr.bf16.mxu0 0
      %7847 = vmatpush1.bf16.msra.mxu0 %v7835
      %7848 = vmatprep.subr.bf16.mxu0 0
      %7849 = vmatpush1.bf16.msra.mxu0 0
      %7850 = vmatprep.subr.bf16.mxu0 0
      %7851 = vmatpush1.bf16.msra.mxu0 0
      %7852 = vmatprep.subr.bf16.mxu0 0
      %7853 = vmatpush1.bf16.msra.mxu0 0
      %7854 = vmatprep.subr.bf16.mxu0 0
      %7855 = vmatpush1.bf16.msra.mxu0 0
      %7856 = vmatprep.subr.bf16.mxu0 0
      %7857 = vmatpush1.bf16.msra.mxu0 0
      %7858 = vmatprep.subr.bf16.mxu0 0
      %7859 = vmatpush1.bf16.msra.mxu0 0
      %7860 = vmatprep.subr.bf16.mxu0 0
      %7861 = vmatpush1.bf16.msra.mxu0 0
      %7862 = vmatprep.subr.bf16.mxu0 0
      %7863 = vmatpush1.bf16.msra.mxu0 0
      %7864 = vmatprep.subr.bf16.mxu0 0
      %7865 = vmatpush1.bf16.msra.mxu0 0
      %7866 = vmatprep.subr.bf16.mxu0 0
      %7867 = vmatpush1.bf16.msra.mxu0 0
      %7868 = vmatprep.subr.bf16.mxu0 0
      %7869 = vmatpush1.bf16.msra.mxu0 0
      %7870 = vmatprep.subr.bf16.mxu0 0
      %7871 = vmatpush1.bf16.msra.mxu0 0
      %7872 = vmatprep.subr.bf16.mxu0 0
      %7873 = vmatpush1.bf16.msra.mxu0 0
      %7874 = vmatprep.subr.bf16.mxu0 0
      %7875 = vmatpush1.bf16.msra.mxu0 0
      %7876 = vmatprep.mubr.bf16.mxu0 0
      %7877 = vmatmul.mubr.bf16.gmra.mrb[0].mxu0 %v7839
      %v7878 = vpop.f32.mrb[0].mxu0
      %v7879 = vadd.f32 %v7824, %v7878
      %v7880 = vpop.f32.mrb[0].mxu0
      %v7881 = vpop.f32.mrb[0].mxu0
      %v7882 = vadd.f32 %v7824, %v7881
      %v7883 = vpop.f32.mrb[0].mxu0
      %7884 = vmatprep.mubr.bf16.mxu0 0
      %7885 = vmatmul.mubr.bf16.gmra.mrb[0].mxu0 %v7842
      %v7886 = vpop.f32.mrb[0].mxu0
      %v7887 = vadd.f32 %v7824, %v7886
      %v7888 = vpop.f32.mrb[0].mxu0
      %v7889 = vpop.f32.mrb[0].mxu0
      %v7890 = vadd.f32 %v7824, %v7889
      %v7891 = vpop.f32.mrb[0].mxu0
      %7892 = vdwg.mxu0
      %7893 = vst [vmem:[%s253] sm:$0xff] %v7879
      %7894 = vst [vmem:[%s253 + $0x8] sm:$0xff] %v7882
      %7895 = vst [vmem:[%s253 + $0x10] sm:$0xff] %v7887
      %7896 = vst [vmem:[%s253 + $0x18] sm:$0xff] %v7890
      %s7897 = smul.u32 4, %s17
      %p7898 = scmp.lt.s32.totalorder %s7897, 7
      %s7899 = scalar_select %p7898, %s7897, 7
      %s7900 = smul.addr %s7899, 8
      %s7901 = scalar_lea.vmem %s6, %s7900
      // Predicated region
      $region45: #{decomposable_attention_forward.1} parent=43 // pred_check
        %p7902 = pneg %p166
      $region46: #{decomposable_attention_forward.1} parent=43 // pred_check_branch
        %7904 = sbr.rel (%p7902) target = $region48
      $region47: #{decomposable_attention_forward.1} parent=43 // pred_region
        %s7905 = smul.u32 4, %s17
      $region48: #{decomposable_attention_forward.1} parent=43 // pred_fallthru
        _
    $region44: #{decomposable_attention_forward.1} parent=5 // pred_fallthru
      _
    %p7906 = scmp.le.s32.totalorder 2, %s12
    // Predicated region
    $region49: #{decomposable_attention_forward.1} parent=5 // pred_check
      %p7907 = pneg %p7906
    $region50: #{decomposable_attention_forward.1} parent=5 // pred_check_branch
      %7909 = sbr.rel (%p7907) target = $region52
    $region51: #{decomposable_attention_forward.1} parent=5 // pred_region
      %s7910 = ssub.s32 %s12, 2
      // Predicated region
      $region53: #{decomposable_attention_forward.1} parent=51 // pred_check
        %p7911 = pneg %p172
      $region54: #{decomposable_attention_forward.1} parent=51 // pred_check_branch
        %7913 = sbr.rel (%p7911) target = $region56
      $region55: #{decomposable_attention_forward.1} parent=51 // pred_region
        %s7914 = smul.u32 4, %s18
        %p7915 = scmp.lt.s32.totalorder %s7914, 7
        %s7916 = scalar_select %p7915, %s7914, 7
        %s7917 = smul.addr %s7916, 8
        %s7918 = scalar_lea.vmem %s6, %s7917
      $region56: #{decomposable_attention_forward.1} parent=51 // pred_fallthru
        _
    $region52: #{decomposable_attention_forward.1} parent=5 // pred_fallthru
      _
  $region6: #{decomposable_attention_forward.1} parent=0 // loop_footer
    %s16 = sadd.s32 1, %s12
  $region7: #{decomposable_attention_forward.1} parent=0 // loop_footer_branch
    %11 = sbr.rel target = $region3
  $region8: #{decomposable_attention_forward.1} parent=0 // loop_exit
    _

</llo_original>
